<compile_context>
chip_gen: v6e
topology: v6e:2x2x1
jax: 0.10.0
libtpu: 0.0.40
codegen_flags: <defaults>
</compile_context>

<pallas_src>
import functools
import math

import jax
import jax.numpy as jnp
from jax.experimental import pallas as pl
from jax.experimental.pallas import tpu as pltpu

D = 8
W = 256
INPUT_CH = 128
OUTPUT_CH = 3
SKIPS = (4,)                                   # concat happens after these layers
SKIP_CONSUMERS = tuple(s + 1 for s in SKIPS)   # layers whose input is cat([feat, h])
OUT_PAD = 128                                  # lane-padded width of the last matmul
DEFAULT_TILE_N = 2048                          # max rows per grid step


def albedo_kernel(feat_ref, w_in_ref, w_hid_ref, b_ref, w_last_ref, b_last_ref,
                  out_ref):
    """Fused MLP: 8 x (bf16 matmul + f32 bias + ReLU), skip via split matmul,
    final matmul + sigmoid, direct (tile_n, 3) f32 store."""
    feat = feat_ref[...].astype(jnp.bfloat16)        # real f32 -> bf16 cast (in-kernel)
    h = feat
    hid = 0
    for i in range(D):
        if i in SKIP_CONSUMERS:
            # relu(cat([feat, h]) @ W + b) == relu(feat @ W[:128] + h @ W[128:] + b)
            acc = jnp.dot(feat, w_in_ref[1], preferred_element_type=jnp.float32)
            acc = acc + jnp.dot(h, w_hid_ref[hid], preferred_element_type=jnp.float32)
            hid += 1
        elif i == 0:
            acc = jnp.dot(feat, w_in_ref[0], preferred_element_type=jnp.float32)
        else:
            acc = jnp.dot(h, w_hid_ref[hid], preferred_element_type=jnp.float32)
            hid += 1
        acc = acc + b_ref[i]                          # (1, W) f32 bias
        h = jnp.maximum(acc, 0.0).astype(jnp.bfloat16)    # ReLU on f32, back to bf16

    logits = jnp.dot(h, w_last_ref[...], preferred_element_type=jnp.float32)
    logits = logits + b_last_ref[...]
    out_ref[...] = jax.nn.sigmoid(logits[:, :OUTPUT_CH]).astype(out_ref.dtype)


def init_params(key):
    """PyTorch-style uniform(-1/sqrt(fan_in), 1/sqrt(fan_in)) init.

    Weights stored transposed relative to nn.Linear, i.e. (in, out), in bf16;
    biases in f32.  Parameters are stacked into 5 arrays:
      w_in  : (2, INPUT_CH, W)  -- layer 0 weight, layer 5's feature-half
      w_hid : (7, W, W)         -- layers 1-4, layer 5's h-half, layers 6-7
      b_hid : (D, 1, W) f32
      w_last: (W, OUT_PAD)      -- zero-padded 3 -> 128 on the output dim
      b_last: (1, OUT_PAD) f32
    """
    keys = jax.random.split(key, D + 1)
    w_in, w_hid, b_hid = [], [], []
    for i in range(D):
        if i in SKIP_CONSUMERS:
            fan_in = W + INPUT_CH
        elif i == 0:
            fan_in = INPUT_CH
        else:
            fan_in = W
        bound = 1.0 / math.sqrt(fan_in)
        kw, kb = jax.random.split(keys[i])
        w = jax.random.uniform(kw, (fan_in, W), jnp.float32, -bound, bound)
        b = jax.random.uniform(kb, (1, W), jnp.float32, -bound, bound)
        if i == 0:
            w_in.append(w)
        elif i in SKIP_CONSUMERS:
            w_in.append(w[:INPUT_CH])
            w_hid.append(w[INPUT_CH:])
        else:
            w_hid.append(w)
        b_hid.append(b)

    bound = 1.0 / math.sqrt(W)
    kw, kb = jax.random.split(keys[D])
    w_last = jax.random.uniform(kw, (W, OUTPUT_CH), jnp.float32, -bound, bound)
    b_last = jax.random.uniform(kb, (1, OUTPUT_CH), jnp.float32, -bound, bound)
    w_last = jnp.pad(w_last, ((0, 0), (0, OUT_PAD - OUTPUT_CH)))
    b_last = jnp.pad(b_last, ((0, 0), (0, OUT_PAD - OUTPUT_CH)))

    return (
        jnp.stack(w_in).astype(jnp.bfloat16),    # (2, 128, 256)
        jnp.stack(w_hid).astype(jnp.bfloat16),   # (7, 256, 256)
        jnp.stack(b_hid),                        # (8, 1, 256) f32
        w_last.astype(jnp.bfloat16),             # (256, 128)
        b_last,                                  # (1, 128) f32
    )


def _cost_estimate(n_rows, params):
    k_dims = [INPUT_CH] + [W] * 4 + [INPUT_CH + W] + [W] * 2     # per-layer K
    flops_per_row = sum(2 * k * W for k in k_dims) + 2 * W * OUT_PAD
    param_bytes = sum(int(p.size) * p.dtype.itemsize for p in params)
    return pl.CostEstimate(
        flops=int(n_rows) * flops_per_row,
        transcendentals=int(n_rows) * OUTPUT_CH,                 # sigmoid
        bytes_accessed=int(n_rows) * INPUT_CH * 4                # f32 features in
                       + int(n_rows) * OUTPUT_CH * 4             # f32 rgb out
                       + param_bytes,
    )


def _pick_tile_n(n_rows):
    """Largest row tile <= DEFAULT_TILE_N dividing n_rows, capped so the grid
    keeps >= 4 steps when possible (v7x megacore needs multiple parallel steps)."""
    if n_rows <= 8:
        return n_rows
    target = max(min(DEFAULT_TILE_N, n_rows // 4), 8)
    t = max((min(target, n_rows) // 8) * 8, 8)
    while t > 8 and n_rows % t != 0:
        t -= 8
    if n_rows % t != 0:
        t = n_rows        # fall back to a single full-array step
    return t


@functools.partial(jax.jit, static_argnums=(2,))
def albedo_forward(features, params, tile_n=None):
    w_in, w_hid, b_hid, w_last, b_last = params
    N = features.shape[0]
    if tile_n is None:
        tile_n = _pick_tile_n(N)
    tile_n = min(tile_n, N)
    assert N % tile_n == 0, "batch size must be a multiple of tile_n"
    assert tile_n % 8 == 0 or tile_n == N, "tile_n must be a multiple of 8"

    grid = (N // tile_n,)

    def const_spec(p):
        # whole parameter resident in VMEM; block index never changes so it is
        # DMA'd once and reused across every grid step.
        nd = p.ndim
        return pl.BlockSpec(p.shape, lambda i, _nd=nd: (0,) * _nd)

    in_specs = [pl.BlockSpec((tile_n, INPUT_CH), lambda i: (i, 0))]
    in_specs += [const_spec(p) for p in (w_in, w_hid, b_hid, w_last, b_last)]

    return pl.pallas_call(
        albedo_kernel,
        out_shape=jax.ShapeDtypeStruct((N, OUTPUT_CH), jnp.float32),
        grid_spec=pltpu.PrefetchScalarGridSpec(
            num_scalar_prefetch=0,
            grid=grid,
            in_specs=in_specs,
            out_specs=pl.BlockSpec((tile_n, OUTPUT_CH), lambda i: (i, 0)),
        ),
        compiler_params=pltpu.CompilerParams(
            dimension_semantics=("parallel",),
            vmem_limit_bytes=32 * 1024 * 1024,   # also lifts v5e's 16 MiB default
        ),
        cost_estimate=_cost_estimate(N, params),
    )(features, w_in, w_hid, b_hid, w_last, b_last)


def albedo_reference(features, params):
    """Pure-JAX f32 reference matching the PyTorch forward (concat form)."""
    w_in, w_hid, b_hid, w_last, b_last = params
    feat = features.astype(jnp.float32)
    h = feat
    hid = 0
    for i in range(D):
        if i in SKIP_CONSUMERS:
            w = jnp.concatenate([w_in[1].astype(jnp.float32),
                                 w_hid[hid].astype(jnp.float32)], axis=0)
            hid += 1
            x = jnp.concatenate([feat, h], axis=-1)   # torch.cat([features, h], -1)
        elif i == 0:
            w = w_in[0].astype(jnp.float32)
            x = h
        else:
            w = w_hid[hid].astype(jnp.float32)
            hid += 1
            x = h
        h = jnp.maximum(x @ w + b_hid[i], 0.0)
    out = jax.nn.sigmoid(h @ w_last.astype(jnp.float32) + b_last)
    return out[:, :OUTPUT_CH]


if __name__ == "__main__":
    key = jax.random.PRNGKey(0)
    k_feat, k_par = jax.random.split(key)

    N = 2048  # -> tile_n = 512, 4 grid steps (keeps both v7x TensorCores busy)
    features = jax.random.normal(k_feat, (N, INPUT_CH), dtype=jnp.float32)
    params = init_params(k_par)

    out = jax.block_until_ready(albedo_forward(features, params))

    ref = albedo_reference(features, params)
    assert out.shape == (N, OUTPUT_CH), out.shape
    err = float(jnp.max(jnp.abs(out.astype(jnp.float32) - ref)))
    assert err < 3e-2, f"mismatch vs reference, max abs err = {err}"

    print("KERNEL_OK")
</pallas_src>

<mosaic_0001>
module attributes {stable_mosaic.version = 11 : i64} {
  func.func @albedo_kernel(%arg0: i32, %arg1: memref<512x128xf32, #tpu.memory_space<vmem>>, %arg2: memref<2x128x256xbf16, #tpu.memory_space<vmem>>, %arg3: memref<7x256x256xbf16, #tpu.memory_space<vmem>>, %arg4: memref<8x1x256xf32, #tpu.memory_space<vmem>>, %arg5: memref<256x128xbf16, #tpu.memory_space<vmem>>, %arg6: memref<1x128xf32, #tpu.memory_space<vmem>>, %arg7: memref<512x3xf32, #tpu.memory_space<vmem>>) attributes {dimension_semantics = [#tpu.dimension_semantics<parallel>], iteration_bounds = array<i64: 4>, scalar_prefetch = 0 : i64, scratch_operands = 0 : i64, tpu.core_type = #tpu.core_type<tc>, window_params = [{transform_indices = @transform_0, window_bounds = array<i64: 512, 128>}, {pipeline_mode = #tpu.pipeline_mode<synchronous>, transform_indices = @transform_1, window_bounds = array<i64: 2, 128, 256>}, {pipeline_mode = #tpu.pipeline_mode<synchronous>, transform_indices = @transform_2, window_bounds = array<i64: 7, 256, 256>}, {pipeline_mode = #tpu.pipeline_mode<synchronous>, transform_indices = @transform_3, window_bounds = array<i64: 8, 1, 256>}, {pipeline_mode = #tpu.pipeline_mode<synchronous>, transform_indices = @transform_4, window_bounds = array<i64: 256, 128>}, {pipeline_mode = #tpu.pipeline_mode<synchronous>, transform_indices = @transform_5, window_bounds = array<i64: 1, 128>}, {transform_indices = @transform_6, window_bounds = array<i64: 512, 3>}]} {
    %c0 = arith.constant 0 : index
    %c0_0 = arith.constant 0 : index
    %0 = vector.load %arg1[%c0, %c0_0] : memref<512x128xf32, #tpu.memory_space<vmem>>, vector<512x128xf32>
    %1 = arith.truncf %0 : vector<512x128xf32> to vector<512x128xbf16>
    %c0_1 = arith.constant 0 : index
    %c0_2 = arith.constant 0 : index
    %c0_3 = arith.constant 0 : index
    %2 = vector.load %arg2[%c0_1, %c0_2, %c0_3] : memref<2x128x256xbf16, #tpu.memory_space<vmem>>, vector<1x128x256xbf16>
    %3 = vector.shape_cast %2 : vector<1x128x256xbf16> to vector<128x256xbf16>
    %cst = arith.constant dense<0.000000e+00> : vector<512x256xf32>
    %4 = tpu.matmul %1, %3, %cst {dimension_numbers = #tpu.dot_dimension_numbers<[1], [0], [0], [1], [0, 0, 1, 1], [], []>} : vector<512x128xbf16>, vector<128x256xbf16>, vector<512x256xf32> -> vector<512x256xf32>
    %c0_4 = arith.constant 0 : index
    %c0_5 = arith.constant 0 : index
    %c0_6 = arith.constant 0 : index
    %5 = vector.load %arg4[%c0_4, %c0_5, %c0_6] : memref<8x1x256xf32, #tpu.memory_space<vmem>>, vector<1x1x256xf32>
    %6 = vector.shape_cast %5 : vector<1x1x256xf32> to vector<1x256xf32>
    %7 = vector.broadcast %6 : vector<1x256xf32> to vector<512x256xf32>
    %8 = arith.addf %4, %7 : vector<512x256xf32>
    %cst_7 = arith.constant 0.000000e+00 : f32
    %9 = vector.broadcast %cst_7 : f32 to vector<512x256xf32>
    %10 = arith.maximumf %8, %9 : vector<512x256xf32>
    %11 = arith.truncf %10 : vector<512x256xf32> to vector<512x256xbf16>
    %c0_8 = arith.constant 0 : index
    %c0_9 = arith.constant 0 : index
    %c0_10 = arith.constant 0 : index
    %12 = vector.load %arg3[%c0_8, %c0_9, %c0_10] : memref<7x256x256xbf16, #tpu.memory_space<vmem>>, vector<1x256x256xbf16>
    %13 = vector.shape_cast %12 : vector<1x256x256xbf16> to vector<256x256xbf16>
    %cst_11 = arith.constant dense<0.000000e+00> : vector<512x256xf32>
    %14 = tpu.matmul %11, %13, %cst_11 {dimension_numbers = #tpu.dot_dimension_numbers<[1], [0], [0], [1], [0, 0, 1, 1], [], []>} : vector<512x256xbf16>, vector<256x256xbf16>, vector<512x256xf32> -> vector<512x256xf32>
    %c1 = arith.constant 1 : index
    %c0_12 = arith.constant 0 : index
    %c0_13 = arith.constant 0 : index
    %15 = vector.load %arg4[%c1, %c0_12, %c0_13] : memref<8x1x256xf32, #tpu.memory_space<vmem>>, vector<1x1x256xf32>
    %16 = vector.shape_cast %15 : vector<1x1x256xf32> to vector<1x256xf32>
    %17 = vector.broadcast %16 : vector<1x256xf32> to vector<512x256xf32>
    %18 = arith.addf %14, %17 : vector<512x256xf32>
    %cst_14 = arith.constant 0.000000e+00 : f32
    %19 = vector.broadcast %cst_14 : f32 to vector<512x256xf32>
    %20 = arith.maximumf %18, %19 : vector<512x256xf32>
    %21 = arith.truncf %20 : vector<512x256xf32> to vector<512x256xbf16>
    %c1_15 = arith.constant 1 : index
    %c0_16 = arith.constant 0 : index
    %c0_17 = arith.constant 0 : index
    %22 = vector.load %arg3[%c1_15, %c0_16, %c0_17] : memref<7x256x256xbf16, #tpu.memory_space<vmem>>, vector<1x256x256xbf16>
    %23 = vector.shape_cast %22 : vector<1x256x256xbf16> to vector<256x256xbf16>
    %cst_18 = arith.constant dense<0.000000e+00> : vector<512x256xf32>
    %24 = tpu.matmul %21, %23, %cst_18 {dimension_numbers = #tpu.dot_dimension_numbers<[1], [0], [0], [1], [0, 0, 1, 1], [], []>} : vector<512x256xbf16>, vector<256x256xbf16>, vector<512x256xf32> -> vector<512x256xf32>
    %c2 = arith.constant 2 : index
    %c0_19 = arith.constant 0 : index
    %c0_20 = arith.constant 0 : index
    %25 = vector.load %arg4[%c2, %c0_19, %c0_20] : memref<8x1x256xf32, #tpu.memory_space<vmem>>, vector<1x1x256xf32>
    %26 = vector.shape_cast %25 : vector<1x1x256xf32> to vector<1x256xf32>
    %27 = vector.broadcast %26 : vector<1x256xf32> to vector<512x256xf32>
    %28 = arith.addf %24, %27 : vector<512x256xf32>
    %cst_21 = arith.constant 0.000000e+00 : f32
    %29 = vector.broadcast %cst_21 : f32 to vector<512x256xf32>
    %30 = arith.maximumf %28, %29 : vector<512x256xf32>
    %31 = arith.truncf %30 : vector<512x256xf32> to vector<512x256xbf16>
    %c2_22 = arith.constant 2 : index
    %c0_23 = arith.constant 0 : index
    %c0_24 = arith.constant 0 : index
    %32 = vector.load %arg3[%c2_22, %c0_23, %c0_24] : memref<7x256x256xbf16, #tpu.memory_space<vmem>>, vector<1x256x256xbf16>
    %33 = vector.shape_cast %32 : vector<1x256x256xbf16> to vector<256x256xbf16>
    %cst_25 = arith.constant dense<0.000000e+00> : vector<512x256xf32>
    %34 = tpu.matmul %31, %33, %cst_25 {dimension_numbers = #tpu.dot_dimension_numbers<[1], [0], [0], [1], [0, 0, 1, 1], [], []>} : vector<512x256xbf16>, vector<256x256xbf16>, vector<512x256xf32> -> vector<512x256xf32>
    %c3 = arith.constant 3 : index
    %c0_26 = arith.constant 0 : index
    %c0_27 = arith.constant 0 : index
    %35 = vector.load %arg4[%c3, %c0_26, %c0_27] : memref<8x1x256xf32, #tpu.memory_space<vmem>>, vector<1x1x256xf32>
    %36 = vector.shape_cast %35 : vector<1x1x256xf32> to vector<1x256xf32>
    %37 = vector.broadcast %36 : vector<1x256xf32> to vector<512x256xf32>
    %38 = arith.addf %34, %37 : vector<512x256xf32>
    %cst_28 = arith.constant 0.000000e+00 : f32
    %39 = vector.broadcast %cst_28 : f32 to vector<512x256xf32>
    %40 = arith.maximumf %38, %39 : vector<512x256xf32>
    %41 = arith.truncf %40 : vector<512x256xf32> to vector<512x256xbf16>
    %c3_29 = arith.constant 3 : index
    %c0_30 = arith.constant 0 : index
    %c0_31 = arith.constant 0 : index
    %42 = vector.load %arg3[%c3_29, %c0_30, %c0_31] : memref<7x256x256xbf16, #tpu.memory_space<vmem>>, vector<1x256x256xbf16>
    %43 = vector.shape_cast %42 : vector<1x256x256xbf16> to vector<256x256xbf16>
    %cst_32 = arith.constant dense<0.000000e+00> : vector<512x256xf32>
    %44 = tpu.matmul %41, %43, %cst_32 {dimension_numbers = #tpu.dot_dimension_numbers<[1], [0], [0], [1], [0, 0, 1, 1], [], []>} : vector<512x256xbf16>, vector<256x256xbf16>, vector<512x256xf32> -> vector<512x256xf32>
    %c4 = arith.constant 4 : index
    %c0_33 = arith.constant 0 : index
    %c0_34 = arith.constant 0 : index
    %45 = vector.load %arg4[%c4, %c0_33, %c0_34] : memref<8x1x256xf32, #tpu.memory_space<vmem>>, vector<1x1x256xf32>
    %46 = vector.shape_cast %45 : vector<1x1x256xf32> to vector<1x256xf32>
    %47 = vector.broadcast %46 : vector<1x256xf32> to vector<512x256xf32>
    %48 = arith.addf %44, %47 : vector<512x256xf32>
    %cst_35 = arith.constant 0.000000e+00 : f32
    %49 = vector.broadcast %cst_35 : f32 to vector<512x256xf32>
    %50 = arith.maximumf %48, %49 : vector<512x256xf32>
    %51 = arith.truncf %50 : vector<512x256xf32> to vector<512x256xbf16>
    %c1_36 = arith.constant 1 : index
    %c0_37 = arith.constant 0 : index
    %c0_38 = arith.constant 0 : index
    %52 = vector.load %arg2[%c1_36, %c0_37, %c0_38] : memref<2x128x256xbf16, #tpu.memory_space<vmem>>, vector<1x128x256xbf16>
    %53 = vector.shape_cast %52 : vector<1x128x256xbf16> to vector<128x256xbf16>
    %cst_39 = arith.constant dense<0.000000e+00> : vector<512x256xf32>
    %54 = tpu.matmul %1, %53, %cst_39 {dimension_numbers = #tpu.dot_dimension_numbers<[1], [0], [0], [1], [0, 0, 1, 1], [], []>} : vector<512x128xbf16>, vector<128x256xbf16>, vector<512x256xf32> -> vector<512x256xf32>
    %c4_40 = arith.constant 4 : index
    %c0_41 = arith.constant 0 : index
    %c0_42 = arith.constant 0 : index
    %55 = vector.load %arg3[%c4_40, %c0_41, %c0_42] : memref<7x256x256xbf16, #tpu.memory_space<vmem>>, vector<1x256x256xbf16>
    %56 = vector.shape_cast %55 : vector<1x256x256xbf16> to vector<256x256xbf16>
    %cst_43 = arith.constant dense<0.000000e+00> : vector<512x256xf32>
    %57 = tpu.matmul %51, %56, %cst_43 {dimension_numbers = #tpu.dot_dimension_numbers<[1], [0], [0], [1], [0, 0, 1, 1], [], []>} : vector<512x256xbf16>, vector<256x256xbf16>, vector<512x256xf32> -> vector<512x256xf32>
    %58 = arith.addf %54, %57 : vector<512x256xf32>
    %c5 = arith.constant 5 : index
    %c0_44 = arith.constant 0 : index
    %c0_45 = arith.constant 0 : index
    %59 = vector.load %arg4[%c5, %c0_44, %c0_45] : memref<8x1x256xf32, #tpu.memory_space<vmem>>, vector<1x1x256xf32>
    %60 = vector.shape_cast %59 : vector<1x1x256xf32> to vector<1x256xf32>
    %61 = vector.broadcast %60 : vector<1x256xf32> to vector<512x256xf32>
    %62 = arith.addf %58, %61 : vector<512x256xf32>
    %cst_46 = arith.constant 0.000000e+00 : f32
    %63 = vector.broadcast %cst_46 : f32 to vector<512x256xf32>
    %64 = arith.maximumf %62, %63 : vector<512x256xf32>
    %65 = arith.truncf %64 : vector<512x256xf32> to vector<512x256xbf16>
    %c5_47 = arith.constant 5 : index
    %c0_48 = arith.constant 0 : index
    %c0_49 = arith.constant 0 : index
    %66 = vector.load %arg3[%c5_47, %c0_48, %c0_49] : memref<7x256x256xbf16, #tpu.memory_space<vmem>>, vector<1x256x256xbf16>
    %67 = vector.shape_cast %66 : vector<1x256x256xbf16> to vector<256x256xbf16>
    %cst_50 = arith.constant dense<0.000000e+00> : vector<512x256xf32>
    %68 = tpu.matmul %65, %67, %cst_50 {dimension_numbers = #tpu.dot_dimension_numbers<[1], [0], [0], [1], [0, 0, 1, 1], [], []>} : vector<512x256xbf16>, vector<256x256xbf16>, vector<512x256xf32> -> vector<512x256xf32>
    %c6 = arith.constant 6 : index
    %c0_51 = arith.constant 0 : index
    %c0_52 = arith.constant 0 : index
    %69 = vector.load %arg4[%c6, %c0_51, %c0_52] : memref<8x1x256xf32, #tpu.memory_space<vmem>>, vector<1x1x256xf32>
    %70 = vector.shape_cast %69 : vector<1x1x256xf32> to vector<1x256xf32>
    %71 = vector.broadcast %70 : vector<1x256xf32> to vector<512x256xf32>
    %72 = arith.addf %68, %71 : vector<512x256xf32>
    %cst_53 = arith.constant 0.000000e+00 : f32
    %73 = vector.broadcast %cst_53 : f32 to vector<512x256xf32>
    %74 = arith.maximumf %72, %73 : vector<512x256xf32>
    %75 = arith.truncf %74 : vector<512x256xf32> to vector<512x256xbf16>
    %c6_54 = arith.constant 6 : index
    %c0_55 = arith.constant 0 : index
    %c0_56 = arith.constant 0 : index
    %76 = vector.load %arg3[%c6_54, %c0_55, %c0_56] : memref<7x256x256xbf16, #tpu.memory_space<vmem>>, vector<1x256x256xbf16>
    %77 = vector.shape_cast %76 : vector<1x256x256xbf16> to vector<256x256xbf16>
    %cst_57 = arith.constant dense<0.000000e+00> : vector<512x256xf32>
    %78 = tpu.matmul %75, %77, %cst_57 {dimension_numbers = #tpu.dot_dimension_numbers<[1], [0], [0], [1], [0, 0, 1, 1], [], []>} : vector<512x256xbf16>, vector<256x256xbf16>, vector<512x256xf32> -> vector<512x256xf32>
    %c7 = arith.constant 7 : index
    %c0_58 = arith.constant 0 : index
    %c0_59 = arith.constant 0 : index
    %79 = vector.load %arg4[%c7, %c0_58, %c0_59] : memref<8x1x256xf32, #tpu.memory_space<vmem>>, vector<1x1x256xf32>
    %80 = vector.shape_cast %79 : vector<1x1x256xf32> to vector<1x256xf32>
    %81 = vector.broadcast %80 : vector<1x256xf32> to vector<512x256xf32>
    %82 = arith.addf %78, %81 : vector<512x256xf32>
    %cst_60 = arith.constant 0.000000e+00 : f32
    %83 = vector.broadcast %cst_60 : f32 to vector<512x256xf32>
    %84 = arith.maximumf %82, %83 : vector<512x256xf32>
    %85 = arith.truncf %84 : vector<512x256xf32> to vector<512x256xbf16>
    %c0_61 = arith.constant 0 : index
    %c0_62 = arith.constant 0 : index
    %86 = vector.load %arg5[%c0_61, %c0_62] : memref<256x128xbf16, #tpu.memory_space<vmem>>, vector<256x128xbf16>
    %cst_63 = arith.constant dense<0.000000e+00> : vector<512x128xf32>
    %87 = tpu.matmul %85, %86, %cst_63 {dimension_numbers = #tpu.dot_dimension_numbers<[1], [0], [0], [1], [0, 0, 1, 1], [], []>} : vector<512x256xbf16>, vector<256x128xbf16>, vector<512x128xf32> -> vector<512x128xf32>
    %c0_64 = arith.constant 0 : index
    %c0_65 = arith.constant 0 : index
    %88 = vector.load %arg6[%c0_64, %c0_65] : memref<1x128xf32, #tpu.memory_space<vmem>>, vector<1x128xf32>
    %89 = vector.broadcast %88 : vector<1x128xf32> to vector<512x128xf32>
    %90 = arith.addf %87, %89 : vector<512x128xf32>
    %91 = vector.extract_strided_slice %90 {offsets = [0, 0], sizes = [512, 3], strides = [1, 1]} : vector<512x128xf32> to vector<512x3xf32>
    %92 = arith.negf %91 : vector<512x3xf32>
    %93 = math.exp %92 : vector<512x3xf32>
    %cst_66 = arith.constant 1.000000e+00 : f32
    %94 = vector.broadcast %cst_66 : f32 to vector<512x3xf32>
    %95 = arith.addf %94, %93 : vector<512x3xf32>
    %96 = arith.divf %94, %95 : vector<512x3xf32>
    %c0_67 = arith.constant 0 : index
    %c0_68 = arith.constant 0 : index
    %97 = vector.load %arg7[%c0_67, %c0_68] : memref<512x3xf32, #tpu.memory_space<vmem>>, vector<512x3xf32>
    tpu.vector_store %arg7[%c0_67, %c0_68], %96 {strides = array<i32>} : memref<512x3xf32, #tpu.memory_space<vmem>>, vector<512x3xf32>,
    return
  }
  func.func @transform_0(%arg0: i32) -> (i32, i32) {
    %c0_i32 = arith.constant 0 : i32
    %c0_i32_0 = arith.constant 0 : i32
    return %arg0, %c0_i32 : i32, i32
  }
  func.func @transform_1(%arg0: i32) -> (i32, i32, i32) {
    %c0_i32 = arith.constant 0 : i32
    %c0_i32_0 = arith.constant 0 : i32
    %c0_i32_1 = arith.constant 0 : i32
    %c0_i32_2 = arith.constant 0 : i32
    return %c0_i32, %c0_i32_0, %c0_i32_1 : i32, i32, i32
  }
  func.func @transform_2(%arg0: i32) -> (i32, i32, i32) {
    %c0_i32 = arith.constant 0 : i32
    %c0_i32_0 = arith.constant 0 : i32
    %c0_i32_1 = arith.constant 0 : i32
    %c0_i32_2 = arith.constant 0 : i32
    return %c0_i32, %c0_i32_0, %c0_i32_1 : i32, i32, i32
  }
  func.func @transform_3(%arg0: i32) -> (i32, i32, i32) {
    %c0_i32 = arith.constant 0 : i32
    %c0_i32_0 = arith.constant 0 : i32
    %c0_i32_1 = arith.constant 0 : i32
    %c0_i32_2 = arith.constant 0 : i32
    return %c0_i32, %c0_i32_0, %c0_i32_1 : i32, i32, i32
  }
  func.func @transform_4(%arg0: i32) -> (i32, i32) {
    %c0_i32 = arith.constant 0 : i32
    %c0_i32_0 = arith.constant 0 : i32
    %c0_i32_1 = arith.constant 0 : i32
    return %c0_i32, %c0_i32_0 : i32, i32
  }
  func.func @transform_5(%arg0: i32) -> (i32, i32) {
    %c0_i32 = arith.constant 0 : i32
    %c0_i32_0 = arith.constant 0 : i32
    %c0_i32_1 = arith.constant 0 : i32
    return %c0_i32, %c0_i32_0 : i32, i32
  }
  func.func @transform_6(%arg0: i32) -> (i32, i32) {
    %c0_i32 = arith.constant 0 : i32
    %c0_i32_0 = arith.constant 0 : i32
    return %arg0, %c0_i32 : i32, i32
  }
}

</mosaic_0001>

<llo_original>
// kernel: albedo_forward.1
$region0: #{albedo_forward.1}
  #allocation0 [shape = 'u32[]', space=smem, size = 0x4, offset = 0x4, fixed_abs, tag = 'smem constant byte address 0x4 - core index']
  #allocation1 [shape = 'u32[144,128]{1,0:T(1,128)}', space=vmem, size = 0x12000, scoped, tag = 'internal scratch']
  %s0 = inlined_call_operand.hbm [shape: f32[2048,128], index: 0, kind: input, shape index: {}]
  %s1 = inlined_call_operand.hbm [shape: bf16[2,128,256], index: 1, kind: input, shape index: {}]
  %s2 = inlined_call_operand.hbm [shape: bf16[7,256,256], index: 2, kind: input, shape index: {}]
  %s3 = inlined_call_operand.hbm [shape: f32[8,1,256], index: 3, kind: input, shape index: {}]
  %s4 = inlined_call_operand.hbm [shape: bf16[256,128], index: 4, kind: input, shape index: {}]
  %s5 = inlined_call_operand.vmem [shape: f32[1,128], index: 5, kind: input, shape index: {}]
  %s6 = inlined_call_operand.vmem [shape: f32[2048,3], index: 6, kind: output, shape index: {}]
  %s7 = sld [smem:[#allocation0]]
  $region77: #{albedo_forward.1} parent=0
    _
  %s9 = ssub.s32 1, %s7
  %s10 = scalar_select 0, %s9, %s7
  $region1: #{albedo_forward.1} parent=0
    #allocation2 [shape = 'u8[524288]{0}', space=vmem, size = 0x80000, scoped, tag = 'input window, operand 0']
    #allocation3 [shape = 's32[2]{0}', space=sflag, size = 0x8, scoped, tag = 'scoped memory for albedo_forward.1']
    #allocation4 [shape = 'u8[131072]{0}', space=vmem, size = 0x20000, scoped, tag = 'input window, operand 1, single buffered']
    #allocation5 [shape = 's32[1]{0}', space=sflag, size = 0x4, scoped, tag = 'scoped memory for albedo_forward.1']
    #allocation6 [shape = 'u8[917504]{0}', space=vmem, size = 0xe0000, scoped, tag = 'input window, operand 2, single buffered']
    #allocation7 [shape = 'u8[8192]{0}', space=vmem, size = 0x2000, scoped, tag = 'input window, operand 3, single buffered']
    #allocation8 [shape = 's32[1]{0}', space=sflag, size = 0x4, scoped, tag = 'scoped memory for albedo_forward.1']
    #allocation9 [shape = 'u8[65536]{0}', space=vmem, size = 0x10000, scoped, tag = 'input window, operand 4, single buffered']
    %11 = vsyncpa [#allocation3], 0
    %s12 = scalar_lea.sflag [#allocation3], 1
    %13 = vsyncpa %s12, 0
    %14 = vsyncpa [#allocation5], 0
    %15 = vsyncpa [#allocation8], 0
    loop: start=0, step=1, limit=6
    $region2: #{albedo_forward.1} parent=1 // loop_pre_header
      _
    $region3: #{albedo_forward.1} parent=1 // loop_header
      %s17 = sphi 0, %s21
      %p18 = scmp.ge.s32.totalorder %s17, 6
      %s27 = sphi 0, %s29
      %s30 = sphi 0, %s27
      %s31 = sphi 0, %s30
      %s47 = sphi 0, %s31
      %s51 = sphi 0, %s51
      %s53 = sphi 0, %s51
      %s54 = sphi 0, %s53
      %s68 = sphi 0, %s54
      %s72 = sphi 0, %s72
      %s74 = sphi 0, %s72
      %s75 = sphi 0, %s74
      %s89 = sphi 0, %s75
      %s93 = sphi 0, %s93
      %s95 = sphi 0, %s93
      %s96 = sphi 0, %s95
      %s110 = sphi 0, %s96
      %s114 = sphi 0, %s114
      %s116 = sphi 0, %s114
      %s117 = sphi 0, %s116
      %s131 = sphi 0, %s117
      %s135 = sphi 0, %s135
      %s137 = sphi 0, %s135
      %s138 = sphi 0, %s137
      %s152 = sphi 0, %s138
      %s158 = sphi 0, %s160
      %s161 = sphi 0, %s158
      %s162 = sphi 0, %s161
      %s178 = sphi 0, %s162
    $region4: #{albedo_forward.1} parent=1 // loop_header_branch
      %20 = sbr.rel (%p18) target = $region8
    $region5: #{albedo_forward.1} parent=1 // loop_body
      %s22 = ssub.s32 %s17, 1
      %s23 = ssub.s32 %s17, 2
      %s24 = sadd.s32 %s17, 1
      %s25 = ssub.s32 %s17, %s24
      %p26 = scmp.eq.s32.totalorder %s25, 0
      %s28 = sadd.s32 %s27, 1
      %s29 = scalar_select %p26, %s27, %s28
      %p32 = pneg %p26
      %p33 = scmp.eq.s32.totalorder %s17, 3
      %p34 = por %p32, %p33
      %p35 = scmp.ne.s32.totalorder %s27, %s30
      %p36 = scmp.eq.s32.totalorder %s17, 0
      %p37 = por %p35, %p36
      %p38 = scmp.ne.s32.totalorder %s27, %s30
      %p39 = scmp.eq.s32.totalorder %s22, 3
      %p40 = por %p38, %p39
      %p41 = scmp.ne.s32.totalorder %s30, %s31
      %p42 = scmp.eq.s32.totalorder %s22, 0
      %p43 = por %p41, %p42
      %p44 = scmp.ne.s32.totalorder %s30, %s31
      %p45 = scmp.eq.s32.totalorder %s23, 3
      %p46 = por %p44, %p45
      %p48 = scmp.ne.s32.totalorder %s31, %s47
      %p49 = scmp.eq.s32.totalorder %s23, 0
      %p50 = por %p48, %p49
      %s52 = sadd.s32 %s51, 1
      %p55 = scmp.eq.s32.totalorder %s17, 3
      %p56 = scmp.ne.s32.totalorder %s51, %s53
      %p57 = scmp.eq.s32.totalorder %s17, 0
      %p58 = por %p56, %p57
      %p59 = scmp.ne.s32.totalorder %s51, %s53
      %p60 = scmp.eq.s32.totalorder %s22, 3
      %p61 = por %p59, %p60
      %p62 = scmp.ne.s32.totalorder %s53, %s54
      %p63 = scmp.eq.s32.totalorder %s22, 0
      %p64 = por %p62, %p63
      %p65 = scmp.ne.s32.totalorder %s53, %s54
      %p66 = scmp.eq.s32.totalorder %s23, 3
      %p67 = por %p65, %p66
      %p69 = scmp.ne.s32.totalorder %s54, %s68
      %p70 = scmp.eq.s32.totalorder %s23, 0
      %p71 = por %p69, %p70
      %s73 = sadd.s32 %s72, 1
      %p76 = scmp.eq.s32.totalorder %s17, 3
      %p77 = scmp.ne.s32.totalorder %s72, %s74
      %p78 = scmp.eq.s32.totalorder %s17, 0
      %p79 = por %p77, %p78
      %p80 = scmp.ne.s32.totalorder %s72, %s74
      %p81 = scmp.eq.s32.totalorder %s22, 3
      %p82 = por %p80, %p81
      %p83 = scmp.ne.s32.totalorder %s74, %s75
      %p84 = scmp.eq.s32.totalorder %s22, 0
      %p85 = por %p83, %p84
      %p86 = scmp.ne.s32.totalorder %s74, %s75
      %p87 = scmp.eq.s32.totalorder %s23, 3
      %p88 = por %p86, %p87
      %p90 = scmp.ne.s32.totalorder %s75, %s89
      %p91 = scmp.eq.s32.totalorder %s23, 0
      %p92 = por %p90, %p91
      %s94 = sadd.s32 %s93, 1
      %p97 = scmp.eq.s32.totalorder %s17, 3
      %p98 = scmp.ne.s32.totalorder %s93, %s95
      %p99 = scmp.eq.s32.totalorder %s17, 0
      %p100 = por %p98, %p99
      %p101 = scmp.ne.s32.totalorder %s93, %s95
      %p102 = scmp.eq.s32.totalorder %s22, 3
      %p103 = por %p101, %p102
      %p104 = scmp.ne.s32.totalorder %s95, %s96
      %p105 = scmp.eq.s32.totalorder %s22, 0
      %p106 = por %p104, %p105
      %p107 = scmp.ne.s32.totalorder %s95, %s96
      %p108 = scmp.eq.s32.totalorder %s23, 3
      %p109 = por %p107, %p108
      %p111 = scmp.ne.s32.totalorder %s96, %s110
      %p112 = scmp.eq.s32.totalorder %s23, 0
      %p113 = por %p111, %p112
      %s115 = sadd.s32 %s114, 1
      %p118 = scmp.eq.s32.totalorder %s17, 3
      %p119 = scmp.ne.s32.totalorder %s114, %s116
      %p120 = scmp.eq.s32.totalorder %s17, 0
      %p121 = por %p119, %p120
      %p122 = scmp.ne.s32.totalorder %s114, %s116
      %p123 = scmp.eq.s32.totalorder %s22, 3
      %p124 = por %p122, %p123
      %p125 = scmp.ne.s32.totalorder %s116, %s117
      %p126 = scmp.eq.s32.totalorder %s22, 0
      %p127 = por %p125, %p126
      %p128 = scmp.ne.s32.totalorder %s116, %s117
      %p129 = scmp.eq.s32.totalorder %s23, 3
      %p130 = por %p128, %p129
      %p132 = scmp.ne.s32.totalorder %s117, %s131
      %p133 = scmp.eq.s32.totalorder %s23, 0
      %p134 = por %p132, %p133
      %s136 = sadd.s32 %s135, 1
      %p139 = scmp.eq.s32.totalorder %s17, 3
      %p140 = scmp.ne.s32.totalorder %s135, %s137
      %p141 = scmp.eq.s32.totalorder %s17, 0
      %p142 = por %p140, %p141
      %p143 = scmp.ne.s32.totalorder %s135, %s137
      %p144 = scmp.eq.s32.totalorder %s22, 3
      %p145 = por %p143, %p144
      %p146 = scmp.ne.s32.totalorder %s137, %s138
      %p147 = scmp.eq.s32.totalorder %s22, 0
      %p148 = por %p146, %p147
      %p149 = scmp.ne.s32.totalorder %s137, %s138
      %p150 = scmp.eq.s32.totalorder %s23, 3
      %p151 = por %p149, %p150
      %p153 = scmp.ne.s32.totalorder %s138, %s152
      %p154 = scmp.eq.s32.totalorder %s23, 0
      %p155 = por %p153, %p154
      %s156 = ssub.s32 %s17, %s24
      %p157 = scmp.eq.s32.totalorder %s156, 0
      %s159 = sadd.s32 %s158, 1
      %s160 = scalar_select %p157, %s158, %s159
      %p163 = pneg %p157
      %p164 = scmp.eq.s32.totalorder %s17, 3
      %p165 = por %p163, %p164
      %p166 = scmp.ne.s32.totalorder %s158, %s161
      %p167 = scmp.eq.s32.totalorder %s17, 0
      %p168 = por %p166, %p167
      %p169 = scmp.ne.s32.totalorder %s158, %s161
      %p170 = scmp.eq.s32.totalorder %s22, 3
      %p171 = por %p169, %p170
      %p172 = scmp.ne.s32.totalorder %s161, %s162
      %p173 = scmp.eq.s32.totalorder %s22, 0
      %p174 = por %p172, %p173
      %p175 = scmp.ne.s32.totalorder %s161, %s162
      %p176 = scmp.eq.s32.totalorder %s23, 3
      %p177 = por %p175, %p176
      %p179 = scmp.ne.s32.totalorder %s162, %s178
      %p180 = scmp.eq.s32.totalorder %s23, 0
      %p181 = por %p179, %p180
      %p182 = scmp.le.s32.totalorder 1, %s17
      %p183 = scmp.lt.s32.totalorder %s17, 5
      %p184 = pnand %p182, %p183
      %p185 = pneg %p184
      // Predicated region
      $region9: #{albedo_forward.1} parent=5 // pred_check
        _
      $region10: #{albedo_forward.1} parent=5 // pred_check_branch
        %187 = sbr.rel (%p184) target = $region12
      $region11: #{albedo_forward.1} parent=5 // pred_region
        %s188 = ssub.s32 %s17, 1
        // Predicated region
        $region13: #{albedo_forward.1} parent=11 // pred_check
          %p189 = pneg %p64
        $region14: #{albedo_forward.1} parent=11 // pred_check_branch
          %191 = sbr.rel (%p189) target = $region16
        $region15: #{albedo_forward.1} parent=11 // pred_region
          %s193 = ssub.s32 4096, 4096
          %194 = vsyncadd [#allocation5], %s193
          %s195 = sshll.u32 [#allocation4], 4
          %s196 = int_to_ptr.vmem [resolvable:$true] %s195
          %201 = dma.hbm_to_vmem [thread:$0]  %s1, 4096, %s196, [#allocation5], 128, 128, 8
        $region16: #{albedo_forward.1} parent=11 // pred_fallthru
          _
        // Predicated region
        $region17: #{albedo_forward.1} parent=11 // pred_check
          %p202 = pneg %p85
        $region18: #{albedo_forward.1} parent=11 // pred_check_branch
          %204 = sbr.rel (%p202) target = $region20
        $region19: #{albedo_forward.1} parent=11 // pred_region
          %s206 = ssub.s32 28672, 28672
          %207 = vsyncadd [#allocation5], %s206
          %s208 = sshll.u32 [#allocation6], 4
          %s209 = int_to_ptr.vmem [resolvable:$true] %s208
          %214 = dma.hbm_to_vmem [thread:$0]  %s2, 28672, %s209, [#allocation5], 128, 128, 8
        $region20: #{albedo_forward.1} parent=11 // pred_fallthru
          _
        // Predicated region
        $region21: #{albedo_forward.1} parent=11 // pred_check
          %p215 = pneg %p106
        $region22: #{albedo_forward.1} parent=11 // pred_check_branch
          %217 = sbr.rel (%p215) target = $region24
        $region23: #{albedo_forward.1} parent=11 // pred_region
          %s219 = ssub.s32 256, 256
          %220 = vsyncadd [#allocation8], %s219
          %s221 = sshll.u32 [#allocation7], 4
          %s222 = int_to_ptr.vmem [resolvable:$true] %s221
          %227 = dma.hbm_to_vmem [thread:$0]  %s3, 256, %s222, [#allocation8], 32, 32, 2
        $region24: #{albedo_forward.1} parent=11 // pred_fallthru
          _
        // Predicated region
        $region25: #{albedo_forward.1} parent=11 // pred_check
          %p228 = pneg %p127
        $region26: #{albedo_forward.1} parent=11 // pred_check_branch
          %230 = sbr.rel (%p228) target = $region28
        $region27: #{albedo_forward.1} parent=11 // pred_region
          %s232 = ssub.s32 2048, 2048
          %233 = vsyncadd [#allocation8], %s232
          %s234 = sshll.u32 [#allocation9], 4
          %s235 = int_to_ptr.vmem [resolvable:$true] %s234
          %240 = dma.hbm_to_vmem [thread:$0]  %s4, 2048, %s235, [#allocation8], 64, 64, 4
        $region28: #{albedo_forward.1} parent=11 // pred_fallthru
          _
        // Predicated region
        $region29: #{albedo_forward.1} parent=11 // pred_check
          %p241 = pneg %p148
        $region30: #{albedo_forward.1} parent=11 // pred_check_branch
          %243 = sbr.rel (%p241) target = $region32
        $region31: #{albedo_forward.1} parent=11 // pred_region
          _
        $region32: #{albedo_forward.1} parent=11 // pred_fallthru
          _
      $region12: #{albedo_forward.1} parent=5 // pred_fallthru
        _
      %p244 = scmp.lt.s32.totalorder %s17, 4
      // Predicated region
      $region33: #{albedo_forward.1} parent=5 // pred_check
        %p245 = pneg %p244
      $region34: #{albedo_forward.1} parent=5 // pred_check_branch
        %247 = sbr.rel (%p245) target = $region36
      $region35: #{albedo_forward.1} parent=5 // pred_region
        // Predicated region
        $region37: #{albedo_forward.1} parent=35 // pred_check
          %p248 = pneg %p37
        $region38: #{albedo_forward.1} parent=35 // pred_check_branch
          %250 = sbr.rel (%p248) target = $region40
        $region39: #{albedo_forward.1} parent=35 // pred_region
          %s251 = sand.u32 %s27, 1
          %s252 = scalar_lea.sflag [#allocation3], %s251
          %s253 = sand.u32 %s27, 1
          %s254 = smul.addr %s253, 512
          %s255 = scalar_lea.vmem [#allocation2], %s254
          %s256 = smul.u32 64, %s17
          %s258 = ssub.s32 8192, 8192
          %259 = vsyncadd %s252, %s258
          %s260 = smul.addr %s256, 128
          %s261 = scalar_lea.hbm %s0, %s260
          %s262 = sshll.u32 %s255, 4
          %s263 = int_to_ptr.vmem [resolvable:$true] %s262
          %268 = dma.hbm_to_vmem [thread:$0]  %s261, 8192, %s263, %s252, 128, 128, 8
        $region40: #{albedo_forward.1} parent=35 // pred_fallthru
          _
      $region36: #{albedo_forward.1} parent=5 // pred_fallthru
        _
      %p269 = scmp.le.s32.totalorder 1, %s17
      %p270 = scmp.lt.s32.totalorder %s17, 5
      %p271 = pnand %p269, %p270
      %p272 = pneg %p271
      // Predicated region
      $region41: #{albedo_forward.1} parent=5 // pred_check
        _
      $region42: #{albedo_forward.1} parent=5 // pred_check_branch
        %274 = sbr.rel (%p271) target = $region44
      $region43: #{albedo_forward.1} parent=5 // pred_region
        %s275 = ssub.s32 %s17, 1
        %s276 = sand.u32 %s30, 1
        %s277 = scalar_lea.sflag [#allocation3], %s276
        %s278 = sand.u32 %s30, 1
        %s279 = smul.addr %s278, 512
        %s280 = scalar_lea.vmem [#allocation2], %s279
        // Predicated region
        $region45: #{albedo_forward.1} parent=43 // pred_check
          %p281 = pneg %p43
        $region46: #{albedo_forward.1} parent=43 // pred_check_branch
          %283 = sbr.rel (%p281) target = $region48
        $region47: #{albedo_forward.1} parent=43 // pred_region
          %284 = dma.done %s277, 8192
        $region48: #{albedo_forward.1} parent=43 // pred_fallthru
          _
        // Predicated region
        $region49: #{albedo_forward.1} parent=43 // pred_check
          %p285 = pneg %p64
        $region50: #{albedo_forward.1} parent=43 // pred_check_branch
          %287 = sbr.rel (%p285) target = $region52
        $region51: #{albedo_forward.1} parent=43 // pred_region
          %288 = dma.done [#allocation5], 4096
        $region52: #{albedo_forward.1} parent=43 // pred_fallthru
          _
        // Predicated region
        $region53: #{albedo_forward.1} parent=43 // pred_check
          %p289 = pneg %p85
        $region54: #{albedo_forward.1} parent=43 // pred_check_branch
          %291 = sbr.rel (%p289) target = $region56
        $region55: #{albedo_forward.1} parent=43 // pred_region
          %292 = dma.done [#allocation5], 28672
        $region56: #{albedo_forward.1} parent=43 // pred_fallthru
          _
        // Predicated region
        $region57: #{albedo_forward.1} parent=43 // pred_check
          %p293 = pneg %p106
        $region58: #{albedo_forward.1} parent=43 // pred_check_branch
          %295 = sbr.rel (%p293) target = $region60
        $region59: #{albedo_forward.1} parent=43 // pred_region
          %296 = dma.done [#allocation8], 256
        $region60: #{albedo_forward.1} parent=43 // pred_fallthru
          _
        // Predicated region
        $region61: #{albedo_forward.1} parent=43 // pred_check
          %p297 = pneg %p127
        $region62: #{albedo_forward.1} parent=43 // pred_check_branch
          %299 = sbr.rel (%p297) target = $region64
        $region63: #{albedo_forward.1} parent=43 // pred_region
          %300 = dma.done [#allocation8], 2048
        $region64: #{albedo_forward.1} parent=43 // pred_fallthru
          _
        %s301 = sand.u32 %s30, 1
        %s302 = scalar_lea.sflag [#allocation3], %s301
        %s303 = sand.u32 %s30, 1
        %s304 = smul.addr %s303, 512
        %s305 = scalar_lea.vmem [#allocation2], %s304
        %p306 = pneg %p43
        %p307 = pneg %p40
        %p308 = pneg %p64
        %p309 = pneg %p61
        %p310 = pneg %p85
        %p311 = pneg %p82
        %p312 = pneg %p106
        %p313 = pneg %p103
        %p314 = pneg %p127
        %p315 = pneg %p124
        %p316 = pneg %p148
        %p317 = pneg %p145
        %p318 = pneg %p174
        %p319 = pneg %p171
        %s320 = smul.u32 64, %s22
        %p321 = scmp.lt.s32.totalorder %s320, 255
        %s322 = scalar_select %p321, %s320, 255
        %s323 = smul.addr %s322, 8
        %s324 = scalar_lea.vmem %s6, %s323
        %s325 = smul.u32 64, %s22
        %s326 = smul.u32 64, %s22
        %p327 = scmp.lt.s32.totalorder %s326, 255
        %s328 = scalar_select %p327, %s326, 255
        %s329 = smul.addr %s328, 8
        %s330 = scalar_lea.vmem %s6, %s329
        %s331 = smul.u32 64, %s22
        %v333 = vld [vmem:[%s280] sm:$0xff]
        %v334 = vld [vmem:[%s280 + $0x8] sm:$0xff]
        %v335 = vld [vmem:[%s280 + $0x10] sm:$0xff]
        %v336 = vld [vmem:[%s280 + $0x18] sm:$0xff]
        %v337 = vld [vmem:[%s280 + $0x20] sm:$0xff]
        %v338 = vld [vmem:[%s280 + $0x28] sm:$0xff]
        %v339 = vld [vmem:[%s280 + $0x30] sm:$0xff]
        %v340 = vld [vmem:[%s280 + $0x38] sm:$0xff]
        %v341 = vld [vmem:[%s280 + $0x40] sm:$0xff]
        %v342 = vld [vmem:[%s280 + $0x48] sm:$0xff]
        %v343 = vld [vmem:[%s280 + $0x50] sm:$0xff]
        %v344 = vld [vmem:[%s280 + $0x58] sm:$0xff]
        %v345 = vld [vmem:[%s280 + $0x60] sm:$0xff]
        %v346 = vld [vmem:[%s280 + $0x68] sm:$0xff]
        %v347 = vld [vmem:[%s280 + $0x70] sm:$0xff]
        %v348 = vld [vmem:[%s280 + $0x78] sm:$0xff]
        %v349 = vld [vmem:[%s280 + $0x80] sm:$0xff]
        %v350 = vld [vmem:[%s280 + $0x88] sm:$0xff]
        %v351 = vld [vmem:[%s280 + $0x90] sm:$0xff]
        %v352 = vld [vmem:[%s280 + $0x98] sm:$0xff]
        %v353 = vld [vmem:[%s280 + $0xa0] sm:$0xff]
        %v354 = vld [vmem:[%s280 + $0xa8] sm:$0xff]
        %v355 = vld [vmem:[%s280 + $0xb0] sm:$0xff]
        %v356 = vld [vmem:[%s280 + $0xb8] sm:$0xff]
        %v357 = vld [vmem:[%s280 + $0xc0] sm:$0xff]
        %v358 = vld [vmem:[%s280 + $0xc8] sm:$0xff]
        %v359 = vld [vmem:[%s280 + $0xd0] sm:$0xff]
        %v360 = vld [vmem:[%s280 + $0xd8] sm:$0xff]
        %v361 = vld [vmem:[%s280 + $0xe0] sm:$0xff]
        %v362 = vld [vmem:[%s280 + $0xe8] sm:$0xff]
        %v363 = vld [vmem:[%s280 + $0xf0] sm:$0xff]
        %v364 = vld [vmem:[%s280 + $0xf8] sm:$0xff]
        %v365 = vld [vmem:[%s280 + $0x100] sm:$0xff]
        %v366 = vld [vmem:[%s280 + $0x108] sm:$0xff]
        %v367 = vld [vmem:[%s280 + $0x110] sm:$0xff]
        %v368 = vld [vmem:[%s280 + $0x118] sm:$0xff]
        %v369 = vld [vmem:[%s280 + $0x120] sm:$0xff]
        %v370 = vld [vmem:[%s280 + $0x128] sm:$0xff]
        %v371 = vld [vmem:[%s280 + $0x130] sm:$0xff]
        %v372 = vld [vmem:[%s280 + $0x138] sm:$0xff]
        %v373 = vld [vmem:[%s280 + $0x140] sm:$0xff]
        %v374 = vld [vmem:[%s280 + $0x148] sm:$0xff]
        %v375 = vld [vmem:[%s280 + $0x150] sm:$0xff]
        %v376 = vld [vmem:[%s280 + $0x158] sm:$0xff]
        %v377 = vld [vmem:[%s280 + $0x160] sm:$0xff]
        %v378 = vld [vmem:[%s280 + $0x168] sm:$0xff]
        %v379 = vld [vmem:[%s280 + $0x170] sm:$0xff]
        %v380 = vld [vmem:[%s280 + $0x178] sm:$0xff]
        %v381 = vld [vmem:[%s280 + $0x180] sm:$0xff]
        %v382 = vld [vmem:[%s280 + $0x188] sm:$0xff]
        %v383 = vld [vmem:[%s280 + $0x190] sm:$0xff]
        %v384 = vld [vmem:[%s280 + $0x198] sm:$0xff]
        %v385 = vld [vmem:[%s280 + $0x1a0] sm:$0xff]
        %v386 = vld [vmem:[%s280 + $0x1a8] sm:$0xff]
        %v387 = vld [vmem:[%s280 + $0x1b0] sm:$0xff]
        %v388 = vld [vmem:[%s280 + $0x1b8] sm:$0xff]
        %v389 = vld [vmem:[%s280 + $0x1c0] sm:$0xff]
        %v390 = vld [vmem:[%s280 + $0x1c8] sm:$0xff]
        %v391 = vld [vmem:[%s280 + $0x1d0] sm:$0xff]
        %v392 = vld [vmem:[%s280 + $0x1d8] sm:$0xff]
        %v393 = vld [vmem:[%s280 + $0x1e0] sm:$0xff]
        %v394 = vld [vmem:[%s280 + $0x1e8] sm:$0xff]
        %v395 = vld [vmem:[%s280 + $0x1f0] sm:$0xff]
        %v396 = vld [vmem:[%s280 + $0x1f8] sm:$0xff]
        %v397 = vpack.c.bf16 %v334, %v333
        %v398 = vpack.c.bf16 %v336, %v335
        %v399 = vpack.c.bf16 %v338, %v337
        %v400 = vpack.c.bf16 %v340, %v339
        %v401 = vpack.c.bf16 %v342, %v341
        %v402 = vpack.c.bf16 %v344, %v343
        %v403 = vpack.c.bf16 %v346, %v345
        %v404 = vpack.c.bf16 %v348, %v347
        %v405 = vpack.c.bf16 %v350, %v349
        %v406 = vpack.c.bf16 %v352, %v351
        %v407 = vpack.c.bf16 %v354, %v353
        %v408 = vpack.c.bf16 %v356, %v355
        %v409 = vpack.c.bf16 %v358, %v357
        %v410 = vpack.c.bf16 %v360, %v359
        %v411 = vpack.c.bf16 %v362, %v361
        %v412 = vpack.c.bf16 %v364, %v363
        %v413 = vpack.c.bf16 %v366, %v365
        %v414 = vpack.c.bf16 %v368, %v367
        %v415 = vpack.c.bf16 %v370, %v369
        %v416 = vpack.c.bf16 %v372, %v371
        %v417 = vpack.c.bf16 %v374, %v373
        %v418 = vpack.c.bf16 %v376, %v375
        %v419 = vpack.c.bf16 %v378, %v377
        %v420 = vpack.c.bf16 %v380, %v379
        %v421 = vpack.c.bf16 %v382, %v381
        %v422 = vpack.c.bf16 %v384, %v383
        %v423 = vpack.c.bf16 %v386, %v385
        %v424 = vpack.c.bf16 %v388, %v387
        %v425 = vpack.c.bf16 %v390, %v389
        %v426 = vpack.c.bf16 %v392, %v391
        %v427 = vpack.c.bf16 %v394, %v393
        %v428 = vpack.c.bf16 %v396, %v395
        %v429 = vld [vmem:[#allocation4] sm:$0xff]
        %v430 = vld [vmem:[#allocation4 + $0x8] sm:$0xff]
        %v431 = vld [vmem:[#allocation4 + $0x10] sm:$0xff]
        %v432 = vld [vmem:[#allocation4 + $0x18] sm:$0xff]
        %v433 = vld [vmem:[#allocation4 + $0x20] sm:$0xff]
        %v434 = vld [vmem:[#allocation4 + $0x28] sm:$0xff]
        %v435 = vld [vmem:[#allocation4 + $0x30] sm:$0xff]
        %v436 = vld [vmem:[#allocation4 + $0x38] sm:$0xff]
        %v437 = vld [vmem:[#allocation4 + $0x40] sm:$0xff]
        %v438 = vld [vmem:[#allocation4 + $0x48] sm:$0xff]
        %v439 = vld [vmem:[#allocation4 + $0x50] sm:$0xff]
        %v440 = vld [vmem:[#allocation4 + $0x58] sm:$0xff]
        %v441 = vld [vmem:[#allocation4 + $0x60] sm:$0xff]
        %v442 = vld [vmem:[#allocation4 + $0x68] sm:$0xff]
        %v443 = vld [vmem:[#allocation4 + $0x70] sm:$0xff]
        %v444 = vld [vmem:[#allocation4 + $0x78] sm:$0xff]
        %v445 = vld [vmem:[#allocation7] sm:$0x3]
        %v447 = vlaneseq
        %v448 = vshrl.u32 %v447, 7
        %v449 = vsub.s32 0, %v448
        %v450 = vrot.slane %v445, %v449
        %v451 = vlaneseq
        %v452 = vshrl.u32 %v451, 7
        %v453 = vsub.s32 1, %v452
        %v454 = vrot.slane %v445, %v453
        %v473 = vunpack.c.l.b16 %v429
        %v474 = vunpack.c.h.b16 %v429
        %v475 = vunpack.c.l.b16 %v430
        %v476 = vunpack.c.h.b16 %v430
        %v477 = vunpack.c.l.b16 %v431
        %v478 = vunpack.c.h.b16 %v431
        %v479 = vunpack.c.l.b16 %v432
        %v480 = vunpack.c.h.b16 %v432
        %v481 = vunpack.c.l.b16 %v433
        %v482 = vunpack.c.h.b16 %v433
        %v483 = vunpack.c.l.b16 %v434
        %v484 = vunpack.c.h.b16 %v434
        %v485 = vunpack.c.l.b16 %v435
        %v486 = vunpack.c.h.b16 %v435
        %v487 = vunpack.c.l.b16 %v436
        %v488 = vunpack.c.h.b16 %v436
        %v489 = vunpack.c.l.b16 %v437
        %v490 = vunpack.c.h.b16 %v437
        %v491 = vunpack.c.l.b16 %v438
        %v492 = vunpack.c.h.b16 %v438
        %v493 = vunpack.c.l.b16 %v439
        %v494 = vunpack.c.h.b16 %v439
        %v495 = vunpack.c.l.b16 %v440
        %v496 = vunpack.c.h.b16 %v440
        %v497 = vunpack.c.l.b16 %v441
        %v498 = vunpack.c.h.b16 %v441
        %v499 = vunpack.c.l.b16 %v442
        %v500 = vunpack.c.h.b16 %v442
        %v501 = vunpack.c.l.b16 %v443
        %v502 = vunpack.c.h.b16 %v443
        %v503 = vunpack.c.l.b16 %v444
        %v504 = vunpack.c.h.b16 %v444
        %v505 = vpack.c.b16 %v475, %v473
        %v506 = vpack.c.b16 %v476, %v474
        %v507 = vpack.c.b16 %v479, %v477
        %v508 = vpack.c.b16 %v480, %v478
        %v509 = vpack.c.b16 %v483, %v481
        %v510 = vpack.c.b16 %v484, %v482
        %v511 = vpack.c.b16 %v487, %v485
        %v512 = vpack.c.b16 %v488, %v486
        %v513 = vpack.c.b16 %v491, %v489
        %v514 = vpack.c.b16 %v492, %v490
        %v515 = vpack.c.b16 %v495, %v493
        %v516 = vpack.c.b16 %v496, %v494
        %v517 = vpack.c.b16 %v499, %v497
        %v518 = vpack.c.b16 %v500, %v498
        %v519 = vpack.c.b16 %v503, %v501
        %v520 = vpack.c.b16 %v504, %v502
        %537 = vmatprep.subr.bf16.mxu0 %v520
        %538 = vmatpush1.bf16.msra.mxu0 %v519
        %539 = vmatprep.subr.bf16.mxu0 %v518
        %540 = vmatpush1.bf16.msra.mxu0 %v517
        %541 = vmatprep.subr.bf16.mxu0 %v516
        %542 = vmatpush1.bf16.msra.mxu0 %v515
        %543 = vmatprep.subr.bf16.mxu0 %v514
        %544 = vmatpush1.bf16.msra.mxu0 %v513
        %545 = vmatprep.subr.bf16.mxu0 %v512
        %546 = vmatpush1.bf16.msra.mxu0 %v511
        %547 = vmatprep.subr.bf16.mxu0 %v510
        %548 = vmatpush1.bf16.msra.mxu0 %v509
        %549 = vmatprep.subr.bf16.mxu0 %v508
        %550 = vmatpush1.bf16.msra.mxu0 %v507
        %551 = vmatprep.subr.bf16.mxu0 %v506
        %552 = vmatpush1.bf16.msra.mxu0 %v505
        %553 = vmatprep.subr.bf16.mxu0 0
        %554 = vmatpush2.bf16.msra.mxu0 0
        %555 = vmatprep.subr.bf16.mxu0 0
        %556 = vmatpush2.bf16.msra.mxu0 0
        %557 = vmatprep.subr.bf16.mxu0 0
        %558 = vmatpush2.bf16.msra.mxu0 0
        %559 = vmatprep.subr.bf16.mxu0 0
        %560 = vmatpush2.bf16.msra.mxu0 0
        %561 = vmatprep.subr.bf16.mxu0 0
        %562 = vmatpush2.bf16.msra.mxu0 0
        %563 = vmatprep.subr.bf16.mxu0 0
        %564 = vmatpush2.bf16.msra.mxu0 0
        %565 = vmatprep.subr.bf16.mxu0 0
        %566 = vmatpush2.bf16.msra.mxu0 0
        %567 = vmatprep.subr.bf16.mxu0 0
        %568 = vmatpush2.bf16.msra.mxu0 0
        %569 = vmatprep.mubr.bf16.mxu0 0
        %570 = vmatmul.mubr.bf16.gmra.mxu0 %v397
        %v571 = vpop.f32.mrf.mxu0
        %v572 = vadd.f32 %v450, %v571
        %v573 = vpop.f32.mrf.mxu0
        %v574 = vadd.f32 %v454, %v573
        %v575 = vpop.f32.mrf.mxu0
        %v576 = vadd.f32 %v450, %v575
        %v577 = vpop.f32.mrf.mxu0
        %v578 = vadd.f32 %v454, %v577
        %579 = vmatprep.mubr.bf16.mxu0 0
        %580 = vmatmul.mubr.bf16.gmra.mxu0 %v398
        %v581 = vpop.f32.mrf.mxu0
        %v582 = vadd.f32 %v450, %v581
        %v583 = vpop.f32.mrf.mxu0
        %v584 = vadd.f32 %v454, %v583
        %v585 = vpop.f32.mrf.mxu0
        %v586 = vadd.f32 %v450, %v585
        %v587 = vpop.f32.mrf.mxu0
        %v588 = vadd.f32 %v454, %v587
        %589 = vmatprep.mubr.bf16.mxu0 0
        %590 = vmatmul.mubr.bf16.gmra.mxu0 %v399
        %v591 = vpop.f32.mrf.mxu0
        %v592 = vadd.f32 %v450, %v591
        %v593 = vpop.f32.mrf.mxu0
        %v594 = vadd.f32 %v454, %v593
        %v595 = vpop.f32.mrf.mxu0
        %v596 = vadd.f32 %v450, %v595
        %v597 = vpop.f32.mrf.mxu0
        %v598 = vadd.f32 %v454, %v597
        %599 = vmatprep.mubr.bf16.mxu0 0
        %600 = vmatmul.mubr.bf16.gmra.mxu0 %v400
        %v601 = vpop.f32.mrf.mxu0
        %v602 = vadd.f32 %v450, %v601
        %v603 = vpop.f32.mrf.mxu0
        %v604 = vadd.f32 %v454, %v603
        %v605 = vpop.f32.mrf.mxu0
        %v606 = vadd.f32 %v450, %v605
        %v607 = vpop.f32.mrf.mxu0
        %v608 = vadd.f32 %v454, %v607
        %609 = vmatprep.mubr.bf16.mxu0 0
        %610 = vmatmul.mubr.bf16.gmra.mxu0 %v401
        %v611 = vpop.f32.mrf.mxu0
        %v612 = vadd.f32 %v450, %v611
        %v613 = vpop.f32.mrf.mxu0
        %v614 = vadd.f32 %v454, %v613
        %v615 = vpop.f32.mrf.mxu0
        %v616 = vadd.f32 %v450, %v615
        %v617 = vpop.f32.mrf.mxu0
        %v618 = vadd.f32 %v454, %v617
        %619 = vmatprep.mubr.bf16.mxu0 0
        %620 = vmatmul.mubr.bf16.gmra.mxu0 %v402
        %v621 = vpop.f32.mrf.mxu0
        %v622 = vadd.f32 %v450, %v621
        %v623 = vpop.f32.mrf.mxu0
        %v624 = vadd.f32 %v454, %v623
        %v625 = vpop.f32.mrf.mxu0
        %v626 = vadd.f32 %v450, %v625
        %v627 = vpop.f32.mrf.mxu0
        %v628 = vadd.f32 %v454, %v627
        %629 = vmatprep.mubr.bf16.mxu0 0
        %630 = vmatmul.mubr.bf16.gmra.mxu0 %v403
        %v631 = vpop.f32.mrf.mxu0
        %v632 = vadd.f32 %v450, %v631
        %v633 = vpop.f32.mrf.mxu0
        %v634 = vadd.f32 %v454, %v633
        %v635 = vpop.f32.mrf.mxu0
        %v636 = vadd.f32 %v450, %v635
        %v637 = vpop.f32.mrf.mxu0
        %v638 = vadd.f32 %v454, %v637
        %639 = vmatprep.mubr.bf16.mxu0 0
        %640 = vmatmul.mubr.bf16.gmra.mxu0 %v404
        %v641 = vpop.f32.mrf.mxu0
        %v642 = vadd.f32 %v450, %v641
        %v643 = vpop.f32.mrf.mxu0
        %v644 = vadd.f32 %v454, %v643
        %v645 = vpop.f32.mrf.mxu0
        %v646 = vadd.f32 %v450, %v645
        %v647 = vpop.f32.mrf.mxu0
        %v648 = vadd.f32 %v454, %v647
        %649 = vmatprep.mubr.bf16.mxu0 0
        %650 = vmatmul.mubr.bf16.gmra.mxu0 %v405
        %v651 = vpop.f32.mrf.mxu0
        %v652 = vadd.f32 %v450, %v651
        %v653 = vpop.f32.mrf.mxu0
        %v654 = vadd.f32 %v454, %v653
        %v655 = vpop.f32.mrf.mxu0
        %v656 = vadd.f32 %v450, %v655
        %v657 = vpop.f32.mrf.mxu0
        %v658 = vadd.f32 %v454, %v657
        %659 = vmatprep.mubr.bf16.mxu0 0
        %660 = vmatmul.mubr.bf16.gmra.mxu0 %v406
        %v661 = vpop.f32.mrf.mxu0
        %v662 = vadd.f32 %v450, %v661
        %v663 = vpop.f32.mrf.mxu0
        %v664 = vadd.f32 %v454, %v663
        %v665 = vpop.f32.mrf.mxu0
        %v666 = vadd.f32 %v450, %v665
        %v667 = vpop.f32.mrf.mxu0
        %v668 = vadd.f32 %v454, %v667
        %669 = vmatprep.mubr.bf16.mxu0 0
        %670 = vmatmul.mubr.bf16.gmra.mxu0 %v407
        %v671 = vpop.f32.mrf.mxu0
        %v672 = vadd.f32 %v450, %v671
        %v673 = vpop.f32.mrf.mxu0
        %v674 = vadd.f32 %v454, %v673
        %v675 = vpop.f32.mrf.mxu0
        %v676 = vadd.f32 %v450, %v675
        %v677 = vpop.f32.mrf.mxu0
        %v678 = vadd.f32 %v454, %v677
        %679 = vmatprep.mubr.bf16.mxu0 0
        %680 = vmatmul.mubr.bf16.gmra.mxu0 %v408
        %v681 = vpop.f32.mrf.mxu0
        %v682 = vadd.f32 %v450, %v681
        %v683 = vpop.f32.mrf.mxu0
        %v684 = vadd.f32 %v454, %v683
        %v685 = vpop.f32.mrf.mxu0
        %v686 = vadd.f32 %v450, %v685
        %v687 = vpop.f32.mrf.mxu0
        %v688 = vadd.f32 %v454, %v687
        %689 = vmatprep.mubr.bf16.mxu0 0
        %690 = vmatmul.mubr.bf16.gmra.mxu0 %v409
        %v691 = vpop.f32.mrf.mxu0
        %v692 = vadd.f32 %v450, %v691
        %v693 = vpop.f32.mrf.mxu0
        %v694 = vadd.f32 %v454, %v693
        %v695 = vpop.f32.mrf.mxu0
        %v696 = vadd.f32 %v450, %v695
        %v697 = vpop.f32.mrf.mxu0
        %v698 = vadd.f32 %v454, %v697
        %699 = vmatprep.mubr.bf16.mxu0 0
        %700 = vmatmul.mubr.bf16.gmra.mxu0 %v410
        %v701 = vpop.f32.mrf.mxu0
        %v702 = vadd.f32 %v450, %v701
        %v703 = vpop.f32.mrf.mxu0
        %v704 = vadd.f32 %v454, %v703
        %v705 = vpop.f32.mrf.mxu0
        %v706 = vadd.f32 %v450, %v705
        %v707 = vpop.f32.mrf.mxu0
        %v708 = vadd.f32 %v454, %v707
        %709 = vmatprep.mubr.bf16.mxu0 0
        %710 = vmatmul.mubr.bf16.gmra.mxu0 %v411
        %v711 = vpop.f32.mrf.mxu0
        %v712 = vadd.f32 %v450, %v711
        %v713 = vpop.f32.mrf.mxu0
        %v714 = vadd.f32 %v454, %v713
        %v715 = vpop.f32.mrf.mxu0
        %v716 = vadd.f32 %v450, %v715
        %v717 = vpop.f32.mrf.mxu0
        %v718 = vadd.f32 %v454, %v717
        %719 = vmatprep.mubr.bf16.mxu0 0
        %720 = vmatmul.mubr.bf16.gmra.mxu0 %v412
        %v721 = vpop.f32.mrf.mxu0
        %v722 = vadd.f32 %v450, %v721
        %v723 = vpop.f32.mrf.mxu0
        %v724 = vadd.f32 %v454, %v723
        %v725 = vpop.f32.mrf.mxu0
        %v726 = vadd.f32 %v450, %v725
        %v727 = vpop.f32.mrf.mxu0
        %v728 = vadd.f32 %v454, %v727
        %729 = vmatprep.mubr.bf16.mxu0 0
        %730 = vmatmul.mubr.bf16.gmra.mxu0 %v413
        %v731 = vpop.f32.mrf.mxu0
        %v732 = vadd.f32 %v450, %v731
        %v733 = vpop.f32.mrf.mxu0
        %v734 = vadd.f32 %v454, %v733
        %v735 = vpop.f32.mrf.mxu0
        %v736 = vadd.f32 %v450, %v735
        %v737 = vpop.f32.mrf.mxu0
        %v738 = vadd.f32 %v454, %v737
        %739 = vmatprep.mubr.bf16.mxu0 0
        %740 = vmatmul.mubr.bf16.gmra.mxu0 %v414
        %v741 = vpop.f32.mrf.mxu0
        %v742 = vadd.f32 %v450, %v741
        %v743 = vpop.f32.mrf.mxu0
        %v744 = vadd.f32 %v454, %v743
        %v745 = vpop.f32.mrf.mxu0
        %v746 = vadd.f32 %v450, %v745
        %v747 = vpop.f32.mrf.mxu0
        %v748 = vadd.f32 %v454, %v747
        %749 = vmatprep.mubr.bf16.mxu0 0
        %750 = vmatmul.mubr.bf16.gmra.mxu0 %v415
        %v751 = vpop.f32.mrf.mxu0
        %v752 = vadd.f32 %v450, %v751
        %v753 = vpop.f32.mrf.mxu0
        %v754 = vadd.f32 %v454, %v753
        %v755 = vpop.f32.mrf.mxu0
        %v756 = vadd.f32 %v450, %v755
        %v757 = vpop.f32.mrf.mxu0
        %v758 = vadd.f32 %v454, %v757
        %759 = vmatprep.mubr.bf16.mxu0 0
        %760 = vmatmul.mubr.bf16.gmra.mxu0 %v416
        %v761 = vpop.f32.mrf.mxu0
        %v762 = vadd.f32 %v450, %v761
        %v763 = vpop.f32.mrf.mxu0
        %v764 = vadd.f32 %v454, %v763
        %v765 = vpop.f32.mrf.mxu0
        %v766 = vadd.f32 %v450, %v765
        %v767 = vpop.f32.mrf.mxu0
        %v768 = vadd.f32 %v454, %v767
        %769 = vmatprep.mubr.bf16.mxu0 0
        %770 = vmatmul.mubr.bf16.gmra.mxu0 %v417
        %v771 = vpop.f32.mrf.mxu0
        %v772 = vadd.f32 %v450, %v771
        %v773 = vpop.f32.mrf.mxu0
        %v774 = vadd.f32 %v454, %v773
        %v775 = vpop.f32.mrf.mxu0
        %v776 = vadd.f32 %v450, %v775
        %v777 = vpop.f32.mrf.mxu0
        %v778 = vadd.f32 %v454, %v777
        %779 = vmatprep.mubr.bf16.mxu0 0
        %780 = vmatmul.mubr.bf16.gmra.mxu0 %v418
        %v781 = vpop.f32.mrf.mxu0
        %v782 = vadd.f32 %v450, %v781
        %v783 = vpop.f32.mrf.mxu0
        %v784 = vadd.f32 %v454, %v783
        %v785 = vpop.f32.mrf.mxu0
        %v786 = vadd.f32 %v450, %v785
        %v787 = vpop.f32.mrf.mxu0
        %v788 = vadd.f32 %v454, %v787
        %789 = vmatprep.mubr.bf16.mxu0 0
        %790 = vmatmul.mubr.bf16.gmra.mxu0 %v419
        %v791 = vpop.f32.mrf.mxu0
        %v792 = vadd.f32 %v450, %v791
        %v793 = vpop.f32.mrf.mxu0
        %v794 = vadd.f32 %v454, %v793
        %v795 = vpop.f32.mrf.mxu0
        %v796 = vadd.f32 %v450, %v795
        %v797 = vpop.f32.mrf.mxu0
        %v798 = vadd.f32 %v454, %v797
        %799 = vmatprep.mubr.bf16.mxu0 0
        %800 = vmatmul.mubr.bf16.gmra.mxu0 %v420
        %v801 = vpop.f32.mrf.mxu0
        %v802 = vadd.f32 %v450, %v801
        %v803 = vpop.f32.mrf.mxu0
        %v804 = vadd.f32 %v454, %v803
        %v805 = vpop.f32.mrf.mxu0
        %v806 = vadd.f32 %v450, %v805
        %v807 = vpop.f32.mrf.mxu0
        %v808 = vadd.f32 %v454, %v807
        %809 = vmatprep.mubr.bf16.mxu0 0
        %810 = vmatmul.mubr.bf16.gmra.mxu0 %v421
        %v811 = vpop.f32.mrf.mxu0
        %v812 = vadd.f32 %v450, %v811
        %v813 = vpop.f32.mrf.mxu0
        %v814 = vadd.f32 %v454, %v813
        %v815 = vpop.f32.mrf.mxu0
        %v816 = vadd.f32 %v450, %v815
        %v817 = vpop.f32.mrf.mxu0
        %v818 = vadd.f32 %v454, %v817
        %819 = vmatprep.mubr.bf16.mxu0 0
        %820 = vmatmul.mubr.bf16.gmra.mxu0 %v422
        %v821 = vpop.f32.mrf.mxu0
        %v822 = vadd.f32 %v450, %v821
        %v823 = vpop.f32.mrf.mxu0
        %v824 = vadd.f32 %v454, %v823
        %v825 = vpop.f32.mrf.mxu0
        %v826 = vadd.f32 %v450, %v825
        %v827 = vpop.f32.mrf.mxu0
        %v828 = vadd.f32 %v454, %v827
        %829 = vmatprep.mubr.bf16.mxu0 0
        %830 = vmatmul.mubr.bf16.gmra.mxu0 %v423
        %v831 = vpop.f32.mrf.mxu0
        %v832 = vadd.f32 %v450, %v831
        %v833 = vpop.f32.mrf.mxu0
        %v834 = vadd.f32 %v454, %v833
        %v835 = vpop.f32.mrf.mxu0
        %v836 = vadd.f32 %v450, %v835
        %v837 = vpop.f32.mrf.mxu0
        %v838 = vadd.f32 %v454, %v837
        %839 = vmatprep.mubr.bf16.mxu0 0
        %840 = vmatmul.mubr.bf16.gmra.mxu0 %v424
        %v841 = vpop.f32.mrf.mxu0
        %v842 = vadd.f32 %v450, %v841
        %v843 = vpop.f32.mrf.mxu0
        %v844 = vadd.f32 %v454, %v843
        %v845 = vpop.f32.mrf.mxu0
        %v846 = vadd.f32 %v450, %v845
        %v847 = vpop.f32.mrf.mxu0
        %v848 = vadd.f32 %v454, %v847
        %849 = vmatprep.mubr.bf16.mxu0 0
        %850 = vmatmul.mubr.bf16.gmra.mxu0 %v425
        %v851 = vpop.f32.mrf.mxu0
        %v852 = vadd.f32 %v450, %v851
        %v853 = vpop.f32.mrf.mxu0
        %v854 = vadd.f32 %v454, %v853
        %v855 = vpop.f32.mrf.mxu0
        %v856 = vadd.f32 %v450, %v855
        %v857 = vpop.f32.mrf.mxu0
        %v858 = vadd.f32 %v454, %v857
        %859 = vmatprep.mubr.bf16.mxu0 0
        %860 = vmatmul.mubr.bf16.gmra.mxu0 %v426
        %v861 = vpop.f32.mrf.mxu0
        %v862 = vadd.f32 %v450, %v861
        %v863 = vpop.f32.mrf.mxu0
        %v864 = vadd.f32 %v454, %v863
        %v865 = vpop.f32.mrf.mxu0
        %v866 = vadd.f32 %v450, %v865
        %v867 = vpop.f32.mrf.mxu0
        %v868 = vadd.f32 %v454, %v867
        %869 = vmatprep.mubr.bf16.mxu0 0
        %870 = vmatmul.mubr.bf16.gmra.mxu0 %v427
        %v871 = vpop.f32.mrf.mxu0
        %v872 = vadd.f32 %v450, %v871
        %v873 = vpop.f32.mrf.mxu0
        %v874 = vadd.f32 %v454, %v873
        %v875 = vpop.f32.mrf.mxu0
        %v876 = vadd.f32 %v450, %v875
        %v877 = vpop.f32.mrf.mxu0
        %v878 = vadd.f32 %v454, %v877
        %879 = vmatprep.mubr.bf16.mxu0 0
        %880 = vmatmul.mubr.bf16.gmra.mxu0 %v428
        %v881 = vpop.f32.mrf.mxu0
        %v882 = vadd.f32 %v450, %v881
        %v883 = vpop.f32.mrf.mxu0
        %v884 = vadd.f32 %v454, %v883
        %v885 = vpop.f32.mrf.mxu0
        %v886 = vadd.f32 %v450, %v885
        %v887 = vpop.f32.mrf.mxu0
        %v888 = vadd.f32 %v454, %v887
        %889 = vdwg.mxu0
        %v890 = vmax.f32 %v572, 0.0
        %v891 = vmax.f32 %v574, 0.0
        %v892 = vmax.f32 %v576, 0.0
        %v893 = vmax.f32 %v578, 0.0
        %v894 = vmax.f32 %v582, 0.0
        %v895 = vmax.f32 %v584, 0.0
        %v896 = vmax.f32 %v586, 0.0
        %v897 = vmax.f32 %v588, 0.0
        %v898 = vmax.f32 %v592, 0.0
        %v899 = vmax.f32 %v594, 0.0
        %v900 = vmax.f32 %v596, 0.0
        %v901 = vmax.f32 %v598, 0.0
        %v902 = vmax.f32 %v602, 0.0
        %v903 = vmax.f32 %v604, 0.0
        %v904 = vmax.f32 %v606, 0.0
        %v905 = vmax.f32 %v608, 0.0
        %v906 = vmax.f32 %v612, 0.0
        %v907 = vmax.f32 %v614, 0.0
        %v908 = vmax.f32 %v616, 0.0
        %v909 = vmax.f32 %v618, 0.0
        %v910 = vmax.f32 %v622, 0.0
        %v911 = vmax.f32 %v624, 0.0
        %v912 = vmax.f32 %v626, 0.0
        %v913 = vmax.f32 %v628, 0.0
        %v914 = vmax.f32 %v632, 0.0
        %v915 = vmax.f32 %v634, 0.0
        %v916 = vmax.f32 %v636, 0.0
        %v917 = vmax.f32 %v638, 0.0
        %v918 = vmax.f32 %v642, 0.0
        %v919 = vmax.f32 %v644, 0.0
        %v920 = vmax.f32 %v646, 0.0
        %v921 = vmax.f32 %v648, 0.0
        %v922 = vmax.f32 %v652, 0.0
        %v923 = vmax.f32 %v654, 0.0
        %v924 = vmax.f32 %v656, 0.0
        %v925 = vmax.f32 %v658, 0.0
        %v926 = vmax.f32 %v662, 0.0
        %v927 = vmax.f32 %v664, 0.0
        %v928 = vmax.f32 %v666, 0.0
        %v929 = vmax.f32 %v668, 0.0
        %v930 = vmax.f32 %v672, 0.0
        %v931 = vmax.f32 %v674, 0.0
        %v932 = vmax.f32 %v676, 0.0
        %v933 = vmax.f32 %v678, 0.0
        %v934 = vmax.f32 %v682, 0.0
        %v935 = vmax.f32 %v684, 0.0
        %v936 = vmax.f32 %v686, 0.0
        %v937 = vmax.f32 %v688, 0.0
        %v938 = vmax.f32 %v692, 0.0
        %v939 = vmax.f32 %v694, 0.0
        %v940 = vmax.f32 %v696, 0.0
        %v941 = vmax.f32 %v698, 0.0
        %v942 = vmax.f32 %v702, 0.0
        %v943 = vmax.f32 %v704, 0.0
        %v944 = vmax.f32 %v706, 0.0
        %v945 = vmax.f32 %v708, 0.0
        %v946 = vmax.f32 %v712, 0.0
        %v947 = vmax.f32 %v714, 0.0
        %v948 = vmax.f32 %v716, 0.0
        %v949 = vmax.f32 %v718, 0.0
        %v950 = vmax.f32 %v722, 0.0
        %v951 = vmax.f32 %v724, 0.0
        %v952 = vmax.f32 %v726, 0.0
        %v953 = vmax.f32 %v728, 0.0
        %v954 = vmax.f32 %v732, 0.0
        %v955 = vmax.f32 %v734, 0.0
        %v956 = vmax.f32 %v736, 0.0
        %v957 = vmax.f32 %v738, 0.0
        %v958 = vmax.f32 %v742, 0.0
        %v959 = vmax.f32 %v744, 0.0
        %v960 = vmax.f32 %v746, 0.0
        %v961 = vmax.f32 %v748, 0.0
        %v962 = vmax.f32 %v752, 0.0
        %v963 = vmax.f32 %v754, 0.0
        %v964 = vmax.f32 %v756, 0.0
        %v965 = vmax.f32 %v758, 0.0
        %v966 = vmax.f32 %v762, 0.0
        %v967 = vmax.f32 %v764, 0.0
        %v968 = vmax.f32 %v766, 0.0
        %v969 = vmax.f32 %v768, 0.0
        %v970 = vmax.f32 %v772, 0.0
        %v971 = vmax.f32 %v774, 0.0
        %v972 = vmax.f32 %v776, 0.0
        %v973 = vmax.f32 %v778, 0.0
        %v974 = vmax.f32 %v782, 0.0
        %v975 = vmax.f32 %v784, 0.0
        %v976 = vmax.f32 %v786, 0.0
        %v977 = vmax.f32 %v788, 0.0
        %v978 = vmax.f32 %v792, 0.0
        %v979 = vmax.f32 %v794, 0.0
        %v980 = vmax.f32 %v796, 0.0
        %v981 = vmax.f32 %v798, 0.0
        %v982 = vmax.f32 %v802, 0.0
        %v983 = vmax.f32 %v804, 0.0
        %v984 = vmax.f32 %v806, 0.0
        %v985 = vmax.f32 %v808, 0.0
        %v986 = vmax.f32 %v812, 0.0
        %v987 = vmax.f32 %v814, 0.0
        %v988 = vmax.f32 %v816, 0.0
        %v989 = vmax.f32 %v818, 0.0
        %v990 = vmax.f32 %v822, 0.0
        %v991 = vmax.f32 %v824, 0.0
        %v992 = vmax.f32 %v826, 0.0
        %v993 = vmax.f32 %v828, 0.0
        %v994 = vmax.f32 %v832, 0.0
        %v995 = vmax.f32 %v834, 0.0
        %v996 = vmax.f32 %v836, 0.0
        %v997 = vmax.f32 %v838, 0.0
        %v998 = vmax.f32 %v842, 0.0
        %v999 = vmax.f32 %v844, 0.0
        %v1000 = vmax.f32 %v846, 0.0
        %v1001 = vmax.f32 %v848, 0.0
        %v1002 = vmax.f32 %v852, 0.0
        %v1003 = vmax.f32 %v854, 0.0
        %v1004 = vmax.f32 %v856, 0.0
        %v1005 = vmax.f32 %v858, 0.0
        %v1006 = vmax.f32 %v862, 0.0
        %v1007 = vmax.f32 %v864, 0.0
        %v1008 = vmax.f32 %v866, 0.0
        %v1009 = vmax.f32 %v868, 0.0
        %v1010 = vmax.f32 %v872, 0.0
        %v1011 = vmax.f32 %v874, 0.0
        %v1012 = vmax.f32 %v876, 0.0
        %v1013 = vmax.f32 %v878, 0.0
        %v1014 = vmax.f32 %v882, 0.0
        %v1015 = vmax.f32 %v884, 0.0
        %v1016 = vmax.f32 %v886, 0.0
        %v1017 = vmax.f32 %v888, 0.0
        %v1018 = vpack.c.bf16 %v892, %v890
        %v1019 = vpack.c.bf16 %v893, %v891
        %v1020 = vpack.c.bf16 %v896, %v894
        %v1021 = vpack.c.bf16 %v897, %v895
        %v1022 = vpack.c.bf16 %v900, %v898
        %v1023 = vpack.c.bf16 %v901, %v899
        %v1024 = vpack.c.bf16 %v904, %v902
        %v1025 = vpack.c.bf16 %v905, %v903
        %v1026 = vpack.c.bf16 %v908, %v906
        %v1027 = vpack.c.bf16 %v909, %v907
        %v1028 = vpack.c.bf16 %v912, %v910
        %v1029 = vpack.c.bf16 %v913, %v911
        %v1030 = vpack.c.bf16 %v916, %v914
        %v1031 = vpack.c.bf16 %v917, %v915
        %v1032 = vpack.c.bf16 %v920, %v918
        %v1033 = vpack.c.bf16 %v921, %v919
        %v1034 = vpack.c.bf16 %v924, %v922
        %v1035 = vpack.c.bf16 %v925, %v923
        %v1036 = vpack.c.bf16 %v928, %v926
        %v1037 = vpack.c.bf16 %v929, %v927
        %v1038 = vpack.c.bf16 %v932, %v930
        %v1039 = vpack.c.bf16 %v933, %v931
        %v1040 = vpack.c.bf16 %v936, %v934
        %v1041 = vpack.c.bf16 %v937, %v935
        %v1042 = vpack.c.bf16 %v940, %v938
        %v1043 = vpack.c.bf16 %v941, %v939
        %v1044 = vpack.c.bf16 %v944, %v942
        %v1045 = vpack.c.bf16 %v945, %v943
        %v1046 = vpack.c.bf16 %v948, %v946
        %v1047 = vpack.c.bf16 %v949, %v947
        %v1048 = vpack.c.bf16 %v952, %v950
        %v1049 = vpack.c.bf16 %v953, %v951
        %v1050 = vpack.c.bf16 %v956, %v954
        %v1051 = vpack.c.bf16 %v957, %v955
        %v1052 = vpack.c.bf16 %v960, %v958
        %v1053 = vpack.c.bf16 %v961, %v959
        %v1054 = vpack.c.bf16 %v964, %v962
        %v1055 = vpack.c.bf16 %v965, %v963
        %v1056 = vpack.c.bf16 %v968, %v966
        %v1057 = vpack.c.bf16 %v969, %v967
        %v1058 = vpack.c.bf16 %v972, %v970
        %v1059 = vpack.c.bf16 %v973, %v971
        %v1060 = vpack.c.bf16 %v976, %v974
        %v1061 = vpack.c.bf16 %v977, %v975
        %v1062 = vpack.c.bf16 %v980, %v978
        %v1063 = vpack.c.bf16 %v981, %v979
        %v1064 = vpack.c.bf16 %v984, %v982
        %v1065 = vpack.c.bf16 %v985, %v983
        %v1066 = vpack.c.bf16 %v988, %v986
        %v1067 = vpack.c.bf16 %v989, %v987
        %v1068 = vpack.c.bf16 %v992, %v990
        %v1069 = vpack.c.bf16 %v993, %v991
        %v1070 = vpack.c.bf16 %v996, %v994
        %v1071 = vpack.c.bf16 %v997, %v995
        %v1072 = vpack.c.bf16 %v1000, %v998
        %v1073 = vpack.c.bf16 %v1001, %v999
        %v1074 = vpack.c.bf16 %v1004, %v1002
        %v1075 = vpack.c.bf16 %v1005, %v1003
        %v1076 = vpack.c.bf16 %v1008, %v1006
        %v1077 = vpack.c.bf16 %v1009, %v1007
        %v1078 = vpack.c.bf16 %v1012, %v1010
        %v1079 = vpack.c.bf16 %v1013, %v1011
        %v1080 = vpack.c.bf16 %v1016, %v1014
        %v1081 = vpack.c.bf16 %v1017, %v1015
        %v1082 = vld [vmem:[#allocation6] sm:$0xff]
        %v1083 = vld [vmem:[#allocation6 + $0x8] sm:$0xff]
        %v1084 = vld [vmem:[#allocation6 + $0x10] sm:$0xff]
        %v1085 = vld [vmem:[#allocation6 + $0x18] sm:$0xff]
        %v1086 = vld [vmem:[#allocation6 + $0x20] sm:$0xff]
        %v1087 = vld [vmem:[#allocation6 + $0x28] sm:$0xff]
        %v1088 = vld [vmem:[#allocation6 + $0x30] sm:$0xff]
        %v1089 = vld [vmem:[#allocation6 + $0x38] sm:$0xff]
        %v1090 = vld [vmem:[#allocation6 + $0x40] sm:$0xff]
        %v1091 = vld [vmem:[#allocation6 + $0x48] sm:$0xff]
        %v1092 = vld [vmem:[#allocation6 + $0x50] sm:$0xff]
        %v1093 = vld [vmem:[#allocation6 + $0x58] sm:$0xff]
        %v1094 = vld [vmem:[#allocation6 + $0x60] sm:$0xff]
        %v1095 = vld [vmem:[#allocation6 + $0x68] sm:$0xff]
        %v1096 = vld [vmem:[#allocation6 + $0x70] sm:$0xff]
        %v1097 = vld [vmem:[#allocation6 + $0x78] sm:$0xff]
        %v1098 = vld [vmem:[#allocation6 + $0x80] sm:$0xff]
        %v1099 = vld [vmem:[#allocation6 + $0x88] sm:$0xff]
        %v1100 = vld [vmem:[#allocation6 + $0x90] sm:$0xff]
        %v1101 = vld [vmem:[#allocation6 + $0x98] sm:$0xff]
        %v1102 = vld [vmem:[#allocation6 + $0xa0] sm:$0xff]
        %v1103 = vld [vmem:[#allocation6 + $0xa8] sm:$0xff]
        %v1104 = vld [vmem:[#allocation6 + $0xb0] sm:$0xff]
        %v1105 = vld [vmem:[#allocation6 + $0xb8] sm:$0xff]
        %v1106 = vld [vmem:[#allocation6 + $0xc0] sm:$0xff]
        %v1107 = vld [vmem:[#allocation6 + $0xc8] sm:$0xff]
        %v1108 = vld [vmem:[#allocation6 + $0xd0] sm:$0xff]
        %v1109 = vld [vmem:[#allocation6 + $0xd8] sm:$0xff]
        %v1110 = vld [vmem:[#allocation6 + $0xe0] sm:$0xff]
        %v1111 = vld [vmem:[#allocation6 + $0xe8] sm:$0xff]
        %v1112 = vld [vmem:[#allocation6 + $0xf0] sm:$0xff]
        %v1113 = vld [vmem:[#allocation6 + $0xf8] sm:$0xff]
        %s1114 = scalar_lea.vmem [#allocation7], 2
        %v1115 = vld [vmem:[%s1114] sm:$0x3]
        %v1117 = vlaneseq
        %v1118 = vshrl.u32 %v1117, 7
        %v1119 = vsub.s32 0, %v1118
        %v1120 = vrot.slane %v1115, %v1119
        %v1121 = vlaneseq
        %v1122 = vshrl.u32 %v1121, 7
        %v1123 = vsub.s32 1, %v1122
        %v1124 = vrot.slane %v1115, %v1123
        %v1159 = vunpack.c.l.b16 %v1082
        %v1160 = vunpack.c.h.b16 %v1082
        %v1161 = vunpack.c.l.b16 %v1083
        %v1162 = vunpack.c.h.b16 %v1083
        %v1163 = vunpack.c.l.b16 %v1084
        %v1164 = vunpack.c.h.b16 %v1084
        %v1165 = vunpack.c.l.b16 %v1085
        %v1166 = vunpack.c.h.b16 %v1085
        %v1167 = vunpack.c.l.b16 %v1086
        %v1168 = vunpack.c.h.b16 %v1086
        %v1169 = vunpack.c.l.b16 %v1087
        %v1170 = vunpack.c.h.b16 %v1087
        %v1171 = vunpack.c.l.b16 %v1088
        %v1172 = vunpack.c.h.b16 %v1088
        %v1173 = vunpack.c.l.b16 %v1089
        %v1174 = vunpack.c.h.b16 %v1089
        %v1175 = vunpack.c.l.b16 %v1090
        %v1176 = vunpack.c.h.b16 %v1090
        %v1177 = vunpack.c.l.b16 %v1091
        %v1178 = vunpack.c.h.b16 %v1091
        %v1179 = vunpack.c.l.b16 %v1092
        %v1180 = vunpack.c.h.b16 %v1092
        %v1181 = vunpack.c.l.b16 %v1093
        %v1182 = vunpack.c.h.b16 %v1093
        %v1183 = vunpack.c.l.b16 %v1094
        %v1184 = vunpack.c.h.b16 %v1094
        %v1185 = vunpack.c.l.b16 %v1095
        %v1186 = vunpack.c.h.b16 %v1095
        %v1187 = vunpack.c.l.b16 %v1096
        %v1188 = vunpack.c.h.b16 %v1096
        %v1189 = vunpack.c.l.b16 %v1097
        %v1190 = vunpack.c.h.b16 %v1097
        %v1191 = vunpack.c.l.b16 %v1098
        %v1192 = vunpack.c.h.b16 %v1098
        %v1193 = vunpack.c.l.b16 %v1099
        %v1194 = vunpack.c.h.b16 %v1099
        %v1195 = vunpack.c.l.b16 %v1100
        %v1196 = vunpack.c.h.b16 %v1100
        %v1197 = vunpack.c.l.b16 %v1101
        %v1198 = vunpack.c.h.b16 %v1101
        %v1199 = vunpack.c.l.b16 %v1102
        %v1200 = vunpack.c.h.b16 %v1102
        %v1201 = vunpack.c.l.b16 %v1103
        %v1202 = vunpack.c.h.b16 %v1103
        %v1203 = vunpack.c.l.b16 %v1104
        %v1204 = vunpack.c.h.b16 %v1104
        %v1205 = vunpack.c.l.b16 %v1105
        %v1206 = vunpack.c.h.b16 %v1105
        %v1207 = vunpack.c.l.b16 %v1106
        %v1208 = vunpack.c.h.b16 %v1106
        %v1209 = vunpack.c.l.b16 %v1107
        %v1210 = vunpack.c.h.b16 %v1107
        %v1211 = vunpack.c.l.b16 %v1108
        %v1212 = vunpack.c.h.b16 %v1108
        %v1213 = vunpack.c.l.b16 %v1109
        %v1214 = vunpack.c.h.b16 %v1109
        %v1215 = vunpack.c.l.b16 %v1110
        %v1216 = vunpack.c.h.b16 %v1110
        %v1217 = vunpack.c.l.b16 %v1111
        %v1218 = vunpack.c.h.b16 %v1111
        %v1219 = vunpack.c.l.b16 %v1112
        %v1220 = vunpack.c.h.b16 %v1112
        %v1221 = vunpack.c.l.b16 %v1113
        %v1222 = vunpack.c.h.b16 %v1113
        %v1223 = vpack.c.b16 %v1161, %v1159
        %v1224 = vpack.c.b16 %v1162, %v1160
        %v1225 = vpack.c.b16 %v1165, %v1163
        %v1226 = vpack.c.b16 %v1166, %v1164
        %v1227 = vpack.c.b16 %v1169, %v1167
        %v1228 = vpack.c.b16 %v1170, %v1168
        %v1229 = vpack.c.b16 %v1173, %v1171
        %v1230 = vpack.c.b16 %v1174, %v1172
        %v1231 = vpack.c.b16 %v1177, %v1175
        %v1232 = vpack.c.b16 %v1178, %v1176
        %v1233 = vpack.c.b16 %v1181, %v1179
        %v1234 = vpack.c.b16 %v1182, %v1180
        %v1235 = vpack.c.b16 %v1185, %v1183
        %v1236 = vpack.c.b16 %v1186, %v1184
        %v1237 = vpack.c.b16 %v1189, %v1187
        %v1238 = vpack.c.b16 %v1190, %v1188
        %v1239 = vpack.c.b16 %v1193, %v1191
        %v1240 = vpack.c.b16 %v1194, %v1192
        %v1241 = vpack.c.b16 %v1197, %v1195
        %v1242 = vpack.c.b16 %v1198, %v1196
        %v1243 = vpack.c.b16 %v1201, %v1199
        %v1244 = vpack.c.b16 %v1202, %v1200
        %v1245 = vpack.c.b16 %v1205, %v1203
        %v1246 = vpack.c.b16 %v1206, %v1204
        %v1247 = vpack.c.b16 %v1209, %v1207
        %v1248 = vpack.c.b16 %v1210, %v1208
        %v1249 = vpack.c.b16 %v1213, %v1211
        %v1250 = vpack.c.b16 %v1214, %v1212
        %v1251 = vpack.c.b16 %v1217, %v1215
        %v1252 = vpack.c.b16 %v1218, %v1216
        %v1253 = vpack.c.b16 %v1221, %v1219
        %v1254 = vpack.c.b16 %v1222, %v1220
        %1287 = vmatprep.subr.bf16.mxu0 %v1238
        %1288 = vmatpush1.bf16.msra.mxu0 %v1237
        %1289 = vmatprep.subr.bf16.mxu0 %v1236
        %1290 = vmatpush1.bf16.msra.mxu0 %v1235
        %1291 = vmatprep.subr.bf16.mxu0 %v1234
        %1292 = vmatpush1.bf16.msra.mxu0 %v1233
        %1293 = vmatprep.subr.bf16.mxu0 %v1232
        %1294 = vmatpush1.bf16.msra.mxu0 %v1231
        %1295 = vmatprep.subr.bf16.mxu0 %v1230
        %1296 = vmatpush1.bf16.msra.mxu0 %v1229
        %1297 = vmatprep.subr.bf16.mxu0 %v1228
        %1298 = vmatpush1.bf16.msra.mxu0 %v1227
        %1299 = vmatprep.subr.bf16.mxu0 %v1226
        %1300 = vmatpush1.bf16.msra.mxu0 %v1225
        %1301 = vmatprep.subr.bf16.mxu0 %v1224
        %1302 = vmatpush1.bf16.msra.mxu0 %v1223
        %1303 = vmatprep.subr.bf16.mxu0 %v1254
        %1304 = vmatpush2.bf16.msra.mxu0 %v1253
        %1305 = vmatprep.subr.bf16.mxu0 %v1252
        %1306 = vmatpush2.bf16.msra.mxu0 %v1251
        %1307 = vmatprep.subr.bf16.mxu0 %v1250
        %1308 = vmatpush2.bf16.msra.mxu0 %v1249
        %1309 = vmatprep.subr.bf16.mxu0 %v1248
        %1310 = vmatpush2.bf16.msra.mxu0 %v1247
        %1311 = vmatprep.subr.bf16.mxu0 %v1246
        %1312 = vmatpush2.bf16.msra.mxu0 %v1245
        %1313 = vmatprep.subr.bf16.mxu0 %v1244
        %1314 = vmatpush2.bf16.msra.mxu0 %v1243
        %1315 = vmatprep.subr.bf16.mxu0 %v1242
        %1316 = vmatpush2.bf16.msra.mxu0 %v1241
        %1317 = vmatprep.subr.bf16.mxu0 %v1240
        %1318 = vmatpush2.bf16.msra.mxu0 %v1239
        %1319 = vmatprep.mubr.bf16.mxu0 %v1019
        %1320 = vmatmul.mubr.bf16.gmra.mxu0 %v1018
        %v1321 = vpop.f32.mrf.mxu0
        %v1322 = vadd.f32 %v1120, %v1321
        %v1323 = vpop.f32.mrf.mxu0
        %v1324 = vadd.f32 %v1124, %v1323
        %v1325 = vpop.f32.mrf.mxu0
        %v1326 = vadd.f32 %v1120, %v1325
        %v1327 = vpop.f32.mrf.mxu0
        %v1328 = vadd.f32 %v1124, %v1327
        %1329 = vmatprep.mubr.bf16.mxu0 %v1021
        %1330 = vmatmul.mubr.bf16.gmra.mxu0 %v1020
        %v1331 = vpop.f32.mrf.mxu0
        %v1332 = vadd.f32 %v1120, %v1331
        %v1333 = vpop.f32.mrf.mxu0
        %v1334 = vadd.f32 %v1124, %v1333
        %v1335 = vpop.f32.mrf.mxu0
        %v1336 = vadd.f32 %v1120, %v1335
        %v1337 = vpop.f32.mrf.mxu0
        %v1338 = vadd.f32 %v1124, %v1337
        %1339 = vmatprep.mubr.bf16.mxu0 %v1023
        %1340 = vmatmul.mubr.bf16.gmra.mxu0 %v1022
        %v1341 = vpop.f32.mrf.mxu0
        %v1342 = vadd.f32 %v1120, %v1341
        %v1343 = vpop.f32.mrf.mxu0
        %v1344 = vadd.f32 %v1124, %v1343
        %v1345 = vpop.f32.mrf.mxu0
        %v1346 = vadd.f32 %v1120, %v1345
        %v1347 = vpop.f32.mrf.mxu0
        %v1348 = vadd.f32 %v1124, %v1347
        %1349 = vmatprep.mubr.bf16.mxu0 %v1025
        %1350 = vmatmul.mubr.bf16.gmra.mxu0 %v1024
        %v1351 = vpop.f32.mrf.mxu0
        %v1352 = vadd.f32 %v1120, %v1351
        %v1353 = vpop.f32.mrf.mxu0
        %v1354 = vadd.f32 %v1124, %v1353
        %v1355 = vpop.f32.mrf.mxu0
        %v1356 = vadd.f32 %v1120, %v1355
        %v1357 = vpop.f32.mrf.mxu0
        %v1358 = vadd.f32 %v1124, %v1357
        %1359 = vmatprep.mubr.bf16.mxu0 %v1027
        %1360 = vmatmul.mubr.bf16.gmra.mxu0 %v1026
        %v1361 = vpop.f32.mrf.mxu0
        %v1362 = vadd.f32 %v1120, %v1361
        %v1363 = vpop.f32.mrf.mxu0
        %v1364 = vadd.f32 %v1124, %v1363
        %v1365 = vpop.f32.mrf.mxu0
        %v1366 = vadd.f32 %v1120, %v1365
        %v1367 = vpop.f32.mrf.mxu0
        %v1368 = vadd.f32 %v1124, %v1367
        %1369 = vmatprep.mubr.bf16.mxu0 %v1029
        %1370 = vmatmul.mubr.bf16.gmra.mxu0 %v1028
        %v1371 = vpop.f32.mrf.mxu0
        %v1372 = vadd.f32 %v1120, %v1371
        %v1373 = vpop.f32.mrf.mxu0
        %v1374 = vadd.f32 %v1124, %v1373
        %v1375 = vpop.f32.mrf.mxu0
        %v1376 = vadd.f32 %v1120, %v1375
        %v1377 = vpop.f32.mrf.mxu0
        %v1378 = vadd.f32 %v1124, %v1377
        %1379 = vmatprep.mubr.bf16.mxu0 %v1031
        %1380 = vmatmul.mubr.bf16.gmra.mxu0 %v1030
        %v1381 = vpop.f32.mrf.mxu0
        %v1382 = vadd.f32 %v1120, %v1381
        %v1383 = vpop.f32.mrf.mxu0
        %v1384 = vadd.f32 %v1124, %v1383
        %v1385 = vpop.f32.mrf.mxu0
        %v1386 = vadd.f32 %v1120, %v1385
        %v1387 = vpop.f32.mrf.mxu0
        %v1388 = vadd.f32 %v1124, %v1387
        %1389 = vmatprep.mubr.bf16.mxu0 %v1033
        %1390 = vmatmul.mubr.bf16.gmra.mxu0 %v1032
        %v1391 = vpop.f32.mrf.mxu0
        %v1392 = vadd.f32 %v1120, %v1391
        %v1393 = vpop.f32.mrf.mxu0
        %v1394 = vadd.f32 %v1124, %v1393
        %v1395 = vpop.f32.mrf.mxu0
        %v1396 = vadd.f32 %v1120, %v1395
        %v1397 = vpop.f32.mrf.mxu0
        %v1398 = vadd.f32 %v1124, %v1397
        %1399 = vmatprep.mubr.bf16.mxu0 %v1035
        %1400 = vmatmul.mubr.bf16.gmra.mxu0 %v1034
        %v1401 = vpop.f32.mrf.mxu0
        %v1402 = vadd.f32 %v1120, %v1401
        %v1403 = vpop.f32.mrf.mxu0
        %v1404 = vadd.f32 %v1124, %v1403
        %v1405 = vpop.f32.mrf.mxu0
        %v1406 = vadd.f32 %v1120, %v1405
        %v1407 = vpop.f32.mrf.mxu0
        %v1408 = vadd.f32 %v1124, %v1407
        %1409 = vmatprep.mubr.bf16.mxu0 %v1037
        %1410 = vmatmul.mubr.bf16.gmra.mxu0 %v1036
        %v1411 = vpop.f32.mrf.mxu0
        %v1412 = vadd.f32 %v1120, %v1411
        %v1413 = vpop.f32.mrf.mxu0
        %v1414 = vadd.f32 %v1124, %v1413
        %v1415 = vpop.f32.mrf.mxu0
        %v1416 = vadd.f32 %v1120, %v1415
        %v1417 = vpop.f32.mrf.mxu0
        %v1418 = vadd.f32 %v1124, %v1417
        %1419 = vmatprep.mubr.bf16.mxu0 %v1039
        %1420 = vmatmul.mubr.bf16.gmra.mxu0 %v1038
        %v1421 = vpop.f32.mrf.mxu0
        %v1422 = vadd.f32 %v1120, %v1421
        %v1423 = vpop.f32.mrf.mxu0
        %v1424 = vadd.f32 %v1124, %v1423
        %v1425 = vpop.f32.mrf.mxu0
        %v1426 = vadd.f32 %v1120, %v1425
        %v1427 = vpop.f32.mrf.mxu0
        %v1428 = vadd.f32 %v1124, %v1427
        %1429 = vmatprep.mubr.bf16.mxu0 %v1041
        %1430 = vmatmul.mubr.bf16.gmra.mxu0 %v1040
        %v1431 = vpop.f32.mrf.mxu0
        %v1432 = vadd.f32 %v1120, %v1431
        %v1433 = vpop.f32.mrf.mxu0
        %v1434 = vadd.f32 %v1124, %v1433
        %v1435 = vpop.f32.mrf.mxu0
        %v1436 = vadd.f32 %v1120, %v1435
        %v1437 = vpop.f32.mrf.mxu0
        %v1438 = vadd.f32 %v1124, %v1437
        %1439 = vmatprep.mubr.bf16.mxu0 %v1043
        %1440 = vmatmul.mubr.bf16.gmra.mxu0 %v1042
        %v1441 = vpop.f32.mrf.mxu0
        %v1442 = vadd.f32 %v1120, %v1441
        %v1443 = vpop.f32.mrf.mxu0
        %v1444 = vadd.f32 %v1124, %v1443
        %v1445 = vpop.f32.mrf.mxu0
        %v1446 = vadd.f32 %v1120, %v1445
        %v1447 = vpop.f32.mrf.mxu0
        %v1448 = vadd.f32 %v1124, %v1447
        %1449 = vmatprep.mubr.bf16.mxu0 %v1045
        %1450 = vmatmul.mubr.bf16.gmra.mxu0 %v1044
        %v1451 = vpop.f32.mrf.mxu0
        %v1452 = vadd.f32 %v1120, %v1451
        %v1453 = vpop.f32.mrf.mxu0
        %v1454 = vadd.f32 %v1124, %v1453
        %v1455 = vpop.f32.mrf.mxu0
        %v1456 = vadd.f32 %v1120, %v1455
        %v1457 = vpop.f32.mrf.mxu0
        %v1458 = vadd.f32 %v1124, %v1457
        %1459 = vmatprep.mubr.bf16.mxu0 %v1047
        %1460 = vmatmul.mubr.bf16.gmra.mxu0 %v1046
        %v1461 = vpop.f32.mrf.mxu0
        %v1462 = vadd.f32 %v1120, %v1461
        %v1463 = vpop.f32.mrf.mxu0
        %v1464 = vadd.f32 %v1124, %v1463
        %v1465 = vpop.f32.mrf.mxu0
        %v1466 = vadd.f32 %v1120, %v1465
        %v1467 = vpop.f32.mrf.mxu0
        %v1468 = vadd.f32 %v1124, %v1467
        %1469 = vmatprep.mubr.bf16.mxu0 %v1049
        %1470 = vmatmul.mubr.bf16.gmra.mxu0 %v1048
        %v1471 = vpop.f32.mrf.mxu0
        %v1472 = vadd.f32 %v1120, %v1471
        %v1473 = vpop.f32.mrf.mxu0
        %v1474 = vadd.f32 %v1124, %v1473
        %v1475 = vpop.f32.mrf.mxu0
        %v1476 = vadd.f32 %v1120, %v1475
        %v1477 = vpop.f32.mrf.mxu0
        %v1478 = vadd.f32 %v1124, %v1477
        %1479 = vmatprep.mubr.bf16.mxu0 %v1051
        %1480 = vmatmul.mubr.bf16.gmra.mxu0 %v1050
        %v1481 = vpop.f32.mrf.mxu0
        %v1482 = vadd.f32 %v1120, %v1481
        %v1483 = vpop.f32.mrf.mxu0
        %v1484 = vadd.f32 %v1124, %v1483
        %v1485 = vpop.f32.mrf.mxu0
        %v1486 = vadd.f32 %v1120, %v1485
        %v1487 = vpop.f32.mrf.mxu0
        %v1488 = vadd.f32 %v1124, %v1487
        %1489 = vmatprep.mubr.bf16.mxu0 %v1053
        %1490 = vmatmul.mubr.bf16.gmra.mxu0 %v1052
        %v1491 = vpop.f32.mrf.mxu0
        %v1492 = vadd.f32 %v1120, %v1491
        %v1493 = vpop.f32.mrf.mxu0
        %v1494 = vadd.f32 %v1124, %v1493
        %v1495 = vpop.f32.mrf.mxu0
        %v1496 = vadd.f32 %v1120, %v1495
        %v1497 = vpop.f32.mrf.mxu0
        %v1498 = vadd.f32 %v1124, %v1497
        %1499 = vmatprep.mubr.bf16.mxu0 %v1055
        %1500 = vmatmul.mubr.bf16.gmra.mxu0 %v1054
        %v1501 = vpop.f32.mrf.mxu0
        %v1502 = vadd.f32 %v1120, %v1501
        %v1503 = vpop.f32.mrf.mxu0
        %v1504 = vadd.f32 %v1124, %v1503
        %v1505 = vpop.f32.mrf.mxu0
        %v1506 = vadd.f32 %v1120, %v1505
        %v1507 = vpop.f32.mrf.mxu0
        %v1508 = vadd.f32 %v1124, %v1507
        %1509 = vmatprep.mubr.bf16.mxu0 %v1057
        %1510 = vmatmul.mubr.bf16.gmra.mxu0 %v1056
        %v1511 = vpop.f32.mrf.mxu0
        %v1512 = vadd.f32 %v1120, %v1511
        %v1513 = vpop.f32.mrf.mxu0
        %v1514 = vadd.f32 %v1124, %v1513
        %v1515 = vpop.f32.mrf.mxu0
        %v1516 = vadd.f32 %v1120, %v1515
        %v1517 = vpop.f32.mrf.mxu0
        %v1518 = vadd.f32 %v1124, %v1517
        %1519 = vmatprep.mubr.bf16.mxu0 %v1059
        %1520 = vmatmul.mubr.bf16.gmra.mxu0 %v1058
        %v1521 = vpop.f32.mrf.mxu0
        %v1522 = vadd.f32 %v1120, %v1521
        %v1523 = vpop.f32.mrf.mxu0
        %v1524 = vadd.f32 %v1124, %v1523
        %v1525 = vpop.f32.mrf.mxu0
        %v1526 = vadd.f32 %v1120, %v1525
        %v1527 = vpop.f32.mrf.mxu0
        %v1528 = vadd.f32 %v1124, %v1527
        %1529 = vmatprep.mubr.bf16.mxu0 %v1061
        %1530 = vmatmul.mubr.bf16.gmra.mxu0 %v1060
        %v1531 = vpop.f32.mrf.mxu0
        %v1532 = vadd.f32 %v1120, %v1531
        %v1533 = vpop.f32.mrf.mxu0
        %v1534 = vadd.f32 %v1124, %v1533
        %v1535 = vpop.f32.mrf.mxu0
        %v1536 = vadd.f32 %v1120, %v1535
        %v1537 = vpop.f32.mrf.mxu0
        %v1538 = vadd.f32 %v1124, %v1537
        %1539 = vmatprep.mubr.bf16.mxu0 %v1063
        %1540 = vmatmul.mubr.bf16.gmra.mxu0 %v1062
        %v1541 = vpop.f32.mrf.mxu0
        %v1542 = vadd.f32 %v1120, %v1541
        %v1543 = vpop.f32.mrf.mxu0
        %v1544 = vadd.f32 %v1124, %v1543
        %v1545 = vpop.f32.mrf.mxu0
        %v1546 = vadd.f32 %v1120, %v1545
        %v1547 = vpop.f32.mrf.mxu0
        %v1548 = vadd.f32 %v1124, %v1547
        %1549 = vmatprep.mubr.bf16.mxu0 %v1065
        %1550 = vmatmul.mubr.bf16.gmra.mxu0 %v1064
        %v1551 = vpop.f32.mrf.mxu0
        %v1552 = vadd.f32 %v1120, %v1551
        %v1553 = vpop.f32.mrf.mxu0
        %v1554 = vadd.f32 %v1124, %v1553
        %v1555 = vpop.f32.mrf.mxu0
        %v1556 = vadd.f32 %v1120, %v1555
        %v1557 = vpop.f32.mrf.mxu0
        %v1558 = vadd.f32 %v1124, %v1557
        %1559 = vmatprep.mubr.bf16.mxu0 %v1067
        %1560 = vmatmul.mubr.bf16.gmra.mxu0 %v1066
        %v1561 = vpop.f32.mrf.mxu0
        %v1562 = vadd.f32 %v1120, %v1561
        %v1563 = vpop.f32.mrf.mxu0
        %v1564 = vadd.f32 %v1124, %v1563
        %v1565 = vpop.f32.mrf.mxu0
        %v1566 = vadd.f32 %v1120, %v1565
        %v1567 = vpop.f32.mrf.mxu0
        %v1568 = vadd.f32 %v1124, %v1567
        %1569 = vmatprep.mubr.bf16.mxu0 %v1069
        %1570 = vmatmul.mubr.bf16.gmra.mxu0 %v1068
        %v1571 = vpop.f32.mrf.mxu0
        %v1572 = vadd.f32 %v1120, %v1571
        %v1573 = vpop.f32.mrf.mxu0
        %v1574 = vadd.f32 %v1124, %v1573
        %v1575 = vpop.f32.mrf.mxu0
        %v1576 = vadd.f32 %v1120, %v1575
        %v1577 = vpop.f32.mrf.mxu0
        %v1578 = vadd.f32 %v1124, %v1577
        %1579 = vmatprep.mubr.bf16.mxu0 %v1071
        %1580 = vmatmul.mubr.bf16.gmra.mxu0 %v1070
        %v1581 = vpop.f32.mrf.mxu0
        %v1582 = vadd.f32 %v1120, %v1581
        %v1583 = vpop.f32.mrf.mxu0
        %v1584 = vadd.f32 %v1124, %v1583
        %v1585 = vpop.f32.mrf.mxu0
        %v1586 = vadd.f32 %v1120, %v1585
        %v1587 = vpop.f32.mrf.mxu0
        %v1588 = vadd.f32 %v1124, %v1587
        %1589 = vmatprep.mubr.bf16.mxu0 %v1073
        %1590 = vmatmul.mubr.bf16.gmra.mxu0 %v1072
        %v1591 = vpop.f32.mrf.mxu0
        %v1592 = vadd.f32 %v1120, %v1591
        %v1593 = vpop.f32.mrf.mxu0
        %v1594 = vadd.f32 %v1124, %v1593
        %v1595 = vpop.f32.mrf.mxu0
        %v1596 = vadd.f32 %v1120, %v1595
        %v1597 = vpop.f32.mrf.mxu0
        %v1598 = vadd.f32 %v1124, %v1597
        %1599 = vmatprep.mubr.bf16.mxu0 %v1075
        %1600 = vmatmul.mubr.bf16.gmra.mxu0 %v1074
        %v1601 = vpop.f32.mrf.mxu0
        %v1602 = vadd.f32 %v1120, %v1601
        %v1603 = vpop.f32.mrf.mxu0
        %v1604 = vadd.f32 %v1124, %v1603
        %v1605 = vpop.f32.mrf.mxu0
        %v1606 = vadd.f32 %v1120, %v1605
        %v1607 = vpop.f32.mrf.mxu0
        %v1608 = vadd.f32 %v1124, %v1607
        %1609 = vmatprep.mubr.bf16.mxu0 %v1077
        %1610 = vmatmul.mubr.bf16.gmra.mxu0 %v1076
        %v1611 = vpop.f32.mrf.mxu0
        %v1612 = vadd.f32 %v1120, %v1611
        %v1613 = vpop.f32.mrf.mxu0
        %v1614 = vadd.f32 %v1124, %v1613
        %v1615 = vpop.f32.mrf.mxu0
        %v1616 = vadd.f32 %v1120, %v1615
        %v1617 = vpop.f32.mrf.mxu0
        %v1618 = vadd.f32 %v1124, %v1617
        %1619 = vmatprep.mubr.bf16.mxu0 %v1079
        %1620 = vmatmul.mubr.bf16.gmra.mxu0 %v1078
        %v1621 = vpop.f32.mrf.mxu0
        %v1622 = vadd.f32 %v1120, %v1621
        %v1623 = vpop.f32.mrf.mxu0
        %v1624 = vadd.f32 %v1124, %v1623
        %v1625 = vpop.f32.mrf.mxu0
        %v1626 = vadd.f32 %v1120, %v1625
        %v1627 = vpop.f32.mrf.mxu0
        %v1628 = vadd.f32 %v1124, %v1627
        %1629 = vmatprep.mubr.bf16.mxu0 %v1081
        %1630 = vmatmul.mubr.bf16.gmra.mxu0 %v1080
        %v1631 = vpop.f32.mrf.mxu0
        %v1632 = vadd.f32 %v1120, %v1631
        %v1633 = vpop.f32.mrf.mxu0
        %v1634 = vadd.f32 %v1124, %v1633
        %v1635 = vpop.f32.mrf.mxu0
        %v1636 = vadd.f32 %v1120, %v1635
        %v1637 = vpop.f32.mrf.mxu0
        %v1638 = vadd.f32 %v1124, %v1637
        %1639 = vdwg.mxu0
        %v1640 = vmax.f32 %v1322, 0.0
        %v1641 = vmax.f32 %v1324, 0.0
        %v1642 = vmax.f32 %v1326, 0.0
        %v1643 = vmax.f32 %v1328, 0.0
        %v1644 = vmax.f32 %v1332, 0.0
        %v1645 = vmax.f32 %v1334, 0.0
        %v1646 = vmax.f32 %v1336, 0.0
        %v1647 = vmax.f32 %v1338, 0.0
        %v1648 = vmax.f32 %v1342, 0.0
        %v1649 = vmax.f32 %v1344, 0.0
        %v1650 = vmax.f32 %v1346, 0.0
        %v1651 = vmax.f32 %v1348, 0.0
        %v1652 = vmax.f32 %v1352, 0.0
        %v1653 = vmax.f32 %v1354, 0.0
        %v1654 = vmax.f32 %v1356, 0.0
        %v1655 = vmax.f32 %v1358, 0.0
        %v1656 = vmax.f32 %v1362, 0.0
        %v1657 = vmax.f32 %v1364, 0.0
        %v1658 = vmax.f32 %v1366, 0.0
        %v1659 = vmax.f32 %v1368, 0.0
        %v1660 = vmax.f32 %v1372, 0.0
        %v1661 = vmax.f32 %v1374, 0.0
        %v1662 = vmax.f32 %v1376, 0.0
        %v1663 = vmax.f32 %v1378, 0.0
        %v1664 = vmax.f32 %v1382, 0.0
        %v1665 = vmax.f32 %v1384, 0.0
        %v1666 = vmax.f32 %v1386, 0.0
        %v1667 = vmax.f32 %v1388, 0.0
        %v1668 = vmax.f32 %v1392, 0.0
        %v1669 = vmax.f32 %v1394, 0.0
        %v1670 = vmax.f32 %v1396, 0.0
        %v1671 = vmax.f32 %v1398, 0.0
        %v1672 = vmax.f32 %v1402, 0.0
        %v1673 = vmax.f32 %v1404, 0.0
        %v1674 = vmax.f32 %v1406, 0.0
        %v1675 = vmax.f32 %v1408, 0.0
        %v1676 = vmax.f32 %v1412, 0.0
        %v1677 = vmax.f32 %v1414, 0.0
        %v1678 = vmax.f32 %v1416, 0.0
        %v1679 = vmax.f32 %v1418, 0.0
        %v1680 = vmax.f32 %v1422, 0.0
        %v1681 = vmax.f32 %v1424, 0.0
        %v1682 = vmax.f32 %v1426, 0.0
        %v1683 = vmax.f32 %v1428, 0.0
        %v1684 = vmax.f32 %v1432, 0.0
        %v1685 = vmax.f32 %v1434, 0.0
        %v1686 = vmax.f32 %v1436, 0.0
        %v1687 = vmax.f32 %v1438, 0.0
        %v1688 = vmax.f32 %v1442, 0.0
        %v1689 = vmax.f32 %v1444, 0.0
        %v1690 = vmax.f32 %v1446, 0.0
        %v1691 = vmax.f32 %v1448, 0.0
        %v1692 = vmax.f32 %v1452, 0.0
        %v1693 = vmax.f32 %v1454, 0.0
        %v1694 = vmax.f32 %v1456, 0.0
        %v1695 = vmax.f32 %v1458, 0.0
        %v1696 = vmax.f32 %v1462, 0.0
        %v1697 = vmax.f32 %v1464, 0.0
        %v1698 = vmax.f32 %v1466, 0.0
        %v1699 = vmax.f32 %v1468, 0.0
        %v1700 = vmax.f32 %v1472, 0.0
        %v1701 = vmax.f32 %v1474, 0.0
        %v1702 = vmax.f32 %v1476, 0.0
        %v1703 = vmax.f32 %v1478, 0.0
        %v1704 = vmax.f32 %v1482, 0.0
        %v1705 = vmax.f32 %v1484, 0.0
        %v1706 = vmax.f32 %v1486, 0.0
        %v1707 = vmax.f32 %v1488, 0.0
        %v1708 = vmax.f32 %v1492, 0.0
        %v1709 = vmax.f32 %v1494, 0.0
        %v1710 = vmax.f32 %v1496, 0.0
        %v1711 = vmax.f32 %v1498, 0.0
        %v1712 = vmax.f32 %v1502, 0.0
        %v1713 = vmax.f32 %v1504, 0.0
        %v1714 = vmax.f32 %v1506, 0.0
        %v1715 = vmax.f32 %v1508, 0.0
        %v1716 = vmax.f32 %v1512, 0.0
        %v1717 = vmax.f32 %v1514, 0.0
        %v1718 = vmax.f32 %v1516, 0.0
        %v1719 = vmax.f32 %v1518, 0.0
        %v1720 = vmax.f32 %v1522, 0.0
        %v1721 = vmax.f32 %v1524, 0.0
        %v1722 = vmax.f32 %v1526, 0.0
        %v1723 = vmax.f32 %v1528, 0.0
        %v1724 = vmax.f32 %v1532, 0.0
        %v1725 = vmax.f32 %v1534, 0.0
        %v1726 = vmax.f32 %v1536, 0.0
        %v1727 = vmax.f32 %v1538, 0.0
        %v1728 = vmax.f32 %v1542, 0.0
        %v1729 = vmax.f32 %v1544, 0.0
        %v1730 = vmax.f32 %v1546, 0.0
        %v1731 = vmax.f32 %v1548, 0.0
        %v1732 = vmax.f32 %v1552, 0.0
        %v1733 = vmax.f32 %v1554, 0.0
        %v1734 = vmax.f32 %v1556, 0.0
        %v1735 = vmax.f32 %v1558, 0.0
        %v1736 = vmax.f32 %v1562, 0.0
        %v1737 = vmax.f32 %v1564, 0.0
        %v1738 = vmax.f32 %v1566, 0.0
        %v1739 = vmax.f32 %v1568, 0.0
        %v1740 = vmax.f32 %v1572, 0.0
        %v1741 = vmax.f32 %v1574, 0.0
        %v1742 = vmax.f32 %v1576, 0.0
        %v1743 = vmax.f32 %v1578, 0.0
        %v1744 = vmax.f32 %v1582, 0.0
        %v1745 = vmax.f32 %v1584, 0.0
        %v1746 = vmax.f32 %v1586, 0.0
        %v1747 = vmax.f32 %v1588, 0.0
        %v1748 = vmax.f32 %v1592, 0.0
        %v1749 = vmax.f32 %v1594, 0.0
        %v1750 = vmax.f32 %v1596, 0.0
        %v1751 = vmax.f32 %v1598, 0.0
        %v1752 = vmax.f32 %v1602, 0.0
        %v1753 = vmax.f32 %v1604, 0.0
        %v1754 = vmax.f32 %v1606, 0.0
        %v1755 = vmax.f32 %v1608, 0.0
        %v1756 = vmax.f32 %v1612, 0.0
        %v1757 = vmax.f32 %v1614, 0.0
        %v1758 = vmax.f32 %v1616, 0.0
        %v1759 = vmax.f32 %v1618, 0.0
        %v1760 = vmax.f32 %v1622, 0.0
        %v1761 = vmax.f32 %v1624, 0.0
        %v1762 = vmax.f32 %v1626, 0.0
        %v1763 = vmax.f32 %v1628, 0.0
        %v1764 = vmax.f32 %v1632, 0.0
        %v1765 = vmax.f32 %v1634, 0.0
        %v1766 = vmax.f32 %v1636, 0.0
        %v1767 = vmax.f32 %v1638, 0.0
        %v1768 = vpack.c.bf16 %v1642, %v1640
        %v1769 = vpack.c.bf16 %v1643, %v1641
        %v1770 = vpack.c.bf16 %v1646, %v1644
        %v1771 = vpack.c.bf16 %v1647, %v1645
        %v1772 = vpack.c.bf16 %v1650, %v1648
        %v1773 = vpack.c.bf16 %v1651, %v1649
        %v1774 = vpack.c.bf16 %v1654, %v1652
        %v1775 = vpack.c.bf16 %v1655, %v1653
        %v1776 = vpack.c.bf16 %v1658, %v1656
        %v1777 = vpack.c.bf16 %v1659, %v1657
        %v1778 = vpack.c.bf16 %v1662, %v1660
        %v1779 = vpack.c.bf16 %v1663, %v1661
        %v1780 = vpack.c.bf16 %v1666, %v1664
        %v1781 = vpack.c.bf16 %v1667, %v1665
        %v1782 = vpack.c.bf16 %v1670, %v1668
        %v1783 = vpack.c.bf16 %v1671, %v1669
        %v1784 = vpack.c.bf16 %v1674, %v1672
        %v1785 = vpack.c.bf16 %v1675, %v1673
        %v1786 = vpack.c.bf16 %v1678, %v1676
        %v1787 = vpack.c.bf16 %v1679, %v1677
        %v1788 = vpack.c.bf16 %v1682, %v1680
        %v1789 = vpack.c.bf16 %v1683, %v1681
        %v1790 = vpack.c.bf16 %v1686, %v1684
        %v1791 = vpack.c.bf16 %v1687, %v1685
        %v1792 = vpack.c.bf16 %v1690, %v1688
        %v1793 = vpack.c.bf16 %v1691, %v1689
        %v1794 = vpack.c.bf16 %v1694, %v1692
        %v1795 = vpack.c.bf16 %v1695, %v1693
        %v1796 = vpack.c.bf16 %v1698, %v1696
        %v1797 = vpack.c.bf16 %v1699, %v1697
        %v1798 = vpack.c.bf16 %v1702, %v1700
        %v1799 = vpack.c.bf16 %v1703, %v1701
        %v1800 = vpack.c.bf16 %v1706, %v1704
        %v1801 = vpack.c.bf16 %v1707, %v1705
        %v1802 = vpack.c.bf16 %v1710, %v1708
        %v1803 = vpack.c.bf16 %v1711, %v1709
        %v1804 = vpack.c.bf16 %v1714, %v1712
        %v1805 = vpack.c.bf16 %v1715, %v1713
        %v1806 = vpack.c.bf16 %v1718, %v1716
        %v1807 = vpack.c.bf16 %v1719, %v1717
        %v1808 = vpack.c.bf16 %v1722, %v1720
        %v1809 = vpack.c.bf16 %v1723, %v1721
        %v1810 = vpack.c.bf16 %v1726, %v1724
        %v1811 = vpack.c.bf16 %v1727, %v1725
        %v1812 = vpack.c.bf16 %v1730, %v1728
        %v1813 = vpack.c.bf16 %v1731, %v1729
        %v1814 = vpack.c.bf16 %v1734, %v1732
        %v1815 = vpack.c.bf16 %v1735, %v1733
        %v1816 = vpack.c.bf16 %v1738, %v1736
        %v1817 = vpack.c.bf16 %v1739, %v1737
        %v1818 = vpack.c.bf16 %v1742, %v1740
        %v1819 = vpack.c.bf16 %v1743, %v1741
        %v1820 = vpack.c.bf16 %v1746, %v1744
        %v1821 = vpack.c.bf16 %v1747, %v1745
        %v1822 = vpack.c.bf16 %v1750, %v1748
        %v1823 = vpack.c.bf16 %v1751, %v1749
        %v1824 = vpack.c.bf16 %v1754, %v1752
        %v1825 = vpack.c.bf16 %v1755, %v1753
        %v1826 = vpack.c.bf16 %v1758, %v1756
        %v1827 = vpack.c.bf16 %v1759, %v1757
        %v1828 = vpack.c.bf16 %v1762, %v1760
        %v1829 = vpack.c.bf16 %v1763, %v1761
        %v1830 = vpack.c.bf16 %v1766, %v1764
        %v1831 = vpack.c.bf16 %v1767, %v1765
        %s1832 = scalar_lea.vmem [#allocation6], 256
        %v1833 = vld [vmem:[%s1832] sm:$0xff]
        %v1834 = vld [vmem:[%s1832 + $0x8] sm:$0xff]
        %v1835 = vld [vmem:[%s1832 + $0x10] sm:$0xff]
        %v1836 = vld [vmem:[%s1832 + $0x18] sm:$0xff]
        %v1837 = vld [vmem:[%s1832 + $0x20] sm:$0xff]
        %v1838 = vld [vmem:[%s1832 + $0x28] sm:$0xff]
        %v1839 = vld [vmem:[%s1832 + $0x30] sm:$0xff]
        %v1840 = vld [vmem:[%s1832 + $0x38] sm:$0xff]
        %v1841 = vld [vmem:[%s1832 + $0x40] sm:$0xff]
        %v1842 = vld [vmem:[%s1832 + $0x48] sm:$0xff]
        %v1843 = vld [vmem:[%s1832 + $0x50] sm:$0xff]
        %v1844 = vld [vmem:[%s1832 + $0x58] sm:$0xff]
        %v1845 = vld [vmem:[%s1832 + $0x60] sm:$0xff]
        %v1846 = vld [vmem:[%s1832 + $0x68] sm:$0xff]
        %v1847 = vld [vmem:[%s1832 + $0x70] sm:$0xff]
        %v1848 = vld [vmem:[%s1832 + $0x78] sm:$0xff]
        %v1849 = vld [vmem:[%s1832 + $0x80] sm:$0xff]
        %v1850 = vld [vmem:[%s1832 + $0x88] sm:$0xff]
        %v1851 = vld [vmem:[%s1832 + $0x90] sm:$0xff]
        %v1852 = vld [vmem:[%s1832 + $0x98] sm:$0xff]
        %v1853 = vld [vmem:[%s1832 + $0xa0] sm:$0xff]
        %v1854 = vld [vmem:[%s1832 + $0xa8] sm:$0xff]
        %v1855 = vld [vmem:[%s1832 + $0xb0] sm:$0xff]
        %v1856 = vld [vmem:[%s1832 + $0xb8] sm:$0xff]
        %v1857 = vld [vmem:[%s1832 + $0xc0] sm:$0xff]
        %v1858 = vld [vmem:[%s1832 + $0xc8] sm:$0xff]
        %v1859 = vld [vmem:[%s1832 + $0xd0] sm:$0xff]
        %v1860 = vld [vmem:[%s1832 + $0xd8] sm:$0xff]
        %v1861 = vld [vmem:[%s1832 + $0xe0] sm:$0xff]
        %v1862 = vld [vmem:[%s1832 + $0xe8] sm:$0xff]
        %v1863 = vld [vmem:[%s1832 + $0xf0] sm:$0xff]
        %v1864 = vld [vmem:[%s1832 + $0xf8] sm:$0xff]
        %s1865 = scalar_lea.vmem [#allocation7], 4
        %v1866 = vld [vmem:[%s1865] sm:$0x3]
        %v1868 = vlaneseq
        %v1869 = vshrl.u32 %v1868, 7
        %v1870 = vsub.s32 0, %v1869
        %v1871 = vrot.slane %v1866, %v1870
        %v1872 = vlaneseq
        %v1873 = vshrl.u32 %v1872, 7
        %v1874 = vsub.s32 1, %v1873
        %v1875 = vrot.slane %v1866, %v1874
        %v1910 = vunpack.c.l.b16 %v1833
        %v1911 = vunpack.c.h.b16 %v1833
        %v1912 = vunpack.c.l.b16 %v1834
        %v1913 = vunpack.c.h.b16 %v1834
        %v1914 = vunpack.c.l.b16 %v1835
        %v1915 = vunpack.c.h.b16 %v1835
        %v1916 = vunpack.c.l.b16 %v1836
        %v1917 = vunpack.c.h.b16 %v1836
        %v1918 = vunpack.c.l.b16 %v1837
        %v1919 = vunpack.c.h.b16 %v1837
        %v1920 = vunpack.c.l.b16 %v1838
        %v1921 = vunpack.c.h.b16 %v1838
        %v1922 = vunpack.c.l.b16 %v1839
        %v1923 = vunpack.c.h.b16 %v1839
        %v1924 = vunpack.c.l.b16 %v1840
        %v1925 = vunpack.c.h.b16 %v1840
        %v1926 = vunpack.c.l.b16 %v1841
        %v1927 = vunpack.c.h.b16 %v1841
        %v1928 = vunpack.c.l.b16 %v1842
        %v1929 = vunpack.c.h.b16 %v1842
        %v1930 = vunpack.c.l.b16 %v1843
        %v1931 = vunpack.c.h.b16 %v1843
        %v1932 = vunpack.c.l.b16 %v1844
        %v1933 = vunpack.c.h.b16 %v1844
        %v1934 = vunpack.c.l.b16 %v1845
        %v1935 = vunpack.c.h.b16 %v1845
        %v1936 = vunpack.c.l.b16 %v1846
        %v1937 = vunpack.c.h.b16 %v1846
        %v1938 = vunpack.c.l.b16 %v1847
        %v1939 = vunpack.c.h.b16 %v1847
        %v1940 = vunpack.c.l.b16 %v1848
        %v1941 = vunpack.c.h.b16 %v1848
        %v1942 = vunpack.c.l.b16 %v1849
        %v1943 = vunpack.c.h.b16 %v1849
        %v1944 = vunpack.c.l.b16 %v1850
        %v1945 = vunpack.c.h.b16 %v1850
        %v1946 = vunpack.c.l.b16 %v1851
        %v1947 = vunpack.c.h.b16 %v1851
        %v1948 = vunpack.c.l.b16 %v1852
        %v1949 = vunpack.c.h.b16 %v1852
        %v1950 = vunpack.c.l.b16 %v1853
        %v1951 = vunpack.c.h.b16 %v1853
        %v1952 = vunpack.c.l.b16 %v1854
        %v1953 = vunpack.c.h.b16 %v1854
        %v1954 = vunpack.c.l.b16 %v1855
        %v1955 = vunpack.c.h.b16 %v1855
        %v1956 = vunpack.c.l.b16 %v1856
        %v1957 = vunpack.c.h.b16 %v1856
        %v1958 = vunpack.c.l.b16 %v1857
        %v1959 = vunpack.c.h.b16 %v1857
        %v1960 = vunpack.c.l.b16 %v1858
        %v1961 = vunpack.c.h.b16 %v1858
        %v1962 = vunpack.c.l.b16 %v1859
        %v1963 = vunpack.c.h.b16 %v1859
        %v1964 = vunpack.c.l.b16 %v1860
        %v1965 = vunpack.c.h.b16 %v1860
        %v1966 = vunpack.c.l.b16 %v1861
        %v1967 = vunpack.c.h.b16 %v1861
        %v1968 = vunpack.c.l.b16 %v1862
        %v1969 = vunpack.c.h.b16 %v1862
        %v1970 = vunpack.c.l.b16 %v1863
        %v1971 = vunpack.c.h.b16 %v1863
        %v1972 = vunpack.c.l.b16 %v1864
        %v1973 = vunpack.c.h.b16 %v1864
        %v1974 = vpack.c.b16 %v1912, %v1910
        %v1975 = vpack.c.b16 %v1913, %v1911
        %v1976 = vpack.c.b16 %v1916, %v1914
        %v1977 = vpack.c.b16 %v1917, %v1915
        %v1978 = vpack.c.b16 %v1920, %v1918
        %v1979 = vpack.c.b16 %v1921, %v1919
        %v1980 = vpack.c.b16 %v1924, %v1922
        %v1981 = vpack.c.b16 %v1925, %v1923
        %v1982 = vpack.c.b16 %v1928, %v1926
        %v1983 = vpack.c.b16 %v1929, %v1927
        %v1984 = vpack.c.b16 %v1932, %v1930
        %v1985 = vpack.c.b16 %v1933, %v1931
        %v1986 = vpack.c.b16 %v1936, %v1934
        %v1987 = vpack.c.b16 %v1937, %v1935
        %v1988 = vpack.c.b16 %v1940, %v1938
        %v1989 = vpack.c.b16 %v1941, %v1939
        %v1990 = vpack.c.b16 %v1944, %v1942
        %v1991 = vpack.c.b16 %v1945, %v1943
        %v1992 = vpack.c.b16 %v1948, %v1946
        %v1993 = vpack.c.b16 %v1949, %v1947
        %v1994 = vpack.c.b16 %v1952, %v1950
        %v1995 = vpack.c.b16 %v1953, %v1951
        %v1996 = vpack.c.b16 %v1956, %v1954
        %v1997 = vpack.c.b16 %v1957, %v1955
        %v1998 = vpack.c.b16 %v1960, %v1958
        %v1999 = vpack.c.b16 %v1961, %v1959
        %v2000 = vpack.c.b16 %v1964, %v1962
        %v2001 = vpack.c.b16 %v1965, %v1963
        %v2002 = vpack.c.b16 %v1968, %v1966
        %v2003 = vpack.c.b16 %v1969, %v1967
        %v2004 = vpack.c.b16 %v1972, %v1970
        %v2005 = vpack.c.b16 %v1973, %v1971
        %2038 = vmatprep.subr.bf16.mxu0 %v1989
        %2039 = vmatpush1.bf16.msra.mxu0 %v1988
        %2040 = vmatprep.subr.bf16.mxu0 %v1987
        %2041 = vmatpush1.bf16.msra.mxu0 %v1986
        %2042 = vmatprep.subr.bf16.mxu0 %v1985
        %2043 = vmatpush1.bf16.msra.mxu0 %v1984
        %2044 = vmatprep.subr.bf16.mxu0 %v1983
        %2045 = vmatpush1.bf16.msra.mxu0 %v1982
        %2046 = vmatprep.subr.bf16.mxu0 %v1981
        %2047 = vmatpush1.bf16.msra.mxu0 %v1980
        %2048 = vmatprep.subr.bf16.mxu0 %v1979
        %2049 = vmatpush1.bf16.msra.mxu0 %v1978
        %2050 = vmatprep.subr.bf16.mxu0 %v1977
        %2051 = vmatpush1.bf16.msra.mxu0 %v1976
        %2052 = vmatprep.subr.bf16.mxu0 %v1975
        %2053 = vmatpush1.bf16.msra.mxu0 %v1974
        %2054 = vmatprep.subr.bf16.mxu0 %v2005
        %2055 = vmatpush2.bf16.msra.mxu0 %v2004
        %2056 = vmatprep.subr.bf16.mxu0 %v2003
        %2057 = vmatpush2.bf16.msra.mxu0 %v2002
        %2058 = vmatprep.subr.bf16.mxu0 %v2001
        %2059 = vmatpush2.bf16.msra.mxu0 %v2000
        %2060 = vmatprep.subr.bf16.mxu0 %v1999
        %2061 = vmatpush2.bf16.msra.mxu0 %v1998
        %2062 = vmatprep.subr.bf16.mxu0 %v1997
        %2063 = vmatpush2.bf16.msra.mxu0 %v1996
        %2064 = vmatprep.subr.bf16.mxu0 %v1995
        %2065 = vmatpush2.bf16.msra.mxu0 %v1994
        %2066 = vmatprep.subr.bf16.mxu0 %v1993
        %2067 = vmatpush2.bf16.msra.mxu0 %v1992
        %2068 = vmatprep.subr.bf16.mxu0 %v1991
        %2069 = vmatpush2.bf16.msra.mxu0 %v1990
        %2070 = vmatprep.mubr.bf16.mxu0 %v1769
        %2071 = vmatmul.mubr.bf16.gmra.mxu0 %v1768
        %v2072 = vpop.f32.mrf.mxu0
        %v2073 = vadd.f32 %v1871, %v2072
        %v2074 = vpop.f32.mrf.mxu0
        %v2075 = vadd.f32 %v1875, %v2074
        %v2076 = vpop.f32.mrf.mxu0
        %v2077 = vadd.f32 %v1871, %v2076
        %v2078 = vpop.f32.mrf.mxu0
        %v2079 = vadd.f32 %v1875, %v2078
        %2080 = vmatprep.mubr.bf16.mxu0 %v1771
        %2081 = vmatmul.mubr.bf16.gmra.mxu0 %v1770
        %v2082 = vpop.f32.mrf.mxu0
        %v2083 = vadd.f32 %v1871, %v2082
        %v2084 = vpop.f32.mrf.mxu0
        %v2085 = vadd.f32 %v1875, %v2084
        %v2086 = vpop.f32.mrf.mxu0
        %v2087 = vadd.f32 %v1871, %v2086
        %v2088 = vpop.f32.mrf.mxu0
        %v2089 = vadd.f32 %v1875, %v2088
        %2090 = vmatprep.mubr.bf16.mxu0 %v1773
        %2091 = vmatmul.mubr.bf16.gmra.mxu0 %v1772
        %v2092 = vpop.f32.mrf.mxu0
        %v2093 = vadd.f32 %v1871, %v2092
        %v2094 = vpop.f32.mrf.mxu0
        %v2095 = vadd.f32 %v1875, %v2094
        %v2096 = vpop.f32.mrf.mxu0
        %v2097 = vadd.f32 %v1871, %v2096
        %v2098 = vpop.f32.mrf.mxu0
        %v2099 = vadd.f32 %v1875, %v2098
        %2100 = vmatprep.mubr.bf16.mxu0 %v1775
        %2101 = vmatmul.mubr.bf16.gmra.mxu0 %v1774
        %v2102 = vpop.f32.mrf.mxu0
        %v2103 = vadd.f32 %v1871, %v2102
        %v2104 = vpop.f32.mrf.mxu0
        %v2105 = vadd.f32 %v1875, %v2104
        %v2106 = vpop.f32.mrf.mxu0
        %v2107 = vadd.f32 %v1871, %v2106
        %v2108 = vpop.f32.mrf.mxu0
        %v2109 = vadd.f32 %v1875, %v2108
        %2110 = vmatprep.mubr.bf16.mxu0 %v1777
        %2111 = vmatmul.mubr.bf16.gmra.mxu0 %v1776
        %v2112 = vpop.f32.mrf.mxu0
        %v2113 = vadd.f32 %v1871, %v2112
        %v2114 = vpop.f32.mrf.mxu0
        %v2115 = vadd.f32 %v1875, %v2114
        %v2116 = vpop.f32.mrf.mxu0
        %v2117 = vadd.f32 %v1871, %v2116
        %v2118 = vpop.f32.mrf.mxu0
        %v2119 = vadd.f32 %v1875, %v2118
        %2120 = vmatprep.mubr.bf16.mxu0 %v1779
        %2121 = vmatmul.mubr.bf16.gmra.mxu0 %v1778
        %v2122 = vpop.f32.mrf.mxu0
        %v2123 = vadd.f32 %v1871, %v2122
        %v2124 = vpop.f32.mrf.mxu0
        %v2125 = vadd.f32 %v1875, %v2124
        %v2126 = vpop.f32.mrf.mxu0
        %v2127 = vadd.f32 %v1871, %v2126
        %v2128 = vpop.f32.mrf.mxu0
        %v2129 = vadd.f32 %v1875, %v2128
        %2130 = vmatprep.mubr.bf16.mxu0 %v1781
        %2131 = vmatmul.mubr.bf16.gmra.mxu0 %v1780
        %v2132 = vpop.f32.mrf.mxu0
        %v2133 = vadd.f32 %v1871, %v2132
        %v2134 = vpop.f32.mrf.mxu0
        %v2135 = vadd.f32 %v1875, %v2134
        %v2136 = vpop.f32.mrf.mxu0
        %v2137 = vadd.f32 %v1871, %v2136
        %v2138 = vpop.f32.mrf.mxu0
        %v2139 = vadd.f32 %v1875, %v2138
        %2140 = vmatprep.mubr.bf16.mxu0 %v1783
        %2141 = vmatmul.mubr.bf16.gmra.mxu0 %v1782
        %v2142 = vpop.f32.mrf.mxu0
        %v2143 = vadd.f32 %v1871, %v2142
        %v2144 = vpop.f32.mrf.mxu0
        %v2145 = vadd.f32 %v1875, %v2144
        %v2146 = vpop.f32.mrf.mxu0
        %v2147 = vadd.f32 %v1871, %v2146
        %v2148 = vpop.f32.mrf.mxu0
        %v2149 = vadd.f32 %v1875, %v2148
        %2150 = vmatprep.mubr.bf16.mxu0 %v1785
        %2151 = vmatmul.mubr.bf16.gmra.mxu0 %v1784
        %v2152 = vpop.f32.mrf.mxu0
        %v2153 = vadd.f32 %v1871, %v2152
        %v2154 = vpop.f32.mrf.mxu0
        %v2155 = vadd.f32 %v1875, %v2154
        %v2156 = vpop.f32.mrf.mxu0
        %v2157 = vadd.f32 %v1871, %v2156
        %v2158 = vpop.f32.mrf.mxu0
        %v2159 = vadd.f32 %v1875, %v2158
        %2160 = vmatprep.mubr.bf16.mxu0 %v1787
        %2161 = vmatmul.mubr.bf16.gmra.mxu0 %v1786
        %v2162 = vpop.f32.mrf.mxu0
        %v2163 = vadd.f32 %v1871, %v2162
        %v2164 = vpop.f32.mrf.mxu0
        %v2165 = vadd.f32 %v1875, %v2164
        %v2166 = vpop.f32.mrf.mxu0
        %v2167 = vadd.f32 %v1871, %v2166
        %v2168 = vpop.f32.mrf.mxu0
        %v2169 = vadd.f32 %v1875, %v2168
        %2170 = vmatprep.mubr.bf16.mxu0 %v1789
        %2171 = vmatmul.mubr.bf16.gmra.mxu0 %v1788
        %v2172 = vpop.f32.mrf.mxu0
        %v2173 = vadd.f32 %v1871, %v2172
        %v2174 = vpop.f32.mrf.mxu0
        %v2175 = vadd.f32 %v1875, %v2174
        %v2176 = vpop.f32.mrf.mxu0
        %v2177 = vadd.f32 %v1871, %v2176
        %v2178 = vpop.f32.mrf.mxu0
        %v2179 = vadd.f32 %v1875, %v2178
        %2180 = vmatprep.mubr.bf16.mxu0 %v1791
        %2181 = vmatmul.mubr.bf16.gmra.mxu0 %v1790
        %v2182 = vpop.f32.mrf.mxu0
        %v2183 = vadd.f32 %v1871, %v2182
        %v2184 = vpop.f32.mrf.mxu0
        %v2185 = vadd.f32 %v1875, %v2184
        %v2186 = vpop.f32.mrf.mxu0
        %v2187 = vadd.f32 %v1871, %v2186
        %v2188 = vpop.f32.mrf.mxu0
        %v2189 = vadd.f32 %v1875, %v2188
        %2190 = vmatprep.mubr.bf16.mxu0 %v1793
        %2191 = vmatmul.mubr.bf16.gmra.mxu0 %v1792
        %v2192 = vpop.f32.mrf.mxu0
        %v2193 = vadd.f32 %v1871, %v2192
        %v2194 = vpop.f32.mrf.mxu0
        %v2195 = vadd.f32 %v1875, %v2194
        %v2196 = vpop.f32.mrf.mxu0
        %v2197 = vadd.f32 %v1871, %v2196
        %v2198 = vpop.f32.mrf.mxu0
        %v2199 = vadd.f32 %v1875, %v2198
        %2200 = vmatprep.mubr.bf16.mxu0 %v1795
        %2201 = vmatmul.mubr.bf16.gmra.mxu0 %v1794
        %v2202 = vpop.f32.mrf.mxu0
        %v2203 = vadd.f32 %v1871, %v2202
        %v2204 = vpop.f32.mrf.mxu0
        %v2205 = vadd.f32 %v1875, %v2204
        %v2206 = vpop.f32.mrf.mxu0
        %v2207 = vadd.f32 %v1871, %v2206
        %v2208 = vpop.f32.mrf.mxu0
        %v2209 = vadd.f32 %v1875, %v2208
        %2210 = vmatprep.mubr.bf16.mxu0 %v1797
        %2211 = vmatmul.mubr.bf16.gmra.mxu0 %v1796
        %v2212 = vpop.f32.mrf.mxu0
        %v2213 = vadd.f32 %v1871, %v2212
        %v2214 = vpop.f32.mrf.mxu0
        %v2215 = vadd.f32 %v1875, %v2214
        %v2216 = vpop.f32.mrf.mxu0
        %v2217 = vadd.f32 %v1871, %v2216
        %v2218 = vpop.f32.mrf.mxu0
        %v2219 = vadd.f32 %v1875, %v2218
        %2220 = vmatprep.mubr.bf16.mxu0 %v1799
        %2221 = vmatmul.mubr.bf16.gmra.mxu0 %v1798
        %v2222 = vpop.f32.mrf.mxu0
        %v2223 = vadd.f32 %v1871, %v2222
        %v2224 = vpop.f32.mrf.mxu0
        %v2225 = vadd.f32 %v1875, %v2224
        %v2226 = vpop.f32.mrf.mxu0
        %v2227 = vadd.f32 %v1871, %v2226
        %v2228 = vpop.f32.mrf.mxu0
        %v2229 = vadd.f32 %v1875, %v2228
        %2230 = vmatprep.mubr.bf16.mxu0 %v1801
        %2231 = vmatmul.mubr.bf16.gmra.mxu0 %v1800
        %v2232 = vpop.f32.mrf.mxu0
        %v2233 = vadd.f32 %v1871, %v2232
        %v2234 = vpop.f32.mrf.mxu0
        %v2235 = vadd.f32 %v1875, %v2234
        %v2236 = vpop.f32.mrf.mxu0
        %v2237 = vadd.f32 %v1871, %v2236
        %v2238 = vpop.f32.mrf.mxu0
        %v2239 = vadd.f32 %v1875, %v2238
        %2240 = vmatprep.mubr.bf16.mxu0 %v1803
        %2241 = vmatmul.mubr.bf16.gmra.mxu0 %v1802
        %v2242 = vpop.f32.mrf.mxu0
        %v2243 = vadd.f32 %v1871, %v2242
        %v2244 = vpop.f32.mrf.mxu0
        %v2245 = vadd.f32 %v1875, %v2244
        %v2246 = vpop.f32.mrf.mxu0
        %v2247 = vadd.f32 %v1871, %v2246
        %v2248 = vpop.f32.mrf.mxu0
        %v2249 = vadd.f32 %v1875, %v2248
        %2250 = vmatprep.mubr.bf16.mxu0 %v1805
        %2251 = vmatmul.mubr.bf16.gmra.mxu0 %v1804
        %v2252 = vpop.f32.mrf.mxu0
        %v2253 = vadd.f32 %v1871, %v2252
        %v2254 = vpop.f32.mrf.mxu0
        %v2255 = vadd.f32 %v1875, %v2254
        %v2256 = vpop.f32.mrf.mxu0
        %v2257 = vadd.f32 %v1871, %v2256
        %v2258 = vpop.f32.mrf.mxu0
        %v2259 = vadd.f32 %v1875, %v2258
        %2260 = vmatprep.mubr.bf16.mxu0 %v1807
        %2261 = vmatmul.mubr.bf16.gmra.mxu0 %v1806
        %v2262 = vpop.f32.mrf.mxu0
        %v2263 = vadd.f32 %v1871, %v2262
        %v2264 = vpop.f32.mrf.mxu0
        %v2265 = vadd.f32 %v1875, %v2264
        %v2266 = vpop.f32.mrf.mxu0
        %v2267 = vadd.f32 %v1871, %v2266
        %v2268 = vpop.f32.mrf.mxu0
        %v2269 = vadd.f32 %v1875, %v2268
        %2270 = vmatprep.mubr.bf16.mxu0 %v1809
        %2271 = vmatmul.mubr.bf16.gmra.mxu0 %v1808
        %v2272 = vpop.f32.mrf.mxu0
        %v2273 = vadd.f32 %v1871, %v2272
        %v2274 = vpop.f32.mrf.mxu0
        %v2275 = vadd.f32 %v1875, %v2274
        %v2276 = vpop.f32.mrf.mxu0
        %v2277 = vadd.f32 %v1871, %v2276
        %v2278 = vpop.f32.mrf.mxu0
        %v2279 = vadd.f32 %v1875, %v2278
        %2280 = vmatprep.mubr.bf16.mxu0 %v1811
        %2281 = vmatmul.mubr.bf16.gmra.mxu0 %v1810
        %v2282 = vpop.f32.mrf.mxu0
        %v2283 = vadd.f32 %v1871, %v2282
        %v2284 = vpop.f32.mrf.mxu0
        %v2285 = vadd.f32 %v1875, %v2284
        %v2286 = vpop.f32.mrf.mxu0
        %v2287 = vadd.f32 %v1871, %v2286
        %v2288 = vpop.f32.mrf.mxu0
        %v2289 = vadd.f32 %v1875, %v2288
        %2290 = vmatprep.mubr.bf16.mxu0 %v1813
        %2291 = vmatmul.mubr.bf16.gmra.mxu0 %v1812
        %v2292 = vpop.f32.mrf.mxu0
        %v2293 = vadd.f32 %v1871, %v2292
        %v2294 = vpop.f32.mrf.mxu0
        %v2295 = vadd.f32 %v1875, %v2294
        %v2296 = vpop.f32.mrf.mxu0
        %v2297 = vadd.f32 %v1871, %v2296
        %v2298 = vpop.f32.mrf.mxu0
        %v2299 = vadd.f32 %v1875, %v2298
        %2300 = vmatprep.mubr.bf16.mxu0 %v1815
        %2301 = vmatmul.mubr.bf16.gmra.mxu0 %v1814
        %v2302 = vpop.f32.mrf.mxu0
        %v2303 = vadd.f32 %v1871, %v2302
        %v2304 = vpop.f32.mrf.mxu0
        %v2305 = vadd.f32 %v1875, %v2304
        %v2306 = vpop.f32.mrf.mxu0
        %v2307 = vadd.f32 %v1871, %v2306
        %v2308 = vpop.f32.mrf.mxu0
        %v2309 = vadd.f32 %v1875, %v2308
        %2310 = vmatprep.mubr.bf16.mxu0 %v1817
        %2311 = vmatmul.mubr.bf16.gmra.mxu0 %v1816
        %v2312 = vpop.f32.mrf.mxu0
        %v2313 = vadd.f32 %v1871, %v2312
        %v2314 = vpop.f32.mrf.mxu0
        %v2315 = vadd.f32 %v1875, %v2314
        %v2316 = vpop.f32.mrf.mxu0
        %v2317 = vadd.f32 %v1871, %v2316
        %v2318 = vpop.f32.mrf.mxu0
        %v2319 = vadd.f32 %v1875, %v2318
        %2320 = vmatprep.mubr.bf16.mxu0 %v1819
        %2321 = vmatmul.mubr.bf16.gmra.mxu0 %v1818
        %v2322 = vpop.f32.mrf.mxu0
        %v2323 = vadd.f32 %v1871, %v2322
        %v2324 = vpop.f32.mrf.mxu0
        %v2325 = vadd.f32 %v1875, %v2324
        %v2326 = vpop.f32.mrf.mxu0
        %v2327 = vadd.f32 %v1871, %v2326
        %v2328 = vpop.f32.mrf.mxu0
        %v2329 = vadd.f32 %v1875, %v2328
        %2330 = vmatprep.mubr.bf16.mxu0 %v1821
        %2331 = vmatmul.mubr.bf16.gmra.mxu0 %v1820
        %v2332 = vpop.f32.mrf.mxu0
        %v2333 = vadd.f32 %v1871, %v2332
        %v2334 = vpop.f32.mrf.mxu0
        %v2335 = vadd.f32 %v1875, %v2334
        %v2336 = vpop.f32.mrf.mxu0
        %v2337 = vadd.f32 %v1871, %v2336
        %v2338 = vpop.f32.mrf.mxu0
        %v2339 = vadd.f32 %v1875, %v2338
        %2340 = vmatprep.mubr.bf16.mxu0 %v1823
        %2341 = vmatmul.mubr.bf16.gmra.mxu0 %v1822
        %v2342 = vpop.f32.mrf.mxu0
        %v2343 = vadd.f32 %v1871, %v2342
        %v2344 = vpop.f32.mrf.mxu0
        %v2345 = vadd.f32 %v1875, %v2344
        %v2346 = vpop.f32.mrf.mxu0
        %v2347 = vadd.f32 %v1871, %v2346
        %v2348 = vpop.f32.mrf.mxu0
        %v2349 = vadd.f32 %v1875, %v2348
        %2350 = vmatprep.mubr.bf16.mxu0 %v1825
        %2351 = vmatmul.mubr.bf16.gmra.mxu0 %v1824
        %v2352 = vpop.f32.mrf.mxu0
        %v2353 = vadd.f32 %v1871, %v2352
        %v2354 = vpop.f32.mrf.mxu0
        %v2355 = vadd.f32 %v1875, %v2354
        %v2356 = vpop.f32.mrf.mxu0
        %v2357 = vadd.f32 %v1871, %v2356
        %v2358 = vpop.f32.mrf.mxu0
        %v2359 = vadd.f32 %v1875, %v2358
        %2360 = vmatprep.mubr.bf16.mxu0 %v1827
        %2361 = vmatmul.mubr.bf16.gmra.mxu0 %v1826
        %v2362 = vpop.f32.mrf.mxu0
        %v2363 = vadd.f32 %v1871, %v2362
        %v2364 = vpop.f32.mrf.mxu0
        %v2365 = vadd.f32 %v1875, %v2364
        %v2366 = vpop.f32.mrf.mxu0
        %v2367 = vadd.f32 %v1871, %v2366
        %v2368 = vpop.f32.mrf.mxu0
        %v2369 = vadd.f32 %v1875, %v2368
        %2370 = vmatprep.mubr.bf16.mxu0 %v1829
        %2371 = vmatmul.mubr.bf16.gmra.mxu0 %v1828
        %v2372 = vpop.f32.mrf.mxu0
        %v2373 = vadd.f32 %v1871, %v2372
        %v2374 = vpop.f32.mrf.mxu0
        %v2375 = vadd.f32 %v1875, %v2374
        %v2376 = vpop.f32.mrf.mxu0
        %v2377 = vadd.f32 %v1871, %v2376
        %v2378 = vpop.f32.mrf.mxu0
        %v2379 = vadd.f32 %v1875, %v2378
        %2380 = vmatprep.mubr.bf16.mxu0 %v1831
        %2381 = vmatmul.mubr.bf16.gmra.mxu0 %v1830
        %v2382 = vpop.f32.mrf.mxu0
        %v2383 = vadd.f32 %v1871, %v2382
        %v2384 = vpop.f32.mrf.mxu0
        %v2385 = vadd.f32 %v1875, %v2384
        %v2386 = vpop.f32.mrf.mxu0
        %v2387 = vadd.f32 %v1871, %v2386
        %v2388 = vpop.f32.mrf.mxu0
        %v2389 = vadd.f32 %v1875, %v2388
        %2390 = vdwg.mxu0
        %v2391 = vmax.f32 %v2073, 0.0
        %v2392 = vmax.f32 %v2075, 0.0
        %v2393 = vmax.f32 %v2077, 0.0
        %v2394 = vmax.f32 %v2079, 0.0
        %v2395 = vmax.f32 %v2083, 0.0
        %v2396 = vmax.f32 %v2085, 0.0
        %v2397 = vmax.f32 %v2087, 0.0
        %v2398 = vmax.f32 %v2089, 0.0
        %v2399 = vmax.f32 %v2093, 0.0
        %v2400 = vmax.f32 %v2095, 0.0
        %v2401 = vmax.f32 %v2097, 0.0
        %v2402 = vmax.f32 %v2099, 0.0
        %v2403 = vmax.f32 %v2103, 0.0
        %v2404 = vmax.f32 %v2105, 0.0
        %v2405 = vmax.f32 %v2107, 0.0
        %v2406 = vmax.f32 %v2109, 0.0
        %v2407 = vmax.f32 %v2113, 0.0
        %v2408 = vmax.f32 %v2115, 0.0
        %v2409 = vmax.f32 %v2117, 0.0
        %v2410 = vmax.f32 %v2119, 0.0
        %v2411 = vmax.f32 %v2123, 0.0
        %v2412 = vmax.f32 %v2125, 0.0
        %v2413 = vmax.f32 %v2127, 0.0
        %v2414 = vmax.f32 %v2129, 0.0
        %v2415 = vmax.f32 %v2133, 0.0
        %v2416 = vmax.f32 %v2135, 0.0
        %v2417 = vmax.f32 %v2137, 0.0
        %v2418 = vmax.f32 %v2139, 0.0
        %v2419 = vmax.f32 %v2143, 0.0
        %v2420 = vmax.f32 %v2145, 0.0
        %v2421 = vmax.f32 %v2147, 0.0
        %v2422 = vmax.f32 %v2149, 0.0
        %v2423 = vmax.f32 %v2153, 0.0
        %v2424 = vmax.f32 %v2155, 0.0
        %v2425 = vmax.f32 %v2157, 0.0
        %v2426 = vmax.f32 %v2159, 0.0
        %v2427 = vmax.f32 %v2163, 0.0
        %v2428 = vmax.f32 %v2165, 0.0
        %v2429 = vmax.f32 %v2167, 0.0
        %v2430 = vmax.f32 %v2169, 0.0
        %v2431 = vmax.f32 %v2173, 0.0
        %v2432 = vmax.f32 %v2175, 0.0
        %v2433 = vmax.f32 %v2177, 0.0
        %v2434 = vmax.f32 %v2179, 0.0
        %v2435 = vmax.f32 %v2183, 0.0
        %v2436 = vmax.f32 %v2185, 0.0
        %v2437 = vmax.f32 %v2187, 0.0
        %v2438 = vmax.f32 %v2189, 0.0
        %v2439 = vmax.f32 %v2193, 0.0
        %v2440 = vmax.f32 %v2195, 0.0
        %v2441 = vmax.f32 %v2197, 0.0
        %v2442 = vmax.f32 %v2199, 0.0
        %v2443 = vmax.f32 %v2203, 0.0
        %v2444 = vmax.f32 %v2205, 0.0
        %v2445 = vmax.f32 %v2207, 0.0
        %v2446 = vmax.f32 %v2209, 0.0
        %v2447 = vmax.f32 %v2213, 0.0
        %v2448 = vmax.f32 %v2215, 0.0
        %v2449 = vmax.f32 %v2217, 0.0
        %v2450 = vmax.f32 %v2219, 0.0
        %v2451 = vmax.f32 %v2223, 0.0
        %v2452 = vmax.f32 %v2225, 0.0
        %v2453 = vmax.f32 %v2227, 0.0
        %v2454 = vmax.f32 %v2229, 0.0
        %v2455 = vmax.f32 %v2233, 0.0
        %v2456 = vmax.f32 %v2235, 0.0
        %v2457 = vmax.f32 %v2237, 0.0
        %v2458 = vmax.f32 %v2239, 0.0
        %v2459 = vmax.f32 %v2243, 0.0
        %v2460 = vmax.f32 %v2245, 0.0
        %v2461 = vmax.f32 %v2247, 0.0
        %v2462 = vmax.f32 %v2249, 0.0
        %v2463 = vmax.f32 %v2253, 0.0
        %v2464 = vmax.f32 %v2255, 0.0
        %v2465 = vmax.f32 %v2257, 0.0
        %v2466 = vmax.f32 %v2259, 0.0
        %v2467 = vmax.f32 %v2263, 0.0
        %v2468 = vmax.f32 %v2265, 0.0
        %v2469 = vmax.f32 %v2267, 0.0
        %v2470 = vmax.f32 %v2269, 0.0
        %v2471 = vmax.f32 %v2273, 0.0
        %v2472 = vmax.f32 %v2275, 0.0
        %v2473 = vmax.f32 %v2277, 0.0
        %v2474 = vmax.f32 %v2279, 0.0
        %v2475 = vmax.f32 %v2283, 0.0
        %v2476 = vmax.f32 %v2285, 0.0
        %v2477 = vmax.f32 %v2287, 0.0
        %v2478 = vmax.f32 %v2289, 0.0
        %v2479 = vmax.f32 %v2293, 0.0
        %v2480 = vmax.f32 %v2295, 0.0
        %v2481 = vmax.f32 %v2297, 0.0
        %v2482 = vmax.f32 %v2299, 0.0
        %v2483 = vmax.f32 %v2303, 0.0
        %v2484 = vmax.f32 %v2305, 0.0
        %v2485 = vmax.f32 %v2307, 0.0
        %v2486 = vmax.f32 %v2309, 0.0
        %v2487 = vmax.f32 %v2313, 0.0
        %v2488 = vmax.f32 %v2315, 0.0
        %v2489 = vmax.f32 %v2317, 0.0
        %v2490 = vmax.f32 %v2319, 0.0
        %v2491 = vmax.f32 %v2323, 0.0
        %v2492 = vmax.f32 %v2325, 0.0
        %v2493 = vmax.f32 %v2327, 0.0
        %v2494 = vmax.f32 %v2329, 0.0
        %v2495 = vmax.f32 %v2333, 0.0
        %v2496 = vmax.f32 %v2335, 0.0
        %v2497 = vmax.f32 %v2337, 0.0
        %v2498 = vmax.f32 %v2339, 0.0
        %v2499 = vmax.f32 %v2343, 0.0
        %v2500 = vmax.f32 %v2345, 0.0
        %v2501 = vmax.f32 %v2347, 0.0
        %v2502 = vmax.f32 %v2349, 0.0
        %v2503 = vmax.f32 %v2353, 0.0
        %v2504 = vmax.f32 %v2355, 0.0
        %v2505 = vmax.f32 %v2357, 0.0
        %v2506 = vmax.f32 %v2359, 0.0
        %v2507 = vmax.f32 %v2363, 0.0
        %v2508 = vmax.f32 %v2365, 0.0
        %v2509 = vmax.f32 %v2367, 0.0
        %v2510 = vmax.f32 %v2369, 0.0
        %v2511 = vmax.f32 %v2373, 0.0
        %v2512 = vmax.f32 %v2375, 0.0
        %v2513 = vmax.f32 %v2377, 0.0
        %v2514 = vmax.f32 %v2379, 0.0
        %v2515 = vmax.f32 %v2383, 0.0
        %v2516 = vmax.f32 %v2385, 0.0
        %v2517 = vmax.f32 %v2387, 0.0
        %v2518 = vmax.f32 %v2389, 0.0
        %v2519 = vpack.c.bf16 %v2393, %v2391
        %v2520 = vpack.c.bf16 %v2394, %v2392
        %v2521 = vpack.c.bf16 %v2397, %v2395
        %v2522 = vpack.c.bf16 %v2398, %v2396
        %v2523 = vpack.c.bf16 %v2401, %v2399
        %v2524 = vpack.c.bf16 %v2402, %v2400
        %v2525 = vpack.c.bf16 %v2405, %v2403
        %v2526 = vpack.c.bf16 %v2406, %v2404
        %v2527 = vpack.c.bf16 %v2409, %v2407
        %v2528 = vpack.c.bf16 %v2410, %v2408
        %v2529 = vpack.c.bf16 %v2413, %v2411
        %v2530 = vpack.c.bf16 %v2414, %v2412
        %v2531 = vpack.c.bf16 %v2417, %v2415
        %v2532 = vpack.c.bf16 %v2418, %v2416
        %v2533 = vpack.c.bf16 %v2421, %v2419
        %v2534 = vpack.c.bf16 %v2422, %v2420
        %v2535 = vpack.c.bf16 %v2425, %v2423
        %v2536 = vpack.c.bf16 %v2426, %v2424
        %v2537 = vpack.c.bf16 %v2429, %v2427
        %v2538 = vpack.c.bf16 %v2430, %v2428
        %v2539 = vpack.c.bf16 %v2433, %v2431
        %v2540 = vpack.c.bf16 %v2434, %v2432
        %v2541 = vpack.c.bf16 %v2437, %v2435
        %v2542 = vpack.c.bf16 %v2438, %v2436
        %v2543 = vpack.c.bf16 %v2441, %v2439
        %v2544 = vpack.c.bf16 %v2442, %v2440
        %v2545 = vpack.c.bf16 %v2445, %v2443
        %v2546 = vpack.c.bf16 %v2446, %v2444
        %v2547 = vpack.c.bf16 %v2449, %v2447
        %v2548 = vpack.c.bf16 %v2450, %v2448
        %v2549 = vpack.c.bf16 %v2453, %v2451
        %v2550 = vpack.c.bf16 %v2454, %v2452
        %v2551 = vpack.c.bf16 %v2457, %v2455
        %v2552 = vpack.c.bf16 %v2458, %v2456
        %v2553 = vpack.c.bf16 %v2461, %v2459
        %v2554 = vpack.c.bf16 %v2462, %v2460
        %v2555 = vpack.c.bf16 %v2465, %v2463
        %v2556 = vpack.c.bf16 %v2466, %v2464
        %v2557 = vpack.c.bf16 %v2469, %v2467
        %v2558 = vpack.c.bf16 %v2470, %v2468
        %v2559 = vpack.c.bf16 %v2473, %v2471
        %v2560 = vpack.c.bf16 %v2474, %v2472
        %v2561 = vpack.c.bf16 %v2477, %v2475
        %v2562 = vpack.c.bf16 %v2478, %v2476
        %v2563 = vpack.c.bf16 %v2481, %v2479
        %v2564 = vpack.c.bf16 %v2482, %v2480
        %v2565 = vpack.c.bf16 %v2485, %v2483
        %v2566 = vpack.c.bf16 %v2486, %v2484
        %v2567 = vpack.c.bf16 %v2489, %v2487
        %v2568 = vpack.c.bf16 %v2490, %v2488
        %v2569 = vpack.c.bf16 %v2493, %v2491
        %v2570 = vpack.c.bf16 %v2494, %v2492
        %v2571 = vpack.c.bf16 %v2497, %v2495
        %v2572 = vpack.c.bf16 %v2498, %v2496
        %v2573 = vpack.c.bf16 %v2501, %v2499
        %v2574 = vpack.c.bf16 %v2502, %v2500
        %v2575 = vpack.c.bf16 %v2505, %v2503
        %v2576 = vpack.c.bf16 %v2506, %v2504
        %v2577 = vpack.c.bf16 %v2509, %v2507
        %v2578 = vpack.c.bf16 %v2510, %v2508
        %v2579 = vpack.c.bf16 %v2513, %v2511
        %v2580 = vpack.c.bf16 %v2514, %v2512
        %v2581 = vpack.c.bf16 %v2517, %v2515
        %v2582 = vpack.c.bf16 %v2518, %v2516
        %s2583 = scalar_lea.vmem [#allocation6], 512
        %v2584 = vld [vmem:[%s2583] sm:$0xff]
        %v2585 = vld [vmem:[%s2583 + $0x8] sm:$0xff]
        %v2586 = vld [vmem:[%s2583 + $0x10] sm:$0xff]
        %v2587 = vld [vmem:[%s2583 + $0x18] sm:$0xff]
        %v2588 = vld [vmem:[%s2583 + $0x20] sm:$0xff]
        %v2589 = vld [vmem:[%s2583 + $0x28] sm:$0xff]
        %v2590 = vld [vmem:[%s2583 + $0x30] sm:$0xff]
        %v2591 = vld [vmem:[%s2583 + $0x38] sm:$0xff]
        %v2592 = vld [vmem:[%s2583 + $0x40] sm:$0xff]
        %v2593 = vld [vmem:[%s2583 + $0x48] sm:$0xff]
        %v2594 = vld [vmem:[%s2583 + $0x50] sm:$0xff]
        %v2595 = vld [vmem:[%s2583 + $0x58] sm:$0xff]
        %v2596 = vld [vmem:[%s2583 + $0x60] sm:$0xff]
        %v2597 = vld [vmem:[%s2583 + $0x68] sm:$0xff]
        %v2598 = vld [vmem:[%s2583 + $0x70] sm:$0xff]
        %v2599 = vld [vmem:[%s2583 + $0x78] sm:$0xff]
        %v2600 = vld [vmem:[%s2583 + $0x80] sm:$0xff]
        %v2601 = vld [vmem:[%s2583 + $0x88] sm:$0xff]
        %v2602 = vld [vmem:[%s2583 + $0x90] sm:$0xff]
        %v2603 = vld [vmem:[%s2583 + $0x98] sm:$0xff]
        %v2604 = vld [vmem:[%s2583 + $0xa0] sm:$0xff]
        %v2605 = vld [vmem:[%s2583 + $0xa8] sm:$0xff]
        %v2606 = vld [vmem:[%s2583 + $0xb0] sm:$0xff]
        %v2607 = vld [vmem:[%s2583 + $0xb8] sm:$0xff]
        %v2608 = vld [vmem:[%s2583 + $0xc0] sm:$0xff]
        %v2609 = vld [vmem:[%s2583 + $0xc8] sm:$0xff]
        %v2610 = vld [vmem:[%s2583 + $0xd0] sm:$0xff]
        %v2611 = vld [vmem:[%s2583 + $0xd8] sm:$0xff]
        %v2612 = vld [vmem:[%s2583 + $0xe0] sm:$0xff]
        %v2613 = vld [vmem:[%s2583 + $0xe8] sm:$0xff]
        %v2614 = vld [vmem:[%s2583 + $0xf0] sm:$0xff]
        %v2615 = vld [vmem:[%s2583 + $0xf8] sm:$0xff]
        %s2616 = scalar_lea.vmem [#allocation7], 6
        %v2617 = vld [vmem:[%s2616] sm:$0x3]
        %v2619 = vlaneseq
        %v2620 = vshrl.u32 %v2619, 7
        %v2621 = vsub.s32 0, %v2620
        %v2622 = vrot.slane %v2617, %v2621
        %v2623 = vlaneseq
        %v2624 = vshrl.u32 %v2623, 7
        %v2625 = vsub.s32 1, %v2624
        %v2626 = vrot.slane %v2617, %v2625
        %v2661 = vunpack.c.l.b16 %v2584
        %v2662 = vunpack.c.h.b16 %v2584
        %v2663 = vunpack.c.l.b16 %v2585
        %v2664 = vunpack.c.h.b16 %v2585
        %v2665 = vunpack.c.l.b16 %v2586
        %v2666 = vunpack.c.h.b16 %v2586
        %v2667 = vunpack.c.l.b16 %v2587
        %v2668 = vunpack.c.h.b16 %v2587
        %v2669 = vunpack.c.l.b16 %v2588
        %v2670 = vunpack.c.h.b16 %v2588
        %v2671 = vunpack.c.l.b16 %v2589
        %v2672 = vunpack.c.h.b16 %v2589
        %v2673 = vunpack.c.l.b16 %v2590
        %v2674 = vunpack.c.h.b16 %v2590
        %v2675 = vunpack.c.l.b16 %v2591
        %v2676 = vunpack.c.h.b16 %v2591
        %v2677 = vunpack.c.l.b16 %v2592
        %v2678 = vunpack.c.h.b16 %v2592
        %v2679 = vunpack.c.l.b16 %v2593
        %v2680 = vunpack.c.h.b16 %v2593
        %v2681 = vunpack.c.l.b16 %v2594
        %v2682 = vunpack.c.h.b16 %v2594
        %v2683 = vunpack.c.l.b16 %v2595
        %v2684 = vunpack.c.h.b16 %v2595
        %v2685 = vunpack.c.l.b16 %v2596
        %v2686 = vunpack.c.h.b16 %v2596
        %v2687 = vunpack.c.l.b16 %v2597
        %v2688 = vunpack.c.h.b16 %v2597
        %v2689 = vunpack.c.l.b16 %v2598
        %v2690 = vunpack.c.h.b16 %v2598
        %v2691 = vunpack.c.l.b16 %v2599
        %v2692 = vunpack.c.h.b16 %v2599
        %v2693 = vunpack.c.l.b16 %v2600
        %v2694 = vunpack.c.h.b16 %v2600
        %v2695 = vunpack.c.l.b16 %v2601
        %v2696 = vunpack.c.h.b16 %v2601
        %v2697 = vunpack.c.l.b16 %v2602
        %v2698 = vunpack.c.h.b16 %v2602
        %v2699 = vunpack.c.l.b16 %v2603
        %v2700 = vunpack.c.h.b16 %v2603
        %v2701 = vunpack.c.l.b16 %v2604
        %v2702 = vunpack.c.h.b16 %v2604
        %v2703 = vunpack.c.l.b16 %v2605
        %v2704 = vunpack.c.h.b16 %v2605
        %v2705 = vunpack.c.l.b16 %v2606
        %v2706 = vunpack.c.h.b16 %v2606
        %v2707 = vunpack.c.l.b16 %v2607
        %v2708 = vunpack.c.h.b16 %v2607
        %v2709 = vunpack.c.l.b16 %v2608
        %v2710 = vunpack.c.h.b16 %v2608
        %v2711 = vunpack.c.l.b16 %v2609
        %v2712 = vunpack.c.h.b16 %v2609
        %v2713 = vunpack.c.l.b16 %v2610
        %v2714 = vunpack.c.h.b16 %v2610
        %v2715 = vunpack.c.l.b16 %v2611
        %v2716 = vunpack.c.h.b16 %v2611
        %v2717 = vunpack.c.l.b16 %v2612
        %v2718 = vunpack.c.h.b16 %v2612
        %v2719 = vunpack.c.l.b16 %v2613
        %v2720 = vunpack.c.h.b16 %v2613
        %v2721 = vunpack.c.l.b16 %v2614
        %v2722 = vunpack.c.h.b16 %v2614
        %v2723 = vunpack.c.l.b16 %v2615
        %v2724 = vunpack.c.h.b16 %v2615
        %v2725 = vpack.c.b16 %v2663, %v2661
        %v2726 = vpack.c.b16 %v2664, %v2662
        %v2727 = vpack.c.b16 %v2667, %v2665
        %v2728 = vpack.c.b16 %v2668, %v2666
        %v2729 = vpack.c.b16 %v2671, %v2669
        %v2730 = vpack.c.b16 %v2672, %v2670
        %v2731 = vpack.c.b16 %v2675, %v2673
        %v2732 = vpack.c.b16 %v2676, %v2674
        %v2733 = vpack.c.b16 %v2679, %v2677
        %v2734 = vpack.c.b16 %v2680, %v2678
        %v2735 = vpack.c.b16 %v2683, %v2681
        %v2736 = vpack.c.b16 %v2684, %v2682
        %v2737 = vpack.c.b16 %v2687, %v2685
        %v2738 = vpack.c.b16 %v2688, %v2686
        %v2739 = vpack.c.b16 %v2691, %v2689
        %v2740 = vpack.c.b16 %v2692, %v2690
        %v2741 = vpack.c.b16 %v2695, %v2693
        %v2742 = vpack.c.b16 %v2696, %v2694
        %v2743 = vpack.c.b16 %v2699, %v2697
        %v2744 = vpack.c.b16 %v2700, %v2698
        %v2745 = vpack.c.b16 %v2703, %v2701
        %v2746 = vpack.c.b16 %v2704, %v2702
        %v2747 = vpack.c.b16 %v2707, %v2705
        %v2748 = vpack.c.b16 %v2708, %v2706
        %v2749 = vpack.c.b16 %v2711, %v2709
        %v2750 = vpack.c.b16 %v2712, %v2710
        %v2751 = vpack.c.b16 %v2715, %v2713
        %v2752 = vpack.c.b16 %v2716, %v2714
        %v2753 = vpack.c.b16 %v2719, %v2717
        %v2754 = vpack.c.b16 %v2720, %v2718
        %v2755 = vpack.c.b16 %v2723, %v2721
        %v2756 = vpack.c.b16 %v2724, %v2722
        %2789 = vmatprep.subr.bf16.mxu0 %v2740
        %2790 = vmatpush1.bf16.msra.mxu0 %v2739
        %2791 = vmatprep.subr.bf16.mxu0 %v2738
        %2792 = vmatpush1.bf16.msra.mxu0 %v2737
        %2793 = vmatprep.subr.bf16.mxu0 %v2736
        %2794 = vmatpush1.bf16.msra.mxu0 %v2735
        %2795 = vmatprep.subr.bf16.mxu0 %v2734
        %2796 = vmatpush1.bf16.msra.mxu0 %v2733
        %2797 = vmatprep.subr.bf16.mxu0 %v2732
        %2798 = vmatpush1.bf16.msra.mxu0 %v2731
        %2799 = vmatprep.subr.bf16.mxu0 %v2730
        %2800 = vmatpush1.bf16.msra.mxu0 %v2729
        %2801 = vmatprep.subr.bf16.mxu0 %v2728
        %2802 = vmatpush1.bf16.msra.mxu0 %v2727
        %2803 = vmatprep.subr.bf16.mxu0 %v2726
        %2804 = vmatpush1.bf16.msra.mxu0 %v2725
        %2805 = vmatprep.subr.bf16.mxu0 %v2756
        %2806 = vmatpush2.bf16.msra.mxu0 %v2755
        %2807 = vmatprep.subr.bf16.mxu0 %v2754
        %2808 = vmatpush2.bf16.msra.mxu0 %v2753
        %2809 = vmatprep.subr.bf16.mxu0 %v2752
        %2810 = vmatpush2.bf16.msra.mxu0 %v2751
        %2811 = vmatprep.subr.bf16.mxu0 %v2750
        %2812 = vmatpush2.bf16.msra.mxu0 %v2749
        %2813 = vmatprep.subr.bf16.mxu0 %v2748
        %2814 = vmatpush2.bf16.msra.mxu0 %v2747
        %2815 = vmatprep.subr.bf16.mxu0 %v2746
        %2816 = vmatpush2.bf16.msra.mxu0 %v2745
        %2817 = vmatprep.subr.bf16.mxu0 %v2744
        %2818 = vmatpush2.bf16.msra.mxu0 %v2743
        %2819 = vmatprep.subr.bf16.mxu0 %v2742
        %2820 = vmatpush2.bf16.msra.mxu0 %v2741
        %2821 = vmatprep.mubr.bf16.mxu0 %v2520
        %2822 = vmatmul.mubr.bf16.gmra.mxu0 %v2519
        %v2823 = vpop.f32.mrf.mxu0
        %v2824 = vadd.f32 %v2622, %v2823
        %v2825 = vpop.f32.mrf.mxu0
        %v2826 = vadd.f32 %v2626, %v2825
        %v2827 = vpop.f32.mrf.mxu0
        %v2828 = vadd.f32 %v2622, %v2827
        %v2829 = vpop.f32.mrf.mxu0
        %v2830 = vadd.f32 %v2626, %v2829
        %2831 = vmatprep.mubr.bf16.mxu0 %v2522
        %2832 = vmatmul.mubr.bf16.gmra.mxu0 %v2521
        %v2833 = vpop.f32.mrf.mxu0
        %v2834 = vadd.f32 %v2622, %v2833
        %v2835 = vpop.f32.mrf.mxu0
        %v2836 = vadd.f32 %v2626, %v2835
        %v2837 = vpop.f32.mrf.mxu0
        %v2838 = vadd.f32 %v2622, %v2837
        %v2839 = vpop.f32.mrf.mxu0
        %v2840 = vadd.f32 %v2626, %v2839
        %2841 = vmatprep.mubr.bf16.mxu0 %v2524
        %2842 = vmatmul.mubr.bf16.gmra.mxu0 %v2523
        %v2843 = vpop.f32.mrf.mxu0
        %v2844 = vadd.f32 %v2622, %v2843
        %v2845 = vpop.f32.mrf.mxu0
        %v2846 = vadd.f32 %v2626, %v2845
        %v2847 = vpop.f32.mrf.mxu0
        %v2848 = vadd.f32 %v2622, %v2847
        %v2849 = vpop.f32.mrf.mxu0
        %v2850 = vadd.f32 %v2626, %v2849
        %2851 = vmatprep.mubr.bf16.mxu0 %v2526
        %2852 = vmatmul.mubr.bf16.gmra.mxu0 %v2525
        %v2853 = vpop.f32.mrf.mxu0
        %v2854 = vadd.f32 %v2622, %v2853
        %v2855 = vpop.f32.mrf.mxu0
        %v2856 = vadd.f32 %v2626, %v2855
        %v2857 = vpop.f32.mrf.mxu0
        %v2858 = vadd.f32 %v2622, %v2857
        %v2859 = vpop.f32.mrf.mxu0
        %v2860 = vadd.f32 %v2626, %v2859
        %2861 = vmatprep.mubr.bf16.mxu0 %v2528
        %2862 = vmatmul.mubr.bf16.gmra.mxu0 %v2527
        %v2863 = vpop.f32.mrf.mxu0
        %v2864 = vadd.f32 %v2622, %v2863
        %v2865 = vpop.f32.mrf.mxu0
        %v2866 = vadd.f32 %v2626, %v2865
        %v2867 = vpop.f32.mrf.mxu0
        %v2868 = vadd.f32 %v2622, %v2867
        %v2869 = vpop.f32.mrf.mxu0
        %v2870 = vadd.f32 %v2626, %v2869
        %2871 = vmatprep.mubr.bf16.mxu0 %v2530
        %2872 = vmatmul.mubr.bf16.gmra.mxu0 %v2529
        %v2873 = vpop.f32.mrf.mxu0
        %v2874 = vadd.f32 %v2622, %v2873
        %v2875 = vpop.f32.mrf.mxu0
        %v2876 = vadd.f32 %v2626, %v2875
        %v2877 = vpop.f32.mrf.mxu0
        %v2878 = vadd.f32 %v2622, %v2877
        %v2879 = vpop.f32.mrf.mxu0
        %v2880 = vadd.f32 %v2626, %v2879
        %2881 = vmatprep.mubr.bf16.mxu0 %v2532
        %2882 = vmatmul.mubr.bf16.gmra.mxu0 %v2531
        %v2883 = vpop.f32.mrf.mxu0
        %v2884 = vadd.f32 %v2622, %v2883
        %v2885 = vpop.f32.mrf.mxu0
        %v2886 = vadd.f32 %v2626, %v2885
        %v2887 = vpop.f32.mrf.mxu0
        %v2888 = vadd.f32 %v2622, %v2887
        %v2889 = vpop.f32.mrf.mxu0
        %v2890 = vadd.f32 %v2626, %v2889
        %2891 = vmatprep.mubr.bf16.mxu0 %v2534
        %2892 = vmatmul.mubr.bf16.gmra.mxu0 %v2533
        %v2893 = vpop.f32.mrf.mxu0
        %v2894 = vadd.f32 %v2622, %v2893
        %v2895 = vpop.f32.mrf.mxu0
        %v2896 = vadd.f32 %v2626, %v2895
        %v2897 = vpop.f32.mrf.mxu0
        %v2898 = vadd.f32 %v2622, %v2897
        %v2899 = vpop.f32.mrf.mxu0
        %v2900 = vadd.f32 %v2626, %v2899
        %2901 = vmatprep.mubr.bf16.mxu0 %v2536
        %2902 = vmatmul.mubr.bf16.gmra.mxu0 %v2535
        %v2903 = vpop.f32.mrf.mxu0
        %v2904 = vadd.f32 %v2622, %v2903
        %v2905 = vpop.f32.mrf.mxu0
        %v2906 = vadd.f32 %v2626, %v2905
        %v2907 = vpop.f32.mrf.mxu0
        %v2908 = vadd.f32 %v2622, %v2907
        %v2909 = vpop.f32.mrf.mxu0
        %v2910 = vadd.f32 %v2626, %v2909
        %2911 = vmatprep.mubr.bf16.mxu0 %v2538
        %2912 = vmatmul.mubr.bf16.gmra.mxu0 %v2537
        %v2913 = vpop.f32.mrf.mxu0
        %v2914 = vadd.f32 %v2622, %v2913
        %v2915 = vpop.f32.mrf.mxu0
        %v2916 = vadd.f32 %v2626, %v2915
        %v2917 = vpop.f32.mrf.mxu0
        %v2918 = vadd.f32 %v2622, %v2917
        %v2919 = vpop.f32.mrf.mxu0
        %v2920 = vadd.f32 %v2626, %v2919
        %2921 = vmatprep.mubr.bf16.mxu0 %v2540
        %2922 = vmatmul.mubr.bf16.gmra.mxu0 %v2539
        %v2923 = vpop.f32.mrf.mxu0
        %v2924 = vadd.f32 %v2622, %v2923
        %v2925 = vpop.f32.mrf.mxu0
        %v2926 = vadd.f32 %v2626, %v2925
        %v2927 = vpop.f32.mrf.mxu0
        %v2928 = vadd.f32 %v2622, %v2927
        %v2929 = vpop.f32.mrf.mxu0
        %v2930 = vadd.f32 %v2626, %v2929
        %2931 = vmatprep.mubr.bf16.mxu0 %v2542
        %2932 = vmatmul.mubr.bf16.gmra.mxu0 %v2541
        %v2933 = vpop.f32.mrf.mxu0
        %v2934 = vadd.f32 %v2622, %v2933
        %v2935 = vpop.f32.mrf.mxu0
        %v2936 = vadd.f32 %v2626, %v2935
        %v2937 = vpop.f32.mrf.mxu0
        %v2938 = vadd.f32 %v2622, %v2937
        %v2939 = vpop.f32.mrf.mxu0
        %v2940 = vadd.f32 %v2626, %v2939
        %2941 = vmatprep.mubr.bf16.mxu0 %v2544
        %2942 = vmatmul.mubr.bf16.gmra.mxu0 %v2543
        %v2943 = vpop.f32.mrf.mxu0
        %v2944 = vadd.f32 %v2622, %v2943
        %v2945 = vpop.f32.mrf.mxu0
        %v2946 = vadd.f32 %v2626, %v2945
        %v2947 = vpop.f32.mrf.mxu0
        %v2948 = vadd.f32 %v2622, %v2947
        %v2949 = vpop.f32.mrf.mxu0
        %v2950 = vadd.f32 %v2626, %v2949
        %2951 = vmatprep.mubr.bf16.mxu0 %v2546
        %2952 = vmatmul.mubr.bf16.gmra.mxu0 %v2545
        %v2953 = vpop.f32.mrf.mxu0
        %v2954 = vadd.f32 %v2622, %v2953
        %v2955 = vpop.f32.mrf.mxu0
        %v2956 = vadd.f32 %v2626, %v2955
        %v2957 = vpop.f32.mrf.mxu0
        %v2958 = vadd.f32 %v2622, %v2957
        %v2959 = vpop.f32.mrf.mxu0
        %v2960 = vadd.f32 %v2626, %v2959
        %2961 = vmatprep.mubr.bf16.mxu0 %v2548
        %2962 = vmatmul.mubr.bf16.gmra.mxu0 %v2547
        %v2963 = vpop.f32.mrf.mxu0
        %v2964 = vadd.f32 %v2622, %v2963
        %v2965 = vpop.f32.mrf.mxu0
        %v2966 = vadd.f32 %v2626, %v2965
        %v2967 = vpop.f32.mrf.mxu0
        %v2968 = vadd.f32 %v2622, %v2967
        %v2969 = vpop.f32.mrf.mxu0
        %v2970 = vadd.f32 %v2626, %v2969
        %2971 = vmatprep.mubr.bf16.mxu0 %v2550
        %2972 = vmatmul.mubr.bf16.gmra.mxu0 %v2549
        %v2973 = vpop.f32.mrf.mxu0
        %v2974 = vadd.f32 %v2622, %v2973
        %v2975 = vpop.f32.mrf.mxu0
        %v2976 = vadd.f32 %v2626, %v2975
        %v2977 = vpop.f32.mrf.mxu0
        %v2978 = vadd.f32 %v2622, %v2977
        %v2979 = vpop.f32.mrf.mxu0
        %v2980 = vadd.f32 %v2626, %v2979
        %2981 = vmatprep.mubr.bf16.mxu0 %v2552
        %2982 = vmatmul.mubr.bf16.gmra.mxu0 %v2551
        %v2983 = vpop.f32.mrf.mxu0
        %v2984 = vadd.f32 %v2622, %v2983
        %v2985 = vpop.f32.mrf.mxu0
        %v2986 = vadd.f32 %v2626, %v2985
        %v2987 = vpop.f32.mrf.mxu0
        %v2988 = vadd.f32 %v2622, %v2987
        %v2989 = vpop.f32.mrf.mxu0
        %v2990 = vadd.f32 %v2626, %v2989
        %2991 = vmatprep.mubr.bf16.mxu0 %v2554
        %2992 = vmatmul.mubr.bf16.gmra.mxu0 %v2553
        %v2993 = vpop.f32.mrf.mxu0
        %v2994 = vadd.f32 %v2622, %v2993
        %v2995 = vpop.f32.mrf.mxu0
        %v2996 = vadd.f32 %v2626, %v2995
        %v2997 = vpop.f32.mrf.mxu0
        %v2998 = vadd.f32 %v2622, %v2997
        %v2999 = vpop.f32.mrf.mxu0
        %v3000 = vadd.f32 %v2626, %v2999
        %3001 = vmatprep.mubr.bf16.mxu0 %v2556
        %3002 = vmatmul.mubr.bf16.gmra.mxu0 %v2555
        %v3003 = vpop.f32.mrf.mxu0
        %v3004 = vadd.f32 %v2622, %v3003
        %v3005 = vpop.f32.mrf.mxu0
        %v3006 = vadd.f32 %v2626, %v3005
        %v3007 = vpop.f32.mrf.mxu0
        %v3008 = vadd.f32 %v2622, %v3007
        %v3009 = vpop.f32.mrf.mxu0
        %v3010 = vadd.f32 %v2626, %v3009
        %3011 = vmatprep.mubr.bf16.mxu0 %v2558
        %3012 = vmatmul.mubr.bf16.gmra.mxu0 %v2557
        %v3013 = vpop.f32.mrf.mxu0
        %v3014 = vadd.f32 %v2622, %v3013
        %v3015 = vpop.f32.mrf.mxu0
        %v3016 = vadd.f32 %v2626, %v3015
        %v3017 = vpop.f32.mrf.mxu0
        %v3018 = vadd.f32 %v2622, %v3017
        %v3019 = vpop.f32.mrf.mxu0
        %v3020 = vadd.f32 %v2626, %v3019
        %3021 = vmatprep.mubr.bf16.mxu0 %v2560
        %3022 = vmatmul.mubr.bf16.gmra.mxu0 %v2559
        %v3023 = vpop.f32.mrf.mxu0
        %v3024 = vadd.f32 %v2622, %v3023
        %v3025 = vpop.f32.mrf.mxu0
        %v3026 = vadd.f32 %v2626, %v3025
        %v3027 = vpop.f32.mrf.mxu0
        %v3028 = vadd.f32 %v2622, %v3027
        %v3029 = vpop.f32.mrf.mxu0
        %v3030 = vadd.f32 %v2626, %v3029
        %3031 = vmatprep.mubr.bf16.mxu0 %v2562
        %3032 = vmatmul.mubr.bf16.gmra.mxu0 %v2561
        %v3033 = vpop.f32.mrf.mxu0
        %v3034 = vadd.f32 %v2622, %v3033
        %v3035 = vpop.f32.mrf.mxu0
        %v3036 = vadd.f32 %v2626, %v3035
        %v3037 = vpop.f32.mrf.mxu0
        %v3038 = vadd.f32 %v2622, %v3037
        %v3039 = vpop.f32.mrf.mxu0
        %v3040 = vadd.f32 %v2626, %v3039
        %3041 = vmatprep.mubr.bf16.mxu0 %v2564
        %3042 = vmatmul.mubr.bf16.gmra.mxu0 %v2563
        %v3043 = vpop.f32.mrf.mxu0
        %v3044 = vadd.f32 %v2622, %v3043
        %v3045 = vpop.f32.mrf.mxu0
        %v3046 = vadd.f32 %v2626, %v3045
        %v3047 = vpop.f32.mrf.mxu0
        %v3048 = vadd.f32 %v2622, %v3047
        %v3049 = vpop.f32.mrf.mxu0
        %v3050 = vadd.f32 %v2626, %v3049
        %3051 = vmatprep.mubr.bf16.mxu0 %v2566
        %3052 = vmatmul.mubr.bf16.gmra.mxu0 %v2565
        %v3053 = vpop.f32.mrf.mxu0
        %v3054 = vadd.f32 %v2622, %v3053
        %v3055 = vpop.f32.mrf.mxu0
        %v3056 = vadd.f32 %v2626, %v3055
        %v3057 = vpop.f32.mrf.mxu0
        %v3058 = vadd.f32 %v2622, %v3057
        %v3059 = vpop.f32.mrf.mxu0
        %v3060 = vadd.f32 %v2626, %v3059
        %3061 = vmatprep.mubr.bf16.mxu0 %v2568
        %3062 = vmatmul.mubr.bf16.gmra.mxu0 %v2567
        %v3063 = vpop.f32.mrf.mxu0
        %v3064 = vadd.f32 %v2622, %v3063
        %v3065 = vpop.f32.mrf.mxu0
        %v3066 = vadd.f32 %v2626, %v3065
        %v3067 = vpop.f32.mrf.mxu0
        %v3068 = vadd.f32 %v2622, %v3067
        %v3069 = vpop.f32.mrf.mxu0
        %v3070 = vadd.f32 %v2626, %v3069
        %3071 = vmatprep.mubr.bf16.mxu0 %v2570
        %3072 = vmatmul.mubr.bf16.gmra.mxu0 %v2569
        %v3073 = vpop.f32.mrf.mxu0
        %v3074 = vadd.f32 %v2622, %v3073
        %v3075 = vpop.f32.mrf.mxu0
        %v3076 = vadd.f32 %v2626, %v3075
        %v3077 = vpop.f32.mrf.mxu0
        %v3078 = vadd.f32 %v2622, %v3077
        %v3079 = vpop.f32.mrf.mxu0
        %v3080 = vadd.f32 %v2626, %v3079
        %3081 = vmatprep.mubr.bf16.mxu0 %v2572
        %3082 = vmatmul.mubr.bf16.gmra.mxu0 %v2571
        %v3083 = vpop.f32.mrf.mxu0
        %v3084 = vadd.f32 %v2622, %v3083
        %v3085 = vpop.f32.mrf.mxu0
        %v3086 = vadd.f32 %v2626, %v3085
        %v3087 = vpop.f32.mrf.mxu0
        %v3088 = vadd.f32 %v2622, %v3087
        %v3089 = vpop.f32.mrf.mxu0
        %v3090 = vadd.f32 %v2626, %v3089
        %3091 = vmatprep.mubr.bf16.mxu0 %v2574
        %3092 = vmatmul.mubr.bf16.gmra.mxu0 %v2573
        %v3093 = vpop.f32.mrf.mxu0
        %v3094 = vadd.f32 %v2622, %v3093
        %v3095 = vpop.f32.mrf.mxu0
        %v3096 = vadd.f32 %v2626, %v3095
        %v3097 = vpop.f32.mrf.mxu0
        %v3098 = vadd.f32 %v2622, %v3097
        %v3099 = vpop.f32.mrf.mxu0
        %v3100 = vadd.f32 %v2626, %v3099
        %3101 = vmatprep.mubr.bf16.mxu0 %v2576
        %3102 = vmatmul.mubr.bf16.gmra.mxu0 %v2575
        %v3103 = vpop.f32.mrf.mxu0
        %v3104 = vadd.f32 %v2622, %v3103
        %v3105 = vpop.f32.mrf.mxu0
        %v3106 = vadd.f32 %v2626, %v3105
        %v3107 = vpop.f32.mrf.mxu0
        %v3108 = vadd.f32 %v2622, %v3107
        %v3109 = vpop.f32.mrf.mxu0
        %v3110 = vadd.f32 %v2626, %v3109
        %3111 = vmatprep.mubr.bf16.mxu0 %v2578
        %3112 = vmatmul.mubr.bf16.gmra.mxu0 %v2577
        %v3113 = vpop.f32.mrf.mxu0
        %v3114 = vadd.f32 %v2622, %v3113
        %v3115 = vpop.f32.mrf.mxu0
        %v3116 = vadd.f32 %v2626, %v3115
        %v3117 = vpop.f32.mrf.mxu0
        %v3118 = vadd.f32 %v2622, %v3117
        %v3119 = vpop.f32.mrf.mxu0
        %v3120 = vadd.f32 %v2626, %v3119
        %3121 = vmatprep.mubr.bf16.mxu0 %v2580
        %3122 = vmatmul.mubr.bf16.gmra.mxu0 %v2579
        %v3123 = vpop.f32.mrf.mxu0
        %v3124 = vadd.f32 %v2622, %v3123
        %v3125 = vpop.f32.mrf.mxu0
        %v3126 = vadd.f32 %v2626, %v3125
        %v3127 = vpop.f32.mrf.mxu0
        %v3128 = vadd.f32 %v2622, %v3127
        %v3129 = vpop.f32.mrf.mxu0
        %v3130 = vadd.f32 %v2626, %v3129
        %3131 = vmatprep.mubr.bf16.mxu0 %v2582
        %3132 = vmatmul.mubr.bf16.gmra.mxu0 %v2581
        %v3133 = vpop.f32.mrf.mxu0
        %v3134 = vadd.f32 %v2622, %v3133
        %v3135 = vpop.f32.mrf.mxu0
        %v3136 = vadd.f32 %v2626, %v3135
        %v3137 = vpop.f32.mrf.mxu0
        %v3138 = vadd.f32 %v2622, %v3137
        %v3139 = vpop.f32.mrf.mxu0
        %v3140 = vadd.f32 %v2626, %v3139
        %3141 = vdwg.mxu0
        %v3142 = vmax.f32 %v2824, 0.0
        %v3143 = vmax.f32 %v2826, 0.0
        %v3144 = vmax.f32 %v2828, 0.0
        %v3145 = vmax.f32 %v2830, 0.0
        %v3146 = vmax.f32 %v2834, 0.0
        %v3147 = vmax.f32 %v2836, 0.0
        %v3148 = vmax.f32 %v2838, 0.0
        %v3149 = vmax.f32 %v2840, 0.0
        %v3150 = vmax.f32 %v2844, 0.0
        %v3151 = vmax.f32 %v2846, 0.0
        %v3152 = vmax.f32 %v2848, 0.0
        %v3153 = vmax.f32 %v2850, 0.0
        %v3154 = vmax.f32 %v2854, 0.0
        %v3155 = vmax.f32 %v2856, 0.0
        %v3156 = vmax.f32 %v2858, 0.0
        %v3157 = vmax.f32 %v2860, 0.0
        %v3158 = vmax.f32 %v2864, 0.0
        %v3159 = vmax.f32 %v2866, 0.0
        %v3160 = vmax.f32 %v2868, 0.0
        %v3161 = vmax.f32 %v2870, 0.0
        %v3162 = vmax.f32 %v2874, 0.0
        %v3163 = vmax.f32 %v2876, 0.0
        %v3164 = vmax.f32 %v2878, 0.0
        %v3165 = vmax.f32 %v2880, 0.0
        %v3166 = vmax.f32 %v2884, 0.0
        %v3167 = vmax.f32 %v2886, 0.0
        %v3168 = vmax.f32 %v2888, 0.0
        %v3169 = vmax.f32 %v2890, 0.0
        %v3170 = vmax.f32 %v2894, 0.0
        %v3171 = vmax.f32 %v2896, 0.0
        %v3172 = vmax.f32 %v2898, 0.0
        %v3173 = vmax.f32 %v2900, 0.0
        %v3174 = vmax.f32 %v2904, 0.0
        %v3175 = vmax.f32 %v2906, 0.0
        %v3176 = vmax.f32 %v2908, 0.0
        %v3177 = vmax.f32 %v2910, 0.0
        %v3178 = vmax.f32 %v2914, 0.0
        %v3179 = vmax.f32 %v2916, 0.0
        %v3180 = vmax.f32 %v2918, 0.0
        %v3181 = vmax.f32 %v2920, 0.0
        %v3182 = vmax.f32 %v2924, 0.0
        %v3183 = vmax.f32 %v2926, 0.0
        %v3184 = vmax.f32 %v2928, 0.0
        %v3185 = vmax.f32 %v2930, 0.0
        %v3186 = vmax.f32 %v2934, 0.0
        %v3187 = vmax.f32 %v2936, 0.0
        %v3188 = vmax.f32 %v2938, 0.0
        %v3189 = vmax.f32 %v2940, 0.0
        %v3190 = vmax.f32 %v2944, 0.0
        %v3191 = vmax.f32 %v2946, 0.0
        %v3192 = vmax.f32 %v2948, 0.0
        %v3193 = vmax.f32 %v2950, 0.0
        %v3194 = vmax.f32 %v2954, 0.0
        %v3195 = vmax.f32 %v2956, 0.0
        %v3196 = vmax.f32 %v2958, 0.0
        %v3197 = vmax.f32 %v2960, 0.0
        %v3198 = vmax.f32 %v2964, 0.0
        %v3199 = vmax.f32 %v2966, 0.0
        %v3200 = vmax.f32 %v2968, 0.0
        %v3201 = vmax.f32 %v2970, 0.0
        %v3202 = vmax.f32 %v2974, 0.0
        %v3203 = vmax.f32 %v2976, 0.0
        %v3204 = vmax.f32 %v2978, 0.0
        %v3205 = vmax.f32 %v2980, 0.0
        %v3206 = vmax.f32 %v2984, 0.0
        %v3207 = vmax.f32 %v2986, 0.0
        %v3208 = vmax.f32 %v2988, 0.0
        %v3209 = vmax.f32 %v2990, 0.0
        %v3210 = vmax.f32 %v2994, 0.0
        %v3211 = vmax.f32 %v2996, 0.0
        %v3212 = vmax.f32 %v2998, 0.0
        %v3213 = vmax.f32 %v3000, 0.0
        %v3214 = vmax.f32 %v3004, 0.0
        %v3215 = vmax.f32 %v3006, 0.0
        %v3216 = vmax.f32 %v3008, 0.0
        %v3217 = vmax.f32 %v3010, 0.0
        %v3218 = vmax.f32 %v3014, 0.0
        %v3219 = vmax.f32 %v3016, 0.0
        %v3220 = vmax.f32 %v3018, 0.0
        %v3221 = vmax.f32 %v3020, 0.0
        %v3222 = vmax.f32 %v3024, 0.0
        %v3223 = vmax.f32 %v3026, 0.0
        %v3224 = vmax.f32 %v3028, 0.0
        %v3225 = vmax.f32 %v3030, 0.0
        %v3226 = vmax.f32 %v3034, 0.0
        %v3227 = vmax.f32 %v3036, 0.0
        %v3228 = vmax.f32 %v3038, 0.0
        %v3229 = vmax.f32 %v3040, 0.0
        %v3230 = vmax.f32 %v3044, 0.0
        %v3231 = vmax.f32 %v3046, 0.0
        %v3232 = vmax.f32 %v3048, 0.0
        %v3233 = vmax.f32 %v3050, 0.0
        %v3234 = vmax.f32 %v3054, 0.0
        %v3235 = vmax.f32 %v3056, 0.0
        %v3236 = vmax.f32 %v3058, 0.0
        %v3237 = vmax.f32 %v3060, 0.0
        %v3238 = vmax.f32 %v3064, 0.0
        %v3239 = vmax.f32 %v3066, 0.0
        %v3240 = vmax.f32 %v3068, 0.0
        %v3241 = vmax.f32 %v3070, 0.0
        %v3242 = vmax.f32 %v3074, 0.0
        %v3243 = vmax.f32 %v3076, 0.0
        %v3244 = vmax.f32 %v3078, 0.0
        %v3245 = vmax.f32 %v3080, 0.0
        %v3246 = vmax.f32 %v3084, 0.0
        %v3247 = vmax.f32 %v3086, 0.0
        %v3248 = vmax.f32 %v3088, 0.0
        %v3249 = vmax.f32 %v3090, 0.0
        %v3250 = vmax.f32 %v3094, 0.0
        %v3251 = vmax.f32 %v3096, 0.0
        %v3252 = vmax.f32 %v3098, 0.0
        %v3253 = vmax.f32 %v3100, 0.0
        %v3254 = vmax.f32 %v3104, 0.0
        %v3255 = vmax.f32 %v3106, 0.0
        %v3256 = vmax.f32 %v3108, 0.0
        %v3257 = vmax.f32 %v3110, 0.0
        %v3258 = vmax.f32 %v3114, 0.0
        %v3259 = vmax.f32 %v3116, 0.0
        %v3260 = vmax.f32 %v3118, 0.0
        %v3261 = vmax.f32 %v3120, 0.0
        %v3262 = vmax.f32 %v3124, 0.0
        %v3263 = vmax.f32 %v3126, 0.0
        %v3264 = vmax.f32 %v3128, 0.0
        %v3265 = vmax.f32 %v3130, 0.0
        %v3266 = vmax.f32 %v3134, 0.0
        %v3267 = vmax.f32 %v3136, 0.0
        %v3268 = vmax.f32 %v3138, 0.0
        %v3269 = vmax.f32 %v3140, 0.0
        %v3270 = vpack.c.bf16 %v3144, %v3142
        %v3271 = vpack.c.bf16 %v3145, %v3143
        %v3272 = vpack.c.bf16 %v3148, %v3146
        %v3273 = vpack.c.bf16 %v3149, %v3147
        %v3274 = vpack.c.bf16 %v3152, %v3150
        %v3275 = vpack.c.bf16 %v3153, %v3151
        %v3276 = vpack.c.bf16 %v3156, %v3154
        %v3277 = vpack.c.bf16 %v3157, %v3155
        %v3278 = vpack.c.bf16 %v3160, %v3158
        %v3279 = vpack.c.bf16 %v3161, %v3159
        %v3280 = vpack.c.bf16 %v3164, %v3162
        %v3281 = vpack.c.bf16 %v3165, %v3163
        %v3282 = vpack.c.bf16 %v3168, %v3166
        %v3283 = vpack.c.bf16 %v3169, %v3167
        %v3284 = vpack.c.bf16 %v3172, %v3170
        %v3285 = vpack.c.bf16 %v3173, %v3171
        %v3286 = vpack.c.bf16 %v3176, %v3174
        %v3287 = vpack.c.bf16 %v3177, %v3175
        %v3288 = vpack.c.bf16 %v3180, %v3178
        %v3289 = vpack.c.bf16 %v3181, %v3179
        %v3290 = vpack.c.bf16 %v3184, %v3182
        %v3291 = vpack.c.bf16 %v3185, %v3183
        %v3292 = vpack.c.bf16 %v3188, %v3186
        %v3293 = vpack.c.bf16 %v3189, %v3187
        %v3294 = vpack.c.bf16 %v3192, %v3190
        %v3295 = vpack.c.bf16 %v3193, %v3191
        %v3296 = vpack.c.bf16 %v3196, %v3194
        %v3297 = vpack.c.bf16 %v3197, %v3195
        %v3298 = vpack.c.bf16 %v3200, %v3198
        %v3299 = vpack.c.bf16 %v3201, %v3199
        %v3300 = vpack.c.bf16 %v3204, %v3202
        %v3301 = vpack.c.bf16 %v3205, %v3203
        %v3302 = vpack.c.bf16 %v3208, %v3206
        %v3303 = vpack.c.bf16 %v3209, %v3207
        %v3304 = vpack.c.bf16 %v3212, %v3210
        %v3305 = vpack.c.bf16 %v3213, %v3211
        %v3306 = vpack.c.bf16 %v3216, %v3214
        %v3307 = vpack.c.bf16 %v3217, %v3215
        %v3308 = vpack.c.bf16 %v3220, %v3218
        %v3309 = vpack.c.bf16 %v3221, %v3219
        %v3310 = vpack.c.bf16 %v3224, %v3222
        %v3311 = vpack.c.bf16 %v3225, %v3223
        %v3312 = vpack.c.bf16 %v3228, %v3226
        %v3313 = vpack.c.bf16 %v3229, %v3227
        %v3314 = vpack.c.bf16 %v3232, %v3230
        %v3315 = vpack.c.bf16 %v3233, %v3231
        %v3316 = vpack.c.bf16 %v3236, %v3234
        %v3317 = vpack.c.bf16 %v3237, %v3235
        %v3318 = vpack.c.bf16 %v3240, %v3238
        %v3319 = vpack.c.bf16 %v3241, %v3239
        %v3320 = vpack.c.bf16 %v3244, %v3242
        %v3321 = vpack.c.bf16 %v3245, %v3243
        %v3322 = vpack.c.bf16 %v3248, %v3246
        %v3323 = vpack.c.bf16 %v3249, %v3247
        %v3324 = vpack.c.bf16 %v3252, %v3250
        %v3325 = vpack.c.bf16 %v3253, %v3251
        %v3326 = vpack.c.bf16 %v3256, %v3254
        %v3327 = vpack.c.bf16 %v3257, %v3255
        %v3328 = vpack.c.bf16 %v3260, %v3258
        %v3329 = vpack.c.bf16 %v3261, %v3259
        %v3330 = vpack.c.bf16 %v3264, %v3262
        %v3331 = vpack.c.bf16 %v3265, %v3263
        %v3332 = vpack.c.bf16 %v3268, %v3266
        %v3333 = vpack.c.bf16 %v3269, %v3267
        %s3334 = scalar_lea.vmem [#allocation6], 768
        %v3335 = vld [vmem:[%s3334] sm:$0xff]
        %v3336 = vld [vmem:[%s3334 + $0x8] sm:$0xff]
        %v3337 = vld [vmem:[%s3334 + $0x10] sm:$0xff]
        %v3338 = vld [vmem:[%s3334 + $0x18] sm:$0xff]
        %v3339 = vld [vmem:[%s3334 + $0x20] sm:$0xff]
        %v3340 = vld [vmem:[%s3334 + $0x28] sm:$0xff]
        %v3341 = vld [vmem:[%s3334 + $0x30] sm:$0xff]
        %v3342 = vld [vmem:[%s3334 + $0x38] sm:$0xff]
        %v3343 = vld [vmem:[%s3334 + $0x40] sm:$0xff]
        %v3344 = vld [vmem:[%s3334 + $0x48] sm:$0xff]
        %v3345 = vld [vmem:[%s3334 + $0x50] sm:$0xff]
        %v3346 = vld [vmem:[%s3334 + $0x58] sm:$0xff]
        %v3347 = vld [vmem:[%s3334 + $0x60] sm:$0xff]
        %v3348 = vld [vmem:[%s3334 + $0x68] sm:$0xff]
        %v3349 = vld [vmem:[%s3334 + $0x70] sm:$0xff]
        %v3350 = vld [vmem:[%s3334 + $0x78] sm:$0xff]
        %v3351 = vld [vmem:[%s3334 + $0x80] sm:$0xff]
        %v3352 = vld [vmem:[%s3334 + $0x88] sm:$0xff]
        %v3353 = vld [vmem:[%s3334 + $0x90] sm:$0xff]
        %v3354 = vld [vmem:[%s3334 + $0x98] sm:$0xff]
        %v3355 = vld [vmem:[%s3334 + $0xa0] sm:$0xff]
        %v3356 = vld [vmem:[%s3334 + $0xa8] sm:$0xff]
        %v3357 = vld [vmem:[%s3334 + $0xb0] sm:$0xff]
        %v3358 = vld [vmem:[%s3334 + $0xb8] sm:$0xff]
        %v3359 = vld [vmem:[%s3334 + $0xc0] sm:$0xff]
        %v3360 = vld [vmem:[%s3334 + $0xc8] sm:$0xff]
        %v3361 = vld [vmem:[%s3334 + $0xd0] sm:$0xff]
        %v3362 = vld [vmem:[%s3334 + $0xd8] sm:$0xff]
        %v3363 = vld [vmem:[%s3334 + $0xe0] sm:$0xff]
        %v3364 = vld [vmem:[%s3334 + $0xe8] sm:$0xff]
        %v3365 = vld [vmem:[%s3334 + $0xf0] sm:$0xff]
        %v3366 = vld [vmem:[%s3334 + $0xf8] sm:$0xff]
        %s3367 = scalar_lea.vmem [#allocation7], 8
        %v3368 = vld [vmem:[%s3367] sm:$0x3]
        %v3370 = vlaneseq
        %v3371 = vshrl.u32 %v3370, 7
        %v3372 = vsub.s32 0, %v3371
        %v3373 = vrot.slane %v3368, %v3372
        %v3374 = vlaneseq
        %v3375 = vshrl.u32 %v3374, 7
        %v3376 = vsub.s32 1, %v3375
        %v3377 = vrot.slane %v3368, %v3376
        %v3412 = vunpack.c.l.b16 %v3335
        %v3413 = vunpack.c.h.b16 %v3335
        %v3414 = vunpack.c.l.b16 %v3336
        %v3415 = vunpack.c.h.b16 %v3336
        %v3416 = vunpack.c.l.b16 %v3337
        %v3417 = vunpack.c.h.b16 %v3337
        %v3418 = vunpack.c.l.b16 %v3338
        %v3419 = vunpack.c.h.b16 %v3338
        %v3420 = vunpack.c.l.b16 %v3339
        %v3421 = vunpack.c.h.b16 %v3339
        %v3422 = vunpack.c.l.b16 %v3340
        %v3423 = vunpack.c.h.b16 %v3340
        %v3424 = vunpack.c.l.b16 %v3341
        %v3425 = vunpack.c.h.b16 %v3341
        %v3426 = vunpack.c.l.b16 %v3342
        %v3427 = vunpack.c.h.b16 %v3342
        %v3428 = vunpack.c.l.b16 %v3343
        %v3429 = vunpack.c.h.b16 %v3343
        %v3430 = vunpack.c.l.b16 %v3344
        %v3431 = vunpack.c.h.b16 %v3344
        %v3432 = vunpack.c.l.b16 %v3345
        %v3433 = vunpack.c.h.b16 %v3345
        %v3434 = vunpack.c.l.b16 %v3346
        %v3435 = vunpack.c.h.b16 %v3346
        %v3436 = vunpack.c.l.b16 %v3347
        %v3437 = vunpack.c.h.b16 %v3347
        %v3438 = vunpack.c.l.b16 %v3348
        %v3439 = vunpack.c.h.b16 %v3348
        %v3440 = vunpack.c.l.b16 %v3349
        %v3441 = vunpack.c.h.b16 %v3349
        %v3442 = vunpack.c.l.b16 %v3350
        %v3443 = vunpack.c.h.b16 %v3350
        %v3444 = vunpack.c.l.b16 %v3351
        %v3445 = vunpack.c.h.b16 %v3351
        %v3446 = vunpack.c.l.b16 %v3352
        %v3447 = vunpack.c.h.b16 %v3352
        %v3448 = vunpack.c.l.b16 %v3353
        %v3449 = vunpack.c.h.b16 %v3353
        %v3450 = vunpack.c.l.b16 %v3354
        %v3451 = vunpack.c.h.b16 %v3354
        %v3452 = vunpack.c.l.b16 %v3355
        %v3453 = vunpack.c.h.b16 %v3355
        %v3454 = vunpack.c.l.b16 %v3356
        %v3455 = vunpack.c.h.b16 %v3356
        %v3456 = vunpack.c.l.b16 %v3357
        %v3457 = vunpack.c.h.b16 %v3357
        %v3458 = vunpack.c.l.b16 %v3358
        %v3459 = vunpack.c.h.b16 %v3358
        %v3460 = vunpack.c.l.b16 %v3359
        %v3461 = vunpack.c.h.b16 %v3359
        %v3462 = vunpack.c.l.b16 %v3360
        %v3463 = vunpack.c.h.b16 %v3360
        %v3464 = vunpack.c.l.b16 %v3361
        %v3465 = vunpack.c.h.b16 %v3361
        %v3466 = vunpack.c.l.b16 %v3362
        %v3467 = vunpack.c.h.b16 %v3362
        %v3468 = vunpack.c.l.b16 %v3363
        %v3469 = vunpack.c.h.b16 %v3363
        %v3470 = vunpack.c.l.b16 %v3364
        %v3471 = vunpack.c.h.b16 %v3364
        %v3472 = vunpack.c.l.b16 %v3365
        %v3473 = vunpack.c.h.b16 %v3365
        %v3474 = vunpack.c.l.b16 %v3366
        %v3475 = vunpack.c.h.b16 %v3366
        %v3476 = vpack.c.b16 %v3414, %v3412
        %v3477 = vpack.c.b16 %v3415, %v3413
        %v3478 = vpack.c.b16 %v3418, %v3416
        %v3479 = vpack.c.b16 %v3419, %v3417
        %v3480 = vpack.c.b16 %v3422, %v3420
        %v3481 = vpack.c.b16 %v3423, %v3421
        %v3482 = vpack.c.b16 %v3426, %v3424
        %v3483 = vpack.c.b16 %v3427, %v3425
        %v3484 = vpack.c.b16 %v3430, %v3428
        %v3485 = vpack.c.b16 %v3431, %v3429
        %v3486 = vpack.c.b16 %v3434, %v3432
        %v3487 = vpack.c.b16 %v3435, %v3433
        %v3488 = vpack.c.b16 %v3438, %v3436
        %v3489 = vpack.c.b16 %v3439, %v3437
        %v3490 = vpack.c.b16 %v3442, %v3440
        %v3491 = vpack.c.b16 %v3443, %v3441
        %v3492 = vpack.c.b16 %v3446, %v3444
        %v3493 = vpack.c.b16 %v3447, %v3445
        %v3494 = vpack.c.b16 %v3450, %v3448
        %v3495 = vpack.c.b16 %v3451, %v3449
        %v3496 = vpack.c.b16 %v3454, %v3452
        %v3497 = vpack.c.b16 %v3455, %v3453
        %v3498 = vpack.c.b16 %v3458, %v3456
        %v3499 = vpack.c.b16 %v3459, %v3457
        %v3500 = vpack.c.b16 %v3462, %v3460
        %v3501 = vpack.c.b16 %v3463, %v3461
        %v3502 = vpack.c.b16 %v3466, %v3464
        %v3503 = vpack.c.b16 %v3467, %v3465
        %v3504 = vpack.c.b16 %v3470, %v3468
        %v3505 = vpack.c.b16 %v3471, %v3469
        %v3506 = vpack.c.b16 %v3474, %v3472
        %v3507 = vpack.c.b16 %v3475, %v3473
        %3540 = vmatprep.subr.bf16.mxu0 %v3491
        %3541 = vmatpush1.bf16.msra.mxu0 %v3490
        %3542 = vmatprep.subr.bf16.mxu0 %v3489
        %3543 = vmatpush1.bf16.msra.mxu0 %v3488
        %3544 = vmatprep.subr.bf16.mxu0 %v3487
        %3545 = vmatpush1.bf16.msra.mxu0 %v3486
        %3546 = vmatprep.subr.bf16.mxu0 %v3485
        %3547 = vmatpush1.bf16.msra.mxu0 %v3484
        %3548 = vmatprep.subr.bf16.mxu0 %v3483
        %3549 = vmatpush1.bf16.msra.mxu0 %v3482
        %3550 = vmatprep.subr.bf16.mxu0 %v3481
        %3551 = vmatpush1.bf16.msra.mxu0 %v3480
        %3552 = vmatprep.subr.bf16.mxu0 %v3479
        %3553 = vmatpush1.bf16.msra.mxu0 %v3478
        %3554 = vmatprep.subr.bf16.mxu0 %v3477
        %3555 = vmatpush1.bf16.msra.mxu0 %v3476
        %3556 = vmatprep.subr.bf16.mxu0 %v3507
        %3557 = vmatpush2.bf16.msra.mxu0 %v3506
        %3558 = vmatprep.subr.bf16.mxu0 %v3505
        %3559 = vmatpush2.bf16.msra.mxu0 %v3504
        %3560 = vmatprep.subr.bf16.mxu0 %v3503
        %3561 = vmatpush2.bf16.msra.mxu0 %v3502
        %3562 = vmatprep.subr.bf16.mxu0 %v3501
        %3563 = vmatpush2.bf16.msra.mxu0 %v3500
        %3564 = vmatprep.subr.bf16.mxu0 %v3499
        %3565 = vmatpush2.bf16.msra.mxu0 %v3498
        %3566 = vmatprep.subr.bf16.mxu0 %v3497
        %3567 = vmatpush2.bf16.msra.mxu0 %v3496
        %3568 = vmatprep.subr.bf16.mxu0 %v3495
        %3569 = vmatpush2.bf16.msra.mxu0 %v3494
        %3570 = vmatprep.subr.bf16.mxu0 %v3493
        %3571 = vmatpush2.bf16.msra.mxu0 %v3492
        %3572 = vmatprep.mubr.bf16.mxu0 %v3271
        %3573 = vmatmul.mubr.bf16.gmra.mxu0 %v3270
        %v3574 = vpop.f32.mrf.mxu0
        %v3575 = vadd.f32 %v3373, %v3574
        %v3576 = vpop.f32.mrf.mxu0
        %v3577 = vadd.f32 %v3377, %v3576
        %v3578 = vpop.f32.mrf.mxu0
        %v3579 = vadd.f32 %v3373, %v3578
        %v3580 = vpop.f32.mrf.mxu0
        %v3581 = vadd.f32 %v3377, %v3580
        %3582 = vmatprep.mubr.bf16.mxu0 %v3273
        %3583 = vmatmul.mubr.bf16.gmra.mxu0 %v3272
        %v3584 = vpop.f32.mrf.mxu0
        %v3585 = vadd.f32 %v3373, %v3584
        %v3586 = vpop.f32.mrf.mxu0
        %v3587 = vadd.f32 %v3377, %v3586
        %v3588 = vpop.f32.mrf.mxu0
        %v3589 = vadd.f32 %v3373, %v3588
        %v3590 = vpop.f32.mrf.mxu0
        %v3591 = vadd.f32 %v3377, %v3590
        %3592 = vmatprep.mubr.bf16.mxu0 %v3275
        %3593 = vmatmul.mubr.bf16.gmra.mxu0 %v3274
        %v3594 = vpop.f32.mrf.mxu0
        %v3595 = vadd.f32 %v3373, %v3594
        %v3596 = vpop.f32.mrf.mxu0
        %v3597 = vadd.f32 %v3377, %v3596
        %v3598 = vpop.f32.mrf.mxu0
        %v3599 = vadd.f32 %v3373, %v3598
        %v3600 = vpop.f32.mrf.mxu0
        %v3601 = vadd.f32 %v3377, %v3600
        %3602 = vmatprep.mubr.bf16.mxu0 %v3277
        %3603 = vmatmul.mubr.bf16.gmra.mxu0 %v3276
        %v3604 = vpop.f32.mrf.mxu0
        %v3605 = vadd.f32 %v3373, %v3604
        %v3606 = vpop.f32.mrf.mxu0
        %v3607 = vadd.f32 %v3377, %v3606
        %v3608 = vpop.f32.mrf.mxu0
        %v3609 = vadd.f32 %v3373, %v3608
        %v3610 = vpop.f32.mrf.mxu0
        %v3611 = vadd.f32 %v3377, %v3610
        %3612 = vmatprep.mubr.bf16.mxu0 %v3279
        %3613 = vmatmul.mubr.bf16.gmra.mxu0 %v3278
        %v3614 = vpop.f32.mrf.mxu0
        %v3615 = vadd.f32 %v3373, %v3614
        %v3616 = vpop.f32.mrf.mxu0
        %v3617 = vadd.f32 %v3377, %v3616
        %v3618 = vpop.f32.mrf.mxu0
        %v3619 = vadd.f32 %v3373, %v3618
        %v3620 = vpop.f32.mrf.mxu0
        %v3621 = vadd.f32 %v3377, %v3620
        %3622 = vmatprep.mubr.bf16.mxu0 %v3281
        %3623 = vmatmul.mubr.bf16.gmra.mxu0 %v3280
        %v3624 = vpop.f32.mrf.mxu0
        %v3625 = vadd.f32 %v3373, %v3624
        %v3626 = vpop.f32.mrf.mxu0
        %v3627 = vadd.f32 %v3377, %v3626
        %v3628 = vpop.f32.mrf.mxu0
        %v3629 = vadd.f32 %v3373, %v3628
        %v3630 = vpop.f32.mrf.mxu0
        %v3631 = vadd.f32 %v3377, %v3630
        %3632 = vmatprep.mubr.bf16.mxu0 %v3283
        %3633 = vmatmul.mubr.bf16.gmra.mxu0 %v3282
        %v3634 = vpop.f32.mrf.mxu0
        %v3635 = vadd.f32 %v3373, %v3634
        %v3636 = vpop.f32.mrf.mxu0
        %v3637 = vadd.f32 %v3377, %v3636
        %v3638 = vpop.f32.mrf.mxu0
        %v3639 = vadd.f32 %v3373, %v3638
        %v3640 = vpop.f32.mrf.mxu0
        %v3641 = vadd.f32 %v3377, %v3640
        %3642 = vmatprep.mubr.bf16.mxu0 %v3285
        %3643 = vmatmul.mubr.bf16.gmra.mxu0 %v3284
        %v3644 = vpop.f32.mrf.mxu0
        %v3645 = vadd.f32 %v3373, %v3644
        %v3646 = vpop.f32.mrf.mxu0
        %v3647 = vadd.f32 %v3377, %v3646
        %v3648 = vpop.f32.mrf.mxu0
        %v3649 = vadd.f32 %v3373, %v3648
        %v3650 = vpop.f32.mrf.mxu0
        %v3651 = vadd.f32 %v3377, %v3650
        %3652 = vmatprep.mubr.bf16.mxu0 %v3287
        %3653 = vmatmul.mubr.bf16.gmra.mxu0 %v3286
        %v3654 = vpop.f32.mrf.mxu0
        %v3655 = vadd.f32 %v3373, %v3654
        %v3656 = vpop.f32.mrf.mxu0
        %v3657 = vadd.f32 %v3377, %v3656
        %v3658 = vpop.f32.mrf.mxu0
        %v3659 = vadd.f32 %v3373, %v3658
        %v3660 = vpop.f32.mrf.mxu0
        %v3661 = vadd.f32 %v3377, %v3660
        %3662 = vmatprep.mubr.bf16.mxu0 %v3289
        %3663 = vmatmul.mubr.bf16.gmra.mxu0 %v3288
        %v3664 = vpop.f32.mrf.mxu0
        %v3665 = vadd.f32 %v3373, %v3664
        %v3666 = vpop.f32.mrf.mxu0
        %v3667 = vadd.f32 %v3377, %v3666
        %v3668 = vpop.f32.mrf.mxu0
        %v3669 = vadd.f32 %v3373, %v3668
        %v3670 = vpop.f32.mrf.mxu0
        %v3671 = vadd.f32 %v3377, %v3670
        %3672 = vmatprep.mubr.bf16.mxu0 %v3291
        %3673 = vmatmul.mubr.bf16.gmra.mxu0 %v3290
        %v3674 = vpop.f32.mrf.mxu0
        %v3675 = vadd.f32 %v3373, %v3674
        %v3676 = vpop.f32.mrf.mxu0
        %v3677 = vadd.f32 %v3377, %v3676
        %v3678 = vpop.f32.mrf.mxu0
        %v3679 = vadd.f32 %v3373, %v3678
        %v3680 = vpop.f32.mrf.mxu0
        %v3681 = vadd.f32 %v3377, %v3680
        %3682 = vmatprep.mubr.bf16.mxu0 %v3293
        %3683 = vmatmul.mubr.bf16.gmra.mxu0 %v3292
        %v3684 = vpop.f32.mrf.mxu0
        %v3685 = vadd.f32 %v3373, %v3684
        %v3686 = vpop.f32.mrf.mxu0
        %v3687 = vadd.f32 %v3377, %v3686
        %v3688 = vpop.f32.mrf.mxu0
        %v3689 = vadd.f32 %v3373, %v3688
        %v3690 = vpop.f32.mrf.mxu0
        %v3691 = vadd.f32 %v3377, %v3690
        %3692 = vmatprep.mubr.bf16.mxu0 %v3295
        %3693 = vmatmul.mubr.bf16.gmra.mxu0 %v3294
        %v3694 = vpop.f32.mrf.mxu0
        %v3695 = vadd.f32 %v3373, %v3694
        %v3696 = vpop.f32.mrf.mxu0
        %v3697 = vadd.f32 %v3377, %v3696
        %v3698 = vpop.f32.mrf.mxu0
        %v3699 = vadd.f32 %v3373, %v3698
        %v3700 = vpop.f32.mrf.mxu0
        %v3701 = vadd.f32 %v3377, %v3700
        %3702 = vmatprep.mubr.bf16.mxu0 %v3297
        %3703 = vmatmul.mubr.bf16.gmra.mxu0 %v3296
        %v3704 = vpop.f32.mrf.mxu0
        %v3705 = vadd.f32 %v3373, %v3704
        %v3706 = vpop.f32.mrf.mxu0
        %v3707 = vadd.f32 %v3377, %v3706
        %v3708 = vpop.f32.mrf.mxu0
        %v3709 = vadd.f32 %v3373, %v3708
        %v3710 = vpop.f32.mrf.mxu0
        %v3711 = vadd.f32 %v3377, %v3710
        %3712 = vmatprep.mubr.bf16.mxu0 %v3299
        %3713 = vmatmul.mubr.bf16.gmra.mxu0 %v3298
        %v3714 = vpop.f32.mrf.mxu0
        %v3715 = vadd.f32 %v3373, %v3714
        %v3716 = vpop.f32.mrf.mxu0
        %v3717 = vadd.f32 %v3377, %v3716
        %v3718 = vpop.f32.mrf.mxu0
        %v3719 = vadd.f32 %v3373, %v3718
        %v3720 = vpop.f32.mrf.mxu0
        %v3721 = vadd.f32 %v3377, %v3720
        %3722 = vmatprep.mubr.bf16.mxu0 %v3301
        %3723 = vmatmul.mubr.bf16.gmra.mxu0 %v3300
        %v3724 = vpop.f32.mrf.mxu0
        %v3725 = vadd.f32 %v3373, %v3724
        %v3726 = vpop.f32.mrf.mxu0
        %v3727 = vadd.f32 %v3377, %v3726
        %v3728 = vpop.f32.mrf.mxu0
        %v3729 = vadd.f32 %v3373, %v3728
        %v3730 = vpop.f32.mrf.mxu0
        %v3731 = vadd.f32 %v3377, %v3730
        %3732 = vmatprep.mubr.bf16.mxu0 %v3303
        %3733 = vmatmul.mubr.bf16.gmra.mxu0 %v3302
        %v3734 = vpop.f32.mrf.mxu0
        %v3735 = vadd.f32 %v3373, %v3734
        %v3736 = vpop.f32.mrf.mxu0
        %v3737 = vadd.f32 %v3377, %v3736
        %v3738 = vpop.f32.mrf.mxu0
        %v3739 = vadd.f32 %v3373, %v3738
        %v3740 = vpop.f32.mrf.mxu0
        %v3741 = vadd.f32 %v3377, %v3740
        %3742 = vmatprep.mubr.bf16.mxu0 %v3305
        %3743 = vmatmul.mubr.bf16.gmra.mxu0 %v3304
        %v3744 = vpop.f32.mrf.mxu0
        %v3745 = vadd.f32 %v3373, %v3744
        %v3746 = vpop.f32.mrf.mxu0
        %v3747 = vadd.f32 %v3377, %v3746
        %v3748 = vpop.f32.mrf.mxu0
        %v3749 = vadd.f32 %v3373, %v3748
        %v3750 = vpop.f32.mrf.mxu0
        %v3751 = vadd.f32 %v3377, %v3750
        %3752 = vmatprep.mubr.bf16.mxu0 %v3307
        %3753 = vmatmul.mubr.bf16.gmra.mxu0 %v3306
        %v3754 = vpop.f32.mrf.mxu0
        %v3755 = vadd.f32 %v3373, %v3754
        %v3756 = vpop.f32.mrf.mxu0
        %v3757 = vadd.f32 %v3377, %v3756
        %v3758 = vpop.f32.mrf.mxu0
        %v3759 = vadd.f32 %v3373, %v3758
        %v3760 = vpop.f32.mrf.mxu0
        %v3761 = vadd.f32 %v3377, %v3760
        %3762 = vmatprep.mubr.bf16.mxu0 %v3309
        %3763 = vmatmul.mubr.bf16.gmra.mxu0 %v3308
        %v3764 = vpop.f32.mrf.mxu0
        %v3765 = vadd.f32 %v3373, %v3764
        %v3766 = vpop.f32.mrf.mxu0
        %v3767 = vadd.f32 %v3377, %v3766
        %v3768 = vpop.f32.mrf.mxu0
        %v3769 = vadd.f32 %v3373, %v3768
        %v3770 = vpop.f32.mrf.mxu0
        %v3771 = vadd.f32 %v3377, %v3770
        %3772 = vmatprep.mubr.bf16.mxu0 %v3311
        %3773 = vmatmul.mubr.bf16.gmra.mxu0 %v3310
        %v3774 = vpop.f32.mrf.mxu0
        %v3775 = vadd.f32 %v3373, %v3774
        %v3776 = vpop.f32.mrf.mxu0
        %v3777 = vadd.f32 %v3377, %v3776
        %v3778 = vpop.f32.mrf.mxu0
        %v3779 = vadd.f32 %v3373, %v3778
        %v3780 = vpop.f32.mrf.mxu0
        %v3781 = vadd.f32 %v3377, %v3780
        %3782 = vmatprep.mubr.bf16.mxu0 %v3313
        %3783 = vmatmul.mubr.bf16.gmra.mxu0 %v3312
        %v3784 = vpop.f32.mrf.mxu0
        %v3785 = vadd.f32 %v3373, %v3784
        %v3786 = vpop.f32.mrf.mxu0
        %v3787 = vadd.f32 %v3377, %v3786
        %v3788 = vpop.f32.mrf.mxu0
        %v3789 = vadd.f32 %v3373, %v3788
        %v3790 = vpop.f32.mrf.mxu0
        %v3791 = vadd.f32 %v3377, %v3790
        %3792 = vmatprep.mubr.bf16.mxu0 %v3315
        %3793 = vmatmul.mubr.bf16.gmra.mxu0 %v3314
        %v3794 = vpop.f32.mrf.mxu0
        %v3795 = vadd.f32 %v3373, %v3794
        %v3796 = vpop.f32.mrf.mxu0
        %v3797 = vadd.f32 %v3377, %v3796
        %v3798 = vpop.f32.mrf.mxu0
        %v3799 = vadd.f32 %v3373, %v3798
        %v3800 = vpop.f32.mrf.mxu0
        %v3801 = vadd.f32 %v3377, %v3800
        %3802 = vmatprep.mubr.bf16.mxu0 %v3317
        %3803 = vmatmul.mubr.bf16.gmra.mxu0 %v3316
        %v3804 = vpop.f32.mrf.mxu0
        %v3805 = vadd.f32 %v3373, %v3804
        %v3806 = vpop.f32.mrf.mxu0
        %v3807 = vadd.f32 %v3377, %v3806
        %v3808 = vpop.f32.mrf.mxu0
        %v3809 = vadd.f32 %v3373, %v3808
        %v3810 = vpop.f32.mrf.mxu0
        %v3811 = vadd.f32 %v3377, %v3810
        %3812 = vmatprep.mubr.bf16.mxu0 %v3319
        %3813 = vmatmul.mubr.bf16.gmra.mxu0 %v3318
        %v3814 = vpop.f32.mrf.mxu0
        %v3815 = vadd.f32 %v3373, %v3814
        %v3816 = vpop.f32.mrf.mxu0
        %v3817 = vadd.f32 %v3377, %v3816
        %v3818 = vpop.f32.mrf.mxu0
        %v3819 = vadd.f32 %v3373, %v3818
        %v3820 = vpop.f32.mrf.mxu0
        %v3821 = vadd.f32 %v3377, %v3820
        %3822 = vmatprep.mubr.bf16.mxu0 %v3321
        %3823 = vmatmul.mubr.bf16.gmra.mxu0 %v3320
        %v3824 = vpop.f32.mrf.mxu0
        %v3825 = vadd.f32 %v3373, %v3824
        %v3826 = vpop.f32.mrf.mxu0
        %v3827 = vadd.f32 %v3377, %v3826
        %v3828 = vpop.f32.mrf.mxu0
        %v3829 = vadd.f32 %v3373, %v3828
        %v3830 = vpop.f32.mrf.mxu0
        %v3831 = vadd.f32 %v3377, %v3830
        %3832 = vmatprep.mubr.bf16.mxu0 %v3323
        %3833 = vmatmul.mubr.bf16.gmra.mxu0 %v3322
        %v3834 = vpop.f32.mrf.mxu0
        %v3835 = vadd.f32 %v3373, %v3834
        %v3836 = vpop.f32.mrf.mxu0
        %v3837 = vadd.f32 %v3377, %v3836
        %v3838 = vpop.f32.mrf.mxu0
        %v3839 = vadd.f32 %v3373, %v3838
        %v3840 = vpop.f32.mrf.mxu0
        %v3841 = vadd.f32 %v3377, %v3840
        %3842 = vmatprep.mubr.bf16.mxu0 %v3325
        %3843 = vmatmul.mubr.bf16.gmra.mxu0 %v3324
        %v3844 = vpop.f32.mrf.mxu0
        %v3845 = vadd.f32 %v3373, %v3844
        %v3846 = vpop.f32.mrf.mxu0
        %v3847 = vadd.f32 %v3377, %v3846
        %v3848 = vpop.f32.mrf.mxu0
        %v3849 = vadd.f32 %v3373, %v3848
        %v3850 = vpop.f32.mrf.mxu0
        %v3851 = vadd.f32 %v3377, %v3850
        %3852 = vmatprep.mubr.bf16.mxu0 %v3327
        %3853 = vmatmul.mubr.bf16.gmra.mxu0 %v3326
        %v3854 = vpop.f32.mrf.mxu0
        %v3855 = vadd.f32 %v3373, %v3854
        %v3856 = vpop.f32.mrf.mxu0
        %v3857 = vadd.f32 %v3377, %v3856
        %v3858 = vpop.f32.mrf.mxu0
        %v3859 = vadd.f32 %v3373, %v3858
        %v3860 = vpop.f32.mrf.mxu0
        %v3861 = vadd.f32 %v3377, %v3860
        %3862 = vmatprep.mubr.bf16.mxu0 %v3329
        %3863 = vmatmul.mubr.bf16.gmra.mxu0 %v3328
        %v3864 = vpop.f32.mrf.mxu0
        %v3865 = vadd.f32 %v3373, %v3864
        %v3866 = vpop.f32.mrf.mxu0
        %v3867 = vadd.f32 %v3377, %v3866
        %v3868 = vpop.f32.mrf.mxu0
        %v3869 = vadd.f32 %v3373, %v3868
        %v3870 = vpop.f32.mrf.mxu0
        %v3871 = vadd.f32 %v3377, %v3870
        %3872 = vmatprep.mubr.bf16.mxu0 %v3331
        %3873 = vmatmul.mubr.bf16.gmra.mxu0 %v3330
        %v3874 = vpop.f32.mrf.mxu0
        %v3875 = vadd.f32 %v3373, %v3874
        %v3876 = vpop.f32.mrf.mxu0
        %v3877 = vadd.f32 %v3377, %v3876
        %v3878 = vpop.f32.mrf.mxu0
        %v3879 = vadd.f32 %v3373, %v3878
        %v3880 = vpop.f32.mrf.mxu0
        %v3881 = vadd.f32 %v3377, %v3880
        %3882 = vmatprep.mubr.bf16.mxu0 %v3333
        %3883 = vmatmul.mubr.bf16.gmra.mxu0 %v3332
        %v3884 = vpop.f32.mrf.mxu0
        %v3885 = vadd.f32 %v3373, %v3884
        %v3886 = vpop.f32.mrf.mxu0
        %v3887 = vadd.f32 %v3377, %v3886
        %v3888 = vpop.f32.mrf.mxu0
        %v3889 = vadd.f32 %v3373, %v3888
        %v3890 = vpop.f32.mrf.mxu0
        %v3891 = vadd.f32 %v3377, %v3890
        %3892 = vdwg.mxu0
        %v3893 = vmax.f32 %v3575, 0.0
        %v3894 = vmax.f32 %v3577, 0.0
        %v3895 = vmax.f32 %v3579, 0.0
        %v3896 = vmax.f32 %v3581, 0.0
        %v3897 = vmax.f32 %v3585, 0.0
        %v3898 = vmax.f32 %v3587, 0.0
        %v3899 = vmax.f32 %v3589, 0.0
        %v3900 = vmax.f32 %v3591, 0.0
        %v3901 = vmax.f32 %v3595, 0.0
        %v3902 = vmax.f32 %v3597, 0.0
        %v3903 = vmax.f32 %v3599, 0.0
        %v3904 = vmax.f32 %v3601, 0.0
        %v3905 = vmax.f32 %v3605, 0.0
        %v3906 = vmax.f32 %v3607, 0.0
        %v3907 = vmax.f32 %v3609, 0.0
        %v3908 = vmax.f32 %v3611, 0.0
        %v3909 = vmax.f32 %v3615, 0.0
        %v3910 = vmax.f32 %v3617, 0.0
        %v3911 = vmax.f32 %v3619, 0.0
        %v3912 = vmax.f32 %v3621, 0.0
        %v3913 = vmax.f32 %v3625, 0.0
        %v3914 = vmax.f32 %v3627, 0.0
        %v3915 = vmax.f32 %v3629, 0.0
        %v3916 = vmax.f32 %v3631, 0.0
        %v3917 = vmax.f32 %v3635, 0.0
        %v3918 = vmax.f32 %v3637, 0.0
        %v3919 = vmax.f32 %v3639, 0.0
        %v3920 = vmax.f32 %v3641, 0.0
        %v3921 = vmax.f32 %v3645, 0.0
        %v3922 = vmax.f32 %v3647, 0.0
        %v3923 = vmax.f32 %v3649, 0.0
        %v3924 = vmax.f32 %v3651, 0.0
        %v3925 = vmax.f32 %v3655, 0.0
        %v3926 = vmax.f32 %v3657, 0.0
        %v3927 = vmax.f32 %v3659, 0.0
        %v3928 = vmax.f32 %v3661, 0.0
        %v3929 = vmax.f32 %v3665, 0.0
        %v3930 = vmax.f32 %v3667, 0.0
        %v3931 = vmax.f32 %v3669, 0.0
        %v3932 = vmax.f32 %v3671, 0.0
        %v3933 = vmax.f32 %v3675, 0.0
        %v3934 = vmax.f32 %v3677, 0.0
        %v3935 = vmax.f32 %v3679, 0.0
        %v3936 = vmax.f32 %v3681, 0.0
        %v3937 = vmax.f32 %v3685, 0.0
        %v3938 = vmax.f32 %v3687, 0.0
        %v3939 = vmax.f32 %v3689, 0.0
        %v3940 = vmax.f32 %v3691, 0.0
        %v3941 = vmax.f32 %v3695, 0.0
        %v3942 = vmax.f32 %v3697, 0.0
        %v3943 = vmax.f32 %v3699, 0.0
        %v3944 = vmax.f32 %v3701, 0.0
        %v3945 = vmax.f32 %v3705, 0.0
        %v3946 = vmax.f32 %v3707, 0.0
        %v3947 = vmax.f32 %v3709, 0.0
        %v3948 = vmax.f32 %v3711, 0.0
        %v3949 = vmax.f32 %v3715, 0.0
        %v3950 = vmax.f32 %v3717, 0.0
        %v3951 = vmax.f32 %v3719, 0.0
        %v3952 = vmax.f32 %v3721, 0.0
        %v3953 = vmax.f32 %v3725, 0.0
        %v3954 = vmax.f32 %v3727, 0.0
        %v3955 = vmax.f32 %v3729, 0.0
        %v3956 = vmax.f32 %v3731, 0.0
        %v3957 = vmax.f32 %v3735, 0.0
        %v3958 = vmax.f32 %v3737, 0.0
        %v3959 = vmax.f32 %v3739, 0.0
        %v3960 = vmax.f32 %v3741, 0.0
        %v3961 = vmax.f32 %v3745, 0.0
        %v3962 = vmax.f32 %v3747, 0.0
        %v3963 = vmax.f32 %v3749, 0.0
        %v3964 = vmax.f32 %v3751, 0.0
        %v3965 = vmax.f32 %v3755, 0.0
        %v3966 = vmax.f32 %v3757, 0.0
        %v3967 = vmax.f32 %v3759, 0.0
        %v3968 = vmax.f32 %v3761, 0.0
        %v3969 = vmax.f32 %v3765, 0.0
        %v3970 = vmax.f32 %v3767, 0.0
        %v3971 = vmax.f32 %v3769, 0.0
        %v3972 = vmax.f32 %v3771, 0.0
        %v3973 = vmax.f32 %v3775, 0.0
        %v3974 = vmax.f32 %v3777, 0.0
        %v3975 = vmax.f32 %v3779, 0.0
        %v3976 = vmax.f32 %v3781, 0.0
        %v3977 = vmax.f32 %v3785, 0.0
        %v3978 = vmax.f32 %v3787, 0.0
        %v3979 = vmax.f32 %v3789, 0.0
        %v3980 = vmax.f32 %v3791, 0.0
        %v3981 = vmax.f32 %v3795, 0.0
        %v3982 = vmax.f32 %v3797, 0.0
        %v3983 = vmax.f32 %v3799, 0.0
        %v3984 = vmax.f32 %v3801, 0.0
        %v3985 = vmax.f32 %v3805, 0.0
        %v3986 = vmax.f32 %v3807, 0.0
        %v3987 = vmax.f32 %v3809, 0.0
        %v3988 = vmax.f32 %v3811, 0.0
        %v3989 = vmax.f32 %v3815, 0.0
        %v3990 = vmax.f32 %v3817, 0.0
        %v3991 = vmax.f32 %v3819, 0.0
        %v3992 = vmax.f32 %v3821, 0.0
        %v3993 = vmax.f32 %v3825, 0.0
        %v3994 = vmax.f32 %v3827, 0.0
        %v3995 = vmax.f32 %v3829, 0.0
        %v3996 = vmax.f32 %v3831, 0.0
        %v3997 = vmax.f32 %v3835, 0.0
        %v3998 = vmax.f32 %v3837, 0.0
        %v3999 = vmax.f32 %v3839, 0.0
        %v4000 = vmax.f32 %v3841, 0.0
        %v4001 = vmax.f32 %v3845, 0.0
        %v4002 = vmax.f32 %v3847, 0.0
        %v4003 = vmax.f32 %v3849, 0.0
        %v4004 = vmax.f32 %v3851, 0.0
        %v4005 = vmax.f32 %v3855, 0.0
        %v4006 = vmax.f32 %v3857, 0.0
        %v4007 = vmax.f32 %v3859, 0.0
        %v4008 = vmax.f32 %v3861, 0.0
        %v4009 = vmax.f32 %v3865, 0.0
        %v4010 = vmax.f32 %v3867, 0.0
        %v4011 = vmax.f32 %v3869, 0.0
        %v4012 = vmax.f32 %v3871, 0.0
        %v4013 = vmax.f32 %v3875, 0.0
        %v4014 = vmax.f32 %v3877, 0.0
        %v4015 = vmax.f32 %v3879, 0.0
        %v4016 = vmax.f32 %v3881, 0.0
        %v4017 = vmax.f32 %v3885, 0.0
        %v4018 = vmax.f32 %v3887, 0.0
        %v4019 = vmax.f32 %v3889, 0.0
        %v4020 = vmax.f32 %v3891, 0.0
        %v4021 = vpack.c.bf16 %v3895, %v3893
        %v4022 = vpack.c.bf16 %v3896, %v3894
        %v4023 = vpack.c.bf16 %v3899, %v3897
        %v4024 = vpack.c.bf16 %v3900, %v3898
        %v4025 = vpack.c.bf16 %v3903, %v3901
        %v4026 = vpack.c.bf16 %v3904, %v3902
        %v4027 = vpack.c.bf16 %v3907, %v3905
        %v4028 = vpack.c.bf16 %v3908, %v3906
        %v4029 = vpack.c.bf16 %v3911, %v3909
        %v4030 = vpack.c.bf16 %v3912, %v3910
        %v4031 = vpack.c.bf16 %v3915, %v3913
        %v4032 = vpack.c.bf16 %v3916, %v3914
        %v4033 = vpack.c.bf16 %v3919, %v3917
        %v4034 = vpack.c.bf16 %v3920, %v3918
        %v4035 = vpack.c.bf16 %v3923, %v3921
        %v4036 = vpack.c.bf16 %v3924, %v3922
        %v4037 = vpack.c.bf16 %v3927, %v3925
        %v4038 = vpack.c.bf16 %v3928, %v3926
        %v4039 = vpack.c.bf16 %v3931, %v3929
        %v4040 = vpack.c.bf16 %v3932, %v3930
        %v4041 = vpack.c.bf16 %v3935, %v3933
        %v4042 = vpack.c.bf16 %v3936, %v3934
        %v4043 = vpack.c.bf16 %v3939, %v3937
        %v4044 = vpack.c.bf16 %v3940, %v3938
        %v4045 = vpack.c.bf16 %v3943, %v3941
        %v4046 = vpack.c.bf16 %v3944, %v3942
        %v4047 = vpack.c.bf16 %v3947, %v3945
        %v4048 = vpack.c.bf16 %v3948, %v3946
        %v4049 = vpack.c.bf16 %v3951, %v3949
        %v4050 = vpack.c.bf16 %v3952, %v3950
        %v4051 = vpack.c.bf16 %v3955, %v3953
        %v4052 = vpack.c.bf16 %v3956, %v3954
        %v4053 = vpack.c.bf16 %v3959, %v3957
        %v4054 = vpack.c.bf16 %v3960, %v3958
        %v4055 = vpack.c.bf16 %v3963, %v3961
        %v4056 = vpack.c.bf16 %v3964, %v3962
        %v4057 = vpack.c.bf16 %v3967, %v3965
        %v4058 = vpack.c.bf16 %v3968, %v3966
        %v4059 = vpack.c.bf16 %v3971, %v3969
        %v4060 = vpack.c.bf16 %v3972, %v3970
        %v4061 = vpack.c.bf16 %v3975, %v3973
        %v4062 = vpack.c.bf16 %v3976, %v3974
        %v4063 = vpack.c.bf16 %v3979, %v3977
        %v4064 = vpack.c.bf16 %v3980, %v3978
        %v4065 = vpack.c.bf16 %v3983, %v3981
        %v4066 = vpack.c.bf16 %v3984, %v3982
        %v4067 = vpack.c.bf16 %v3987, %v3985
        %v4068 = vpack.c.bf16 %v3988, %v3986
        %v4069 = vpack.c.bf16 %v3991, %v3989
        %v4070 = vpack.c.bf16 %v3992, %v3990
        %v4071 = vpack.c.bf16 %v3995, %v3993
        %v4072 = vpack.c.bf16 %v3996, %v3994
        %v4073 = vpack.c.bf16 %v3999, %v3997
        %v4074 = vpack.c.bf16 %v4000, %v3998
        %v4075 = vpack.c.bf16 %v4003, %v4001
        %v4076 = vpack.c.bf16 %v4004, %v4002
        %v4077 = vpack.c.bf16 %v4007, %v4005
        %v4078 = vpack.c.bf16 %v4008, %v4006
        %v4079 = vpack.c.bf16 %v4011, %v4009
        %v4080 = vpack.c.bf16 %v4012, %v4010
        %v4081 = vpack.c.bf16 %v4015, %v4013
        %v4082 = vpack.c.bf16 %v4016, %v4014
        %v4083 = vpack.c.bf16 %v4019, %v4017
        %v4084 = vpack.c.bf16 %v4020, %v4018
        %s4085 = scalar_lea.vmem [#allocation4], 128
        %v4086 = vld [vmem:[%s4085] sm:$0xff]
        %v4087 = vld [vmem:[%s4085 + $0x8] sm:$0xff]
        %v4088 = vld [vmem:[%s4085 + $0x10] sm:$0xff]
        %v4089 = vld [vmem:[%s4085 + $0x18] sm:$0xff]
        %v4090 = vld [vmem:[%s4085 + $0x20] sm:$0xff]
        %v4091 = vld [vmem:[%s4085 + $0x28] sm:$0xff]
        %v4092 = vld [vmem:[%s4085 + $0x30] sm:$0xff]
        %v4093 = vld [vmem:[%s4085 + $0x38] sm:$0xff]
        %v4094 = vld [vmem:[%s4085 + $0x40] sm:$0xff]
        %v4095 = vld [vmem:[%s4085 + $0x48] sm:$0xff]
        %v4096 = vld [vmem:[%s4085 + $0x50] sm:$0xff]
        %v4097 = vld [vmem:[%s4085 + $0x58] sm:$0xff]
        %v4098 = vld [vmem:[%s4085 + $0x60] sm:$0xff]
        %v4099 = vld [vmem:[%s4085 + $0x68] sm:$0xff]
        %v4100 = vld [vmem:[%s4085 + $0x70] sm:$0xff]
        %v4101 = vld [vmem:[%s4085 + $0x78] sm:$0xff]
        %s4102 = scalar_lea.vmem [#allocation6], 1024
        %v4103 = vld [vmem:[%s4102] sm:$0xff]
        %v4104 = vld [vmem:[%s4102 + $0x8] sm:$0xff]
        %v4105 = vld [vmem:[%s4102 + $0x10] sm:$0xff]
        %v4106 = vld [vmem:[%s4102 + $0x18] sm:$0xff]
        %v4107 = vld [vmem:[%s4102 + $0x20] sm:$0xff]
        %v4108 = vld [vmem:[%s4102 + $0x28] sm:$0xff]
        %v4109 = vld [vmem:[%s4102 + $0x30] sm:$0xff]
        %v4110 = vld [vmem:[%s4102 + $0x38] sm:$0xff]
        %v4111 = vld [vmem:[%s4102 + $0x40] sm:$0xff]
        %v4112 = vld [vmem:[%s4102 + $0x48] sm:$0xff]
        %v4113 = vld [vmem:[%s4102 + $0x50] sm:$0xff]
        %v4114 = vld [vmem:[%s4102 + $0x58] sm:$0xff]
        %v4115 = vld [vmem:[%s4102 + $0x60] sm:$0xff]
        %v4116 = vld [vmem:[%s4102 + $0x68] sm:$0xff]
        %v4117 = vld [vmem:[%s4102 + $0x70] sm:$0xff]
        %v4118 = vld [vmem:[%s4102 + $0x78] sm:$0xff]
        %v4119 = vld [vmem:[%s4102 + $0x80] sm:$0xff]
        %v4120 = vld [vmem:[%s4102 + $0x88] sm:$0xff]
        %v4121 = vld [vmem:[%s4102 + $0x90] sm:$0xff]
        %v4122 = vld [vmem:[%s4102 + $0x98] sm:$0xff]
        %v4123 = vld [vmem:[%s4102 + $0xa0] sm:$0xff]
        %v4124 = vld [vmem:[%s4102 + $0xa8] sm:$0xff]
        %v4125 = vld [vmem:[%s4102 + $0xb0] sm:$0xff]
        %v4126 = vld [vmem:[%s4102 + $0xb8] sm:$0xff]
        %v4127 = vld [vmem:[%s4102 + $0xc0] sm:$0xff]
        %v4128 = vld [vmem:[%s4102 + $0xc8] sm:$0xff]
        %v4129 = vld [vmem:[%s4102 + $0xd0] sm:$0xff]
        %v4130 = vld [vmem:[%s4102 + $0xd8] sm:$0xff]
        %v4131 = vld [vmem:[%s4102 + $0xe0] sm:$0xff]
        %v4132 = vld [vmem:[%s4102 + $0xe8] sm:$0xff]
        %v4133 = vld [vmem:[%s4102 + $0xf0] sm:$0xff]
        %v4134 = vld [vmem:[%s4102 + $0xf8] sm:$0xff]
        %v4167 = vunpack.c.l.b16 %v4103
        %v4168 = vunpack.c.h.b16 %v4103
        %v4169 = vunpack.c.l.b16 %v4104
        %v4170 = vunpack.c.h.b16 %v4104
        %v4171 = vunpack.c.l.b16 %v4105
        %v4172 = vunpack.c.h.b16 %v4105
        %v4173 = vunpack.c.l.b16 %v4106
        %v4174 = vunpack.c.h.b16 %v4106
        %v4175 = vunpack.c.l.b16 %v4107
        %v4176 = vunpack.c.h.b16 %v4107
        %v4177 = vunpack.c.l.b16 %v4108
        %v4178 = vunpack.c.h.b16 %v4108
        %v4179 = vunpack.c.l.b16 %v4109
        %v4180 = vunpack.c.h.b16 %v4109
        %v4181 = vunpack.c.l.b16 %v4110
        %v4182 = vunpack.c.h.b16 %v4110
        %v4183 = vunpack.c.l.b16 %v4111
        %v4184 = vunpack.c.h.b16 %v4111
        %v4185 = vunpack.c.l.b16 %v4112
        %v4186 = vunpack.c.h.b16 %v4112
        %v4187 = vunpack.c.l.b16 %v4113
        %v4188 = vunpack.c.h.b16 %v4113
        %v4189 = vunpack.c.l.b16 %v4114
        %v4190 = vunpack.c.h.b16 %v4114
        %v4191 = vunpack.c.l.b16 %v4115
        %v4192 = vunpack.c.h.b16 %v4115
        %v4193 = vunpack.c.l.b16 %v4116
        %v4194 = vunpack.c.h.b16 %v4116
        %v4195 = vunpack.c.l.b16 %v4117
        %v4196 = vunpack.c.h.b16 %v4117
        %v4197 = vunpack.c.l.b16 %v4118
        %v4198 = vunpack.c.h.b16 %v4118
        %v4199 = vunpack.c.l.b16 %v4119
        %v4200 = vunpack.c.h.b16 %v4119
        %v4201 = vunpack.c.l.b16 %v4120
        %v4202 = vunpack.c.h.b16 %v4120
        %v4203 = vunpack.c.l.b16 %v4121
        %v4204 = vunpack.c.h.b16 %v4121
        %v4205 = vunpack.c.l.b16 %v4122
        %v4206 = vunpack.c.h.b16 %v4122
        %v4207 = vunpack.c.l.b16 %v4123
        %v4208 = vunpack.c.h.b16 %v4123
        %v4209 = vunpack.c.l.b16 %v4124
        %v4210 = vunpack.c.h.b16 %v4124
        %v4211 = vunpack.c.l.b16 %v4125
        %v4212 = vunpack.c.h.b16 %v4125
        %v4213 = vunpack.c.l.b16 %v4126
        %v4214 = vunpack.c.h.b16 %v4126
        %v4215 = vunpack.c.l.b16 %v4127
        %v4216 = vunpack.c.h.b16 %v4127
        %v4217 = vunpack.c.l.b16 %v4128
        %v4218 = vunpack.c.h.b16 %v4128
        %v4219 = vunpack.c.l.b16 %v4129
        %v4220 = vunpack.c.h.b16 %v4129
        %v4221 = vunpack.c.l.b16 %v4130
        %v4222 = vunpack.c.h.b16 %v4130
        %v4223 = vunpack.c.l.b16 %v4131
        %v4224 = vunpack.c.h.b16 %v4131
        %v4225 = vunpack.c.l.b16 %v4132
        %v4226 = vunpack.c.h.b16 %v4132
        %v4227 = vunpack.c.l.b16 %v4133
        %v4228 = vunpack.c.h.b16 %v4133
        %v4229 = vunpack.c.l.b16 %v4134
        %v4230 = vunpack.c.h.b16 %v4134
        %v4231 = vpack.c.b16 %v4169, %v4167
        %v4232 = vpack.c.b16 %v4170, %v4168
        %v4233 = vpack.c.b16 %v4173, %v4171
        %v4234 = vpack.c.b16 %v4174, %v4172
        %v4235 = vpack.c.b16 %v4177, %v4175
        %v4236 = vpack.c.b16 %v4178, %v4176
        %v4237 = vpack.c.b16 %v4181, %v4179
        %v4238 = vpack.c.b16 %v4182, %v4180
        %v4239 = vpack.c.b16 %v4185, %v4183
        %v4240 = vpack.c.b16 %v4186, %v4184
        %v4241 = vpack.c.b16 %v4189, %v4187
        %v4242 = vpack.c.b16 %v4190, %v4188
        %v4243 = vpack.c.b16 %v4193, %v4191
        %v4244 = vpack.c.b16 %v4194, %v4192
        %v4245 = vpack.c.b16 %v4197, %v4195
        %v4246 = vpack.c.b16 %v4198, %v4196
        %v4247 = vpack.c.b16 %v4201, %v4199
        %v4248 = vpack.c.b16 %v4202, %v4200
        %v4249 = vpack.c.b16 %v4205, %v4203
        %v4250 = vpack.c.b16 %v4206, %v4204
        %v4251 = vpack.c.b16 %v4209, %v4207
        %v4252 = vpack.c.b16 %v4210, %v4208
        %v4253 = vpack.c.b16 %v4213, %v4211
        %v4254 = vpack.c.b16 %v4214, %v4212
        %v4255 = vpack.c.b16 %v4217, %v4215
        %v4256 = vpack.c.b16 %v4218, %v4216
        %v4257 = vpack.c.b16 %v4221, %v4219
        %v4258 = vpack.c.b16 %v4222, %v4220
        %v4259 = vpack.c.b16 %v4225, %v4223
        %v4260 = vpack.c.b16 %v4226, %v4224
        %v4261 = vpack.c.b16 %v4229, %v4227
        %v4262 = vpack.c.b16 %v4230, %v4228
        %4295 = vmatprep.subr.bf16.mxu0 %v4246
        %4296 = vmatpush1.bf16.msra.mxu0 %v4245
        %4297 = vmatprep.subr.bf16.mxu0 %v4244
        %4298 = vmatpush1.bf16.msra.mxu0 %v4243
        %4299 = vmatprep.subr.bf16.mxu0 %v4242
        %4300 = vmatpush1.bf16.msra.mxu0 %v4241
        %4301 = vmatprep.subr.bf16.mxu0 %v4240
        %4302 = vmatpush1.bf16.msra.mxu0 %v4239
        %4303 = vmatprep.subr.bf16.mxu0 %v4238
        %4304 = vmatpush1.bf16.msra.mxu0 %v4237
        %4305 = vmatprep.subr.bf16.mxu0 %v4236
        %4306 = vmatpush1.bf16.msra.mxu0 %v4235
        %4307 = vmatprep.subr.bf16.mxu0 %v4234
        %4308 = vmatpush1.bf16.msra.mxu0 %v4233
        %4309 = vmatprep.subr.bf16.mxu0 %v4232
        %4310 = vmatpush1.bf16.msra.mxu0 %v4231
        %4311 = vmatprep.subr.bf16.mxu0 %v4262
        %4312 = vmatpush2.bf16.msra.mxu0 %v4261
        %4313 = vmatprep.subr.bf16.mxu0 %v4260
        %4314 = vmatpush2.bf16.msra.mxu0 %v4259
        %4315 = vmatprep.subr.bf16.mxu0 %v4258
        %4316 = vmatpush2.bf16.msra.mxu0 %v4257
        %4317 = vmatprep.subr.bf16.mxu0 %v4256
        %4318 = vmatpush2.bf16.msra.mxu0 %v4255
        %4319 = vmatprep.subr.bf16.mxu0 %v4254
        %4320 = vmatpush2.bf16.msra.mxu0 %v4253
        %4321 = vmatprep.subr.bf16.mxu0 %v4252
        %4322 = vmatpush2.bf16.msra.mxu0 %v4251
        %4323 = vmatprep.subr.bf16.mxu0 %v4250
        %4324 = vmatpush2.bf16.msra.mxu0 %v4249
        %4325 = vmatprep.subr.bf16.mxu0 %v4248
        %4326 = vmatpush2.bf16.msra.mxu0 %v4247
        %4327 = vmatprep.mubr.bf16.mxu0 %v4022
        %4328 = vmatmul.mubr.bf16.gmra.mxu0 %v4021
        %v4329 = vpop.f32.mrf.mxu0
        %v4330 = vadd.f32 0.0, %v4329
        %v4331 = vpop.f32.mrf.mxu0
        %v4332 = vadd.f32 0.0, %v4331
        %v4333 = vpop.f32.mrf.mxu0
        %v4334 = vadd.f32 0.0, %v4333
        %v4335 = vpop.f32.mrf.mxu0
        %v4336 = vadd.f32 0.0, %v4335
        %4337 = vmatprep.mubr.bf16.mxu0 %v4024
        %4338 = vmatmul.mubr.bf16.gmra.mxu0 %v4023
        %v4339 = vpop.f32.mrf.mxu0
        %v4340 = vadd.f32 0.0, %v4339
        %v4341 = vpop.f32.mrf.mxu0
        %v4342 = vadd.f32 0.0, %v4341
        %v4343 = vpop.f32.mrf.mxu0
        %v4344 = vadd.f32 0.0, %v4343
        %v4345 = vpop.f32.mrf.mxu0
        %v4346 = vadd.f32 0.0, %v4345
        %4347 = vmatprep.mubr.bf16.mxu0 %v4026
        %4348 = vmatmul.mubr.bf16.gmra.mxu0 %v4025
        %v4349 = vpop.f32.mrf.mxu0
        %v4350 = vadd.f32 0.0, %v4349
        %v4351 = vpop.f32.mrf.mxu0
        %v4352 = vadd.f32 0.0, %v4351
        %v4353 = vpop.f32.mrf.mxu0
        %v4354 = vadd.f32 0.0, %v4353
        %v4355 = vpop.f32.mrf.mxu0
        %v4356 = vadd.f32 0.0, %v4355
        %4357 = vmatprep.mubr.bf16.mxu0 %v4028
        %4358 = vmatmul.mubr.bf16.gmra.mxu0 %v4027
        %v4359 = vpop.f32.mrf.mxu0
        %v4360 = vadd.f32 0.0, %v4359
        %v4361 = vpop.f32.mrf.mxu0
        %v4362 = vadd.f32 0.0, %v4361
        %v4363 = vpop.f32.mrf.mxu0
        %v4364 = vadd.f32 0.0, %v4363
        %v4365 = vpop.f32.mrf.mxu0
        %v4366 = vadd.f32 0.0, %v4365
        %4367 = vmatprep.mubr.bf16.mxu0 %v4030
        %4368 = vmatmul.mubr.bf16.gmra.mxu0 %v4029
        %v4369 = vpop.f32.mrf.mxu0
        %v4370 = vadd.f32 0.0, %v4369
        %v4371 = vpop.f32.mrf.mxu0
        %v4372 = vadd.f32 0.0, %v4371
        %v4373 = vpop.f32.mrf.mxu0
        %v4374 = vadd.f32 0.0, %v4373
        %v4375 = vpop.f32.mrf.mxu0
        %v4376 = vadd.f32 0.0, %v4375
        %4377 = vmatprep.mubr.bf16.mxu0 %v4032
        %4378 = vmatmul.mubr.bf16.gmra.mxu0 %v4031
        %v4379 = vpop.f32.mrf.mxu0
        %v4380 = vadd.f32 0.0, %v4379
        %v4381 = vpop.f32.mrf.mxu0
        %v4382 = vadd.f32 0.0, %v4381
        %v4383 = vpop.f32.mrf.mxu0
        %v4384 = vadd.f32 0.0, %v4383
        %v4385 = vpop.f32.mrf.mxu0
        %v4386 = vadd.f32 0.0, %v4385
        %4387 = vmatprep.mubr.bf16.mxu0 %v4034
        %4388 = vmatmul.mubr.bf16.gmra.mxu0 %v4033
        %v4389 = vpop.f32.mrf.mxu0
        %v4390 = vadd.f32 0.0, %v4389
        %v4391 = vpop.f32.mrf.mxu0
        %v4392 = vadd.f32 0.0, %v4391
        %v4393 = vpop.f32.mrf.mxu0
        %v4394 = vadd.f32 0.0, %v4393
        %v4395 = vpop.f32.mrf.mxu0
        %v4396 = vadd.f32 0.0, %v4395
        %4397 = vmatprep.mubr.bf16.mxu0 %v4036
        %4398 = vmatmul.mubr.bf16.gmra.mxu0 %v4035
        %v4399 = vpop.f32.mrf.mxu0
        %v4400 = vadd.f32 0.0, %v4399
        %v4401 = vpop.f32.mrf.mxu0
        %v4402 = vadd.f32 0.0, %v4401
        %v4403 = vpop.f32.mrf.mxu0
        %v4404 = vadd.f32 0.0, %v4403
        %v4405 = vpop.f32.mrf.mxu0
        %v4406 = vadd.f32 0.0, %v4405
        %4407 = vmatprep.mubr.bf16.mxu0 %v4038
        %4408 = vmatmul.mubr.bf16.gmra.mxu0 %v4037
        %v4409 = vpop.f32.mrf.mxu0
        %v4410 = vadd.f32 0.0, %v4409
        %v4411 = vpop.f32.mrf.mxu0
        %v4412 = vadd.f32 0.0, %v4411
        %v4413 = vpop.f32.mrf.mxu0
        %v4414 = vadd.f32 0.0, %v4413
        %v4415 = vpop.f32.mrf.mxu0
        %v4416 = vadd.f32 0.0, %v4415
        %4417 = vmatprep.mubr.bf16.mxu0 %v4040
        %4418 = vmatmul.mubr.bf16.gmra.mxu0 %v4039
        %v4419 = vpop.f32.mrf.mxu0
        %v4420 = vadd.f32 0.0, %v4419
        %v4421 = vpop.f32.mrf.mxu0
        %v4422 = vadd.f32 0.0, %v4421
        %v4423 = vpop.f32.mrf.mxu0
        %v4424 = vadd.f32 0.0, %v4423
        %v4425 = vpop.f32.mrf.mxu0
        %v4426 = vadd.f32 0.0, %v4425
        %4427 = vmatprep.mubr.bf16.mxu0 %v4042
        %4428 = vmatmul.mubr.bf16.gmra.mxu0 %v4041
        %v4429 = vpop.f32.mrf.mxu0
        %v4430 = vadd.f32 0.0, %v4429
        %v4431 = vpop.f32.mrf.mxu0
        %v4432 = vadd.f32 0.0, %v4431
        %v4433 = vpop.f32.mrf.mxu0
        %v4434 = vadd.f32 0.0, %v4433
        %v4435 = vpop.f32.mrf.mxu0
        %v4436 = vadd.f32 0.0, %v4435
        %4437 = vmatprep.mubr.bf16.mxu0 %v4044
        %4438 = vmatmul.mubr.bf16.gmra.mxu0 %v4043
        %v4439 = vpop.f32.mrf.mxu0
        %v4440 = vadd.f32 0.0, %v4439
        %v4441 = vpop.f32.mrf.mxu0
        %v4442 = vadd.f32 0.0, %v4441
        %v4443 = vpop.f32.mrf.mxu0
        %v4444 = vadd.f32 0.0, %v4443
        %v4445 = vpop.f32.mrf.mxu0
        %v4446 = vadd.f32 0.0, %v4445
        %4447 = vmatprep.mubr.bf16.mxu0 %v4046
        %4448 = vmatmul.mubr.bf16.gmra.mxu0 %v4045
        %v4449 = vpop.f32.mrf.mxu0
        %v4450 = vadd.f32 0.0, %v4449
        %v4451 = vpop.f32.mrf.mxu0
        %v4452 = vadd.f32 0.0, %v4451
        %v4453 = vpop.f32.mrf.mxu0
        %v4454 = vadd.f32 0.0, %v4453
        %v4455 = vpop.f32.mrf.mxu0
        %v4456 = vadd.f32 0.0, %v4455
        %4457 = vmatprep.mubr.bf16.mxu0 %v4048
        %4458 = vmatmul.mubr.bf16.gmra.mxu0 %v4047
        %v4459 = vpop.f32.mrf.mxu0
        %v4460 = vadd.f32 0.0, %v4459
        %v4461 = vpop.f32.mrf.mxu0
        %v4462 = vadd.f32 0.0, %v4461
        %v4463 = vpop.f32.mrf.mxu0
        %v4464 = vadd.f32 0.0, %v4463
        %v4465 = vpop.f32.mrf.mxu0
        %v4466 = vadd.f32 0.0, %v4465
        %4467 = vmatprep.mubr.bf16.mxu0 %v4050
        %4468 = vmatmul.mubr.bf16.gmra.mxu0 %v4049
        %v4469 = vpop.f32.mrf.mxu0
        %v4470 = vadd.f32 0.0, %v4469
        %v4471 = vpop.f32.mrf.mxu0
        %v4472 = vadd.f32 0.0, %v4471
        %v4473 = vpop.f32.mrf.mxu0
        %v4474 = vadd.f32 0.0, %v4473
        %v4475 = vpop.f32.mrf.mxu0
        %v4476 = vadd.f32 0.0, %v4475
        %4477 = vmatprep.mubr.bf16.mxu0 %v4052
        %4478 = vmatmul.mubr.bf16.gmra.mxu0 %v4051
        %v4479 = vpop.f32.mrf.mxu0
        %v4480 = vadd.f32 0.0, %v4479
        %v4481 = vpop.f32.mrf.mxu0
        %v4482 = vadd.f32 0.0, %v4481
        %v4483 = vpop.f32.mrf.mxu0
        %v4484 = vadd.f32 0.0, %v4483
        %v4485 = vpop.f32.mrf.mxu0
        %v4486 = vadd.f32 0.0, %v4485
        %4487 = vmatprep.mubr.bf16.mxu0 %v4054
        %4488 = vmatmul.mubr.bf16.gmra.mxu0 %v4053
        %v4489 = vpop.f32.mrf.mxu0
        %v4490 = vadd.f32 0.0, %v4489
        %v4491 = vpop.f32.mrf.mxu0
        %v4492 = vadd.f32 0.0, %v4491
        %v4493 = vpop.f32.mrf.mxu0
        %v4494 = vadd.f32 0.0, %v4493
        %v4495 = vpop.f32.mrf.mxu0
        %v4496 = vadd.f32 0.0, %v4495
        %4497 = vmatprep.mubr.bf16.mxu0 %v4056
        %4498 = vmatmul.mubr.bf16.gmra.mxu0 %v4055
        %v4499 = vpop.f32.mrf.mxu0
        %v4500 = vadd.f32 0.0, %v4499
        %v4501 = vpop.f32.mrf.mxu0
        %v4502 = vadd.f32 0.0, %v4501
        %v4503 = vpop.f32.mrf.mxu0
        %v4504 = vadd.f32 0.0, %v4503
        %v4505 = vpop.f32.mrf.mxu0
        %v4506 = vadd.f32 0.0, %v4505
        %4507 = vmatprep.mubr.bf16.mxu0 %v4058
        %4508 = vmatmul.mubr.bf16.gmra.mxu0 %v4057
        %v4509 = vpop.f32.mrf.mxu0
        %v4510 = vadd.f32 0.0, %v4509
        %v4511 = vpop.f32.mrf.mxu0
        %v4512 = vadd.f32 0.0, %v4511
        %v4513 = vpop.f32.mrf.mxu0
        %v4514 = vadd.f32 0.0, %v4513
        %v4515 = vpop.f32.mrf.mxu0
        %v4516 = vadd.f32 0.0, %v4515
        %4517 = vmatprep.mubr.bf16.mxu0 %v4060
        %4518 = vmatmul.mubr.bf16.gmra.mxu0 %v4059
        %v4519 = vpop.f32.mrf.mxu0
        %v4520 = vadd.f32 0.0, %v4519
        %v4521 = vpop.f32.mrf.mxu0
        %v4522 = vadd.f32 0.0, %v4521
        %v4523 = vpop.f32.mrf.mxu0
        %v4524 = vadd.f32 0.0, %v4523
        %v4525 = vpop.f32.mrf.mxu0
        %v4526 = vadd.f32 0.0, %v4525
        %4527 = vmatprep.mubr.bf16.mxu0 %v4062
        %4528 = vmatmul.mubr.bf16.gmra.mxu0 %v4061
        %v4529 = vpop.f32.mrf.mxu0
        %v4530 = vadd.f32 0.0, %v4529
        %v4531 = vpop.f32.mrf.mxu0
        %v4532 = vadd.f32 0.0, %v4531
        %v4533 = vpop.f32.mrf.mxu0
        %v4534 = vadd.f32 0.0, %v4533
        %v4535 = vpop.f32.mrf.mxu0
        %v4536 = vadd.f32 0.0, %v4535
        %4537 = vmatprep.mubr.bf16.mxu0 %v4064
        %4538 = vmatmul.mubr.bf16.gmra.mxu0 %v4063
        %v4539 = vpop.f32.mrf.mxu0
        %v4540 = vadd.f32 0.0, %v4539
        %v4541 = vpop.f32.mrf.mxu0
        %v4542 = vadd.f32 0.0, %v4541
        %v4543 = vpop.f32.mrf.mxu0
        %v4544 = vadd.f32 0.0, %v4543
        %v4545 = vpop.f32.mrf.mxu0
        %v4546 = vadd.f32 0.0, %v4545
        %4547 = vmatprep.mubr.bf16.mxu0 %v4066
        %4548 = vmatmul.mubr.bf16.gmra.mxu0 %v4065
        %v4549 = vpop.f32.mrf.mxu0
        %v4550 = vadd.f32 0.0, %v4549
        %v4551 = vpop.f32.mrf.mxu0
        %v4552 = vadd.f32 0.0, %v4551
        %v4553 = vpop.f32.mrf.mxu0
        %v4554 = vadd.f32 0.0, %v4553
        %v4555 = vpop.f32.mrf.mxu0
        %v4556 = vadd.f32 0.0, %v4555
        %4557 = vmatprep.mubr.bf16.mxu0 %v4068
        %4558 = vmatmul.mubr.bf16.gmra.mxu0 %v4067
        %v4559 = vpop.f32.mrf.mxu0
        %v4560 = vadd.f32 0.0, %v4559
        %v4561 = vpop.f32.mrf.mxu0
        %v4562 = vadd.f32 0.0, %v4561
        %v4563 = vpop.f32.mrf.mxu0
        %v4564 = vadd.f32 0.0, %v4563
        %v4565 = vpop.f32.mrf.mxu0
        %v4566 = vadd.f32 0.0, %v4565
        %4567 = vmatprep.mubr.bf16.mxu0 %v4070
        %4568 = vmatmul.mubr.bf16.gmra.mxu0 %v4069
        %v4569 = vpop.f32.mrf.mxu0
        %v4570 = vadd.f32 0.0, %v4569
        %v4571 = vpop.f32.mrf.mxu0
        %v4572 = vadd.f32 0.0, %v4571
        %v4573 = vpop.f32.mrf.mxu0
        %v4574 = vadd.f32 0.0, %v4573
        %v4575 = vpop.f32.mrf.mxu0
        %v4576 = vadd.f32 0.0, %v4575
        %4577 = vmatprep.mubr.bf16.mxu0 %v4072
        %4578 = vmatmul.mubr.bf16.gmra.mxu0 %v4071
        %v4579 = vpop.f32.mrf.mxu0
        %v4580 = vadd.f32 0.0, %v4579
        %v4581 = vpop.f32.mrf.mxu0
        %v4582 = vadd.f32 0.0, %v4581
        %v4583 = vpop.f32.mrf.mxu0
        %v4584 = vadd.f32 0.0, %v4583
        %v4585 = vpop.f32.mrf.mxu0
        %v4586 = vadd.f32 0.0, %v4585
        %4587 = vmatprep.mubr.bf16.mxu0 %v4074
        %4588 = vmatmul.mubr.bf16.gmra.mxu0 %v4073
        %v4589 = vpop.f32.mrf.mxu0
        %v4590 = vadd.f32 0.0, %v4589
        %v4591 = vpop.f32.mrf.mxu0
        %v4592 = vadd.f32 0.0, %v4591
        %v4593 = vpop.f32.mrf.mxu0
        %v4594 = vadd.f32 0.0, %v4593
        %v4595 = vpop.f32.mrf.mxu0
        %v4596 = vadd.f32 0.0, %v4595
        %4597 = vmatprep.mubr.bf16.mxu0 %v4076
        %4598 = vmatmul.mubr.bf16.gmra.mxu0 %v4075
        %v4599 = vpop.f32.mrf.mxu0
        %v4600 = vadd.f32 0.0, %v4599
        %v4601 = vpop.f32.mrf.mxu0
        %v4602 = vadd.f32 0.0, %v4601
        %v4603 = vpop.f32.mrf.mxu0
        %v4604 = vadd.f32 0.0, %v4603
        %v4605 = vpop.f32.mrf.mxu0
        %v4606 = vadd.f32 0.0, %v4605
        %4607 = vmatprep.mubr.bf16.mxu0 %v4078
        %4608 = vmatmul.mubr.bf16.gmra.mxu0 %v4077
        %v4609 = vpop.f32.mrf.mxu0
        %v4610 = vadd.f32 0.0, %v4609
        %v4611 = vpop.f32.mrf.mxu0
        %v4612 = vadd.f32 0.0, %v4611
        %v4613 = vpop.f32.mrf.mxu0
        %v4614 = vadd.f32 0.0, %v4613
        %v4615 = vpop.f32.mrf.mxu0
        %v4616 = vadd.f32 0.0, %v4615
        %4617 = vmatprep.mubr.bf16.mxu0 %v4080
        %4618 = vmatmul.mubr.bf16.gmra.mxu0 %v4079
        %v4619 = vpop.f32.mrf.mxu0
        %v4620 = vadd.f32 0.0, %v4619
        %v4621 = vpop.f32.mrf.mxu0
        %v4622 = vadd.f32 0.0, %v4621
        %v4623 = vpop.f32.mrf.mxu0
        %v4624 = vadd.f32 0.0, %v4623
        %v4625 = vpop.f32.mrf.mxu0
        %v4626 = vadd.f32 0.0, %v4625
        %4627 = vmatprep.mubr.bf16.mxu0 %v4082
        %4628 = vmatmul.mubr.bf16.gmra.mxu0 %v4081
        %v4629 = vpop.f32.mrf.mxu0
        %v4630 = vadd.f32 0.0, %v4629
        %v4631 = vpop.f32.mrf.mxu0
        %v4632 = vadd.f32 0.0, %v4631
        %v4633 = vpop.f32.mrf.mxu0
        %v4634 = vadd.f32 0.0, %v4633
        %v4635 = vpop.f32.mrf.mxu0
        %v4636 = vadd.f32 0.0, %v4635
        %4637 = vmatprep.mubr.bf16.mxu0 %v4084
        %4638 = vmatmul.mubr.bf16.gmra.mxu0 %v4083
        %v4639 = vpop.f32.mrf.mxu0
        %v4640 = vadd.f32 0.0, %v4639
        %v4641 = vpop.f32.mrf.mxu0
        %v4642 = vadd.f32 0.0, %v4641
        %v4643 = vpop.f32.mrf.mxu0
        %v4644 = vadd.f32 0.0, %v4643
        %v4645 = vpop.f32.mrf.mxu0
        %v4646 = vadd.f32 0.0, %v4645
        %4647 = vdwg.mxu0
        %v4664 = vunpack.c.l.b16 %v4086
        %v4665 = vunpack.c.h.b16 %v4086
        %v4666 = vunpack.c.l.b16 %v4087
        %v4667 = vunpack.c.h.b16 %v4087
        %v4668 = vunpack.c.l.b16 %v4088
        %v4669 = vunpack.c.h.b16 %v4088
        %v4670 = vunpack.c.l.b16 %v4089
        %v4671 = vunpack.c.h.b16 %v4089
        %v4672 = vunpack.c.l.b16 %v4090
        %v4673 = vunpack.c.h.b16 %v4090
        %v4674 = vunpack.c.l.b16 %v4091
        %v4675 = vunpack.c.h.b16 %v4091
        %v4676 = vunpack.c.l.b16 %v4092
        %v4677 = vunpack.c.h.b16 %v4092
        %v4678 = vunpack.c.l.b16 %v4093
        %v4679 = vunpack.c.h.b16 %v4093
        %v4680 = vunpack.c.l.b16 %v4094
        %v4681 = vunpack.c.h.b16 %v4094
        %v4682 = vunpack.c.l.b16 %v4095
        %v4683 = vunpack.c.h.b16 %v4095
        %v4684 = vunpack.c.l.b16 %v4096
        %v4685 = vunpack.c.h.b16 %v4096
        %v4686 = vunpack.c.l.b16 %v4097
        %v4687 = vunpack.c.h.b16 %v4097
        %v4688 = vunpack.c.l.b16 %v4098
        %v4689 = vunpack.c.h.b16 %v4098
        %v4690 = vunpack.c.l.b16 %v4099
        %v4691 = vunpack.c.h.b16 %v4099
        %v4692 = vunpack.c.l.b16 %v4100
        %v4693 = vunpack.c.h.b16 %v4100
        %v4694 = vunpack.c.l.b16 %v4101
        %v4695 = vunpack.c.h.b16 %v4101
        %v4696 = vpack.c.b16 %v4666, %v4664
        %v4697 = vpack.c.b16 %v4667, %v4665
        %v4698 = vpack.c.b16 %v4670, %v4668
        %v4699 = vpack.c.b16 %v4671, %v4669
        %v4700 = vpack.c.b16 %v4674, %v4672
        %v4701 = vpack.c.b16 %v4675, %v4673
        %v4702 = vpack.c.b16 %v4678, %v4676
        %v4703 = vpack.c.b16 %v4679, %v4677
        %v4704 = vpack.c.b16 %v4682, %v4680
        %v4705 = vpack.c.b16 %v4683, %v4681
        %v4706 = vpack.c.b16 %v4686, %v4684
        %v4707 = vpack.c.b16 %v4687, %v4685
        %v4708 = vpack.c.b16 %v4690, %v4688
        %v4709 = vpack.c.b16 %v4691, %v4689
        %v4710 = vpack.c.b16 %v4694, %v4692
        %v4711 = vpack.c.b16 %v4695, %v4693
        %4728 = vmatprep.subr.bf16.mxu0 %v4711
        %4729 = vmatpush1.bf16.msra.mxu0 %v4710
        %4730 = vmatprep.subr.bf16.mxu0 %v4709
        %4731 = vmatpush1.bf16.msra.mxu0 %v4708
        %4732 = vmatprep.subr.bf16.mxu0 %v4707
        %4733 = vmatpush1.bf16.msra.mxu0 %v4706
        %4734 = vmatprep.subr.bf16.mxu0 %v4705
        %4735 = vmatpush1.bf16.msra.mxu0 %v4704
        %4736 = vmatprep.subr.bf16.mxu0 %v4703
        %4737 = vmatpush1.bf16.msra.mxu0 %v4702
        %4738 = vmatprep.subr.bf16.mxu0 %v4701
        %4739 = vmatpush1.bf16.msra.mxu0 %v4700
        %4740 = vmatprep.subr.bf16.mxu0 %v4699
        %4741 = vmatpush1.bf16.msra.mxu0 %v4698
        %4742 = vmatprep.subr.bf16.mxu0 %v4697
        %4743 = vmatpush1.bf16.msra.mxu0 %v4696
        %4744 = vmatprep.subr.bf16.mxu0 0
        %4745 = vmatpush2.bf16.msra.mxu0 0
        %4746 = vmatprep.subr.bf16.mxu0 0
        %4747 = vmatpush2.bf16.msra.mxu0 0
        %4748 = vmatprep.subr.bf16.mxu0 0
        %4749 = vmatpush2.bf16.msra.mxu0 0
        %4750 = vmatprep.subr.bf16.mxu0 0
        %4751 = vmatpush2.bf16.msra.mxu0 0
        %4752 = vmatprep.subr.bf16.mxu0 0
        %4753 = vmatpush2.bf16.msra.mxu0 0
        %4754 = vmatprep.subr.bf16.mxu0 0
        %4755 = vmatpush2.bf16.msra.mxu0 0
        %4756 = vmatprep.subr.bf16.mxu0 0
        %4757 = vmatpush2.bf16.msra.mxu0 0
        %4758 = vmatprep.subr.bf16.mxu0 0
        %4759 = vmatpush2.bf16.msra.mxu0 0
        %4760 = vmatprep.mubr.bf16.mxu0 0
        %4761 = vmatmul.mubr.bf16.gmra.mxu0 %v397
        %v4762 = vpop.f32.mrf.mxu0
        %v4763 = vadd.f32 %v4330, %v4762
        %v4764 = vpop.f32.mrf.mxu0
        %v4765 = vadd.f32 %v4332, %v4764
        %v4766 = vpop.f32.mrf.mxu0
        %v4767 = vadd.f32 %v4334, %v4766
        %v4768 = vpop.f32.mrf.mxu0
        %v4769 = vadd.f32 %v4336, %v4768
        %4770 = vmatprep.mubr.bf16.mxu0 0
        %4771 = vmatmul.mubr.bf16.gmra.mxu0 %v398
        %v4772 = vpop.f32.mrf.mxu0
        %v4773 = vadd.f32 %v4340, %v4772
        %v4774 = vpop.f32.mrf.mxu0
        %v4775 = vadd.f32 %v4342, %v4774
        %v4776 = vpop.f32.mrf.mxu0
        %v4777 = vadd.f32 %v4344, %v4776
        %v4778 = vpop.f32.mrf.mxu0
        %v4779 = vadd.f32 %v4346, %v4778
        %4780 = vmatprep.mubr.bf16.mxu0 0
        %4781 = vmatmul.mubr.bf16.gmra.mxu0 %v399
        %v4782 = vpop.f32.mrf.mxu0
        %v4783 = vadd.f32 %v4350, %v4782
        %v4784 = vpop.f32.mrf.mxu0
        %v4785 = vadd.f32 %v4352, %v4784
        %v4786 = vpop.f32.mrf.mxu0
        %v4787 = vadd.f32 %v4354, %v4786
        %v4788 = vpop.f32.mrf.mxu0
        %v4789 = vadd.f32 %v4356, %v4788
        %4790 = vmatprep.mubr.bf16.mxu0 0
        %4791 = vmatmul.mubr.bf16.gmra.mxu0 %v400
        %v4792 = vpop.f32.mrf.mxu0
        %v4793 = vadd.f32 %v4360, %v4792
        %v4794 = vpop.f32.mrf.mxu0
        %v4795 = vadd.f32 %v4362, %v4794
        %v4796 = vpop.f32.mrf.mxu0
        %v4797 = vadd.f32 %v4364, %v4796
        %v4798 = vpop.f32.mrf.mxu0
        %v4799 = vadd.f32 %v4366, %v4798
        %4800 = vmatprep.mubr.bf16.mxu0 0
        %4801 = vmatmul.mubr.bf16.gmra.mxu0 %v401
        %v4802 = vpop.f32.mrf.mxu0
        %v4803 = vadd.f32 %v4370, %v4802
        %v4804 = vpop.f32.mrf.mxu0
        %v4805 = vadd.f32 %v4372, %v4804
        %v4806 = vpop.f32.mrf.mxu0
        %v4807 = vadd.f32 %v4374, %v4806
        %v4808 = vpop.f32.mrf.mxu0
        %v4809 = vadd.f32 %v4376, %v4808
        %4810 = vmatprep.mubr.bf16.mxu0 0
        %4811 = vmatmul.mubr.bf16.gmra.mxu0 %v402
        %v4812 = vpop.f32.mrf.mxu0
        %v4813 = vadd.f32 %v4380, %v4812
        %v4814 = vpop.f32.mrf.mxu0
        %v4815 = vadd.f32 %v4382, %v4814
        %v4816 = vpop.f32.mrf.mxu0
        %v4817 = vadd.f32 %v4384, %v4816
        %v4818 = vpop.f32.mrf.mxu0
        %v4819 = vadd.f32 %v4386, %v4818
        %4820 = vmatprep.mubr.bf16.mxu0 0
        %4821 = vmatmul.mubr.bf16.gmra.mxu0 %v403
        %v4822 = vpop.f32.mrf.mxu0
        %v4823 = vadd.f32 %v4390, %v4822
        %v4824 = vpop.f32.mrf.mxu0
        %v4825 = vadd.f32 %v4392, %v4824
        %v4826 = vpop.f32.mrf.mxu0
        %v4827 = vadd.f32 %v4394, %v4826
        %v4828 = vpop.f32.mrf.mxu0
        %v4829 = vadd.f32 %v4396, %v4828
        %4830 = vmatprep.mubr.bf16.mxu0 0
        %4831 = vmatmul.mubr.bf16.gmra.mxu0 %v404
        %v4832 = vpop.f32.mrf.mxu0
        %v4833 = vadd.f32 %v4400, %v4832
        %v4834 = vpop.f32.mrf.mxu0
        %v4835 = vadd.f32 %v4402, %v4834
        %v4836 = vpop.f32.mrf.mxu0
        %v4837 = vadd.f32 %v4404, %v4836
        %v4838 = vpop.f32.mrf.mxu0
        %v4839 = vadd.f32 %v4406, %v4838
        %4840 = vmatprep.mubr.bf16.mxu0 0
        %4841 = vmatmul.mubr.bf16.gmra.mxu0 %v405
        %v4842 = vpop.f32.mrf.mxu0
        %v4843 = vadd.f32 %v4410, %v4842
        %v4844 = vpop.f32.mrf.mxu0
        %v4845 = vadd.f32 %v4412, %v4844
        %v4846 = vpop.f32.mrf.mxu0
        %v4847 = vadd.f32 %v4414, %v4846
        %v4848 = vpop.f32.mrf.mxu0
        %v4849 = vadd.f32 %v4416, %v4848
        %4850 = vmatprep.mubr.bf16.mxu0 0
        %4851 = vmatmul.mubr.bf16.gmra.mxu0 %v406
        %v4852 = vpop.f32.mrf.mxu0
        %v4853 = vadd.f32 %v4420, %v4852
        %v4854 = vpop.f32.mrf.mxu0
        %v4855 = vadd.f32 %v4422, %v4854
        %v4856 = vpop.f32.mrf.mxu0
        %v4857 = vadd.f32 %v4424, %v4856
        %v4858 = vpop.f32.mrf.mxu0
        %v4859 = vadd.f32 %v4426, %v4858
        %4860 = vmatprep.mubr.bf16.mxu0 0
        %4861 = vmatmul.mubr.bf16.gmra.mxu0 %v407
        %v4862 = vpop.f32.mrf.mxu0
        %v4863 = vadd.f32 %v4430, %v4862
        %v4864 = vpop.f32.mrf.mxu0
        %v4865 = vadd.f32 %v4432, %v4864
        %v4866 = vpop.f32.mrf.mxu0
        %v4867 = vadd.f32 %v4434, %v4866
        %v4868 = vpop.f32.mrf.mxu0
        %v4869 = vadd.f32 %v4436, %v4868
        %4870 = vmatprep.mubr.bf16.mxu0 0
        %4871 = vmatmul.mubr.bf16.gmra.mxu0 %v408
        %v4872 = vpop.f32.mrf.mxu0
        %v4873 = vadd.f32 %v4440, %v4872
        %v4874 = vpop.f32.mrf.mxu0
        %v4875 = vadd.f32 %v4442, %v4874
        %v4876 = vpop.f32.mrf.mxu0
        %v4877 = vadd.f32 %v4444, %v4876
        %v4878 = vpop.f32.mrf.mxu0
        %v4879 = vadd.f32 %v4446, %v4878
        %4880 = vmatprep.mubr.bf16.mxu0 0
        %4881 = vmatmul.mubr.bf16.gmra.mxu0 %v409
        %v4882 = vpop.f32.mrf.mxu0
        %v4883 = vadd.f32 %v4450, %v4882
        %v4884 = vpop.f32.mrf.mxu0
        %v4885 = vadd.f32 %v4452, %v4884
        %v4886 = vpop.f32.mrf.mxu0
        %v4887 = vadd.f32 %v4454, %v4886
        %v4888 = vpop.f32.mrf.mxu0
        %v4889 = vadd.f32 %v4456, %v4888
        %4890 = vmatprep.mubr.bf16.mxu0 0
        %4891 = vmatmul.mubr.bf16.gmra.mxu0 %v410
        %v4892 = vpop.f32.mrf.mxu0
        %v4893 = vadd.f32 %v4460, %v4892
        %v4894 = vpop.f32.mrf.mxu0
        %v4895 = vadd.f32 %v4462, %v4894
        %v4896 = vpop.f32.mrf.mxu0
        %v4897 = vadd.f32 %v4464, %v4896
        %v4898 = vpop.f32.mrf.mxu0
        %v4899 = vadd.f32 %v4466, %v4898
        %4900 = vmatprep.mubr.bf16.mxu0 0
        %4901 = vmatmul.mubr.bf16.gmra.mxu0 %v411
        %v4902 = vpop.f32.mrf.mxu0
        %v4903 = vadd.f32 %v4470, %v4902
        %v4904 = vpop.f32.mrf.mxu0
        %v4905 = vadd.f32 %v4472, %v4904
        %v4906 = vpop.f32.mrf.mxu0
        %v4907 = vadd.f32 %v4474, %v4906
        %v4908 = vpop.f32.mrf.mxu0
        %v4909 = vadd.f32 %v4476, %v4908
        %4910 = vmatprep.mubr.bf16.mxu0 0
        %4911 = vmatmul.mubr.bf16.gmra.mxu0 %v412
        %v4912 = vpop.f32.mrf.mxu0
        %v4913 = vadd.f32 %v4480, %v4912
        %v4914 = vpop.f32.mrf.mxu0
        %v4915 = vadd.f32 %v4482, %v4914
        %v4916 = vpop.f32.mrf.mxu0
        %v4917 = vadd.f32 %v4484, %v4916
        %v4918 = vpop.f32.mrf.mxu0
        %v4919 = vadd.f32 %v4486, %v4918
        %4920 = vmatprep.mubr.bf16.mxu0 0
        %4921 = vmatmul.mubr.bf16.gmra.mxu0 %v413
        %v4922 = vpop.f32.mrf.mxu0
        %v4923 = vadd.f32 %v4490, %v4922
        %v4924 = vpop.f32.mrf.mxu0
        %v4925 = vadd.f32 %v4492, %v4924
        %v4926 = vpop.f32.mrf.mxu0
        %v4927 = vadd.f32 %v4494, %v4926
        %v4928 = vpop.f32.mrf.mxu0
        %v4929 = vadd.f32 %v4496, %v4928
        %4930 = vmatprep.mubr.bf16.mxu0 0
        %4931 = vmatmul.mubr.bf16.gmra.mxu0 %v414
        %v4932 = vpop.f32.mrf.mxu0
        %v4933 = vadd.f32 %v4500, %v4932
        %v4934 = vpop.f32.mrf.mxu0
        %v4935 = vadd.f32 %v4502, %v4934
        %v4936 = vpop.f32.mrf.mxu0
        %v4937 = vadd.f32 %v4504, %v4936
        %v4938 = vpop.f32.mrf.mxu0
        %v4939 = vadd.f32 %v4506, %v4938
        %4940 = vmatprep.mubr.bf16.mxu0 0
        %4941 = vmatmul.mubr.bf16.gmra.mxu0 %v415
        %v4942 = vpop.f32.mrf.mxu0
        %v4943 = vadd.f32 %v4510, %v4942
        %v4944 = vpop.f32.mrf.mxu0
        %v4945 = vadd.f32 %v4512, %v4944
        %v4946 = vpop.f32.mrf.mxu0
        %v4947 = vadd.f32 %v4514, %v4946
        %v4948 = vpop.f32.mrf.mxu0
        %v4949 = vadd.f32 %v4516, %v4948
        %4950 = vmatprep.mubr.bf16.mxu0 0
        %4951 = vmatmul.mubr.bf16.gmra.mxu0 %v416
        %v4952 = vpop.f32.mrf.mxu0
        %v4953 = vadd.f32 %v4520, %v4952
        %v4954 = vpop.f32.mrf.mxu0
        %v4955 = vadd.f32 %v4522, %v4954
        %v4956 = vpop.f32.mrf.mxu0
        %v4957 = vadd.f32 %v4524, %v4956
        %v4958 = vpop.f32.mrf.mxu0
        %v4959 = vadd.f32 %v4526, %v4958
        %4960 = vmatprep.mubr.bf16.mxu0 0
        %4961 = vmatmul.mubr.bf16.gmra.mxu0 %v417
        %v4962 = vpop.f32.mrf.mxu0
        %v4963 = vadd.f32 %v4530, %v4962
        %v4964 = vpop.f32.mrf.mxu0
        %v4965 = vadd.f32 %v4532, %v4964
        %v4966 = vpop.f32.mrf.mxu0
        %v4967 = vadd.f32 %v4534, %v4966
        %v4968 = vpop.f32.mrf.mxu0
        %v4969 = vadd.f32 %v4536, %v4968
        %4970 = vmatprep.mubr.bf16.mxu0 0
        %4971 = vmatmul.mubr.bf16.gmra.mxu0 %v418
        %v4972 = vpop.f32.mrf.mxu0
        %v4973 = vadd.f32 %v4540, %v4972
        %v4974 = vpop.f32.mrf.mxu0
        %v4975 = vadd.f32 %v4542, %v4974
        %v4976 = vpop.f32.mrf.mxu0
        %v4977 = vadd.f32 %v4544, %v4976
        %v4978 = vpop.f32.mrf.mxu0
        %v4979 = vadd.f32 %v4546, %v4978
        %4980 = vmatprep.mubr.bf16.mxu0 0
        %4981 = vmatmul.mubr.bf16.gmra.mxu0 %v419
        %v4982 = vpop.f32.mrf.mxu0
        %v4983 = vadd.f32 %v4550, %v4982
        %v4984 = vpop.f32.mrf.mxu0
        %v4985 = vadd.f32 %v4552, %v4984
        %v4986 = vpop.f32.mrf.mxu0
        %v4987 = vadd.f32 %v4554, %v4986
        %v4988 = vpop.f32.mrf.mxu0
        %v4989 = vadd.f32 %v4556, %v4988
        %4990 = vmatprep.mubr.bf16.mxu0 0
        %4991 = vmatmul.mubr.bf16.gmra.mxu0 %v420
        %v4992 = vpop.f32.mrf.mxu0
        %v4993 = vadd.f32 %v4560, %v4992
        %v4994 = vpop.f32.mrf.mxu0
        %v4995 = vadd.f32 %v4562, %v4994
        %v4996 = vpop.f32.mrf.mxu0
        %v4997 = vadd.f32 %v4564, %v4996
        %v4998 = vpop.f32.mrf.mxu0
        %v4999 = vadd.f32 %v4566, %v4998
        %5000 = vmatprep.mubr.bf16.mxu0 0
        %5001 = vmatmul.mubr.bf16.gmra.mxu0 %v421
        %v5002 = vpop.f32.mrf.mxu0
        %v5003 = vadd.f32 %v4570, %v5002
        %v5004 = vpop.f32.mrf.mxu0
        %v5005 = vadd.f32 %v4572, %v5004
        %v5006 = vpop.f32.mrf.mxu0
        %v5007 = vadd.f32 %v4574, %v5006
        %v5008 = vpop.f32.mrf.mxu0
        %v5009 = vadd.f32 %v4576, %v5008
        %5010 = vmatprep.mubr.bf16.mxu0 0
        %5011 = vmatmul.mubr.bf16.gmra.mxu0 %v422
        %v5012 = vpop.f32.mrf.mxu0
        %v5013 = vadd.f32 %v4580, %v5012
        %v5014 = vpop.f32.mrf.mxu0
        %v5015 = vadd.f32 %v4582, %v5014
        %v5016 = vpop.f32.mrf.mxu0
        %v5017 = vadd.f32 %v4584, %v5016
        %v5018 = vpop.f32.mrf.mxu0
        %v5019 = vadd.f32 %v4586, %v5018
        %5020 = vmatprep.mubr.bf16.mxu0 0
        %5021 = vmatmul.mubr.bf16.gmra.mxu0 %v423
        %v5022 = vpop.f32.mrf.mxu0
        %v5023 = vadd.f32 %v4590, %v5022
        %v5024 = vpop.f32.mrf.mxu0
        %v5025 = vadd.f32 %v4592, %v5024
        %v5026 = vpop.f32.mrf.mxu0
        %v5027 = vadd.f32 %v4594, %v5026
        %v5028 = vpop.f32.mrf.mxu0
        %v5029 = vadd.f32 %v4596, %v5028
        %5030 = vmatprep.mubr.bf16.mxu0 0
        %5031 = vmatmul.mubr.bf16.gmra.mxu0 %v424
        %v5032 = vpop.f32.mrf.mxu0
        %v5033 = vadd.f32 %v4600, %v5032
        %v5034 = vpop.f32.mrf.mxu0
        %v5035 = vadd.f32 %v4602, %v5034
        %v5036 = vpop.f32.mrf.mxu0
        %v5037 = vadd.f32 %v4604, %v5036
        %v5038 = vpop.f32.mrf.mxu0
        %v5039 = vadd.f32 %v4606, %v5038
        %5040 = vmatprep.mubr.bf16.mxu0 0
        %5041 = vmatmul.mubr.bf16.gmra.mxu0 %v425
        %v5042 = vpop.f32.mrf.mxu0
        %v5043 = vadd.f32 %v4610, %v5042
        %v5044 = vpop.f32.mrf.mxu0
        %v5045 = vadd.f32 %v4612, %v5044
        %v5046 = vpop.f32.mrf.mxu0
        %v5047 = vadd.f32 %v4614, %v5046
        %v5048 = vpop.f32.mrf.mxu0
        %v5049 = vadd.f32 %v4616, %v5048
        %5050 = vmatprep.mubr.bf16.mxu0 0
        %5051 = vmatmul.mubr.bf16.gmra.mxu0 %v426
        %v5052 = vpop.f32.mrf.mxu0
        %v5053 = vadd.f32 %v4620, %v5052
        %v5054 = vpop.f32.mrf.mxu0
        %v5055 = vadd.f32 %v4622, %v5054
        %v5056 = vpop.f32.mrf.mxu0
        %v5057 = vadd.f32 %v4624, %v5056
        %v5058 = vpop.f32.mrf.mxu0
        %v5059 = vadd.f32 %v4626, %v5058
        %5060 = vmatprep.mubr.bf16.mxu0 0
        %5061 = vmatmul.mubr.bf16.gmra.mxu0 %v427
        %v5062 = vpop.f32.mrf.mxu0
        %v5063 = vadd.f32 %v4630, %v5062
        %v5064 = vpop.f32.mrf.mxu0
        %v5065 = vadd.f32 %v4632, %v5064
        %v5066 = vpop.f32.mrf.mxu0
        %v5067 = vadd.f32 %v4634, %v5066
        %v5068 = vpop.f32.mrf.mxu0
        %v5069 = vadd.f32 %v4636, %v5068
        %5070 = vmatprep.mubr.bf16.mxu0 0
        %5071 = vmatmul.mubr.bf16.gmra.mxu0 %v428
        %v5072 = vpop.f32.mrf.mxu0
        %v5073 = vadd.f32 %v4640, %v5072
        %v5074 = vpop.f32.mrf.mxu0
        %v5075 = vadd.f32 %v4642, %v5074
        %v5076 = vpop.f32.mrf.mxu0
        %v5077 = vadd.f32 %v4644, %v5076
        %v5078 = vpop.f32.mrf.mxu0
        %v5079 = vadd.f32 %v4646, %v5078
        %5080 = vdwg.mxu0
        %s5081 = scalar_lea.vmem [#allocation7], 10
        %v5082 = vld [vmem:[%s5081] sm:$0x3]
        %v5084 = vlaneseq
        %v5085 = vshrl.u32 %v5084, 7
        %v5086 = vsub.s32 0, %v5085
        %v5087 = vrot.slane %v5082, %v5086
        %v5088 = vlaneseq
        %v5089 = vshrl.u32 %v5088, 7
        %v5090 = vsub.s32 1, %v5089
        %v5091 = vrot.slane %v5082, %v5090
        %v5094 = vadd.f32 %v4763, %v5087
        %v5095 = vadd.f32 %v4765, %v5091
        %v5096 = vadd.f32 %v4767, %v5087
        %v5097 = vadd.f32 %v4769, %v5091
        %v5098 = vadd.f32 %v4773, %v5087
        %v5099 = vadd.f32 %v4775, %v5091
        %v5100 = vadd.f32 %v4777, %v5087
        %v5101 = vadd.f32 %v4779, %v5091
        %v5102 = vadd.f32 %v4783, %v5087
        %v5103 = vadd.f32 %v4785, %v5091
        %v5104 = vadd.f32 %v4787, %v5087
        %v5105 = vadd.f32 %v4789, %v5091
        %v5106 = vadd.f32 %v4793, %v5087
        %v5107 = vadd.f32 %v4795, %v5091
        %v5108 = vadd.f32 %v4797, %v5087
        %v5109 = vadd.f32 %v4799, %v5091
        %v5110 = vadd.f32 %v4803, %v5087
        %v5111 = vadd.f32 %v4805, %v5091
        %v5112 = vadd.f32 %v4807, %v5087
        %v5113 = vadd.f32 %v4809, %v5091
        %v5114 = vadd.f32 %v4813, %v5087
        %v5115 = vadd.f32 %v4815, %v5091
        %v5116 = vadd.f32 %v4817, %v5087
        %v5117 = vadd.f32 %v4819, %v5091
        %v5118 = vadd.f32 %v4823, %v5087
        %v5119 = vadd.f32 %v4825, %v5091
        %v5120 = vadd.f32 %v4827, %v5087
        %v5121 = vadd.f32 %v4829, %v5091
        %v5122 = vadd.f32 %v4833, %v5087
        %v5123 = vadd.f32 %v4835, %v5091
        %v5124 = vadd.f32 %v4837, %v5087
        %v5125 = vadd.f32 %v4839, %v5091
        %v5126 = vadd.f32 %v4843, %v5087
        %v5127 = vadd.f32 %v4845, %v5091
        %v5128 = vadd.f32 %v4847, %v5087
        %v5129 = vadd.f32 %v4849, %v5091
        %v5130 = vadd.f32 %v4853, %v5087
        %v5131 = vadd.f32 %v4855, %v5091
        %v5132 = vadd.f32 %v4857, %v5087
        %v5133 = vadd.f32 %v4859, %v5091
        %v5134 = vadd.f32 %v4863, %v5087
        %v5135 = vadd.f32 %v4865, %v5091
        %v5136 = vadd.f32 %v4867, %v5087
        %v5137 = vadd.f32 %v4869, %v5091
        %v5138 = vadd.f32 %v4873, %v5087
        %v5139 = vadd.f32 %v4875, %v5091
        %v5140 = vadd.f32 %v4877, %v5087
        %v5141 = vadd.f32 %v4879, %v5091
        %v5142 = vadd.f32 %v4883, %v5087
        %v5143 = vadd.f32 %v4885, %v5091
        %v5144 = vadd.f32 %v4887, %v5087
        %v5145 = vadd.f32 %v4889, %v5091
        %v5146 = vadd.f32 %v4893, %v5087
        %v5147 = vadd.f32 %v4895, %v5091
        %v5148 = vadd.f32 %v4897, %v5087
        %v5149 = vadd.f32 %v4899, %v5091
        %v5150 = vadd.f32 %v4903, %v5087
        %v5151 = vadd.f32 %v4905, %v5091
        %v5152 = vadd.f32 %v4907, %v5087
        %v5153 = vadd.f32 %v4909, %v5091
        %v5154 = vadd.f32 %v4913, %v5087
        %v5155 = vadd.f32 %v4915, %v5091
        %v5156 = vadd.f32 %v4917, %v5087
        %v5157 = vadd.f32 %v4919, %v5091
        %v5158 = vadd.f32 %v4923, %v5087
        %v5159 = vadd.f32 %v4925, %v5091
        %v5160 = vadd.f32 %v4927, %v5087
        %v5161 = vadd.f32 %v4929, %v5091
        %v5162 = vadd.f32 %v4933, %v5087
        %v5163 = vadd.f32 %v4935, %v5091
        %v5164 = vadd.f32 %v4937, %v5087
        %v5165 = vadd.f32 %v4939, %v5091
        %v5166 = vadd.f32 %v4943, %v5087
        %v5167 = vadd.f32 %v4945, %v5091
        %v5168 = vadd.f32 %v4947, %v5087
        %v5169 = vadd.f32 %v4949, %v5091
        %v5170 = vadd.f32 %v4953, %v5087
        %v5171 = vadd.f32 %v4955, %v5091
        %v5172 = vadd.f32 %v4957, %v5087
        %v5173 = vadd.f32 %v4959, %v5091
        %v5174 = vadd.f32 %v4963, %v5087
        %v5175 = vadd.f32 %v4965, %v5091
        %v5176 = vadd.f32 %v4967, %v5087
        %v5177 = vadd.f32 %v4969, %v5091
        %v5178 = vadd.f32 %v4973, %v5087
        %v5179 = vadd.f32 %v4975, %v5091
        %v5180 = vadd.f32 %v4977, %v5087
        %v5181 = vadd.f32 %v4979, %v5091
        %v5182 = vadd.f32 %v4983, %v5087
        %v5183 = vadd.f32 %v4985, %v5091
        %v5184 = vadd.f32 %v4987, %v5087
        %v5185 = vadd.f32 %v4989, %v5091
        %v5186 = vadd.f32 %v4993, %v5087
        %v5187 = vadd.f32 %v4995, %v5091
        %v5188 = vadd.f32 %v4997, %v5087
        %v5189 = vadd.f32 %v4999, %v5091
        %v5190 = vadd.f32 %v5003, %v5087
        %v5191 = vadd.f32 %v5005, %v5091
        %v5192 = vadd.f32 %v5007, %v5087
        %v5193 = vadd.f32 %v5009, %v5091
        %v5194 = vadd.f32 %v5013, %v5087
        %v5195 = vadd.f32 %v5015, %v5091
        %v5196 = vadd.f32 %v5017, %v5087
        %v5197 = vadd.f32 %v5019, %v5091
        %v5198 = vadd.f32 %v5023, %v5087
        %v5199 = vadd.f32 %v5025, %v5091
        %v5200 = vadd.f32 %v5027, %v5087
        %v5201 = vadd.f32 %v5029, %v5091
        %v5202 = vadd.f32 %v5033, %v5087
        %v5203 = vadd.f32 %v5035, %v5091
        %v5204 = vadd.f32 %v5037, %v5087
        %v5205 = vadd.f32 %v5039, %v5091
        %v5206 = vadd.f32 %v5043, %v5087
        %v5207 = vadd.f32 %v5045, %v5091
        %v5208 = vadd.f32 %v5047, %v5087
        %v5209 = vadd.f32 %v5049, %v5091
        %v5210 = vadd.f32 %v5053, %v5087
        %v5211 = vadd.f32 %v5055, %v5091
        %v5212 = vadd.f32 %v5057, %v5087
        %v5213 = vadd.f32 %v5059, %v5091
        %v5214 = vadd.f32 %v5063, %v5087
        %v5215 = vadd.f32 %v5065, %v5091
        %v5216 = vadd.f32 %v5067, %v5087
        %v5217 = vadd.f32 %v5069, %v5091
        %v5218 = vadd.f32 %v5073, %v5087
        %v5219 = vadd.f32 %v5075, %v5091
        %v5220 = vadd.f32 %v5077, %v5087
        %v5221 = vadd.f32 %v5079, %v5091
        %v5222 = vmax.f32 %v5094, 0.0
        %v5223 = vmax.f32 %v5095, 0.0
        %v5224 = vmax.f32 %v5096, 0.0
        %v5225 = vmax.f32 %v5097, 0.0
        %v5226 = vmax.f32 %v5098, 0.0
        %v5227 = vmax.f32 %v5099, 0.0
        %v5228 = vmax.f32 %v5100, 0.0
        %v5229 = vmax.f32 %v5101, 0.0
        %v5230 = vmax.f32 %v5102, 0.0
        %v5231 = vmax.f32 %v5103, 0.0
        %v5232 = vmax.f32 %v5104, 0.0
        %v5233 = vmax.f32 %v5105, 0.0
        %v5234 = vmax.f32 %v5106, 0.0
        %v5235 = vmax.f32 %v5107, 0.0
        %v5236 = vmax.f32 %v5108, 0.0
        %v5237 = vmax.f32 %v5109, 0.0
        %v5238 = vmax.f32 %v5110, 0.0
        %v5239 = vmax.f32 %v5111, 0.0
        %v5240 = vmax.f32 %v5112, 0.0
        %v5241 = vmax.f32 %v5113, 0.0
        %v5242 = vmax.f32 %v5114, 0.0
        %v5243 = vmax.f32 %v5115, 0.0
        %v5244 = vmax.f32 %v5116, 0.0
        %v5245 = vmax.f32 %v5117, 0.0
        %v5246 = vmax.f32 %v5118, 0.0
        %v5247 = vmax.f32 %v5119, 0.0
        %v5248 = vmax.f32 %v5120, 0.0
        %v5249 = vmax.f32 %v5121, 0.0
        %v5250 = vmax.f32 %v5122, 0.0
        %v5251 = vmax.f32 %v5123, 0.0
        %v5252 = vmax.f32 %v5124, 0.0
        %v5253 = vmax.f32 %v5125, 0.0
        %v5254 = vmax.f32 %v5126, 0.0
        %v5255 = vmax.f32 %v5127, 0.0
        %v5256 = vmax.f32 %v5128, 0.0
        %v5257 = vmax.f32 %v5129, 0.0
        %v5258 = vmax.f32 %v5130, 0.0
        %v5259 = vmax.f32 %v5131, 0.0
        %v5260 = vmax.f32 %v5132, 0.0
        %v5261 = vmax.f32 %v5133, 0.0
        %v5262 = vmax.f32 %v5134, 0.0
        %v5263 = vmax.f32 %v5135, 0.0
        %v5264 = vmax.f32 %v5136, 0.0
        %v5265 = vmax.f32 %v5137, 0.0
        %v5266 = vmax.f32 %v5138, 0.0
        %v5267 = vmax.f32 %v5139, 0.0
        %v5268 = vmax.f32 %v5140, 0.0
        %v5269 = vmax.f32 %v5141, 0.0
        %v5270 = vmax.f32 %v5142, 0.0
        %v5271 = vmax.f32 %v5143, 0.0
        %v5272 = vmax.f32 %v5144, 0.0
        %v5273 = vmax.f32 %v5145, 0.0
        %v5274 = vmax.f32 %v5146, 0.0
        %v5275 = vmax.f32 %v5147, 0.0
        %v5276 = vmax.f32 %v5148, 0.0
        %v5277 = vmax.f32 %v5149, 0.0
        %v5278 = vmax.f32 %v5150, 0.0
        %v5279 = vmax.f32 %v5151, 0.0
        %v5280 = vmax.f32 %v5152, 0.0
        %v5281 = vmax.f32 %v5153, 0.0
        %v5282 = vmax.f32 %v5154, 0.0
        %v5283 = vmax.f32 %v5155, 0.0
        %v5284 = vmax.f32 %v5156, 0.0
        %v5285 = vmax.f32 %v5157, 0.0
        %v5286 = vmax.f32 %v5158, 0.0
        %v5287 = vmax.f32 %v5159, 0.0
        %v5288 = vmax.f32 %v5160, 0.0
        %v5289 = vmax.f32 %v5161, 0.0
        %v5290 = vmax.f32 %v5162, 0.0
        %v5291 = vmax.f32 %v5163, 0.0
        %v5292 = vmax.f32 %v5164, 0.0
        %v5293 = vmax.f32 %v5165, 0.0
        %v5294 = vmax.f32 %v5166, 0.0
        %v5295 = vmax.f32 %v5167, 0.0
        %v5296 = vmax.f32 %v5168, 0.0
        %v5297 = vmax.f32 %v5169, 0.0
        %v5298 = vmax.f32 %v5170, 0.0
        %v5299 = vmax.f32 %v5171, 0.0
        %v5300 = vmax.f32 %v5172, 0.0
        %v5301 = vmax.f32 %v5173, 0.0
        %v5302 = vmax.f32 %v5174, 0.0
        %v5303 = vmax.f32 %v5175, 0.0
        %v5304 = vmax.f32 %v5176, 0.0
        %v5305 = vmax.f32 %v5177, 0.0
        %v5306 = vmax.f32 %v5178, 0.0
        %v5307 = vmax.f32 %v5179, 0.0
        %v5308 = vmax.f32 %v5180, 0.0
        %v5309 = vmax.f32 %v5181, 0.0
        %v5310 = vmax.f32 %v5182, 0.0
        %v5311 = vmax.f32 %v5183, 0.0
        %v5312 = vmax.f32 %v5184, 0.0
        %v5313 = vmax.f32 %v5185, 0.0
        %v5314 = vmax.f32 %v5186, 0.0
        %v5315 = vmax.f32 %v5187, 0.0
        %v5316 = vmax.f32 %v5188, 0.0
        %v5317 = vmax.f32 %v5189, 0.0
        %v5318 = vmax.f32 %v5190, 0.0
        %v5319 = vmax.f32 %v5191, 0.0
        %v5320 = vmax.f32 %v5192, 0.0
        %v5321 = vmax.f32 %v5193, 0.0
        %v5322 = vmax.f32 %v5194, 0.0
        %v5323 = vmax.f32 %v5195, 0.0
        %v5324 = vmax.f32 %v5196, 0.0
        %v5325 = vmax.f32 %v5197, 0.0
        %v5326 = vmax.f32 %v5198, 0.0
        %v5327 = vmax.f32 %v5199, 0.0
        %v5328 = vmax.f32 %v5200, 0.0
        %v5329 = vmax.f32 %v5201, 0.0
        %v5330 = vmax.f32 %v5202, 0.0
        %v5331 = vmax.f32 %v5203, 0.0
        %v5332 = vmax.f32 %v5204, 0.0
        %v5333 = vmax.f32 %v5205, 0.0
        %v5334 = vmax.f32 %v5206, 0.0
        %v5335 = vmax.f32 %v5207, 0.0
        %v5336 = vmax.f32 %v5208, 0.0
        %v5337 = vmax.f32 %v5209, 0.0
        %v5338 = vmax.f32 %v5210, 0.0
        %v5339 = vmax.f32 %v5211, 0.0
        %v5340 = vmax.f32 %v5212, 0.0
        %v5341 = vmax.f32 %v5213, 0.0
        %v5342 = vmax.f32 %v5214, 0.0
        %v5343 = vmax.f32 %v5215, 0.0
        %v5344 = vmax.f32 %v5216, 0.0
        %v5345 = vmax.f32 %v5217, 0.0
        %v5346 = vmax.f32 %v5218, 0.0
        %v5347 = vmax.f32 %v5219, 0.0
        %v5348 = vmax.f32 %v5220, 0.0
        %v5349 = vmax.f32 %v5221, 0.0
        %v5350 = vpack.c.bf16 %v5224, %v5222
        %v5351 = vpack.c.bf16 %v5225, %v5223
        %v5352 = vpack.c.bf16 %v5228, %v5226
        %v5353 = vpack.c.bf16 %v5229, %v5227
        %v5354 = vpack.c.bf16 %v5232, %v5230
        %v5355 = vpack.c.bf16 %v5233, %v5231
        %v5356 = vpack.c.bf16 %v5236, %v5234
        %v5357 = vpack.c.bf16 %v5237, %v5235
        %v5358 = vpack.c.bf16 %v5240, %v5238
        %v5359 = vpack.c.bf16 %v5241, %v5239
        %v5360 = vpack.c.bf16 %v5244, %v5242
        %v5361 = vpack.c.bf16 %v5245, %v5243
        %v5362 = vpack.c.bf16 %v5248, %v5246
        %v5363 = vpack.c.bf16 %v5249, %v5247
        %v5364 = vpack.c.bf16 %v5252, %v5250
        %v5365 = vpack.c.bf16 %v5253, %v5251
        %v5366 = vpack.c.bf16 %v5256, %v5254
        %v5367 = vpack.c.bf16 %v5257, %v5255
        %v5368 = vpack.c.bf16 %v5260, %v5258
        %v5369 = vpack.c.bf16 %v5261, %v5259
        %v5370 = vpack.c.bf16 %v5264, %v5262
        %v5371 = vpack.c.bf16 %v5265, %v5263
        %v5372 = vpack.c.bf16 %v5268, %v5266
        %v5373 = vpack.c.bf16 %v5269, %v5267
        %v5374 = vpack.c.bf16 %v5272, %v5270
        %v5375 = vpack.c.bf16 %v5273, %v5271
        %v5376 = vpack.c.bf16 %v5276, %v5274
        %v5377 = vpack.c.bf16 %v5277, %v5275
        %v5378 = vpack.c.bf16 %v5280, %v5278
        %v5379 = vpack.c.bf16 %v5281, %v5279
        %v5380 = vpack.c.bf16 %v5284, %v5282
        %v5381 = vpack.c.bf16 %v5285, %v5283
        %v5382 = vpack.c.bf16 %v5288, %v5286
        %v5383 = vpack.c.bf16 %v5289, %v5287
        %v5384 = vpack.c.bf16 %v5292, %v5290
        %v5385 = vpack.c.bf16 %v5293, %v5291
        %v5386 = vpack.c.bf16 %v5296, %v5294
        %v5387 = vpack.c.bf16 %v5297, %v5295
        %v5388 = vpack.c.bf16 %v5300, %v5298
        %v5389 = vpack.c.bf16 %v5301, %v5299
        %v5390 = vpack.c.bf16 %v5304, %v5302
        %v5391 = vpack.c.bf16 %v5305, %v5303
        %v5392 = vpack.c.bf16 %v5308, %v5306
        %v5393 = vpack.c.bf16 %v5309, %v5307
        %v5394 = vpack.c.bf16 %v5312, %v5310
        %v5395 = vpack.c.bf16 %v5313, %v5311
        %v5396 = vpack.c.bf16 %v5316, %v5314
        %v5397 = vpack.c.bf16 %v5317, %v5315
        %v5398 = vpack.c.bf16 %v5320, %v5318
        %v5399 = vpack.c.bf16 %v5321, %v5319
        %v5400 = vpack.c.bf16 %v5324, %v5322
        %v5401 = vpack.c.bf16 %v5325, %v5323
        %v5402 = vpack.c.bf16 %v5328, %v5326
        %v5403 = vpack.c.bf16 %v5329, %v5327
        %v5404 = vpack.c.bf16 %v5332, %v5330
        %v5405 = vpack.c.bf16 %v5333, %v5331
        %v5406 = vpack.c.bf16 %v5336, %v5334
        %v5407 = vpack.c.bf16 %v5337, %v5335
        %v5408 = vpack.c.bf16 %v5340, %v5338
        %v5409 = vpack.c.bf16 %v5341, %v5339
        %v5410 = vpack.c.bf16 %v5344, %v5342
        %v5411 = vpack.c.bf16 %v5345, %v5343
        %v5412 = vpack.c.bf16 %v5348, %v5346
        %v5413 = vpack.c.bf16 %v5349, %v5347
        %s5414 = scalar_lea.vmem [#allocation6], 1280
        %v5415 = vld [vmem:[%s5414] sm:$0xff]
        %v5416 = vld [vmem:[%s5414 + $0x8] sm:$0xff]
        %v5417 = vld [vmem:[%s5414 + $0x10] sm:$0xff]
        %v5418 = vld [vmem:[%s5414 + $0x18] sm:$0xff]
        %v5419 = vld [vmem:[%s5414 + $0x20] sm:$0xff]
        %v5420 = vld [vmem:[%s5414 + $0x28] sm:$0xff]
        %v5421 = vld [vmem:[%s5414 + $0x30] sm:$0xff]
        %v5422 = vld [vmem:[%s5414 + $0x38] sm:$0xff]
        %v5423 = vld [vmem:[%s5414 + $0x40] sm:$0xff]
        %v5424 = vld [vmem:[%s5414 + $0x48] sm:$0xff]
        %v5425 = vld [vmem:[%s5414 + $0x50] sm:$0xff]
        %v5426 = vld [vmem:[%s5414 + $0x58] sm:$0xff]
        %v5427 = vld [vmem:[%s5414 + $0x60] sm:$0xff]
        %v5428 = vld [vmem:[%s5414 + $0x68] sm:$0xff]
        %v5429 = vld [vmem:[%s5414 + $0x70] sm:$0xff]
        %v5430 = vld [vmem:[%s5414 + $0x78] sm:$0xff]
        %v5431 = vld [vmem:[%s5414 + $0x80] sm:$0xff]
        %v5432 = vld [vmem:[%s5414 + $0x88] sm:$0xff]
        %v5433 = vld [vmem:[%s5414 + $0x90] sm:$0xff]
        %v5434 = vld [vmem:[%s5414 + $0x98] sm:$0xff]
        %v5435 = vld [vmem:[%s5414 + $0xa0] sm:$0xff]
        %v5436 = vld [vmem:[%s5414 + $0xa8] sm:$0xff]
        %v5437 = vld [vmem:[%s5414 + $0xb0] sm:$0xff]
        %v5438 = vld [vmem:[%s5414 + $0xb8] sm:$0xff]
        %v5439 = vld [vmem:[%s5414 + $0xc0] sm:$0xff]
        %v5440 = vld [vmem:[%s5414 + $0xc8] sm:$0xff]
        %v5441 = vld [vmem:[%s5414 + $0xd0] sm:$0xff]
        %v5442 = vld [vmem:[%s5414 + $0xd8] sm:$0xff]
        %v5443 = vld [vmem:[%s5414 + $0xe0] sm:$0xff]
        %v5444 = vld [vmem:[%s5414 + $0xe8] sm:$0xff]
        %v5445 = vld [vmem:[%s5414 + $0xf0] sm:$0xff]
        %v5446 = vld [vmem:[%s5414 + $0xf8] sm:$0xff]
        %s5447 = scalar_lea.vmem [#allocation7], 12
        %v5448 = vld [vmem:[%s5447] sm:$0x3]
        %v5450 = vlaneseq
        %v5451 = vshrl.u32 %v5450, 7
        %v5452 = vsub.s32 0, %v5451
        %v5453 = vrot.slane %v5448, %v5452
        %v5454 = vlaneseq
        %v5455 = vshrl.u32 %v5454, 7
        %v5456 = vsub.s32 1, %v5455
        %v5457 = vrot.slane %v5448, %v5456
        %v5492 = vunpack.c.l.b16 %v5415
        %v5493 = vunpack.c.h.b16 %v5415
        %v5494 = vunpack.c.l.b16 %v5416
        %v5495 = vunpack.c.h.b16 %v5416
        %v5496 = vunpack.c.l.b16 %v5417
        %v5497 = vunpack.c.h.b16 %v5417
        %v5498 = vunpack.c.l.b16 %v5418
        %v5499 = vunpack.c.h.b16 %v5418
        %v5500 = vunpack.c.l.b16 %v5419
        %v5501 = vunpack.c.h.b16 %v5419
        %v5502 = vunpack.c.l.b16 %v5420
        %v5503 = vunpack.c.h.b16 %v5420
        %v5504 = vunpack.c.l.b16 %v5421
        %v5505 = vunpack.c.h.b16 %v5421
        %v5506 = vunpack.c.l.b16 %v5422
        %v5507 = vunpack.c.h.b16 %v5422
        %v5508 = vunpack.c.l.b16 %v5423
        %v5509 = vunpack.c.h.b16 %v5423
        %v5510 = vunpack.c.l.b16 %v5424
        %v5511 = vunpack.c.h.b16 %v5424
        %v5512 = vunpack.c.l.b16 %v5425
        %v5513 = vunpack.c.h.b16 %v5425
        %v5514 = vunpack.c.l.b16 %v5426
        %v5515 = vunpack.c.h.b16 %v5426
        %v5516 = vunpack.c.l.b16 %v5427
        %v5517 = vunpack.c.h.b16 %v5427
        %v5518 = vunpack.c.l.b16 %v5428
        %v5519 = vunpack.c.h.b16 %v5428
        %v5520 = vunpack.c.l.b16 %v5429
        %v5521 = vunpack.c.h.b16 %v5429
        %v5522 = vunpack.c.l.b16 %v5430
        %v5523 = vunpack.c.h.b16 %v5430
        %v5524 = vunpack.c.l.b16 %v5431
        %v5525 = vunpack.c.h.b16 %v5431
        %v5526 = vunpack.c.l.b16 %v5432
        %v5527 = vunpack.c.h.b16 %v5432
        %v5528 = vunpack.c.l.b16 %v5433
        %v5529 = vunpack.c.h.b16 %v5433
        %v5530 = vunpack.c.l.b16 %v5434
        %v5531 = vunpack.c.h.b16 %v5434
        %v5532 = vunpack.c.l.b16 %v5435
        %v5533 = vunpack.c.h.b16 %v5435
        %v5534 = vunpack.c.l.b16 %v5436
        %v5535 = vunpack.c.h.b16 %v5436
        %v5536 = vunpack.c.l.b16 %v5437
        %v5537 = vunpack.c.h.b16 %v5437
        %v5538 = vunpack.c.l.b16 %v5438
        %v5539 = vunpack.c.h.b16 %v5438
        %v5540 = vunpack.c.l.b16 %v5439
        %v5541 = vunpack.c.h.b16 %v5439
        %v5542 = vunpack.c.l.b16 %v5440
        %v5543 = vunpack.c.h.b16 %v5440
        %v5544 = vunpack.c.l.b16 %v5441
        %v5545 = vunpack.c.h.b16 %v5441
        %v5546 = vunpack.c.l.b16 %v5442
        %v5547 = vunpack.c.h.b16 %v5442
        %v5548 = vunpack.c.l.b16 %v5443
        %v5549 = vunpack.c.h.b16 %v5443
        %v5550 = vunpack.c.l.b16 %v5444
        %v5551 = vunpack.c.h.b16 %v5444
        %v5552 = vunpack.c.l.b16 %v5445
        %v5553 = vunpack.c.h.b16 %v5445
        %v5554 = vunpack.c.l.b16 %v5446
        %v5555 = vunpack.c.h.b16 %v5446
        %v5556 = vpack.c.b16 %v5494, %v5492
        %v5557 = vpack.c.b16 %v5495, %v5493
        %v5558 = vpack.c.b16 %v5498, %v5496
        %v5559 = vpack.c.b16 %v5499, %v5497
        %v5560 = vpack.c.b16 %v5502, %v5500
        %v5561 = vpack.c.b16 %v5503, %v5501
        %v5562 = vpack.c.b16 %v5506, %v5504
        %v5563 = vpack.c.b16 %v5507, %v5505
        %v5564 = vpack.c.b16 %v5510, %v5508
        %v5565 = vpack.c.b16 %v5511, %v5509
        %v5566 = vpack.c.b16 %v5514, %v5512
        %v5567 = vpack.c.b16 %v5515, %v5513
        %v5568 = vpack.c.b16 %v5518, %v5516
        %v5569 = vpack.c.b16 %v5519, %v5517
        %v5570 = vpack.c.b16 %v5522, %v5520
        %v5571 = vpack.c.b16 %v5523, %v5521
        %v5572 = vpack.c.b16 %v5526, %v5524
        %v5573 = vpack.c.b16 %v5527, %v5525
        %v5574 = vpack.c.b16 %v5530, %v5528
        %v5575 = vpack.c.b16 %v5531, %v5529
        %v5576 = vpack.c.b16 %v5534, %v5532
        %v5577 = vpack.c.b16 %v5535, %v5533
        %v5578 = vpack.c.b16 %v5538, %v5536
        %v5579 = vpack.c.b16 %v5539, %v5537
        %v5580 = vpack.c.b16 %v5542, %v5540
        %v5581 = vpack.c.b16 %v5543, %v5541
        %v5582 = vpack.c.b16 %v5546, %v5544
        %v5583 = vpack.c.b16 %v5547, %v5545
        %v5584 = vpack.c.b16 %v5550, %v5548
        %v5585 = vpack.c.b16 %v5551, %v5549
        %v5586 = vpack.c.b16 %v5554, %v5552
        %v5587 = vpack.c.b16 %v5555, %v5553
        %5620 = vmatprep.subr.bf16.mxu0 %v5571
        %5621 = vmatpush1.bf16.msra.mxu0 %v5570
        %5622 = vmatprep.subr.bf16.mxu0 %v5569
        %5623 = vmatpush1.bf16.msra.mxu0 %v5568
        %5624 = vmatprep.subr.bf16.mxu0 %v5567
        %5625 = vmatpush1.bf16.msra.mxu0 %v5566
        %5626 = vmatprep.subr.bf16.mxu0 %v5565
        %5627 = vmatpush1.bf16.msra.mxu0 %v5564
        %5628 = vmatprep.subr.bf16.mxu0 %v5563
        %5629 = vmatpush1.bf16.msra.mxu0 %v5562
        %5630 = vmatprep.subr.bf16.mxu0 %v5561
        %5631 = vmatpush1.bf16.msra.mxu0 %v5560
        %5632 = vmatprep.subr.bf16.mxu0 %v5559
        %5633 = vmatpush1.bf16.msra.mxu0 %v5558
        %5634 = vmatprep.subr.bf16.mxu0 %v5557
        %5635 = vmatpush1.bf16.msra.mxu0 %v5556
        %5636 = vmatprep.subr.bf16.mxu0 %v5587
        %5637 = vmatpush2.bf16.msra.mxu0 %v5586
        %5638 = vmatprep.subr.bf16.mxu0 %v5585
        %5639 = vmatpush2.bf16.msra.mxu0 %v5584
        %5640 = vmatprep.subr.bf16.mxu0 %v5583
        %5641 = vmatpush2.bf16.msra.mxu0 %v5582
        %5642 = vmatprep.subr.bf16.mxu0 %v5581
        %5643 = vmatpush2.bf16.msra.mxu0 %v5580
        %5644 = vmatprep.subr.bf16.mxu0 %v5579
        %5645 = vmatpush2.bf16.msra.mxu0 %v5578
        %5646 = vmatprep.subr.bf16.mxu0 %v5577
        %5647 = vmatpush2.bf16.msra.mxu0 %v5576
        %5648 = vmatprep.subr.bf16.mxu0 %v5575
        %5649 = vmatpush2.bf16.msra.mxu0 %v5574
        %5650 = vmatprep.subr.bf16.mxu0 %v5573
        %5651 = vmatpush2.bf16.msra.mxu0 %v5572
        %5652 = vmatprep.mubr.bf16.mxu0 %v5351
        %5653 = vmatmul.mubr.bf16.gmra.mxu0 %v5350
        %v5654 = vpop.f32.mrf.mxu0
        %v5655 = vadd.f32 %v5453, %v5654
        %v5656 = vpop.f32.mrf.mxu0
        %v5657 = vadd.f32 %v5457, %v5656
        %v5658 = vpop.f32.mrf.mxu0
        %v5659 = vadd.f32 %v5453, %v5658
        %v5660 = vpop.f32.mrf.mxu0
        %v5661 = vadd.f32 %v5457, %v5660
        %5662 = vmatprep.mubr.bf16.mxu0 %v5353
        %5663 = vmatmul.mubr.bf16.gmra.mxu0 %v5352
        %v5664 = vpop.f32.mrf.mxu0
        %v5665 = vadd.f32 %v5453, %v5664
        %v5666 = vpop.f32.mrf.mxu0
        %v5667 = vadd.f32 %v5457, %v5666
        %v5668 = vpop.f32.mrf.mxu0
        %v5669 = vadd.f32 %v5453, %v5668
        %v5670 = vpop.f32.mrf.mxu0
        %v5671 = vadd.f32 %v5457, %v5670
        %5672 = vmatprep.mubr.bf16.mxu0 %v5355
        %5673 = vmatmul.mubr.bf16.gmra.mxu0 %v5354
        %v5674 = vpop.f32.mrf.mxu0
        %v5675 = vadd.f32 %v5453, %v5674
        %v5676 = vpop.f32.mrf.mxu0
        %v5677 = vadd.f32 %v5457, %v5676
        %v5678 = vpop.f32.mrf.mxu0
        %v5679 = vadd.f32 %v5453, %v5678
        %v5680 = vpop.f32.mrf.mxu0
        %v5681 = vadd.f32 %v5457, %v5680
        %5682 = vmatprep.mubr.bf16.mxu0 %v5357
        %5683 = vmatmul.mubr.bf16.gmra.mxu0 %v5356
        %v5684 = vpop.f32.mrf.mxu0
        %v5685 = vadd.f32 %v5453, %v5684
        %v5686 = vpop.f32.mrf.mxu0
        %v5687 = vadd.f32 %v5457, %v5686
        %v5688 = vpop.f32.mrf.mxu0
        %v5689 = vadd.f32 %v5453, %v5688
        %v5690 = vpop.f32.mrf.mxu0
        %v5691 = vadd.f32 %v5457, %v5690
        %5692 = vmatprep.mubr.bf16.mxu0 %v5359
        %5693 = vmatmul.mubr.bf16.gmra.mxu0 %v5358
        %v5694 = vpop.f32.mrf.mxu0
        %v5695 = vadd.f32 %v5453, %v5694
        %v5696 = vpop.f32.mrf.mxu0
        %v5697 = vadd.f32 %v5457, %v5696
        %v5698 = vpop.f32.mrf.mxu0
        %v5699 = vadd.f32 %v5453, %v5698
        %v5700 = vpop.f32.mrf.mxu0
        %v5701 = vadd.f32 %v5457, %v5700
        %5702 = vmatprep.mubr.bf16.mxu0 %v5361
        %5703 = vmatmul.mubr.bf16.gmra.mxu0 %v5360
        %v5704 = vpop.f32.mrf.mxu0
        %v5705 = vadd.f32 %v5453, %v5704
        %v5706 = vpop.f32.mrf.mxu0
        %v5707 = vadd.f32 %v5457, %v5706
        %v5708 = vpop.f32.mrf.mxu0
        %v5709 = vadd.f32 %v5453, %v5708
        %v5710 = vpop.f32.mrf.mxu0
        %v5711 = vadd.f32 %v5457, %v5710
        %5712 = vmatprep.mubr.bf16.mxu0 %v5363
        %5713 = vmatmul.mubr.bf16.gmra.mxu0 %v5362
        %v5714 = vpop.f32.mrf.mxu0
        %v5715 = vadd.f32 %v5453, %v5714
        %v5716 = vpop.f32.mrf.mxu0
        %v5717 = vadd.f32 %v5457, %v5716
        %v5718 = vpop.f32.mrf.mxu0
        %v5719 = vadd.f32 %v5453, %v5718
        %v5720 = vpop.f32.mrf.mxu0
        %v5721 = vadd.f32 %v5457, %v5720
        %5722 = vmatprep.mubr.bf16.mxu0 %v5365
        %5723 = vmatmul.mubr.bf16.gmra.mxu0 %v5364
        %v5724 = vpop.f32.mrf.mxu0
        %v5725 = vadd.f32 %v5453, %v5724
        %v5726 = vpop.f32.mrf.mxu0
        %v5727 = vadd.f32 %v5457, %v5726
        %v5728 = vpop.f32.mrf.mxu0
        %v5729 = vadd.f32 %v5453, %v5728
        %v5730 = vpop.f32.mrf.mxu0
        %v5731 = vadd.f32 %v5457, %v5730
        %5732 = vmatprep.mubr.bf16.mxu0 %v5367
        %5733 = vmatmul.mubr.bf16.gmra.mxu0 %v5366
        %v5734 = vpop.f32.mrf.mxu0
        %v5735 = vadd.f32 %v5453, %v5734
        %v5736 = vpop.f32.mrf.mxu0
        %v5737 = vadd.f32 %v5457, %v5736
        %v5738 = vpop.f32.mrf.mxu0
        %v5739 = vadd.f32 %v5453, %v5738
        %v5740 = vpop.f32.mrf.mxu0
        %v5741 = vadd.f32 %v5457, %v5740
        %5742 = vmatprep.mubr.bf16.mxu0 %v5369
        %5743 = vmatmul.mubr.bf16.gmra.mxu0 %v5368
        %v5744 = vpop.f32.mrf.mxu0
        %v5745 = vadd.f32 %v5453, %v5744
        %v5746 = vpop.f32.mrf.mxu0
        %v5747 = vadd.f32 %v5457, %v5746
        %v5748 = vpop.f32.mrf.mxu0
        %v5749 = vadd.f32 %v5453, %v5748
        %v5750 = vpop.f32.mrf.mxu0
        %v5751 = vadd.f32 %v5457, %v5750
        %5752 = vmatprep.mubr.bf16.mxu0 %v5371
        %5753 = vmatmul.mubr.bf16.gmra.mxu0 %v5370
        %v5754 = vpop.f32.mrf.mxu0
        %v5755 = vadd.f32 %v5453, %v5754
        %v5756 = vpop.f32.mrf.mxu0
        %v5757 = vadd.f32 %v5457, %v5756
        %v5758 = vpop.f32.mrf.mxu0
        %v5759 = vadd.f32 %v5453, %v5758
        %v5760 = vpop.f32.mrf.mxu0
        %v5761 = vadd.f32 %v5457, %v5760
        %5762 = vmatprep.mubr.bf16.mxu0 %v5373
        %5763 = vmatmul.mubr.bf16.gmra.mxu0 %v5372
        %v5764 = vpop.f32.mrf.mxu0
        %v5765 = vadd.f32 %v5453, %v5764
        %v5766 = vpop.f32.mrf.mxu0
        %v5767 = vadd.f32 %v5457, %v5766
        %v5768 = vpop.f32.mrf.mxu0
        %v5769 = vadd.f32 %v5453, %v5768
        %v5770 = vpop.f32.mrf.mxu0
        %v5771 = vadd.f32 %v5457, %v5770
        %5772 = vmatprep.mubr.bf16.mxu0 %v5375
        %5773 = vmatmul.mubr.bf16.gmra.mxu0 %v5374
        %v5774 = vpop.f32.mrf.mxu0
        %v5775 = vadd.f32 %v5453, %v5774
        %v5776 = vpop.f32.mrf.mxu0
        %v5777 = vadd.f32 %v5457, %v5776
        %v5778 = vpop.f32.mrf.mxu0
        %v5779 = vadd.f32 %v5453, %v5778
        %v5780 = vpop.f32.mrf.mxu0
        %v5781 = vadd.f32 %v5457, %v5780
        %5782 = vmatprep.mubr.bf16.mxu0 %v5377
        %5783 = vmatmul.mubr.bf16.gmra.mxu0 %v5376
        %v5784 = vpop.f32.mrf.mxu0
        %v5785 = vadd.f32 %v5453, %v5784
        %v5786 = vpop.f32.mrf.mxu0
        %v5787 = vadd.f32 %v5457, %v5786
        %v5788 = vpop.f32.mrf.mxu0
        %v5789 = vadd.f32 %v5453, %v5788
        %v5790 = vpop.f32.mrf.mxu0
        %v5791 = vadd.f32 %v5457, %v5790
        %5792 = vmatprep.mubr.bf16.mxu0 %v5379
        %5793 = vmatmul.mubr.bf16.gmra.mxu0 %v5378
        %v5794 = vpop.f32.mrf.mxu0
        %v5795 = vadd.f32 %v5453, %v5794
        %v5796 = vpop.f32.mrf.mxu0
        %v5797 = vadd.f32 %v5457, %v5796
        %v5798 = vpop.f32.mrf.mxu0
        %v5799 = vadd.f32 %v5453, %v5798
        %v5800 = vpop.f32.mrf.mxu0
        %v5801 = vadd.f32 %v5457, %v5800
        %5802 = vmatprep.mubr.bf16.mxu0 %v5381
        %5803 = vmatmul.mubr.bf16.gmra.mxu0 %v5380
        %v5804 = vpop.f32.mrf.mxu0
        %v5805 = vadd.f32 %v5453, %v5804
        %v5806 = vpop.f32.mrf.mxu0
        %v5807 = vadd.f32 %v5457, %v5806
        %v5808 = vpop.f32.mrf.mxu0
        %v5809 = vadd.f32 %v5453, %v5808
        %v5810 = vpop.f32.mrf.mxu0
        %v5811 = vadd.f32 %v5457, %v5810
        %5812 = vmatprep.mubr.bf16.mxu0 %v5383
        %5813 = vmatmul.mubr.bf16.gmra.mxu0 %v5382
        %v5814 = vpop.f32.mrf.mxu0
        %v5815 = vadd.f32 %v5453, %v5814
        %v5816 = vpop.f32.mrf.mxu0
        %v5817 = vadd.f32 %v5457, %v5816
        %v5818 = vpop.f32.mrf.mxu0
        %v5819 = vadd.f32 %v5453, %v5818
        %v5820 = vpop.f32.mrf.mxu0
        %v5821 = vadd.f32 %v5457, %v5820
        %5822 = vmatprep.mubr.bf16.mxu0 %v5385
        %5823 = vmatmul.mubr.bf16.gmra.mxu0 %v5384
        %v5824 = vpop.f32.mrf.mxu0
        %v5825 = vadd.f32 %v5453, %v5824
        %v5826 = vpop.f32.mrf.mxu0
        %v5827 = vadd.f32 %v5457, %v5826
        %v5828 = vpop.f32.mrf.mxu0
        %v5829 = vadd.f32 %v5453, %v5828
        %v5830 = vpop.f32.mrf.mxu0
        %v5831 = vadd.f32 %v5457, %v5830
        %5832 = vmatprep.mubr.bf16.mxu0 %v5387
        %5833 = vmatmul.mubr.bf16.gmra.mxu0 %v5386
        %v5834 = vpop.f32.mrf.mxu0
        %v5835 = vadd.f32 %v5453, %v5834
        %v5836 = vpop.f32.mrf.mxu0
        %v5837 = vadd.f32 %v5457, %v5836
        %v5838 = vpop.f32.mrf.mxu0
        %v5839 = vadd.f32 %v5453, %v5838
        %v5840 = vpop.f32.mrf.mxu0
        %v5841 = vadd.f32 %v5457, %v5840
        %5842 = vmatprep.mubr.bf16.mxu0 %v5389
        %5843 = vmatmul.mubr.bf16.gmra.mxu0 %v5388
        %v5844 = vpop.f32.mrf.mxu0
        %v5845 = vadd.f32 %v5453, %v5844
        %v5846 = vpop.f32.mrf.mxu0
        %v5847 = vadd.f32 %v5457, %v5846
        %v5848 = vpop.f32.mrf.mxu0
        %v5849 = vadd.f32 %v5453, %v5848
        %v5850 = vpop.f32.mrf.mxu0
        %v5851 = vadd.f32 %v5457, %v5850
        %5852 = vmatprep.mubr.bf16.mxu0 %v5391
        %5853 = vmatmul.mubr.bf16.gmra.mxu0 %v5390
        %v5854 = vpop.f32.mrf.mxu0
        %v5855 = vadd.f32 %v5453, %v5854
        %v5856 = vpop.f32.mrf.mxu0
        %v5857 = vadd.f32 %v5457, %v5856
        %v5858 = vpop.f32.mrf.mxu0
        %v5859 = vadd.f32 %v5453, %v5858
        %v5860 = vpop.f32.mrf.mxu0
        %v5861 = vadd.f32 %v5457, %v5860
        %5862 = vmatprep.mubr.bf16.mxu0 %v5393
        %5863 = vmatmul.mubr.bf16.gmra.mxu0 %v5392
        %v5864 = vpop.f32.mrf.mxu0
        %v5865 = vadd.f32 %v5453, %v5864
        %v5866 = vpop.f32.mrf.mxu0
        %v5867 = vadd.f32 %v5457, %v5866
        %v5868 = vpop.f32.mrf.mxu0
        %v5869 = vadd.f32 %v5453, %v5868
        %v5870 = vpop.f32.mrf.mxu0
        %v5871 = vadd.f32 %v5457, %v5870
        %5872 = vmatprep.mubr.bf16.mxu0 %v5395
        %5873 = vmatmul.mubr.bf16.gmra.mxu0 %v5394
        %v5874 = vpop.f32.mrf.mxu0
        %v5875 = vadd.f32 %v5453, %v5874
        %v5876 = vpop.f32.mrf.mxu0
        %v5877 = vadd.f32 %v5457, %v5876
        %v5878 = vpop.f32.mrf.mxu0
        %v5879 = vadd.f32 %v5453, %v5878
        %v5880 = vpop.f32.mrf.mxu0
        %v5881 = vadd.f32 %v5457, %v5880
        %5882 = vmatprep.mubr.bf16.mxu0 %v5397
        %5883 = vmatmul.mubr.bf16.gmra.mxu0 %v5396
        %v5884 = vpop.f32.mrf.mxu0
        %v5885 = vadd.f32 %v5453, %v5884
        %v5886 = vpop.f32.mrf.mxu0
        %v5887 = vadd.f32 %v5457, %v5886
        %v5888 = vpop.f32.mrf.mxu0
        %v5889 = vadd.f32 %v5453, %v5888
        %v5890 = vpop.f32.mrf.mxu0
        %v5891 = vadd.f32 %v5457, %v5890
        %5892 = vmatprep.mubr.bf16.mxu0 %v5399
        %5893 = vmatmul.mubr.bf16.gmra.mxu0 %v5398
        %v5894 = vpop.f32.mrf.mxu0
        %v5895 = vadd.f32 %v5453, %v5894
        %v5896 = vpop.f32.mrf.mxu0
        %v5897 = vadd.f32 %v5457, %v5896
        %v5898 = vpop.f32.mrf.mxu0
        %v5899 = vadd.f32 %v5453, %v5898
        %v5900 = vpop.f32.mrf.mxu0
        %v5901 = vadd.f32 %v5457, %v5900
        %5902 = vmatprep.mubr.bf16.mxu0 %v5401
        %5903 = vmatmul.mubr.bf16.gmra.mxu0 %v5400
        %v5904 = vpop.f32.mrf.mxu0
        %v5905 = vadd.f32 %v5453, %v5904
        %v5906 = vpop.f32.mrf.mxu0
        %v5907 = vadd.f32 %v5457, %v5906
        %v5908 = vpop.f32.mrf.mxu0
        %v5909 = vadd.f32 %v5453, %v5908
        %v5910 = vpop.f32.mrf.mxu0
        %v5911 = vadd.f32 %v5457, %v5910
        %5912 = vmatprep.mubr.bf16.mxu0 %v5403
        %5913 = vmatmul.mubr.bf16.gmra.mxu0 %v5402
        %v5914 = vpop.f32.mrf.mxu0
        %v5915 = vadd.f32 %v5453, %v5914
        %v5916 = vpop.f32.mrf.mxu0
        %v5917 = vadd.f32 %v5457, %v5916
        %v5918 = vpop.f32.mrf.mxu0
        %v5919 = vadd.f32 %v5453, %v5918
        %v5920 = vpop.f32.mrf.mxu0
        %v5921 = vadd.f32 %v5457, %v5920
        %5922 = vmatprep.mubr.bf16.mxu0 %v5405
        %5923 = vmatmul.mubr.bf16.gmra.mxu0 %v5404
        %v5924 = vpop.f32.mrf.mxu0
        %v5925 = vadd.f32 %v5453, %v5924
        %v5926 = vpop.f32.mrf.mxu0
        %v5927 = vadd.f32 %v5457, %v5926
        %v5928 = vpop.f32.mrf.mxu0
        %v5929 = vadd.f32 %v5453, %v5928
        %v5930 = vpop.f32.mrf.mxu0
        %v5931 = vadd.f32 %v5457, %v5930
        %5932 = vmatprep.mubr.bf16.mxu0 %v5407
        %5933 = vmatmul.mubr.bf16.gmra.mxu0 %v5406
        %v5934 = vpop.f32.mrf.mxu0
        %v5935 = vadd.f32 %v5453, %v5934
        %v5936 = vpop.f32.mrf.mxu0
        %v5937 = vadd.f32 %v5457, %v5936
        %v5938 = vpop.f32.mrf.mxu0
        %v5939 = vadd.f32 %v5453, %v5938
        %v5940 = vpop.f32.mrf.mxu0
        %v5941 = vadd.f32 %v5457, %v5940
        %5942 = vmatprep.mubr.bf16.mxu0 %v5409
        %5943 = vmatmul.mubr.bf16.gmra.mxu0 %v5408
        %v5944 = vpop.f32.mrf.mxu0
        %v5945 = vadd.f32 %v5453, %v5944
        %v5946 = vpop.f32.mrf.mxu0
        %v5947 = vadd.f32 %v5457, %v5946
        %v5948 = vpop.f32.mrf.mxu0
        %v5949 = vadd.f32 %v5453, %v5948
        %v5950 = vpop.f32.mrf.mxu0
        %v5951 = vadd.f32 %v5457, %v5950
        %5952 = vmatprep.mubr.bf16.mxu0 %v5411
        %5953 = vmatmul.mubr.bf16.gmra.mxu0 %v5410
        %v5954 = vpop.f32.mrf.mxu0
        %v5955 = vadd.f32 %v5453, %v5954
        %v5956 = vpop.f32.mrf.mxu0
        %v5957 = vadd.f32 %v5457, %v5956
        %v5958 = vpop.f32.mrf.mxu0
        %v5959 = vadd.f32 %v5453, %v5958
        %v5960 = vpop.f32.mrf.mxu0
        %v5961 = vadd.f32 %v5457, %v5960
        %5962 = vmatprep.mubr.bf16.mxu0 %v5413
        %5963 = vmatmul.mubr.bf16.gmra.mxu0 %v5412
        %v5964 = vpop.f32.mrf.mxu0
        %v5965 = vadd.f32 %v5453, %v5964
        %v5966 = vpop.f32.mrf.mxu0
        %v5967 = vadd.f32 %v5457, %v5966
        %v5968 = vpop.f32.mrf.mxu0
        %v5969 = vadd.f32 %v5453, %v5968
        %v5970 = vpop.f32.mrf.mxu0
        %v5971 = vadd.f32 %v5457, %v5970
        %5972 = vdwg.mxu0
        %v5973 = vmax.f32 %v5655, 0.0
        %v5974 = vmax.f32 %v5657, 0.0
        %v5975 = vmax.f32 %v5659, 0.0
        %v5976 = vmax.f32 %v5661, 0.0
        %v5977 = vmax.f32 %v5665, 0.0
        %v5978 = vmax.f32 %v5667, 0.0
        %v5979 = vmax.f32 %v5669, 0.0
        %v5980 = vmax.f32 %v5671, 0.0
        %v5981 = vmax.f32 %v5675, 0.0
        %v5982 = vmax.f32 %v5677, 0.0
        %v5983 = vmax.f32 %v5679, 0.0
        %v5984 = vmax.f32 %v5681, 0.0
        %v5985 = vmax.f32 %v5685, 0.0
        %v5986 = vmax.f32 %v5687, 0.0
        %v5987 = vmax.f32 %v5689, 0.0
        %v5988 = vmax.f32 %v5691, 0.0
        %v5989 = vmax.f32 %v5695, 0.0
        %v5990 = vmax.f32 %v5697, 0.0
        %v5991 = vmax.f32 %v5699, 0.0
        %v5992 = vmax.f32 %v5701, 0.0
        %v5993 = vmax.f32 %v5705, 0.0
        %v5994 = vmax.f32 %v5707, 0.0
        %v5995 = vmax.f32 %v5709, 0.0
        %v5996 = vmax.f32 %v5711, 0.0
        %v5997 = vmax.f32 %v5715, 0.0
        %v5998 = vmax.f32 %v5717, 0.0
        %v5999 = vmax.f32 %v5719, 0.0
        %v6000 = vmax.f32 %v5721, 0.0
        %v6001 = vmax.f32 %v5725, 0.0
        %v6002 = vmax.f32 %v5727, 0.0
        %v6003 = vmax.f32 %v5729, 0.0
        %v6004 = vmax.f32 %v5731, 0.0
        %v6005 = vmax.f32 %v5735, 0.0
        %v6006 = vmax.f32 %v5737, 0.0
        %v6007 = vmax.f32 %v5739, 0.0
        %v6008 = vmax.f32 %v5741, 0.0
        %v6009 = vmax.f32 %v5745, 0.0
        %v6010 = vmax.f32 %v5747, 0.0
        %v6011 = vmax.f32 %v5749, 0.0
        %v6012 = vmax.f32 %v5751, 0.0
        %v6013 = vmax.f32 %v5755, 0.0
        %v6014 = vmax.f32 %v5757, 0.0
        %v6015 = vmax.f32 %v5759, 0.0
        %v6016 = vmax.f32 %v5761, 0.0
        %v6017 = vmax.f32 %v5765, 0.0
        %v6018 = vmax.f32 %v5767, 0.0
        %v6019 = vmax.f32 %v5769, 0.0
        %v6020 = vmax.f32 %v5771, 0.0
        %v6021 = vmax.f32 %v5775, 0.0
        %v6022 = vmax.f32 %v5777, 0.0
        %v6023 = vmax.f32 %v5779, 0.0
        %v6024 = vmax.f32 %v5781, 0.0
        %v6025 = vmax.f32 %v5785, 0.0
        %v6026 = vmax.f32 %v5787, 0.0
        %v6027 = vmax.f32 %v5789, 0.0
        %v6028 = vmax.f32 %v5791, 0.0
        %v6029 = vmax.f32 %v5795, 0.0
        %v6030 = vmax.f32 %v5797, 0.0
        %v6031 = vmax.f32 %v5799, 0.0
        %v6032 = vmax.f32 %v5801, 0.0
        %v6033 = vmax.f32 %v5805, 0.0
        %v6034 = vmax.f32 %v5807, 0.0
        %v6035 = vmax.f32 %v5809, 0.0
        %v6036 = vmax.f32 %v5811, 0.0
        %v6037 = vmax.f32 %v5815, 0.0
        %v6038 = vmax.f32 %v5817, 0.0
        %v6039 = vmax.f32 %v5819, 0.0
        %v6040 = vmax.f32 %v5821, 0.0
        %v6041 = vmax.f32 %v5825, 0.0
        %v6042 = vmax.f32 %v5827, 0.0
        %v6043 = vmax.f32 %v5829, 0.0
        %v6044 = vmax.f32 %v5831, 0.0
        %v6045 = vmax.f32 %v5835, 0.0
        %v6046 = vmax.f32 %v5837, 0.0
        %v6047 = vmax.f32 %v5839, 0.0
        %v6048 = vmax.f32 %v5841, 0.0
        %v6049 = vmax.f32 %v5845, 0.0
        %v6050 = vmax.f32 %v5847, 0.0
        %v6051 = vmax.f32 %v5849, 0.0
        %v6052 = vmax.f32 %v5851, 0.0
        %v6053 = vmax.f32 %v5855, 0.0
        %v6054 = vmax.f32 %v5857, 0.0
        %v6055 = vmax.f32 %v5859, 0.0
        %v6056 = vmax.f32 %v5861, 0.0
        %v6057 = vmax.f32 %v5865, 0.0
        %v6058 = vmax.f32 %v5867, 0.0
        %v6059 = vmax.f32 %v5869, 0.0
        %v6060 = vmax.f32 %v5871, 0.0
        %v6061 = vmax.f32 %v5875, 0.0
        %v6062 = vmax.f32 %v5877, 0.0
        %v6063 = vmax.f32 %v5879, 0.0
        %v6064 = vmax.f32 %v5881, 0.0
        %v6065 = vmax.f32 %v5885, 0.0
        %v6066 = vmax.f32 %v5887, 0.0
        %v6067 = vmax.f32 %v5889, 0.0
        %v6068 = vmax.f32 %v5891, 0.0
        %v6069 = vmax.f32 %v5895, 0.0
        %v6070 = vmax.f32 %v5897, 0.0
        %v6071 = vmax.f32 %v5899, 0.0
        %v6072 = vmax.f32 %v5901, 0.0
        %v6073 = vmax.f32 %v5905, 0.0
        %v6074 = vmax.f32 %v5907, 0.0
        %v6075 = vmax.f32 %v5909, 0.0
        %v6076 = vmax.f32 %v5911, 0.0
        %v6077 = vmax.f32 %v5915, 0.0
        %v6078 = vmax.f32 %v5917, 0.0
        %v6079 = vmax.f32 %v5919, 0.0
        %v6080 = vmax.f32 %v5921, 0.0
        %v6081 = vmax.f32 %v5925, 0.0
        %v6082 = vmax.f32 %v5927, 0.0
        %v6083 = vmax.f32 %v5929, 0.0
        %v6084 = vmax.f32 %v5931, 0.0
        %v6085 = vmax.f32 %v5935, 0.0
        %v6086 = vmax.f32 %v5937, 0.0
        %v6087 = vmax.f32 %v5939, 0.0
        %v6088 = vmax.f32 %v5941, 0.0
        %v6089 = vmax.f32 %v5945, 0.0
        %v6090 = vmax.f32 %v5947, 0.0
        %v6091 = vmax.f32 %v5949, 0.0
        %v6092 = vmax.f32 %v5951, 0.0
        %v6093 = vmax.f32 %v5955, 0.0
        %v6094 = vmax.f32 %v5957, 0.0
        %v6095 = vmax.f32 %v5959, 0.0
        %v6096 = vmax.f32 %v5961, 0.0
        %v6097 = vmax.f32 %v5965, 0.0
        %v6098 = vmax.f32 %v5967, 0.0
        %v6099 = vmax.f32 %v5969, 0.0
        %v6100 = vmax.f32 %v5971, 0.0
        %v6101 = vpack.c.bf16 %v5975, %v5973
        %v6102 = vpack.c.bf16 %v5976, %v5974
        %v6103 = vpack.c.bf16 %v5979, %v5977
        %v6104 = vpack.c.bf16 %v5980, %v5978
        %v6105 = vpack.c.bf16 %v5983, %v5981
        %v6106 = vpack.c.bf16 %v5984, %v5982
        %v6107 = vpack.c.bf16 %v5987, %v5985
        %v6108 = vpack.c.bf16 %v5988, %v5986
        %v6109 = vpack.c.bf16 %v5991, %v5989
        %v6110 = vpack.c.bf16 %v5992, %v5990
        %v6111 = vpack.c.bf16 %v5995, %v5993
        %v6112 = vpack.c.bf16 %v5996, %v5994
        %v6113 = vpack.c.bf16 %v5999, %v5997
        %v6114 = vpack.c.bf16 %v6000, %v5998
        %v6115 = vpack.c.bf16 %v6003, %v6001
        %v6116 = vpack.c.bf16 %v6004, %v6002
        %v6117 = vpack.c.bf16 %v6007, %v6005
        %v6118 = vpack.c.bf16 %v6008, %v6006
        %v6119 = vpack.c.bf16 %v6011, %v6009
        %v6120 = vpack.c.bf16 %v6012, %v6010
        %v6121 = vpack.c.bf16 %v6015, %v6013
        %v6122 = vpack.c.bf16 %v6016, %v6014
        %v6123 = vpack.c.bf16 %v6019, %v6017
        %v6124 = vpack.c.bf16 %v6020, %v6018
        %v6125 = vpack.c.bf16 %v6023, %v6021
        %v6126 = vpack.c.bf16 %v6024, %v6022
        %v6127 = vpack.c.bf16 %v6027, %v6025
        %v6128 = vpack.c.bf16 %v6028, %v6026
        %v6129 = vpack.c.bf16 %v6031, %v6029
        %v6130 = vpack.c.bf16 %v6032, %v6030
        %v6131 = vpack.c.bf16 %v6035, %v6033
        %v6132 = vpack.c.bf16 %v6036, %v6034
        %v6133 = vpack.c.bf16 %v6039, %v6037
        %v6134 = vpack.c.bf16 %v6040, %v6038
        %v6135 = vpack.c.bf16 %v6043, %v6041
        %v6136 = vpack.c.bf16 %v6044, %v6042
        %v6137 = vpack.c.bf16 %v6047, %v6045
        %v6138 = vpack.c.bf16 %v6048, %v6046
        %v6139 = vpack.c.bf16 %v6051, %v6049
        %v6140 = vpack.c.bf16 %v6052, %v6050
        %v6141 = vpack.c.bf16 %v6055, %v6053
        %v6142 = vpack.c.bf16 %v6056, %v6054
        %v6143 = vpack.c.bf16 %v6059, %v6057
        %v6144 = vpack.c.bf16 %v6060, %v6058
        %v6145 = vpack.c.bf16 %v6063, %v6061
        %v6146 = vpack.c.bf16 %v6064, %v6062
        %v6147 = vpack.c.bf16 %v6067, %v6065
        %v6148 = vpack.c.bf16 %v6068, %v6066
        %v6149 = vpack.c.bf16 %v6071, %v6069
        %v6150 = vpack.c.bf16 %v6072, %v6070
        %v6151 = vpack.c.bf16 %v6075, %v6073
        %v6152 = vpack.c.bf16 %v6076, %v6074
        %v6153 = vpack.c.bf16 %v6079, %v6077
        %v6154 = vpack.c.bf16 %v6080, %v6078
        %v6155 = vpack.c.bf16 %v6083, %v6081
        %v6156 = vpack.c.bf16 %v6084, %v6082
        %v6157 = vpack.c.bf16 %v6087, %v6085
        %v6158 = vpack.c.bf16 %v6088, %v6086
        %v6159 = vpack.c.bf16 %v6091, %v6089
        %v6160 = vpack.c.bf16 %v6092, %v6090
        %v6161 = vpack.c.bf16 %v6095, %v6093
        %v6162 = vpack.c.bf16 %v6096, %v6094
        %v6163 = vpack.c.bf16 %v6099, %v6097
        %v6164 = vpack.c.bf16 %v6100, %v6098
        %s6165 = scalar_lea.vmem [#allocation6], 1536
        %v6166 = vld [vmem:[%s6165] sm:$0xff]
        %v6167 = vld [vmem:[%s6165 + $0x8] sm:$0xff]
        %v6168 = vld [vmem:[%s6165 + $0x10] sm:$0xff]
        %v6169 = vld [vmem:[%s6165 + $0x18] sm:$0xff]
        %v6170 = vld [vmem:[%s6165 + $0x20] sm:$0xff]
        %v6171 = vld [vmem:[%s6165 + $0x28] sm:$0xff]
        %v6172 = vld [vmem:[%s6165 + $0x30] sm:$0xff]
        %v6173 = vld [vmem:[%s6165 + $0x38] sm:$0xff]
        %v6174 = vld [vmem:[%s6165 + $0x40] sm:$0xff]
        %v6175 = vld [vmem:[%s6165 + $0x48] sm:$0xff]
        %v6176 = vld [vmem:[%s6165 + $0x50] sm:$0xff]
        %v6177 = vld [vmem:[%s6165 + $0x58] sm:$0xff]
        %v6178 = vld [vmem:[%s6165 + $0x60] sm:$0xff]
        %v6179 = vld [vmem:[%s6165 + $0x68] sm:$0xff]
        %v6180 = vld [vmem:[%s6165 + $0x70] sm:$0xff]
        %v6181 = vld [vmem:[%s6165 + $0x78] sm:$0xff]
        %v6182 = vld [vmem:[%s6165 + $0x80] sm:$0xff]
        %v6183 = vld [vmem:[%s6165 + $0x88] sm:$0xff]
        %v6184 = vld [vmem:[%s6165 + $0x90] sm:$0xff]
        %v6185 = vld [vmem:[%s6165 + $0x98] sm:$0xff]
        %v6186 = vld [vmem:[%s6165 + $0xa0] sm:$0xff]
        %v6187 = vld [vmem:[%s6165 + $0xa8] sm:$0xff]
        %v6188 = vld [vmem:[%s6165 + $0xb0] sm:$0xff]
        %v6189 = vld [vmem:[%s6165 + $0xb8] sm:$0xff]
        %v6190 = vld [vmem:[%s6165 + $0xc0] sm:$0xff]
        %v6191 = vld [vmem:[%s6165 + $0xc8] sm:$0xff]
        %v6192 = vld [vmem:[%s6165 + $0xd0] sm:$0xff]
        %v6193 = vld [vmem:[%s6165 + $0xd8] sm:$0xff]
        %v6194 = vld [vmem:[%s6165 + $0xe0] sm:$0xff]
        %v6195 = vld [vmem:[%s6165 + $0xe8] sm:$0xff]
        %v6196 = vld [vmem:[%s6165 + $0xf0] sm:$0xff]
        %v6197 = vld [vmem:[%s6165 + $0xf8] sm:$0xff]
        %s6198 = scalar_lea.vmem [#allocation7], 14
        %v6199 = vld [vmem:[%s6198] sm:$0x3]
        %v6201 = vlaneseq
        %v6202 = vshrl.u32 %v6201, 7
        %v6203 = vsub.s32 0, %v6202
        %v6204 = vrot.slane %v6199, %v6203
        %v6205 = vlaneseq
        %v6206 = vshrl.u32 %v6205, 7
        %v6207 = vsub.s32 1, %v6206
        %v6208 = vrot.slane %v6199, %v6207
        %v6243 = vunpack.c.l.b16 %v6166
        %v6244 = vunpack.c.h.b16 %v6166
        %v6245 = vunpack.c.l.b16 %v6167
        %v6246 = vunpack.c.h.b16 %v6167
        %v6247 = vunpack.c.l.b16 %v6168
        %v6248 = vunpack.c.h.b16 %v6168
        %v6249 = vunpack.c.l.b16 %v6169
        %v6250 = vunpack.c.h.b16 %v6169
        %v6251 = vunpack.c.l.b16 %v6170
        %v6252 = vunpack.c.h.b16 %v6170
        %v6253 = vunpack.c.l.b16 %v6171
        %v6254 = vunpack.c.h.b16 %v6171
        %v6255 = vunpack.c.l.b16 %v6172
        %v6256 = vunpack.c.h.b16 %v6172
        %v6257 = vunpack.c.l.b16 %v6173
        %v6258 = vunpack.c.h.b16 %v6173
        %v6259 = vunpack.c.l.b16 %v6174
        %v6260 = vunpack.c.h.b16 %v6174
        %v6261 = vunpack.c.l.b16 %v6175
        %v6262 = vunpack.c.h.b16 %v6175
        %v6263 = vunpack.c.l.b16 %v6176
        %v6264 = vunpack.c.h.b16 %v6176
        %v6265 = vunpack.c.l.b16 %v6177
        %v6266 = vunpack.c.h.b16 %v6177
        %v6267 = vunpack.c.l.b16 %v6178
        %v6268 = vunpack.c.h.b16 %v6178
        %v6269 = vunpack.c.l.b16 %v6179
        %v6270 = vunpack.c.h.b16 %v6179
        %v6271 = vunpack.c.l.b16 %v6180
        %v6272 = vunpack.c.h.b16 %v6180
        %v6273 = vunpack.c.l.b16 %v6181
        %v6274 = vunpack.c.h.b16 %v6181
        %v6275 = vunpack.c.l.b16 %v6182
        %v6276 = vunpack.c.h.b16 %v6182
        %v6277 = vunpack.c.l.b16 %v6183
        %v6278 = vunpack.c.h.b16 %v6183
        %v6279 = vunpack.c.l.b16 %v6184
        %v6280 = vunpack.c.h.b16 %v6184
        %v6281 = vunpack.c.l.b16 %v6185
        %v6282 = vunpack.c.h.b16 %v6185
        %v6283 = vunpack.c.l.b16 %v6186
        %v6284 = vunpack.c.h.b16 %v6186
        %v6285 = vunpack.c.l.b16 %v6187
        %v6286 = vunpack.c.h.b16 %v6187
        %v6287 = vunpack.c.l.b16 %v6188
        %v6288 = vunpack.c.h.b16 %v6188
        %v6289 = vunpack.c.l.b16 %v6189
        %v6290 = vunpack.c.h.b16 %v6189
        %v6291 = vunpack.c.l.b16 %v6190
        %v6292 = vunpack.c.h.b16 %v6190
        %v6293 = vunpack.c.l.b16 %v6191
        %v6294 = vunpack.c.h.b16 %v6191
        %v6295 = vunpack.c.l.b16 %v6192
        %v6296 = vunpack.c.h.b16 %v6192
        %v6297 = vunpack.c.l.b16 %v6193
        %v6298 = vunpack.c.h.b16 %v6193
        %v6299 = vunpack.c.l.b16 %v6194
        %v6300 = vunpack.c.h.b16 %v6194
        %v6301 = vunpack.c.l.b16 %v6195
        %v6302 = vunpack.c.h.b16 %v6195
        %v6303 = vunpack.c.l.b16 %v6196
        %v6304 = vunpack.c.h.b16 %v6196
        %v6305 = vunpack.c.l.b16 %v6197
        %v6306 = vunpack.c.h.b16 %v6197
        %v6307 = vpack.c.b16 %v6245, %v6243
        %v6308 = vpack.c.b16 %v6246, %v6244
        %v6309 = vpack.c.b16 %v6249, %v6247
        %v6310 = vpack.c.b16 %v6250, %v6248
        %v6311 = vpack.c.b16 %v6253, %v6251
        %v6312 = vpack.c.b16 %v6254, %v6252
        %v6313 = vpack.c.b16 %v6257, %v6255
        %v6314 = vpack.c.b16 %v6258, %v6256
        %v6315 = vpack.c.b16 %v6261, %v6259
        %v6316 = vpack.c.b16 %v6262, %v6260
        %v6317 = vpack.c.b16 %v6265, %v6263
        %v6318 = vpack.c.b16 %v6266, %v6264
        %v6319 = vpack.c.b16 %v6269, %v6267
        %v6320 = vpack.c.b16 %v6270, %v6268
        %v6321 = vpack.c.b16 %v6273, %v6271
        %v6322 = vpack.c.b16 %v6274, %v6272
        %v6323 = vpack.c.b16 %v6277, %v6275
        %v6324 = vpack.c.b16 %v6278, %v6276
        %v6325 = vpack.c.b16 %v6281, %v6279
        %v6326 = vpack.c.b16 %v6282, %v6280
        %v6327 = vpack.c.b16 %v6285, %v6283
        %v6328 = vpack.c.b16 %v6286, %v6284
        %v6329 = vpack.c.b16 %v6289, %v6287
        %v6330 = vpack.c.b16 %v6290, %v6288
        %v6331 = vpack.c.b16 %v6293, %v6291
        %v6332 = vpack.c.b16 %v6294, %v6292
        %v6333 = vpack.c.b16 %v6297, %v6295
        %v6334 = vpack.c.b16 %v6298, %v6296
        %v6335 = vpack.c.b16 %v6301, %v6299
        %v6336 = vpack.c.b16 %v6302, %v6300
        %v6337 = vpack.c.b16 %v6305, %v6303
        %v6338 = vpack.c.b16 %v6306, %v6304
        %6371 = vmatprep.subr.bf16.mxu0 %v6322
        %6372 = vmatpush1.bf16.msra.mxu0 %v6321
        %6373 = vmatprep.subr.bf16.mxu0 %v6320
        %6374 = vmatpush1.bf16.msra.mxu0 %v6319
        %6375 = vmatprep.subr.bf16.mxu0 %v6318
        %6376 = vmatpush1.bf16.msra.mxu0 %v6317
        %6377 = vmatprep.subr.bf16.mxu0 %v6316
        %6378 = vmatpush1.bf16.msra.mxu0 %v6315
        %6379 = vmatprep.subr.bf16.mxu0 %v6314
        %6380 = vmatpush1.bf16.msra.mxu0 %v6313
        %6381 = vmatprep.subr.bf16.mxu0 %v6312
        %6382 = vmatpush1.bf16.msra.mxu0 %v6311
        %6383 = vmatprep.subr.bf16.mxu0 %v6310
        %6384 = vmatpush1.bf16.msra.mxu0 %v6309
        %6385 = vmatprep.subr.bf16.mxu0 %v6308
        %6386 = vmatpush1.bf16.msra.mxu0 %v6307
        %6387 = vmatprep.subr.bf16.mxu0 %v6338
        %6388 = vmatpush2.bf16.msra.mxu0 %v6337
        %6389 = vmatprep.subr.bf16.mxu0 %v6336
        %6390 = vmatpush2.bf16.msra.mxu0 %v6335
        %6391 = vmatprep.subr.bf16.mxu0 %v6334
        %6392 = vmatpush2.bf16.msra.mxu0 %v6333
        %6393 = vmatprep.subr.bf16.mxu0 %v6332
        %6394 = vmatpush2.bf16.msra.mxu0 %v6331
        %6395 = vmatprep.subr.bf16.mxu0 %v6330
        %6396 = vmatpush2.bf16.msra.mxu0 %v6329
        %6397 = vmatprep.subr.bf16.mxu0 %v6328
        %6398 = vmatpush2.bf16.msra.mxu0 %v6327
        %6399 = vmatprep.subr.bf16.mxu0 %v6326
        %6400 = vmatpush2.bf16.msra.mxu0 %v6325
        %6401 = vmatprep.subr.bf16.mxu0 %v6324
        %6402 = vmatpush2.bf16.msra.mxu0 %v6323
        %6403 = vmatprep.mubr.bf16.mxu0 %v6102
        %6404 = vmatmul.mubr.bf16.gmra.mxu0 %v6101
        %v6405 = vpop.f32.mrf.mxu0
        %v6406 = vadd.f32 %v6204, %v6405
        %v6407 = vpop.f32.mrf.mxu0
        %v6408 = vadd.f32 %v6208, %v6407
        %v6409 = vpop.f32.mrf.mxu0
        %v6410 = vadd.f32 %v6204, %v6409
        %v6411 = vpop.f32.mrf.mxu0
        %v6412 = vadd.f32 %v6208, %v6411
        %6413 = vmatprep.mubr.bf16.mxu0 %v6104
        %6414 = vmatmul.mubr.bf16.gmra.mxu0 %v6103
        %v6415 = vpop.f32.mrf.mxu0
        %v6416 = vadd.f32 %v6204, %v6415
        %v6417 = vpop.f32.mrf.mxu0
        %v6418 = vadd.f32 %v6208, %v6417
        %v6419 = vpop.f32.mrf.mxu0
        %v6420 = vadd.f32 %v6204, %v6419
        %v6421 = vpop.f32.mrf.mxu0
        %v6422 = vadd.f32 %v6208, %v6421
        %6423 = vmatprep.mubr.bf16.mxu0 %v6106
        %6424 = vmatmul.mubr.bf16.gmra.mxu0 %v6105
        %v6425 = vpop.f32.mrf.mxu0
        %v6426 = vadd.f32 %v6204, %v6425
        %v6427 = vpop.f32.mrf.mxu0
        %v6428 = vadd.f32 %v6208, %v6427
        %v6429 = vpop.f32.mrf.mxu0
        %v6430 = vadd.f32 %v6204, %v6429
        %v6431 = vpop.f32.mrf.mxu0
        %v6432 = vadd.f32 %v6208, %v6431
        %6433 = vmatprep.mubr.bf16.mxu0 %v6108
        %6434 = vmatmul.mubr.bf16.gmra.mxu0 %v6107
        %v6435 = vpop.f32.mrf.mxu0
        %v6436 = vadd.f32 %v6204, %v6435
        %v6437 = vpop.f32.mrf.mxu0
        %v6438 = vadd.f32 %v6208, %v6437
        %v6439 = vpop.f32.mrf.mxu0
        %v6440 = vadd.f32 %v6204, %v6439
        %v6441 = vpop.f32.mrf.mxu0
        %v6442 = vadd.f32 %v6208, %v6441
        %6443 = vmatprep.mubr.bf16.mxu0 %v6110
        %6444 = vmatmul.mubr.bf16.gmra.mxu0 %v6109
        %v6445 = vpop.f32.mrf.mxu0
        %v6446 = vadd.f32 %v6204, %v6445
        %v6447 = vpop.f32.mrf.mxu0
        %v6448 = vadd.f32 %v6208, %v6447
        %v6449 = vpop.f32.mrf.mxu0
        %v6450 = vadd.f32 %v6204, %v6449
        %v6451 = vpop.f32.mrf.mxu0
        %v6452 = vadd.f32 %v6208, %v6451
        %6453 = vmatprep.mubr.bf16.mxu0 %v6112
        %6454 = vmatmul.mubr.bf16.gmra.mxu0 %v6111
        %v6455 = vpop.f32.mrf.mxu0
        %v6456 = vadd.f32 %v6204, %v6455
        %v6457 = vpop.f32.mrf.mxu0
        %v6458 = vadd.f32 %v6208, %v6457
        %v6459 = vpop.f32.mrf.mxu0
        %v6460 = vadd.f32 %v6204, %v6459
        %v6461 = vpop.f32.mrf.mxu0
        %v6462 = vadd.f32 %v6208, %v6461
        %6463 = vmatprep.mubr.bf16.mxu0 %v6114
        %6464 = vmatmul.mubr.bf16.gmra.mxu0 %v6113
        %v6465 = vpop.f32.mrf.mxu0
        %v6466 = vadd.f32 %v6204, %v6465
        %v6467 = vpop.f32.mrf.mxu0
        %v6468 = vadd.f32 %v6208, %v6467
        %v6469 = vpop.f32.mrf.mxu0
        %v6470 = vadd.f32 %v6204, %v6469
        %v6471 = vpop.f32.mrf.mxu0
        %v6472 = vadd.f32 %v6208, %v6471
        %6473 = vmatprep.mubr.bf16.mxu0 %v6116
        %6474 = vmatmul.mubr.bf16.gmra.mxu0 %v6115
        %v6475 = vpop.f32.mrf.mxu0
        %v6476 = vadd.f32 %v6204, %v6475
        %v6477 = vpop.f32.mrf.mxu0
        %v6478 = vadd.f32 %v6208, %v6477
        %v6479 = vpop.f32.mrf.mxu0
        %v6480 = vadd.f32 %v6204, %v6479
        %v6481 = vpop.f32.mrf.mxu0
        %v6482 = vadd.f32 %v6208, %v6481
        %6483 = vmatprep.mubr.bf16.mxu0 %v6118
        %6484 = vmatmul.mubr.bf16.gmra.mxu0 %v6117
        %v6485 = vpop.f32.mrf.mxu0
        %v6486 = vadd.f32 %v6204, %v6485
        %v6487 = vpop.f32.mrf.mxu0
        %v6488 = vadd.f32 %v6208, %v6487
        %v6489 = vpop.f32.mrf.mxu0
        %v6490 = vadd.f32 %v6204, %v6489
        %v6491 = vpop.f32.mrf.mxu0
        %v6492 = vadd.f32 %v6208, %v6491
        %6493 = vmatprep.mubr.bf16.mxu0 %v6120
        %6494 = vmatmul.mubr.bf16.gmra.mxu0 %v6119
        %v6495 = vpop.f32.mrf.mxu0
        %v6496 = vadd.f32 %v6204, %v6495
        %v6497 = vpop.f32.mrf.mxu0
        %v6498 = vadd.f32 %v6208, %v6497
        %v6499 = vpop.f32.mrf.mxu0
        %v6500 = vadd.f32 %v6204, %v6499
        %v6501 = vpop.f32.mrf.mxu0
        %v6502 = vadd.f32 %v6208, %v6501
        %6503 = vmatprep.mubr.bf16.mxu0 %v6122
        %6504 = vmatmul.mubr.bf16.gmra.mxu0 %v6121
        %v6505 = vpop.f32.mrf.mxu0
        %v6506 = vadd.f32 %v6204, %v6505
        %v6507 = vpop.f32.mrf.mxu0
        %v6508 = vadd.f32 %v6208, %v6507
        %v6509 = vpop.f32.mrf.mxu0
        %v6510 = vadd.f32 %v6204, %v6509
        %v6511 = vpop.f32.mrf.mxu0
        %v6512 = vadd.f32 %v6208, %v6511
        %6513 = vmatprep.mubr.bf16.mxu0 %v6124
        %6514 = vmatmul.mubr.bf16.gmra.mxu0 %v6123
        %v6515 = vpop.f32.mrf.mxu0
        %v6516 = vadd.f32 %v6204, %v6515
        %v6517 = vpop.f32.mrf.mxu0
        %v6518 = vadd.f32 %v6208, %v6517
        %v6519 = vpop.f32.mrf.mxu0
        %v6520 = vadd.f32 %v6204, %v6519
        %v6521 = vpop.f32.mrf.mxu0
        %v6522 = vadd.f32 %v6208, %v6521
        %6523 = vmatprep.mubr.bf16.mxu0 %v6126
        %6524 = vmatmul.mubr.bf16.gmra.mxu0 %v6125
        %v6525 = vpop.f32.mrf.mxu0
        %v6526 = vadd.f32 %v6204, %v6525
        %v6527 = vpop.f32.mrf.mxu0
        %v6528 = vadd.f32 %v6208, %v6527
        %v6529 = vpop.f32.mrf.mxu0
        %v6530 = vadd.f32 %v6204, %v6529
        %v6531 = vpop.f32.mrf.mxu0
        %v6532 = vadd.f32 %v6208, %v6531
        %6533 = vmatprep.mubr.bf16.mxu0 %v6128
        %6534 = vmatmul.mubr.bf16.gmra.mxu0 %v6127
        %v6535 = vpop.f32.mrf.mxu0
        %v6536 = vadd.f32 %v6204, %v6535
        %v6537 = vpop.f32.mrf.mxu0
        %v6538 = vadd.f32 %v6208, %v6537
        %v6539 = vpop.f32.mrf.mxu0
        %v6540 = vadd.f32 %v6204, %v6539
        %v6541 = vpop.f32.mrf.mxu0
        %v6542 = vadd.f32 %v6208, %v6541
        %6543 = vmatprep.mubr.bf16.mxu0 %v6130
        %6544 = vmatmul.mubr.bf16.gmra.mxu0 %v6129
        %v6545 = vpop.f32.mrf.mxu0
        %v6546 = vadd.f32 %v6204, %v6545
        %v6547 = vpop.f32.mrf.mxu0
        %v6548 = vadd.f32 %v6208, %v6547
        %v6549 = vpop.f32.mrf.mxu0
        %v6550 = vadd.f32 %v6204, %v6549
        %v6551 = vpop.f32.mrf.mxu0
        %v6552 = vadd.f32 %v6208, %v6551
        %6553 = vmatprep.mubr.bf16.mxu0 %v6132
        %6554 = vmatmul.mubr.bf16.gmra.mxu0 %v6131
        %v6555 = vpop.f32.mrf.mxu0
        %v6556 = vadd.f32 %v6204, %v6555
        %v6557 = vpop.f32.mrf.mxu0
        %v6558 = vadd.f32 %v6208, %v6557
        %v6559 = vpop.f32.mrf.mxu0
        %v6560 = vadd.f32 %v6204, %v6559
        %v6561 = vpop.f32.mrf.mxu0
        %v6562 = vadd.f32 %v6208, %v6561
        %6563 = vmatprep.mubr.bf16.mxu0 %v6134
        %6564 = vmatmul.mubr.bf16.gmra.mxu0 %v6133
        %v6565 = vpop.f32.mrf.mxu0
        %v6566 = vadd.f32 %v6204, %v6565
        %v6567 = vpop.f32.mrf.mxu0
        %v6568 = vadd.f32 %v6208, %v6567
        %v6569 = vpop.f32.mrf.mxu0
        %v6570 = vadd.f32 %v6204, %v6569
        %v6571 = vpop.f32.mrf.mxu0
        %v6572 = vadd.f32 %v6208, %v6571
        %6573 = vmatprep.mubr.bf16.mxu0 %v6136
        %6574 = vmatmul.mubr.bf16.gmra.mxu0 %v6135
        %v6575 = vpop.f32.mrf.mxu0
        %v6576 = vadd.f32 %v6204, %v6575
        %v6577 = vpop.f32.mrf.mxu0
        %v6578 = vadd.f32 %v6208, %v6577
        %v6579 = vpop.f32.mrf.mxu0
        %v6580 = vadd.f32 %v6204, %v6579
        %v6581 = vpop.f32.mrf.mxu0
        %v6582 = vadd.f32 %v6208, %v6581
        %6583 = vmatprep.mubr.bf16.mxu0 %v6138
        %6584 = vmatmul.mubr.bf16.gmra.mxu0 %v6137
        %v6585 = vpop.f32.mrf.mxu0
        %v6586 = vadd.f32 %v6204, %v6585
        %v6587 = vpop.f32.mrf.mxu0
        %v6588 = vadd.f32 %v6208, %v6587
        %v6589 = vpop.f32.mrf.mxu0
        %v6590 = vadd.f32 %v6204, %v6589
        %v6591 = vpop.f32.mrf.mxu0
        %v6592 = vadd.f32 %v6208, %v6591
        %6593 = vmatprep.mubr.bf16.mxu0 %v6140
        %6594 = vmatmul.mubr.bf16.gmra.mxu0 %v6139
        %v6595 = vpop.f32.mrf.mxu0
        %v6596 = vadd.f32 %v6204, %v6595
        %v6597 = vpop.f32.mrf.mxu0
        %v6598 = vadd.f32 %v6208, %v6597
        %v6599 = vpop.f32.mrf.mxu0
        %v6600 = vadd.f32 %v6204, %v6599
        %v6601 = vpop.f32.mrf.mxu0
        %v6602 = vadd.f32 %v6208, %v6601
        %6603 = vmatprep.mubr.bf16.mxu0 %v6142
        %6604 = vmatmul.mubr.bf16.gmra.mxu0 %v6141
        %v6605 = vpop.f32.mrf.mxu0
        %v6606 = vadd.f32 %v6204, %v6605
        %v6607 = vpop.f32.mrf.mxu0
        %v6608 = vadd.f32 %v6208, %v6607
        %v6609 = vpop.f32.mrf.mxu0
        %v6610 = vadd.f32 %v6204, %v6609
        %v6611 = vpop.f32.mrf.mxu0
        %v6612 = vadd.f32 %v6208, %v6611
        %6613 = vmatprep.mubr.bf16.mxu0 %v6144
        %6614 = vmatmul.mubr.bf16.gmra.mxu0 %v6143
        %v6615 = vpop.f32.mrf.mxu0
        %v6616 = vadd.f32 %v6204, %v6615
        %v6617 = vpop.f32.mrf.mxu0
        %v6618 = vadd.f32 %v6208, %v6617
        %v6619 = vpop.f32.mrf.mxu0
        %v6620 = vadd.f32 %v6204, %v6619
        %v6621 = vpop.f32.mrf.mxu0
        %v6622 = vadd.f32 %v6208, %v6621
        %6623 = vmatprep.mubr.bf16.mxu0 %v6146
        %6624 = vmatmul.mubr.bf16.gmra.mxu0 %v6145
        %v6625 = vpop.f32.mrf.mxu0
        %v6626 = vadd.f32 %v6204, %v6625
        %v6627 = vpop.f32.mrf.mxu0
        %v6628 = vadd.f32 %v6208, %v6627
        %v6629 = vpop.f32.mrf.mxu0
        %v6630 = vadd.f32 %v6204, %v6629
        %v6631 = vpop.f32.mrf.mxu0
        %v6632 = vadd.f32 %v6208, %v6631
        %6633 = vmatprep.mubr.bf16.mxu0 %v6148
        %6634 = vmatmul.mubr.bf16.gmra.mxu0 %v6147
        %v6635 = vpop.f32.mrf.mxu0
        %v6636 = vadd.f32 %v6204, %v6635
        %v6637 = vpop.f32.mrf.mxu0
        %v6638 = vadd.f32 %v6208, %v6637
        %v6639 = vpop.f32.mrf.mxu0
        %v6640 = vadd.f32 %v6204, %v6639
        %v6641 = vpop.f32.mrf.mxu0
        %v6642 = vadd.f32 %v6208, %v6641
        %6643 = vmatprep.mubr.bf16.mxu0 %v6150
        %6644 = vmatmul.mubr.bf16.gmra.mxu0 %v6149
        %v6645 = vpop.f32.mrf.mxu0
        %v6646 = vadd.f32 %v6204, %v6645
        %v6647 = vpop.f32.mrf.mxu0
        %v6648 = vadd.f32 %v6208, %v6647
        %v6649 = vpop.f32.mrf.mxu0
        %v6650 = vadd.f32 %v6204, %v6649
        %v6651 = vpop.f32.mrf.mxu0
        %v6652 = vadd.f32 %v6208, %v6651
        %6653 = vmatprep.mubr.bf16.mxu0 %v6152
        %6654 = vmatmul.mubr.bf16.gmra.mxu0 %v6151
        %v6655 = vpop.f32.mrf.mxu0
        %v6656 = vadd.f32 %v6204, %v6655
        %v6657 = vpop.f32.mrf.mxu0
        %v6658 = vadd.f32 %v6208, %v6657
        %v6659 = vpop.f32.mrf.mxu0
        %v6660 = vadd.f32 %v6204, %v6659
        %v6661 = vpop.f32.mrf.mxu0
        %v6662 = vadd.f32 %v6208, %v6661
        %6663 = vmatprep.mubr.bf16.mxu0 %v6154
        %6664 = vmatmul.mubr.bf16.gmra.mxu0 %v6153
        %v6665 = vpop.f32.mrf.mxu0
        %v6666 = vadd.f32 %v6204, %v6665
        %v6667 = vpop.f32.mrf.mxu0
        %v6668 = vadd.f32 %v6208, %v6667
        %v6669 = vpop.f32.mrf.mxu0
        %v6670 = vadd.f32 %v6204, %v6669
        %v6671 = vpop.f32.mrf.mxu0
        %v6672 = vadd.f32 %v6208, %v6671
        %6673 = vmatprep.mubr.bf16.mxu0 %v6156
        %6674 = vmatmul.mubr.bf16.gmra.mxu0 %v6155
        %v6675 = vpop.f32.mrf.mxu0
        %v6676 = vadd.f32 %v6204, %v6675
        %v6677 = vpop.f32.mrf.mxu0
        %v6678 = vadd.f32 %v6208, %v6677
        %v6679 = vpop.f32.mrf.mxu0
        %v6680 = vadd.f32 %v6204, %v6679
        %v6681 = vpop.f32.mrf.mxu0
        %v6682 = vadd.f32 %v6208, %v6681
        %6683 = vmatprep.mubr.bf16.mxu0 %v6158
        %6684 = vmatmul.mubr.bf16.gmra.mxu0 %v6157
        %v6685 = vpop.f32.mrf.mxu0
        %v6686 = vadd.f32 %v6204, %v6685
        %v6687 = vpop.f32.mrf.mxu0
        %v6688 = vadd.f32 %v6208, %v6687
        %v6689 = vpop.f32.mrf.mxu0
        %v6690 = vadd.f32 %v6204, %v6689
        %v6691 = vpop.f32.mrf.mxu0
        %v6692 = vadd.f32 %v6208, %v6691
        %6693 = vmatprep.mubr.bf16.mxu0 %v6160
        %6694 = vmatmul.mubr.bf16.gmra.mxu0 %v6159
        %v6695 = vpop.f32.mrf.mxu0
        %v6696 = vadd.f32 %v6204, %v6695
        %v6697 = vpop.f32.mrf.mxu0
        %v6698 = vadd.f32 %v6208, %v6697
        %v6699 = vpop.f32.mrf.mxu0
        %v6700 = vadd.f32 %v6204, %v6699
        %v6701 = vpop.f32.mrf.mxu0
        %v6702 = vadd.f32 %v6208, %v6701
        %6703 = vmatprep.mubr.bf16.mxu0 %v6162
        %6704 = vmatmul.mubr.bf16.gmra.mxu0 %v6161
        %v6705 = vpop.f32.mrf.mxu0
        %v6706 = vadd.f32 %v6204, %v6705
        %v6707 = vpop.f32.mrf.mxu0
        %v6708 = vadd.f32 %v6208, %v6707
        %v6709 = vpop.f32.mrf.mxu0
        %v6710 = vadd.f32 %v6204, %v6709
        %v6711 = vpop.f32.mrf.mxu0
        %v6712 = vadd.f32 %v6208, %v6711
        %6713 = vmatprep.mubr.bf16.mxu0 %v6164
        %6714 = vmatmul.mubr.bf16.gmra.mxu0 %v6163
        %v6715 = vpop.f32.mrf.mxu0
        %v6716 = vadd.f32 %v6204, %v6715
        %v6717 = vpop.f32.mrf.mxu0
        %v6718 = vadd.f32 %v6208, %v6717
        %v6719 = vpop.f32.mrf.mxu0
        %v6720 = vadd.f32 %v6204, %v6719
        %v6721 = vpop.f32.mrf.mxu0
        %v6722 = vadd.f32 %v6208, %v6721
        %6723 = vdwg.mxu0
        %v6724 = vmax.f32 %v6406, 0.0
        %v6725 = vmax.f32 %v6408, 0.0
        %v6726 = vmax.f32 %v6410, 0.0
        %v6727 = vmax.f32 %v6412, 0.0
        %v6728 = vmax.f32 %v6416, 0.0
        %v6729 = vmax.f32 %v6418, 0.0
        %v6730 = vmax.f32 %v6420, 0.0
        %v6731 = vmax.f32 %v6422, 0.0
        %v6732 = vmax.f32 %v6426, 0.0
        %v6733 = vmax.f32 %v6428, 0.0
        %v6734 = vmax.f32 %v6430, 0.0
        %v6735 = vmax.f32 %v6432, 0.0
        %v6736 = vmax.f32 %v6436, 0.0
        %v6737 = vmax.f32 %v6438, 0.0
        %v6738 = vmax.f32 %v6440, 0.0
        %v6739 = vmax.f32 %v6442, 0.0
        %v6740 = vmax.f32 %v6446, 0.0
        %v6741 = vmax.f32 %v6448, 0.0
        %v6742 = vmax.f32 %v6450, 0.0
        %v6743 = vmax.f32 %v6452, 0.0
        %v6744 = vmax.f32 %v6456, 0.0
        %v6745 = vmax.f32 %v6458, 0.0
        %v6746 = vmax.f32 %v6460, 0.0
        %v6747 = vmax.f32 %v6462, 0.0
        %v6748 = vmax.f32 %v6466, 0.0
        %v6749 = vmax.f32 %v6468, 0.0
        %v6750 = vmax.f32 %v6470, 0.0
        %v6751 = vmax.f32 %v6472, 0.0
        %v6752 = vmax.f32 %v6476, 0.0
        %v6753 = vmax.f32 %v6478, 0.0
        %v6754 = vmax.f32 %v6480, 0.0
        %v6755 = vmax.f32 %v6482, 0.0
        %v6756 = vmax.f32 %v6486, 0.0
        %v6757 = vmax.f32 %v6488, 0.0
        %v6758 = vmax.f32 %v6490, 0.0
        %v6759 = vmax.f32 %v6492, 0.0
        %v6760 = vmax.f32 %v6496, 0.0
        %v6761 = vmax.f32 %v6498, 0.0
        %v6762 = vmax.f32 %v6500, 0.0
        %v6763 = vmax.f32 %v6502, 0.0
        %v6764 = vmax.f32 %v6506, 0.0
        %v6765 = vmax.f32 %v6508, 0.0
        %v6766 = vmax.f32 %v6510, 0.0
        %v6767 = vmax.f32 %v6512, 0.0
        %v6768 = vmax.f32 %v6516, 0.0
        %v6769 = vmax.f32 %v6518, 0.0
        %v6770 = vmax.f32 %v6520, 0.0
        %v6771 = vmax.f32 %v6522, 0.0
        %v6772 = vmax.f32 %v6526, 0.0
        %v6773 = vmax.f32 %v6528, 0.0
        %v6774 = vmax.f32 %v6530, 0.0
        %v6775 = vmax.f32 %v6532, 0.0
        %v6776 = vmax.f32 %v6536, 0.0
        %v6777 = vmax.f32 %v6538, 0.0
        %v6778 = vmax.f32 %v6540, 0.0
        %v6779 = vmax.f32 %v6542, 0.0
        %v6780 = vmax.f32 %v6546, 0.0
        %v6781 = vmax.f32 %v6548, 0.0
        %v6782 = vmax.f32 %v6550, 0.0
        %v6783 = vmax.f32 %v6552, 0.0
        %v6784 = vmax.f32 %v6556, 0.0
        %v6785 = vmax.f32 %v6558, 0.0
        %v6786 = vmax.f32 %v6560, 0.0
        %v6787 = vmax.f32 %v6562, 0.0
        %v6788 = vmax.f32 %v6566, 0.0
        %v6789 = vmax.f32 %v6568, 0.0
        %v6790 = vmax.f32 %v6570, 0.0
        %v6791 = vmax.f32 %v6572, 0.0
        %v6792 = vmax.f32 %v6576, 0.0
        %v6793 = vmax.f32 %v6578, 0.0
        %v6794 = vmax.f32 %v6580, 0.0
        %v6795 = vmax.f32 %v6582, 0.0
        %v6796 = vmax.f32 %v6586, 0.0
        %v6797 = vmax.f32 %v6588, 0.0
        %v6798 = vmax.f32 %v6590, 0.0
        %v6799 = vmax.f32 %v6592, 0.0
        %v6800 = vmax.f32 %v6596, 0.0
        %v6801 = vmax.f32 %v6598, 0.0
        %v6802 = vmax.f32 %v6600, 0.0
        %v6803 = vmax.f32 %v6602, 0.0
        %v6804 = vmax.f32 %v6606, 0.0
        %v6805 = vmax.f32 %v6608, 0.0
        %v6806 = vmax.f32 %v6610, 0.0
        %v6807 = vmax.f32 %v6612, 0.0
        %v6808 = vmax.f32 %v6616, 0.0
        %v6809 = vmax.f32 %v6618, 0.0
        %v6810 = vmax.f32 %v6620, 0.0
        %v6811 = vmax.f32 %v6622, 0.0
        %v6812 = vmax.f32 %v6626, 0.0
        %v6813 = vmax.f32 %v6628, 0.0
        %v6814 = vmax.f32 %v6630, 0.0
        %v6815 = vmax.f32 %v6632, 0.0
        %v6816 = vmax.f32 %v6636, 0.0
        %v6817 = vmax.f32 %v6638, 0.0
        %v6818 = vmax.f32 %v6640, 0.0
        %v6819 = vmax.f32 %v6642, 0.0
        %v6820 = vmax.f32 %v6646, 0.0
        %v6821 = vmax.f32 %v6648, 0.0
        %v6822 = vmax.f32 %v6650, 0.0
        %v6823 = vmax.f32 %v6652, 0.0
        %v6824 = vmax.f32 %v6656, 0.0
        %v6825 = vmax.f32 %v6658, 0.0
        %v6826 = vmax.f32 %v6660, 0.0
        %v6827 = vmax.f32 %v6662, 0.0
        %v6828 = vmax.f32 %v6666, 0.0
        %v6829 = vmax.f32 %v6668, 0.0
        %v6830 = vmax.f32 %v6670, 0.0
        %v6831 = vmax.f32 %v6672, 0.0
        %v6832 = vmax.f32 %v6676, 0.0
        %v6833 = vmax.f32 %v6678, 0.0
        %v6834 = vmax.f32 %v6680, 0.0
        %v6835 = vmax.f32 %v6682, 0.0
        %v6836 = vmax.f32 %v6686, 0.0
        %v6837 = vmax.f32 %v6688, 0.0
        %v6838 = vmax.f32 %v6690, 0.0
        %v6839 = vmax.f32 %v6692, 0.0
        %v6840 = vmax.f32 %v6696, 0.0
        %v6841 = vmax.f32 %v6698, 0.0
        %v6842 = vmax.f32 %v6700, 0.0
        %v6843 = vmax.f32 %v6702, 0.0
        %v6844 = vmax.f32 %v6706, 0.0
        %v6845 = vmax.f32 %v6708, 0.0
        %v6846 = vmax.f32 %v6710, 0.0
        %v6847 = vmax.f32 %v6712, 0.0
        %v6848 = vmax.f32 %v6716, 0.0
        %v6849 = vmax.f32 %v6718, 0.0
        %v6850 = vmax.f32 %v6720, 0.0
        %v6851 = vmax.f32 %v6722, 0.0
        %v6852 = vpack.c.bf16 %v6726, %v6724
        %v6853 = vpack.c.bf16 %v6727, %v6725
        %v6854 = vpack.c.bf16 %v6730, %v6728
        %v6855 = vpack.c.bf16 %v6731, %v6729
        %v6856 = vpack.c.bf16 %v6734, %v6732
        %v6857 = vpack.c.bf16 %v6735, %v6733
        %v6858 = vpack.c.bf16 %v6738, %v6736
        %v6859 = vpack.c.bf16 %v6739, %v6737
        %v6860 = vpack.c.bf16 %v6742, %v6740
        %v6861 = vpack.c.bf16 %v6743, %v6741
        %v6862 = vpack.c.bf16 %v6746, %v6744
        %v6863 = vpack.c.bf16 %v6747, %v6745
        %v6864 = vpack.c.bf16 %v6750, %v6748
        %v6865 = vpack.c.bf16 %v6751, %v6749
        %v6866 = vpack.c.bf16 %v6754, %v6752
        %v6867 = vpack.c.bf16 %v6755, %v6753
        %v6868 = vpack.c.bf16 %v6758, %v6756
        %v6869 = vpack.c.bf16 %v6759, %v6757
        %v6870 = vpack.c.bf16 %v6762, %v6760
        %v6871 = vpack.c.bf16 %v6763, %v6761
        %v6872 = vpack.c.bf16 %v6766, %v6764
        %v6873 = vpack.c.bf16 %v6767, %v6765
        %v6874 = vpack.c.bf16 %v6770, %v6768
        %v6875 = vpack.c.bf16 %v6771, %v6769
        %v6876 = vpack.c.bf16 %v6774, %v6772
        %v6877 = vpack.c.bf16 %v6775, %v6773
        %v6878 = vpack.c.bf16 %v6778, %v6776
        %v6879 = vpack.c.bf16 %v6779, %v6777
        %v6880 = vpack.c.bf16 %v6782, %v6780
        %v6881 = vpack.c.bf16 %v6783, %v6781
        %v6882 = vpack.c.bf16 %v6786, %v6784
        %v6883 = vpack.c.bf16 %v6787, %v6785
        %v6884 = vpack.c.bf16 %v6790, %v6788
        %v6885 = vpack.c.bf16 %v6791, %v6789
        %v6886 = vpack.c.bf16 %v6794, %v6792
        %v6887 = vpack.c.bf16 %v6795, %v6793
        %v6888 = vpack.c.bf16 %v6798, %v6796
        %v6889 = vpack.c.bf16 %v6799, %v6797
        %v6890 = vpack.c.bf16 %v6802, %v6800
        %v6891 = vpack.c.bf16 %v6803, %v6801
        %v6892 = vpack.c.bf16 %v6806, %v6804
        %v6893 = vpack.c.bf16 %v6807, %v6805
        %v6894 = vpack.c.bf16 %v6810, %v6808
        %v6895 = vpack.c.bf16 %v6811, %v6809
        %v6896 = vpack.c.bf16 %v6814, %v6812
        %v6897 = vpack.c.bf16 %v6815, %v6813
        %v6898 = vpack.c.bf16 %v6818, %v6816
        %v6899 = vpack.c.bf16 %v6819, %v6817
        %v6900 = vpack.c.bf16 %v6822, %v6820
        %v6901 = vpack.c.bf16 %v6823, %v6821
        %v6902 = vpack.c.bf16 %v6826, %v6824
        %v6903 = vpack.c.bf16 %v6827, %v6825
        %v6904 = vpack.c.bf16 %v6830, %v6828
        %v6905 = vpack.c.bf16 %v6831, %v6829
        %v6906 = vpack.c.bf16 %v6834, %v6832
        %v6907 = vpack.c.bf16 %v6835, %v6833
        %v6908 = vpack.c.bf16 %v6838, %v6836
        %v6909 = vpack.c.bf16 %v6839, %v6837
        %v6910 = vpack.c.bf16 %v6842, %v6840
        %v6911 = vpack.c.bf16 %v6843, %v6841
        %v6912 = vpack.c.bf16 %v6846, %v6844
        %v6913 = vpack.c.bf16 %v6847, %v6845
        %v6914 = vpack.c.bf16 %v6850, %v6848
        %v6915 = vpack.c.bf16 %v6851, %v6849
        %v6916 = vld [vmem:[#allocation9] sm:$0xf]
        %v6917 = vld [vmem:[#allocation9 + $0x4] sm:$0xf]
        %v6918 = vld [vmem:[#allocation9 + $0x8] sm:$0xf]
        %v6919 = vld [vmem:[#allocation9 + $0xc] sm:$0xf]
        %v6920 = vld [vmem:[#allocation9 + $0x10] sm:$0xf]
        %v6921 = vld [vmem:[#allocation9 + $0x14] sm:$0xf]
        %v6922 = vld [vmem:[#allocation9 + $0x18] sm:$0xf]
        %v6923 = vld [vmem:[#allocation9 + $0x1c] sm:$0xf]
        %v6924 = vld [vmem:[#allocation9 + $0x20] sm:$0xf]
        %v6925 = vld [vmem:[#allocation9 + $0x24] sm:$0xf]
        %v6926 = vld [vmem:[#allocation9 + $0x28] sm:$0xf]
        %v6927 = vld [vmem:[#allocation9 + $0x2c] sm:$0xf]
        %v6928 = vld [vmem:[#allocation9 + $0x30] sm:$0xf]
        %v6929 = vld [vmem:[#allocation9 + $0x34] sm:$0xf]
        %v6930 = vld [vmem:[#allocation9 + $0x38] sm:$0xf]
        %v6931 = vld [vmem:[#allocation9 + $0x3c] sm:$0xf]
        %v6932 = vld [vmem:[#allocation9 + $0x40] sm:$0xf]
        %v6933 = vld [vmem:[#allocation9 + $0x44] sm:$0xf]
        %v6934 = vld [vmem:[#allocation9 + $0x48] sm:$0xf]
        %v6935 = vld [vmem:[#allocation9 + $0x4c] sm:$0xf]
        %v6936 = vld [vmem:[#allocation9 + $0x50] sm:$0xf]
        %v6937 = vld [vmem:[#allocation9 + $0x54] sm:$0xf]
        %v6938 = vld [vmem:[#allocation9 + $0x58] sm:$0xf]
        %v6939 = vld [vmem:[#allocation9 + $0x5c] sm:$0xf]
        %v6940 = vld [vmem:[#allocation9 + $0x60] sm:$0xf]
        %v6941 = vld [vmem:[#allocation9 + $0x64] sm:$0xf]
        %v6942 = vld [vmem:[#allocation9 + $0x68] sm:$0xf]
        %v6943 = vld [vmem:[#allocation9 + $0x6c] sm:$0xf]
        %v6944 = vld [vmem:[#allocation9 + $0x70] sm:$0xf]
        %v6945 = vld [vmem:[#allocation9 + $0x74] sm:$0xf]
        %v6946 = vld [vmem:[#allocation9 + $0x78] sm:$0xf]
        %v6947 = vld [vmem:[#allocation9 + $0x7c] sm:$0xf]
        %v6948 = vld [vmem:[%s5] sm:$0x1]
        %v6950 = vlaneseq
        %v6951 = vshrl.u32 %v6950, 7
        %v6952 = vsub.s32 0, %v6951
        %v6953 = vrot.slane %v6948, %v6952
        %v6987 = vunpack.c.l.b16 %v6916
        %v6988 = vunpack.c.l.b16 %v6917
        %v6989 = vunpack.c.l.b16 %v6918
        %v6990 = vunpack.c.l.b16 %v6919
        %v6991 = vunpack.c.l.b16 %v6920
        %v6992 = vunpack.c.l.b16 %v6921
        %v6993 = vunpack.c.l.b16 %v6922
        %v6994 = vunpack.c.l.b16 %v6923
        %v6995 = vunpack.c.l.b16 %v6924
        %v6996 = vunpack.c.l.b16 %v6925
        %v6997 = vunpack.c.l.b16 %v6926
        %v6998 = vunpack.c.l.b16 %v6927
        %v6999 = vunpack.c.l.b16 %v6928
        %v7000 = vunpack.c.l.b16 %v6929
        %v7001 = vunpack.c.l.b16 %v6930
        %v7002 = vunpack.c.l.b16 %v6931
        %v7003 = vunpack.c.l.b16 %v6932
        %v7004 = vunpack.c.l.b16 %v6933
        %v7005 = vunpack.c.l.b16 %v6934
        %v7006 = vunpack.c.l.b16 %v6935
        %v7007 = vunpack.c.l.b16 %v6936
        %v7008 = vunpack.c.l.b16 %v6937
        %v7009 = vunpack.c.l.b16 %v6938
        %v7010 = vunpack.c.l.b16 %v6939
        %v7011 = vunpack.c.l.b16 %v6940
        %v7012 = vunpack.c.l.b16 %v6941
        %v7013 = vunpack.c.l.b16 %v6942
        %v7014 = vunpack.c.l.b16 %v6943
        %v7015 = vunpack.c.l.b16 %v6944
        %v7016 = vunpack.c.l.b16 %v6945
        %v7017 = vunpack.c.l.b16 %v6946
        %v7018 = vunpack.c.l.b16 %v6947
        %v7019 = vpack.c.b16 %v6988, %v6987
        %v7020 = vpack.c.b16 %v6990, %v6989
        %v7021 = vpack.c.b16 %v6992, %v6991
        %v7022 = vpack.c.b16 %v6994, %v6993
        %v7023 = vpack.c.b16 %v6996, %v6995
        %v7024 = vpack.c.b16 %v6998, %v6997
        %v7025 = vpack.c.b16 %v7000, %v6999
        %v7026 = vpack.c.b16 %v7002, %v7001
        %v7027 = vpack.c.b16 %v7004, %v7003
        %v7028 = vpack.c.b16 %v7006, %v7005
        %v7029 = vpack.c.b16 %v7008, %v7007
        %v7030 = vpack.c.b16 %v7010, %v7009
        %v7031 = vpack.c.b16 %v7012, %v7011
        %v7032 = vpack.c.b16 %v7014, %v7013
        %v7033 = vpack.c.b16 %v7016, %v7015
        %v7034 = vpack.c.b16 %v7018, %v7017
        %7051 = vmatprep.subr.bf16.mxu0 0
        %7052 = vmatpush1.bf16.msra.mxu0 %v7026
        %7053 = vmatprep.subr.bf16.mxu0 0
        %7054 = vmatpush1.bf16.msra.mxu0 %v7025
        %7055 = vmatprep.subr.bf16.mxu0 0
        %7056 = vmatpush1.bf16.msra.mxu0 %v7024
        %7057 = vmatprep.subr.bf16.mxu0 0
        %7058 = vmatpush1.bf16.msra.mxu0 %v7023
        %7059 = vmatprep.subr.bf16.mxu0 0
        %7060 = vmatpush1.bf16.msra.mxu0 %v7022
        %7061 = vmatprep.subr.bf16.mxu0 0
        %7062 = vmatpush1.bf16.msra.mxu0 %v7021
        %7063 = vmatprep.subr.bf16.mxu0 0
        %7064 = vmatpush1.bf16.msra.mxu0 %v7020
        %7065 = vmatprep.subr.bf16.mxu0 0
        %7066 = vmatpush1.bf16.msra.mxu0 %v7019
        %7067 = vmatprep.subr.bf16.mxu0 0
        %7068 = vmatpush2.bf16.msra.mxu0 %v7034
        %7069 = vmatprep.subr.bf16.mxu0 0
        %7070 = vmatpush2.bf16.msra.mxu0 %v7033
        %7071 = vmatprep.subr.bf16.mxu0 0
        %7072 = vmatpush2.bf16.msra.mxu0 %v7032
        %7073 = vmatprep.subr.bf16.mxu0 0
        %7074 = vmatpush2.bf16.msra.mxu0 %v7031
        %7075 = vmatprep.subr.bf16.mxu0 0
        %7076 = vmatpush2.bf16.msra.mxu0 %v7030
        %7077 = vmatprep.subr.bf16.mxu0 0
        %7078 = vmatpush2.bf16.msra.mxu0 %v7029
        %7079 = vmatprep.subr.bf16.mxu0 0
        %7080 = vmatpush2.bf16.msra.mxu0 %v7028
        %7081 = vmatprep.subr.bf16.mxu0 0
        %7082 = vmatpush2.bf16.msra.mxu0 %v7027
        %7083 = vmatprep.mubr.bf16.mxu0 %v6853
        %7084 = vmatmul.mubr.bf16.gmra.mxu0 %v6852
        %v7085 = vpop.f32.mrf.mxu0
        %v7086 = vadd.f32 %v6953, %v7085
        %v7087 = vpop.f32.mrf.mxu0
        %v7088 = vpop.f32.mrf.mxu0
        %v7089 = vadd.f32 %v6953, %v7088
        %v7090 = vpop.f32.mrf.mxu0
        %7091 = vmatprep.mubr.bf16.mxu0 %v6855
        %7092 = vmatmul.mubr.bf16.gmra.mxu0 %v6854
        %v7093 = vpop.f32.mrf.mxu0
        %v7094 = vadd.f32 %v6953, %v7093
        %v7095 = vpop.f32.mrf.mxu0
        %v7096 = vpop.f32.mrf.mxu0
        %v7097 = vadd.f32 %v6953, %v7096
        %v7098 = vpop.f32.mrf.mxu0
        %7099 = vmatprep.mubr.bf16.mxu0 %v6857
        %7100 = vmatmul.mubr.bf16.gmra.mxu0 %v6856
        %v7101 = vpop.f32.mrf.mxu0
        %v7102 = vadd.f32 %v6953, %v7101
        %v7103 = vpop.f32.mrf.mxu0
        %v7104 = vpop.f32.mrf.mxu0
        %v7105 = vadd.f32 %v6953, %v7104
        %v7106 = vpop.f32.mrf.mxu0
        %7107 = vmatprep.mubr.bf16.mxu0 %v6859
        %7108 = vmatmul.mubr.bf16.gmra.mxu0 %v6858
        %v7109 = vpop.f32.mrf.mxu0
        %v7110 = vadd.f32 %v6953, %v7109
        %v7111 = vpop.f32.mrf.mxu0
        %v7112 = vpop.f32.mrf.mxu0
        %v7113 = vadd.f32 %v6953, %v7112
        %v7114 = vpop.f32.mrf.mxu0
        %7115 = vmatprep.mubr.bf16.mxu0 %v6861
        %7116 = vmatmul.mubr.bf16.gmra.mxu0 %v6860
        %v7117 = vpop.f32.mrf.mxu0
        %v7118 = vadd.f32 %v6953, %v7117
        %v7119 = vpop.f32.mrf.mxu0
        %v7120 = vpop.f32.mrf.mxu0
        %v7121 = vadd.f32 %v6953, %v7120
        %v7122 = vpop.f32.mrf.mxu0
        %7123 = vmatprep.mubr.bf16.mxu0 %v6863
        %7124 = vmatmul.mubr.bf16.gmra.mxu0 %v6862
        %v7125 = vpop.f32.mrf.mxu0
        %v7126 = vadd.f32 %v6953, %v7125
        %v7127 = vpop.f32.mrf.mxu0
        %v7128 = vpop.f32.mrf.mxu0
        %v7129 = vadd.f32 %v6953, %v7128
        %v7130 = vpop.f32.mrf.mxu0
        %7131 = vmatprep.mubr.bf16.mxu0 %v6865
        %7132 = vmatmul.mubr.bf16.gmra.mxu0 %v6864
        %v7133 = vpop.f32.mrf.mxu0
        %v7134 = vadd.f32 %v6953, %v7133
        %v7135 = vpop.f32.mrf.mxu0
        %v7136 = vpop.f32.mrf.mxu0
        %v7137 = vadd.f32 %v6953, %v7136
        %v7138 = vpop.f32.mrf.mxu0
        %7139 = vmatprep.mubr.bf16.mxu0 %v6867
        %7140 = vmatmul.mubr.bf16.gmra.mxu0 %v6866
        %v7141 = vpop.f32.mrf.mxu0
        %v7142 = vadd.f32 %v6953, %v7141
        %v7143 = vpop.f32.mrf.mxu0
        %v7144 = vpop.f32.mrf.mxu0
        %v7145 = vadd.f32 %v6953, %v7144
        %v7146 = vpop.f32.mrf.mxu0
        %7147 = vmatprep.mubr.bf16.mxu0 %v6869
        %7148 = vmatmul.mubr.bf16.gmra.mxu0 %v6868
        %v7149 = vpop.f32.mrf.mxu0
        %v7150 = vadd.f32 %v6953, %v7149
        %v7151 = vpop.f32.mrf.mxu0
        %v7152 = vpop.f32.mrf.mxu0
        %v7153 = vadd.f32 %v6953, %v7152
        %v7154 = vpop.f32.mrf.mxu0
        %7155 = vmatprep.mubr.bf16.mxu0 %v6871
        %7156 = vmatmul.mubr.bf16.gmra.mxu0 %v6870
        %v7157 = vpop.f32.mrf.mxu0
        %v7158 = vadd.f32 %v6953, %v7157
        %v7159 = vpop.f32.mrf.mxu0
        %v7160 = vpop.f32.mrf.mxu0
        %v7161 = vadd.f32 %v6953, %v7160
        %v7162 = vpop.f32.mrf.mxu0
        %7163 = vmatprep.mubr.bf16.mxu0 %v6873
        %7164 = vmatmul.mubr.bf16.gmra.mxu0 %v6872
        %v7165 = vpop.f32.mrf.mxu0
        %v7166 = vadd.f32 %v6953, %v7165
        %v7167 = vpop.f32.mrf.mxu0
        %v7168 = vpop.f32.mrf.mxu0
        %v7169 = vadd.f32 %v6953, %v7168
        %v7170 = vpop.f32.mrf.mxu0
        %7171 = vmatprep.mubr.bf16.mxu0 %v6875
        %7172 = vmatmul.mubr.bf16.gmra.mxu0 %v6874
        %v7173 = vpop.f32.mrf.mxu0
        %v7174 = vadd.f32 %v6953, %v7173
        %v7175 = vpop.f32.mrf.mxu0
        %v7176 = vpop.f32.mrf.mxu0
        %v7177 = vadd.f32 %v6953, %v7176
        %v7178 = vpop.f32.mrf.mxu0
        %7179 = vmatprep.mubr.bf16.mxu0 %v6877
        %7180 = vmatmul.mubr.bf16.gmra.mxu0 %v6876
        %v7181 = vpop.f32.mrf.mxu0
        %v7182 = vadd.f32 %v6953, %v7181
        %v7183 = vpop.f32.mrf.mxu0
        %v7184 = vpop.f32.mrf.mxu0
        %v7185 = vadd.f32 %v6953, %v7184
        %v7186 = vpop.f32.mrf.mxu0
        %7187 = vmatprep.mubr.bf16.mxu0 %v6879
        %7188 = vmatmul.mubr.bf16.gmra.mxu0 %v6878
        %v7189 = vpop.f32.mrf.mxu0
        %v7190 = vadd.f32 %v6953, %v7189
        %v7191 = vpop.f32.mrf.mxu0
        %v7192 = vpop.f32.mrf.mxu0
        %v7193 = vadd.f32 %v6953, %v7192
        %v7194 = vpop.f32.mrf.mxu0
        %7195 = vmatprep.mubr.bf16.mxu0 %v6881
        %7196 = vmatmul.mubr.bf16.gmra.mxu0 %v6880
        %v7197 = vpop.f32.mrf.mxu0
        %v7198 = vadd.f32 %v6953, %v7197
        %v7199 = vpop.f32.mrf.mxu0
        %v7200 = vpop.f32.mrf.mxu0
        %v7201 = vadd.f32 %v6953, %v7200
        %v7202 = vpop.f32.mrf.mxu0
        %7203 = vmatprep.mubr.bf16.mxu0 %v6883
        %7204 = vmatmul.mubr.bf16.gmra.mxu0 %v6882
        %v7205 = vpop.f32.mrf.mxu0
        %v7206 = vadd.f32 %v6953, %v7205
        %v7207 = vpop.f32.mrf.mxu0
        %v7208 = vpop.f32.mrf.mxu0
        %v7209 = vadd.f32 %v6953, %v7208
        %v7210 = vpop.f32.mrf.mxu0
        %7211 = vmatprep.mubr.bf16.mxu0 %v6885
        %7212 = vmatmul.mubr.bf16.gmra.mxu0 %v6884
        %v7213 = vpop.f32.mrf.mxu0
        %v7214 = vadd.f32 %v6953, %v7213
        %v7215 = vpop.f32.mrf.mxu0
        %v7216 = vpop.f32.mrf.mxu0
        %v7217 = vadd.f32 %v6953, %v7216
        %v7218 = vpop.f32.mrf.mxu0
        %7219 = vmatprep.mubr.bf16.mxu0 %v6887
        %7220 = vmatmul.mubr.bf16.gmra.mxu0 %v6886
        %v7221 = vpop.f32.mrf.mxu0
        %v7222 = vadd.f32 %v6953, %v7221
        %v7223 = vpop.f32.mrf.mxu0
        %v7224 = vpop.f32.mrf.mxu0
        %v7225 = vadd.f32 %v6953, %v7224
        %v7226 = vpop.f32.mrf.mxu0
        %7227 = vmatprep.mubr.bf16.mxu0 %v6889
        %7228 = vmatmul.mubr.bf16.gmra.mxu0 %v6888
        %v7229 = vpop.f32.mrf.mxu0
        %v7230 = vadd.f32 %v6953, %v7229
        %v7231 = vpop.f32.mrf.mxu0
        %v7232 = vpop.f32.mrf.mxu0
        %v7233 = vadd.f32 %v6953, %v7232
        %v7234 = vpop.f32.mrf.mxu0
        %7235 = vmatprep.mubr.bf16.mxu0 %v6891
        %7236 = vmatmul.mubr.bf16.gmra.mxu0 %v6890
        %v7237 = vpop.f32.mrf.mxu0
        %v7238 = vadd.f32 %v6953, %v7237
        %v7239 = vpop.f32.mrf.mxu0
        %v7240 = vpop.f32.mrf.mxu0
        %v7241 = vadd.f32 %v6953, %v7240
        %v7242 = vpop.f32.mrf.mxu0
        %7243 = vmatprep.mubr.bf16.mxu0 %v6893
        %7244 = vmatmul.mubr.bf16.gmra.mxu0 %v6892
        %v7245 = vpop.f32.mrf.mxu0
        %v7246 = vadd.f32 %v6953, %v7245
        %v7247 = vpop.f32.mrf.mxu0
        %v7248 = vpop.f32.mrf.mxu0
        %v7249 = vadd.f32 %v6953, %v7248
        %v7250 = vpop.f32.mrf.mxu0
        %7251 = vmatprep.mubr.bf16.mxu0 %v6895
        %7252 = vmatmul.mubr.bf16.gmra.mxu0 %v6894
        %v7253 = vpop.f32.mrf.mxu0
        %v7254 = vadd.f32 %v6953, %v7253
        %v7255 = vpop.f32.mrf.mxu0
        %v7256 = vpop.f32.mrf.mxu0
        %v7257 = vadd.f32 %v6953, %v7256
        %v7258 = vpop.f32.mrf.mxu0
        %7259 = vmatprep.mubr.bf16.mxu0 %v6897
        %7260 = vmatmul.mubr.bf16.gmra.mxu0 %v6896
        %v7261 = vpop.f32.mrf.mxu0
        %v7262 = vadd.f32 %v6953, %v7261
        %v7263 = vpop.f32.mrf.mxu0
        %v7264 = vpop.f32.mrf.mxu0
        %v7265 = vadd.f32 %v6953, %v7264
        %v7266 = vpop.f32.mrf.mxu0
        %7267 = vmatprep.mubr.bf16.mxu0 %v6899
        %7268 = vmatmul.mubr.bf16.gmra.mxu0 %v6898
        %v7269 = vpop.f32.mrf.mxu0
        %v7270 = vadd.f32 %v6953, %v7269
        %v7271 = vpop.f32.mrf.mxu0
        %v7272 = vpop.f32.mrf.mxu0
        %v7273 = vadd.f32 %v6953, %v7272
        %v7274 = vpop.f32.mrf.mxu0
        %7275 = vmatprep.mubr.bf16.mxu0 %v6901
        %7276 = vmatmul.mubr.bf16.gmra.mxu0 %v6900
        %v7277 = vpop.f32.mrf.mxu0
        %v7278 = vadd.f32 %v6953, %v7277
        %v7279 = vpop.f32.mrf.mxu0
        %v7280 = vpop.f32.mrf.mxu0
        %v7281 = vadd.f32 %v6953, %v7280
        %v7282 = vpop.f32.mrf.mxu0
        %7283 = vmatprep.mubr.bf16.mxu0 %v6903
        %7284 = vmatmul.mubr.bf16.gmra.mxu0 %v6902
        %v7285 = vpop.f32.mrf.mxu0
        %v7286 = vadd.f32 %v6953, %v7285
        %v7287 = vpop.f32.mrf.mxu0
        %v7288 = vpop.f32.mrf.mxu0
        %v7289 = vadd.f32 %v6953, %v7288
        %v7290 = vpop.f32.mrf.mxu0
        %7291 = vmatprep.mubr.bf16.mxu0 %v6905
        %7292 = vmatmul.mubr.bf16.gmra.mxu0 %v6904
        %v7293 = vpop.f32.mrf.mxu0
        %v7294 = vadd.f32 %v6953, %v7293
        %v7295 = vpop.f32.mrf.mxu0
        %v7296 = vpop.f32.mrf.mxu0
        %v7297 = vadd.f32 %v6953, %v7296
        %v7298 = vpop.f32.mrf.mxu0
        %7299 = vmatprep.mubr.bf16.mxu0 %v6907
        %7300 = vmatmul.mubr.bf16.gmra.mxu0 %v6906
        %v7301 = vpop.f32.mrf.mxu0
        %v7302 = vadd.f32 %v6953, %v7301
        %v7303 = vpop.f32.mrf.mxu0
        %v7304 = vpop.f32.mrf.mxu0
        %v7305 = vadd.f32 %v6953, %v7304
        %v7306 = vpop.f32.mrf.mxu0
        %7307 = vmatprep.mubr.bf16.mxu0 %v6909
        %7308 = vmatmul.mubr.bf16.gmra.mxu0 %v6908
        %v7309 = vpop.f32.mrf.mxu0
        %v7310 = vadd.f32 %v6953, %v7309
        %v7311 = vpop.f32.mrf.mxu0
        %v7312 = vpop.f32.mrf.mxu0
        %v7313 = vadd.f32 %v6953, %v7312
        %v7314 = vpop.f32.mrf.mxu0
        %7315 = vmatprep.mubr.bf16.mxu0 %v6911
        %7316 = vmatmul.mubr.bf16.gmra.mxu0 %v6910
        %v7317 = vpop.f32.mrf.mxu0
        %v7318 = vadd.f32 %v6953, %v7317
        %v7319 = vpop.f32.mrf.mxu0
        %v7320 = vpop.f32.mrf.mxu0
        %v7321 = vadd.f32 %v6953, %v7320
        %v7322 = vpop.f32.mrf.mxu0
        %7323 = vmatprep.mubr.bf16.mxu0 %v6913
        %7324 = vmatmul.mubr.bf16.gmra.mxu0 %v6912
        %v7325 = vpop.f32.mrf.mxu0
        %v7326 = vadd.f32 %v6953, %v7325
        %v7327 = vpop.f32.mrf.mxu0
        %v7328 = vpop.f32.mrf.mxu0
        %v7329 = vadd.f32 %v6953, %v7328
        %v7330 = vpop.f32.mrf.mxu0
        %7331 = vmatprep.mubr.bf16.mxu0 %v6915
        %7332 = vmatmul.mubr.bf16.gmra.mxu0 %v6914
        %v7333 = vpop.f32.mrf.mxu0
        %v7334 = vadd.f32 %v6953, %v7333
        %v7335 = vpop.f32.mrf.mxu0
        %v7336 = vpop.f32.mrf.mxu0
        %v7337 = vadd.f32 %v6953, %v7336
        %v7338 = vpop.f32.mrf.mxu0
        %7339 = vdwg.mxu0
        %v7340 = vxor.u32 %v7086, 2147483648
        %v7341 = vxor.u32 %v7089, 2147483648
        %v7342 = vxor.u32 %v7094, 2147483648
        %v7343 = vxor.u32 %v7097, 2147483648
        %v7344 = vxor.u32 %v7102, 2147483648
        %v7345 = vxor.u32 %v7105, 2147483648
        %v7346 = vxor.u32 %v7110, 2147483648
        %v7347 = vxor.u32 %v7113, 2147483648
        %v7348 = vxor.u32 %v7118, 2147483648
        %v7349 = vxor.u32 %v7121, 2147483648
        %v7350 = vxor.u32 %v7126, 2147483648
        %v7351 = vxor.u32 %v7129, 2147483648
        %v7352 = vxor.u32 %v7134, 2147483648
        %v7353 = vxor.u32 %v7137, 2147483648
        %v7354 = vxor.u32 %v7142, 2147483648
        %v7355 = vxor.u32 %v7145, 2147483648
        %v7356 = vxor.u32 %v7150, 2147483648
        %v7357 = vxor.u32 %v7153, 2147483648
        %v7358 = vxor.u32 %v7158, 2147483648
        %v7359 = vxor.u32 %v7161, 2147483648
        %v7360 = vxor.u32 %v7166, 2147483648
        %v7361 = vxor.u32 %v7169, 2147483648
        %v7362 = vxor.u32 %v7174, 2147483648
        %v7363 = vxor.u32 %v7177, 2147483648
        %v7364 = vxor.u32 %v7182, 2147483648
        %v7365 = vxor.u32 %v7185, 2147483648
        %v7366 = vxor.u32 %v7190, 2147483648
        %v7367 = vxor.u32 %v7193, 2147483648
        %v7368 = vxor.u32 %v7198, 2147483648
        %v7369 = vxor.u32 %v7201, 2147483648
        %v7370 = vxor.u32 %v7206, 2147483648
        %v7371 = vxor.u32 %v7209, 2147483648
        %v7372 = vxor.u32 %v7214, 2147483648
        %v7373 = vxor.u32 %v7217, 2147483648
        %v7374 = vxor.u32 %v7222, 2147483648
        %v7375 = vxor.u32 %v7225, 2147483648
        %v7376 = vxor.u32 %v7230, 2147483648
        %v7377 = vxor.u32 %v7233, 2147483648
        %v7378 = vxor.u32 %v7238, 2147483648
        %v7379 = vxor.u32 %v7241, 2147483648
        %v7380 = vxor.u32 %v7246, 2147483648
        %v7381 = vxor.u32 %v7249, 2147483648
        %v7382 = vxor.u32 %v7254, 2147483648
        %v7383 = vxor.u32 %v7257, 2147483648
        %v7384 = vxor.u32 %v7262, 2147483648
        %v7385 = vxor.u32 %v7265, 2147483648
        %v7386 = vxor.u32 %v7270, 2147483648
        %v7387 = vxor.u32 %v7273, 2147483648
        %v7388 = vxor.u32 %v7278, 2147483648
        %v7389 = vxor.u32 %v7281, 2147483648
        %v7390 = vxor.u32 %v7286, 2147483648
        %v7391 = vxor.u32 %v7289, 2147483648
        %v7392 = vxor.u32 %v7294, 2147483648
        %v7393 = vxor.u32 %v7297, 2147483648
        %v7394 = vxor.u32 %v7302, 2147483648
        %v7395 = vxor.u32 %v7305, 2147483648
        %v7396 = vxor.u32 %v7310, 2147483648
        %v7397 = vxor.u32 %v7313, 2147483648
        %v7398 = vxor.u32 %v7318, 2147483648
        %v7399 = vxor.u32 %v7321, 2147483648
        %v7400 = vxor.u32 %v7326, 2147483648
        %v7401 = vxor.u32 %v7329, 2147483648
        %v7402 = vxor.u32 %v7334, 2147483648
        %v7403 = vxor.u32 %v7337, 2147483648
        %v7404 = vmul.f32 %v7340, 1.442695
        %v7405 = vpow.pop %v7404
        %v7406 = vmul.f32 %v7341, 1.442695
        %v7407 = vpow.pop %v7406
        %v7408 = vmul.f32 %v7342, 1.442695
        %v7409 = vpow.pop %v7408
        %v7410 = vmul.f32 %v7343, 1.442695
        %v7411 = vpow.pop %v7410
        %v7412 = vmul.f32 %v7344, 1.442695
        %v7413 = vpow.pop %v7412
        %v7414 = vmul.f32 %v7345, 1.442695
        %v7415 = vpow.pop %v7414
        %v7416 = vmul.f32 %v7346, 1.442695
        %v7417 = vpow.pop %v7416
        %v7418 = vmul.f32 %v7347, 1.442695
        %v7419 = vpow.pop %v7418
        %v7420 = vmul.f32 %v7348, 1.442695
        %v7421 = vpow.pop %v7420
        %v7422 = vmul.f32 %v7349, 1.442695
        %v7423 = vpow.pop %v7422
        %v7424 = vmul.f32 %v7350, 1.442695
        %v7425 = vpow.pop %v7424
        %v7426 = vmul.f32 %v7351, 1.442695
        %v7427 = vpow.pop %v7426
        %v7428 = vmul.f32 %v7352, 1.442695
        %v7429 = vpow.pop %v7428
        %v7430 = vmul.f32 %v7353, 1.442695
        %v7431 = vpow.pop %v7430
        %v7432 = vmul.f32 %v7354, 1.442695
        %v7433 = vpow.pop %v7432
        %v7434 = vmul.f32 %v7355, 1.442695
        %v7435 = vpow.pop %v7434
        %v7436 = vmul.f32 %v7356, 1.442695
        %v7437 = vpow.pop %v7436
        %v7438 = vmul.f32 %v7357, 1.442695
        %v7439 = vpow.pop %v7438
        %v7440 = vmul.f32 %v7358, 1.442695
        %v7441 = vpow.pop %v7440
        %v7442 = vmul.f32 %v7359, 1.442695
        %v7443 = vpow.pop %v7442
        %v7444 = vmul.f32 %v7360, 1.442695
        %v7445 = vpow.pop %v7444
        %v7446 = vmul.f32 %v7361, 1.442695
        %v7447 = vpow.pop %v7446
        %v7448 = vmul.f32 %v7362, 1.442695
        %v7449 = vpow.pop %v7448
        %v7450 = vmul.f32 %v7363, 1.442695
        %v7451 = vpow.pop %v7450
        %v7452 = vmul.f32 %v7364, 1.442695
        %v7453 = vpow.pop %v7452
        %v7454 = vmul.f32 %v7365, 1.442695
        %v7455 = vpow.pop %v7454
        %v7456 = vmul.f32 %v7366, 1.442695
        %v7457 = vpow.pop %v7456
        %v7458 = vmul.f32 %v7367, 1.442695
        %v7459 = vpow.pop %v7458
        %v7460 = vmul.f32 %v7368, 1.442695
        %v7461 = vpow.pop %v7460
        %v7462 = vmul.f32 %v7369, 1.442695
        %v7463 = vpow.pop %v7462
        %v7464 = vmul.f32 %v7370, 1.442695
        %v7465 = vpow.pop %v7464
        %v7466 = vmul.f32 %v7371, 1.442695
        %v7467 = vpow.pop %v7466
        %v7468 = vmul.f32 %v7372, 1.442695
        %v7469 = vpow.pop %v7468
        %v7470 = vmul.f32 %v7373, 1.442695
        %v7471 = vpow.pop %v7470
        %v7472 = vmul.f32 %v7374, 1.442695
        %v7473 = vpow.pop %v7472
        %v7474 = vmul.f32 %v7375, 1.442695
        %v7475 = vpow.pop %v7474
        %v7476 = vmul.f32 %v7376, 1.442695
        %v7477 = vpow.pop %v7476
        %v7478 = vmul.f32 %v7377, 1.442695
        %v7479 = vpow.pop %v7478
        %v7480 = vmul.f32 %v7378, 1.442695
        %v7481 = vpow.pop %v7480
        %v7482 = vmul.f32 %v7379, 1.442695
        %v7483 = vpow.pop %v7482
        %v7484 = vmul.f32 %v7380, 1.442695
        %v7485 = vpow.pop %v7484
        %v7486 = vmul.f32 %v7381, 1.442695
        %v7487 = vpow.pop %v7486
        %v7488 = vmul.f32 %v7382, 1.442695
        %v7489 = vpow.pop %v7488
        %v7490 = vmul.f32 %v7383, 1.442695
        %v7491 = vpow.pop %v7490
        %v7492 = vmul.f32 %v7384, 1.442695
        %v7493 = vpow.pop %v7492
        %v7494 = vmul.f32 %v7385, 1.442695
        %v7495 = vpow.pop %v7494
        %v7496 = vmul.f32 %v7386, 1.442695
        %v7497 = vpow.pop %v7496
        %v7498 = vmul.f32 %v7387, 1.442695
        %v7499 = vpow.pop %v7498
        %v7500 = vmul.f32 %v7388, 1.442695
        %v7501 = vpow.pop %v7500
        %v7502 = vmul.f32 %v7389, 1.442695
        %v7503 = vpow.pop %v7502
        %v7504 = vmul.f32 %v7390, 1.442695
        %v7505 = vpow.pop %v7504
        %v7506 = vmul.f32 %v7391, 1.442695
        %v7507 = vpow.pop %v7506
        %v7508 = vmul.f32 %v7392, 1.442695
        %v7509 = vpow.pop %v7508
        %v7510 = vmul.f32 %v7393, 1.442695
        %v7511 = vpow.pop %v7510
        %v7512 = vmul.f32 %v7394, 1.442695
        %v7513 = vpow.pop %v7512
        %v7514 = vmul.f32 %v7395, 1.442695
        %v7515 = vpow.pop %v7514
        %v7516 = vmul.f32 %v7396, 1.442695
        %v7517 = vpow.pop %v7516
        %v7518 = vmul.f32 %v7397, 1.442695
        %v7519 = vpow.pop %v7518
        %v7520 = vmul.f32 %v7398, 1.442695
        %v7521 = vpow.pop %v7520
        %v7522 = vmul.f32 %v7399, 1.442695
        %v7523 = vpow.pop %v7522
        %v7524 = vmul.f32 %v7400, 1.442695
        %v7525 = vpow.pop %v7524
        %v7526 = vmul.f32 %v7401, 1.442695
        %v7527 = vpow.pop %v7526
        %v7528 = vmul.f32 %v7402, 1.442695
        %v7529 = vpow.pop %v7528
        %v7530 = vmul.f32 %v7403, 1.442695
        %v7531 = vpow.pop %v7530
        %v7532 = vadd.f32 %v7405, 1.0
        %v7533 = vadd.f32 %v7407, 1.0
        %v7534 = vadd.f32 %v7409, 1.0
        %v7535 = vadd.f32 %v7411, 1.0
        %v7536 = vadd.f32 %v7413, 1.0
        %v7537 = vadd.f32 %v7415, 1.0
        %v7538 = vadd.f32 %v7417, 1.0
        %v7539 = vadd.f32 %v7419, 1.0
        %v7540 = vadd.f32 %v7421, 1.0
        %v7541 = vadd.f32 %v7423, 1.0
        %v7542 = vadd.f32 %v7425, 1.0
        %v7543 = vadd.f32 %v7427, 1.0
        %v7544 = vadd.f32 %v7429, 1.0
        %v7545 = vadd.f32 %v7431, 1.0
        %v7546 = vadd.f32 %v7433, 1.0
        %v7547 = vadd.f32 %v7435, 1.0
        %v7548 = vadd.f32 %v7437, 1.0
        %v7549 = vadd.f32 %v7439, 1.0
        %v7550 = vadd.f32 %v7441, 1.0
        %v7551 = vadd.f32 %v7443, 1.0
        %v7552 = vadd.f32 %v7445, 1.0
        %v7553 = vadd.f32 %v7447, 1.0
        %v7554 = vadd.f32 %v7449, 1.0
        %v7555 = vadd.f32 %v7451, 1.0
        %v7556 = vadd.f32 %v7453, 1.0
        %v7557 = vadd.f32 %v7455, 1.0
        %v7558 = vadd.f32 %v7457, 1.0
        %v7559 = vadd.f32 %v7459, 1.0
        %v7560 = vadd.f32 %v7461, 1.0
        %v7561 = vadd.f32 %v7463, 1.0
        %v7562 = vadd.f32 %v7465, 1.0
        %v7563 = vadd.f32 %v7467, 1.0
        %v7564 = vadd.f32 %v7469, 1.0
        %v7565 = vadd.f32 %v7471, 1.0
        %v7566 = vadd.f32 %v7473, 1.0
        %v7567 = vadd.f32 %v7475, 1.0
        %v7568 = vadd.f32 %v7477, 1.0
        %v7569 = vadd.f32 %v7479, 1.0
        %v7570 = vadd.f32 %v7481, 1.0
        %v7571 = vadd.f32 %v7483, 1.0
        %v7572 = vadd.f32 %v7485, 1.0
        %v7573 = vadd.f32 %v7487, 1.0
        %v7574 = vadd.f32 %v7489, 1.0
        %v7575 = vadd.f32 %v7491, 1.0
        %v7576 = vadd.f32 %v7493, 1.0
        %v7577 = vadd.f32 %v7495, 1.0
        %v7578 = vadd.f32 %v7497, 1.0
        %v7579 = vadd.f32 %v7499, 1.0
        %v7580 = vadd.f32 %v7501, 1.0
        %v7581 = vadd.f32 %v7503, 1.0
        %v7582 = vadd.f32 %v7505, 1.0
        %v7583 = vadd.f32 %v7507, 1.0
        %v7584 = vadd.f32 %v7509, 1.0
        %v7585 = vadd.f32 %v7511, 1.0
        %v7586 = vadd.f32 %v7513, 1.0
        %v7587 = vadd.f32 %v7515, 1.0
        %v7588 = vadd.f32 %v7517, 1.0
        %v7589 = vadd.f32 %v7519, 1.0
        %v7590 = vadd.f32 %v7521, 1.0
        %v7591 = vadd.f32 %v7523, 1.0
        %v7592 = vadd.f32 %v7525, 1.0
        %v7593 = vadd.f32 %v7527, 1.0
        %v7594 = vadd.f32 %v7529, 1.0
        %v7595 = vadd.f32 %v7531, 1.0
        %v7596 = vrcp.pop %v7532
        %v7597 = vmul.f32 1.0, %v7596
        %v7598 = vrcp.pop %v7533
        %v7599 = vmul.f32 1.0, %v7598
        %v7600 = vrcp.pop %v7534
        %v7601 = vmul.f32 1.0, %v7600
        %v7602 = vrcp.pop %v7535
        %v7603 = vmul.f32 1.0, %v7602
        %v7604 = vrcp.pop %v7536
        %v7605 = vmul.f32 1.0, %v7604
        %v7606 = vrcp.pop %v7537
        %v7607 = vmul.f32 1.0, %v7606
        %v7608 = vrcp.pop %v7538
        %v7609 = vmul.f32 1.0, %v7608
        %v7610 = vrcp.pop %v7539
        %v7611 = vmul.f32 1.0, %v7610
        %v7612 = vrcp.pop %v7540
        %v7613 = vmul.f32 1.0, %v7612
        %v7614 = vrcp.pop %v7541
        %v7615 = vmul.f32 1.0, %v7614
        %v7616 = vrcp.pop %v7542
        %v7617 = vmul.f32 1.0, %v7616
        %v7618 = vrcp.pop %v7543
        %v7619 = vmul.f32 1.0, %v7618
        %v7620 = vrcp.pop %v7544
        %v7621 = vmul.f32 1.0, %v7620
        %v7622 = vrcp.pop %v7545
        %v7623 = vmul.f32 1.0, %v7622
        %v7624 = vrcp.pop %v7546
        %v7625 = vmul.f32 1.0, %v7624
        %v7626 = vrcp.pop %v7547
        %v7627 = vmul.f32 1.0, %v7626
        %v7628 = vrcp.pop %v7548
        %v7629 = vmul.f32 1.0, %v7628
        %v7630 = vrcp.pop %v7549
        %v7631 = vmul.f32 1.0, %v7630
        %v7632 = vrcp.pop %v7550
        %v7633 = vmul.f32 1.0, %v7632
        %v7634 = vrcp.pop %v7551
        %v7635 = vmul.f32 1.0, %v7634
        %v7636 = vrcp.pop %v7552
        %v7637 = vmul.f32 1.0, %v7636
        %v7638 = vrcp.pop %v7553
        %v7639 = vmul.f32 1.0, %v7638
        %v7640 = vrcp.pop %v7554
        %v7641 = vmul.f32 1.0, %v7640
        %v7642 = vrcp.pop %v7555
        %v7643 = vmul.f32 1.0, %v7642
        %v7644 = vrcp.pop %v7556
        %v7645 = vmul.f32 1.0, %v7644
        %v7646 = vrcp.pop %v7557
        %v7647 = vmul.f32 1.0, %v7646
        %v7648 = vrcp.pop %v7558
        %v7649 = vmul.f32 1.0, %v7648
        %v7650 = vrcp.pop %v7559
        %v7651 = vmul.f32 1.0, %v7650
        %v7652 = vrcp.pop %v7560
        %v7653 = vmul.f32 1.0, %v7652
        %v7654 = vrcp.pop %v7561
        %v7655 = vmul.f32 1.0, %v7654
        %v7656 = vrcp.pop %v7562
        %v7657 = vmul.f32 1.0, %v7656
        %v7658 = vrcp.pop %v7563
        %v7659 = vmul.f32 1.0, %v7658
        %v7660 = vrcp.pop %v7564
        %v7661 = vmul.f32 1.0, %v7660
        %v7662 = vrcp.pop %v7565
        %v7663 = vmul.f32 1.0, %v7662
        %v7664 = vrcp.pop %v7566
        %v7665 = vmul.f32 1.0, %v7664
        %v7666 = vrcp.pop %v7567
        %v7667 = vmul.f32 1.0, %v7666
        %v7668 = vrcp.pop %v7568
        %v7669 = vmul.f32 1.0, %v7668
        %v7670 = vrcp.pop %v7569
        %v7671 = vmul.f32 1.0, %v7670
        %v7672 = vrcp.pop %v7570
        %v7673 = vmul.f32 1.0, %v7672
        %v7674 = vrcp.pop %v7571
        %v7675 = vmul.f32 1.0, %v7674
        %v7676 = vrcp.pop %v7572
        %v7677 = vmul.f32 1.0, %v7676
        %v7678 = vrcp.pop %v7573
        %v7679 = vmul.f32 1.0, %v7678
        %v7680 = vrcp.pop %v7574
        %v7681 = vmul.f32 1.0, %v7680
        %v7682 = vrcp.pop %v7575
        %v7683 = vmul.f32 1.0, %v7682
        %v7684 = vrcp.pop %v7576
        %v7685 = vmul.f32 1.0, %v7684
        %v7686 = vrcp.pop %v7577
        %v7687 = vmul.f32 1.0, %v7686
        %v7688 = vrcp.pop %v7578
        %v7689 = vmul.f32 1.0, %v7688
        %v7690 = vrcp.pop %v7579
        %v7691 = vmul.f32 1.0, %v7690
        %v7692 = vrcp.pop %v7580
        %v7693 = vmul.f32 1.0, %v7692
        %v7694 = vrcp.pop %v7581
        %v7695 = vmul.f32 1.0, %v7694
        %v7696 = vrcp.pop %v7582
        %v7697 = vmul.f32 1.0, %v7696
        %v7698 = vrcp.pop %v7583
        %v7699 = vmul.f32 1.0, %v7698
        %v7700 = vrcp.pop %v7584
        %v7701 = vmul.f32 1.0, %v7700
        %v7702 = vrcp.pop %v7585
        %v7703 = vmul.f32 1.0, %v7702
        %v7704 = vrcp.pop %v7586
        %v7705 = vmul.f32 1.0, %v7704
        %v7706 = vrcp.pop %v7587
        %v7707 = vmul.f32 1.0, %v7706
        %v7708 = vrcp.pop %v7588
        %v7709 = vmul.f32 1.0, %v7708
        %v7710 = vrcp.pop %v7589
        %v7711 = vmul.f32 1.0, %v7710
        %v7712 = vrcp.pop %v7590
        %v7713 = vmul.f32 1.0, %v7712
        %v7714 = vrcp.pop %v7591
        %v7715 = vmul.f32 1.0, %v7714
        %v7716 = vrcp.pop %v7592
        %v7717 = vmul.f32 1.0, %v7716
        %v7718 = vrcp.pop %v7593
        %v7719 = vmul.f32 1.0, %v7718
        %v7720 = vrcp.pop %v7594
        %v7721 = vmul.f32 1.0, %v7720
        %v7722 = vrcp.pop %v7595
        %v7723 = vmul.f32 1.0, %v7722
        %vm7724 = vcmask 23552
        %7725 = vst.msk [vmem:[%s330] sm:$0xff] %vm7724, %v7597
        %7726 = vst.msk [vmem:[%s330 + $0x8] sm:$0xff] %vm7724, %v7599
        %7727 = vst.msk [vmem:[%s330 + $0x10] sm:$0xff] %vm7724, %v7601
        %7728 = vst.msk [vmem:[%s330 + $0x18] sm:$0xff] %vm7724, %v7603
        %7729 = vst.msk [vmem:[%s330 + $0x20] sm:$0xff] %vm7724, %v7605
        %7730 = vst.msk [vmem:[%s330 + $0x28] sm:$0xff] %vm7724, %v7607
        %7731 = vst.msk [vmem:[%s330 + $0x30] sm:$0xff] %vm7724, %v7609
        %7732 = vst.msk [vmem:[%s330 + $0x38] sm:$0xff] %vm7724, %v7611
        %7733 = vst.msk [vmem:[%s330 + $0x40] sm:$0xff] %vm7724, %v7613
        %7734 = vst.msk [vmem:[%s330 + $0x48] sm:$0xff] %vm7724, %v7615
        %7735 = vst.msk [vmem:[%s330 + $0x50] sm:$0xff] %vm7724, %v7617
        %7736 = vst.msk [vmem:[%s330 + $0x58] sm:$0xff] %vm7724, %v7619
        %7737 = vst.msk [vmem:[%s330 + $0x60] sm:$0xff] %vm7724, %v7621
        %7738 = vst.msk [vmem:[%s330 + $0x68] sm:$0xff] %vm7724, %v7623
        %7739 = vst.msk [vmem:[%s330 + $0x70] sm:$0xff] %vm7724, %v7625
        %7740 = vst.msk [vmem:[%s330 + $0x78] sm:$0xff] %vm7724, %v7627
        %7741 = vst.msk [vmem:[%s330 + $0x80] sm:$0xff] %vm7724, %v7629
        %7742 = vst.msk [vmem:[%s330 + $0x88] sm:$0xff] %vm7724, %v7631
        %7743 = vst.msk [vmem:[%s330 + $0x90] sm:$0xff] %vm7724, %v7633
        %7744 = vst.msk [vmem:[%s330 + $0x98] sm:$0xff] %vm7724, %v7635
        %7745 = vst.msk [vmem:[%s330 + $0xa0] sm:$0xff] %vm7724, %v7637
        %7746 = vst.msk [vmem:[%s330 + $0xa8] sm:$0xff] %vm7724, %v7639
        %7747 = vst.msk [vmem:[%s330 + $0xb0] sm:$0xff] %vm7724, %v7641
        %7748 = vst.msk [vmem:[%s330 + $0xb8] sm:$0xff] %vm7724, %v7643
        %7749 = vst.msk [vmem:[%s330 + $0xc0] sm:$0xff] %vm7724, %v7645
        %7750 = vst.msk [vmem:[%s330 + $0xc8] sm:$0xff] %vm7724, %v7647
        %7751 = vst.msk [vmem:[%s330 + $0xd0] sm:$0xff] %vm7724, %v7649
        %7752 = vst.msk [vmem:[%s330 + $0xd8] sm:$0xff] %vm7724, %v7651
        %7753 = vst.msk [vmem:[%s330 + $0xe0] sm:$0xff] %vm7724, %v7653
        %7754 = vst.msk [vmem:[%s330 + $0xe8] sm:$0xff] %vm7724, %v7655
        %7755 = vst.msk [vmem:[%s330 + $0xf0] sm:$0xff] %vm7724, %v7657
        %7756 = vst.msk [vmem:[%s330 + $0xf8] sm:$0xff] %vm7724, %v7659
        %7757 = vst.msk [vmem:[%s330 + $0x100] sm:$0xff] %vm7724, %v7661
        %7758 = vst.msk [vmem:[%s330 + $0x108] sm:$0xff] %vm7724, %v7663
        %7759 = vst.msk [vmem:[%s330 + $0x110] sm:$0xff] %vm7724, %v7665
        %7760 = vst.msk [vmem:[%s330 + $0x118] sm:$0xff] %vm7724, %v7667
        %7761 = vst.msk [vmem:[%s330 + $0x120] sm:$0xff] %vm7724, %v7669
        %7762 = vst.msk [vmem:[%s330 + $0x128] sm:$0xff] %vm7724, %v7671
        %7763 = vst.msk [vmem:[%s330 + $0x130] sm:$0xff] %vm7724, %v7673
        %7764 = vst.msk [vmem:[%s330 + $0x138] sm:$0xff] %vm7724, %v7675
        %7765 = vst.msk [vmem:[%s330 + $0x140] sm:$0xff] %vm7724, %v7677
        %7766 = vst.msk [vmem:[%s330 + $0x148] sm:$0xff] %vm7724, %v7679
        %7767 = vst.msk [vmem:[%s330 + $0x150] sm:$0xff] %vm7724, %v7681
        %7768 = vst.msk [vmem:[%s330 + $0x158] sm:$0xff] %vm7724, %v7683
        %7769 = vst.msk [vmem:[%s330 + $0x160] sm:$0xff] %vm7724, %v7685
        %7770 = vst.msk [vmem:[%s330 + $0x168] sm:$0xff] %vm7724, %v7687
        %7771 = vst.msk [vmem:[%s330 + $0x170] sm:$0xff] %vm7724, %v7689
        %7772 = vst.msk [vmem:[%s330 + $0x178] sm:$0xff] %vm7724, %v7691
        %7773 = vst.msk [vmem:[%s330 + $0x180] sm:$0xff] %vm7724, %v7693
        %7774 = vst.msk [vmem:[%s330 + $0x188] sm:$0xff] %vm7724, %v7695
        %7775 = vst.msk [vmem:[%s330 + $0x190] sm:$0xff] %vm7724, %v7697
        %7776 = vst.msk [vmem:[%s330 + $0x198] sm:$0xff] %vm7724, %v7699
        %7777 = vst.msk [vmem:[%s330 + $0x1a0] sm:$0xff] %vm7724, %v7701
        %7778 = vst.msk [vmem:[%s330 + $0x1a8] sm:$0xff] %vm7724, %v7703
        %7779 = vst.msk [vmem:[%s330 + $0x1b0] sm:$0xff] %vm7724, %v7705
        %7780 = vst.msk [vmem:[%s330 + $0x1b8] sm:$0xff] %vm7724, %v7707
        %7781 = vst.msk [vmem:[%s330 + $0x1c0] sm:$0xff] %vm7724, %v7709
        %7782 = vst.msk [vmem:[%s330 + $0x1c8] sm:$0xff] %vm7724, %v7711
        %7783 = vst.msk [vmem:[%s330 + $0x1d0] sm:$0xff] %vm7724, %v7713
        %7784 = vst.msk [vmem:[%s330 + $0x1d8] sm:$0xff] %vm7724, %v7715
        %7785 = vst.msk [vmem:[%s330 + $0x1e0] sm:$0xff] %vm7724, %v7717
        %7786 = vst.msk [vmem:[%s330 + $0x1e8] sm:$0xff] %vm7724, %v7719
        %7787 = vst.msk [vmem:[%s330 + $0x1f0] sm:$0xff] %vm7724, %v7721
        %7788 = vst.msk [vmem:[%s330 + $0x1f8] sm:$0xff] %vm7724, %v7723
        %s7789 = smul.u32 64, %s22
        %p7790 = scmp.lt.s32.totalorder %s7789, 255
        %s7791 = scalar_select %p7790, %s7789, 255
        %s7792 = smul.addr %s7791, 8
        %s7793 = scalar_lea.vmem %s6, %s7792
        // Predicated region
        $region65: #{albedo_forward.1} parent=43 // pred_check
          %p7794 = pneg %p171
        $region66: #{albedo_forward.1} parent=43 // pred_check_branch
          %7796 = sbr.rel (%p7794) target = $region68
        $region67: #{albedo_forward.1} parent=43 // pred_region
          %s7797 = smul.u32 64, %s22
        $region68: #{albedo_forward.1} parent=43 // pred_fallthru
          _
      $region44: #{albedo_forward.1} parent=5 // pred_fallthru
        _
      %p7798 = scmp.le.s32.totalorder 2, %s17
      // Predicated region
      $region69: #{albedo_forward.1} parent=5 // pred_check
        %p7799 = pneg %p7798
      $region70: #{albedo_forward.1} parent=5 // pred_check_branch
        %7801 = sbr.rel (%p7799) target = $region72
      $region71: #{albedo_forward.1} parent=5 // pred_region
        %s7802 = ssub.s32 %s17, 2
        // Predicated region
        $region73: #{albedo_forward.1} parent=71 // pred_check
          %p7803 = pneg %p177
        $region74: #{albedo_forward.1} parent=71 // pred_check_branch
          %7805 = sbr.rel (%p7803) target = $region76
        $region75: #{albedo_forward.1} parent=71 // pred_region
          %s7806 = smul.u32 64, %s23
          %p7807 = scmp.lt.s32.totalorder %s7806, 255
          %s7808 = scalar_select %p7807, %s7806, 255
          %s7809 = smul.addr %s7808, 8
          %s7810 = scalar_lea.vmem %s6, %s7809
        $region76: #{albedo_forward.1} parent=71 // pred_fallthru
          _
      $region72: #{albedo_forward.1} parent=5 // pred_fallthru
        _
    $region6: #{albedo_forward.1} parent=1 // loop_footer
      %s21 = sadd.s32 1, %s17
    $region7: #{albedo_forward.1} parent=1 // loop_footer_branch
      %16 = sbr.rel target = $region3
    $region8: #{albedo_forward.1} parent=1 // loop_exit
      _
    %7811 = vsyncpa [#allocation3], 1
    %s7812 = scalar_lea.sflag [#allocation3], 1
    %7813 = vsyncpa %s7812, 1
    %7814 = vsyncpa [#allocation5], 1
    %7815 = vsyncpa [#allocation8], 1

</llo_original>
